<compile_context>
chip_gen: v7x
topology: tpu7x:2x2x1
jax: 0.10.0
libtpu: 0.0.40
codegen_flags: <defaults>
</compile_context>

<pallas_src>
from functools import partial

import jax
import jax.numpy as jnp
from jax.experimental import pallas as pl
from jax.experimental.pallas import tpu as pltpu


# ----------------------------------------------------------------------------- kernel

def _aspp_fused_kernel(xpad_ref, w0_ref, w3_ref, wf_ref, shift_ref, pooled_ref, o_ref,
                       *, rates, pad, th, width, cin, cout, compute_dtype):
    """One (batch, row-band) grid step of the fused ASPP forward.

    xpad_ref : (1, H+2*pad, W+2*pad, Cin) bf16  zero-padded input, resident per batch
    w0_ref   : (Cin, Cout)                      1x1 conv weight (BN scale folded in)
    w3_ref   : (3*9, Cin, Cout)                 per-(rate, tap) 3x3 weights (scale folded)
    wf_ref   : (4*Cout, Cout)                   final 1x1 conv over branches 0..3 concat
    shift_ref: (4, Cout) f32                    BN shifts for branches 0..3
    pooled_ref:(1, 1, Cout) f32                 pooled-branch contribution (per batch bias)
    o_ref    : (1, th*W, Cout) f32              output row-band
    """
    rows = th * width
    row0 = pl.program_id(1) * th          # first output row (unpadded coords) of this band

    def tap(dy_off, dx_off):
        # shifted window of the halo'd input covering this band's output pixels
        win = xpad_ref[0,
                       pl.ds(row0 + pad + dy_off, th),
                       pl.ds(pad + dx_off, width),
                       :]                                   # (th, W, Cin)
        return win.reshape(rows, cin)                       # lane dim (Cin) unchanged

    shifts = shift_ref[...]                                 # (4, Cout) f32

    def bn_relu(acc, i):
        # BN scale already folded into the weights; only shift + ReLU remain.
        return jnp.maximum(acc + shifts[i:i + 1, :], 0.0).astype(compute_dtype)

    branches = []

    # branch 0: 1x1 conv (center tap)
    acc0 = jnp.dot(tap(0, 0), w0_ref[...], preferred_element_type=jnp.float32)
    branches.append(bn_relu(acc0, 0))

    # branches 1..3: 3x3 dilated convs, taps built in-kernel (no HBM im2col)
    for ri, r in enumerate(rates):
        acc = jnp.zeros((rows, cout), jnp.float32)
        for dy in range(3):
            for dx in range(3):
                w = w3_ref[ri * 9 + dy * 3 + dx]            # (Cin, Cout)
                acc = acc + jnp.dot(tap((dy - 1) * r, (dx - 1) * r), w,
                                    preferred_element_type=jnp.float32)
        branches.append(bn_relu(acc, ri + 1))

    # Final 1x1 conv over the (virtual) channel concat of branches 0..3 as ONE
    # K=4*Cout matmul (pieces are 128-lane aligned).  The pooled branch is a constant
    # per-batch bias already projected through wf[4] in the wrapper.
    cat = jnp.concatenate(branches, axis=-1)                # (rows, 4*Cout) bf16
    y = jnp.dot(cat, wf_ref[...], preferred_element_type=jnp.float32)
    y = y + pooled_ref[0]                                   # (1, Cout) broadcast
    o_ref[0] = y.astype(o_ref.dtype)


# ----------------------------------------------------------------------------- wrapper

def _pick_row_tile(H, W):
    # biggest divisor of H whose band has <= ~1024 output rows (MXU-friendly M)
    th = 1
    for cand in range(1, H + 1):
        if H % cand == 0 and cand * W <= 1024:
            th = cand
    return th


def aspp_forward(x_nchw, params, rates=(6, 12, 18), eps=1e-5, row_tile=None,
                 compute_dtype=jnp.bfloat16):
    """Fused Pallas ASPP forward.  Input / output NCHW like the PyTorch module."""
    B, Cin, H, W = x_nchw.shape
    Cout = params["w0"].shape[-1]
    n_rates = len(rates)
    R = max(rates)                          # halo = max dilation rate
    Hp, Wp = H + 2 * R, W + 2 * R

    th = row_tile or _pick_row_tile(H, W)
    assert H % th == 0, "row tile must divide H"
    assert (th * W) % 8 == 0, "output row band must be sublane aligned"

    xh = jnp.transpose(x_nchw, (0, 2, 3, 1)).astype(jnp.float32)          # NHWC
    xpad = jnp.pad(xh, ((0, 0), (R, R), (R, R), (0, 0))).astype(compute_dtype)

    # --- fold eval-mode BatchNorm: scale goes into the conv weight columns, shift stays
    def fold(name):
        s = params[f"bn_{name}_gamma"] * jax.lax.rsqrt(params[f"bn_{name}_var"] + eps)
        return s, params[f"bn_{name}_beta"] - params[f"bn_{name}_mean"] * s

    s_b0, sh_b0 = fold("b0")
    s_r, sh_r = [], []
    for i in range(n_rates):
        s, sh = fold(f"r{i}")
        s_r.append(s)
        sh_r.append(sh)
    s_p, sh_p = fold("pool")

    w0 = (params["w0"] * s_b0[None, :]).astype(compute_dtype)             # (Cin, Cout)
    w3 = (params["w3"] * jnp.stack(s_r)[:, None, None, None, :]
          ).reshape(n_rates * 9, Cin, Cout).astype(compute_dtype)         # (27, Cin, Cout)
    wf = params["wf"][:1 + n_rates].reshape((1 + n_rates) * Cout, Cout
                                            ).astype(compute_dtype)       # (4*Cout, Cout)
    shifts = jnp.stack([sh_b0] + sh_r).astype(jnp.float32)                # (4, Cout)

    # --- pooled branch hoisted out of the kernel (constant per batch), pre-projected
    #     through its slice of the final 1x1 conv -> a (B, 1, Cout) bias.
    xp = jnp.mean(xh, axis=(1, 2))                                        # (B, Cin)
    yp = jnp.maximum(xp @ params["wp"] * s_p[None, :] + sh_p[None, :], 0.0)
    pooled_bias = (yp @ params["wf"][1 + n_rates]).reshape(B, 1, Cout).astype(jnp.float32)

    kernel = partial(_aspp_fused_kernel, rates=tuple(rates), pad=R, th=th,
                     width=W, cin=Cin, cout=Cout, compute_dtype=compute_dtype)

    out = pl.pallas_call(
        kernel,
        grid=(B, H // th),
        out_shape=jax.ShapeDtypeStruct((B, H * W, Cout), jnp.float32),
        in_specs=[
            # padded input: constant block index along the row-band axis -> DMA'd once
            # per batch and kept VMEM-resident across all row bands of that batch.
            pl.BlockSpec((1, Hp, Wp, Cin), lambda b, m: (b, 0, 0, 0)),
            pl.BlockSpec((Cin, Cout), lambda b, m: (0, 0)),               # w0
            pl.BlockSpec((n_rates * 9, Cin, Cout), lambda b, m: (0, 0, 0)),  # w3 taps
            pl.BlockSpec(((1 + n_rates) * Cout, Cout), lambda b, m: (0, 0)),  # wf
            pl.BlockSpec((1 + n_rates, Cout), lambda b, m: (0, 0)),       # BN shifts
            pl.BlockSpec((1, 1, Cout), lambda b, m: (b, 0, 0)),           # pooled bias
        ],
        out_specs=pl.BlockSpec((1, th * W, Cout), lambda b, m: (b, m, 0)),
        compiler_params=pltpu.CompilerParams(
            dimension_semantics=("parallel", "parallel"),
            vmem_limit_bytes=48 * 1024 * 1024),
    )(xpad, w0, w3, wf, shifts, pooled_bias)

    y = out.reshape(B, H, W, Cout)
    return jnp.transpose(y, (0, 3, 1, 2))                                 # back to NCHW


# ----------------------------------------------------------------------------- reference

def reference_forward(x_nchw, params, rates=(6, 12, 18), eps=1e-5):
    """Pure-JAX f32 ASPP (eval mode), gold standard for the bf16 Pallas kernel."""
    hp = jax.lax.Precision.HIGHEST
    xh = jnp.transpose(x_nchw, (0, 2, 3, 1)).astype(jnp.float32)          # NHWC
    B, H, W, Cin = xh.shape
    Cout = params["w0"].shape[-1]

    def bn_relu(y, name):
        g = params[f"bn_{name}_gamma"]
        b = params[f"bn_{name}_beta"]
        mu = params[f"bn_{name}_mean"]
        var = params[f"bn_{name}_var"]
        y = (y - mu) / jnp.sqrt(var + eps) * g + b
        return jnp.maximum(y, 0.0)

    branches = [bn_relu(jnp.einsum("bhwc,cd->bhwd", xh, params["w0"], precision=hp), "b0")]
    for i, r in enumerate(rates):
        y = jax.lax.conv_general_dilated(
            xh, params["w3"][i], window_strides=(1, 1),
            padding=[(r, r), (r, r)], rhs_dilation=(r, r),
            dimension_numbers=("NHWC", "HWIO", "NHWC"), precision=hp)
        branches.append(bn_relu(y, f"r{i}"))
    xp = jnp.mean(xh, axis=(1, 2))                                        # (B, Cin)
    yp = bn_relu(jnp.einsum("bc,cd->bd", xp, params["wp"], precision=hp), "pool")
    branches.append(jnp.broadcast_to(yp[:, None, None, :], (B, H, W, Cout)))

    cat = jnp.concatenate(branches, axis=-1)                              # (B,H,W,5*Cout)
    wf = params["wf"].reshape(5 * Cout, Cout)
    y = jnp.einsum("bhwc,cd->bhwd", cat, wf, precision=hp)
    return jnp.transpose(y, (0, 3, 1, 2))


# ----------------------------------------------------------------------------- main

if __name__ == "__main__":
    B, Cin, H, W = 2, 16, 16, 16
    Cout = 128                       # multiple of 128 -> lane-dense output stores
    rates = (6, 12, 18)

    key = jax.random.PRNGKey(0)
    keys = jax.random.split(key, 16)

    def uinit(k, shape, fan_in):
        bound = 1.0 / (fan_in ** 0.5)
        return jax.random.uniform(k, shape, jnp.float32, minval=-bound, maxval=bound)

    params = {
        # 1x1 conv, channels-last ("HWIO" squeezed): (Cin, Cout)
        "w0": uinit(keys[0], (Cin, Cout), Cin),
        # 3x3 dilated conv weights, HWIO per rate: (num_rates, 3, 3, Cin, Cout)
        "w3": uinit(keys[1], (len(rates), 3, 3, Cin, Cout), 9 * Cin),
        # pooled-branch 1x1 conv
        "wp": uinit(keys[2], (Cin, Cout), Cin),
        # final 1x1 conv over the 5*Cout concat, split per branch: (5, Cout, Cout), no bias
        "wf": uinit(keys[3], (5, Cout, Cout), 5 * Cout),
    }
    # eval-mode BatchNorm parameters per branch
    for i, name in enumerate(("b0", "r0", "r1", "r2", "pool")):
        kg, kb, km, kv = jax.random.split(keys[4 + i], 4)
        params[f"bn_{name}_gamma"] = jax.random.uniform(kg, (Cout,), jnp.float32, minval=0.5, maxval=1.5)
        params[f"bn_{name}_beta"] = jax.random.uniform(kb, (Cout,), jnp.float32, minval=-0.5, maxval=0.5)
        params[f"bn_{name}_mean"] = 0.1 * jax.random.normal(km, (Cout,), jnp.float32)
        params[f"bn_{name}_var"] = jax.random.uniform(kv, (Cout,), jnp.float32, minval=0.5, maxval=1.5)

    x = jax.random.normal(keys[15], (B, Cin, H, W), jnp.float32)

    # row_tile=8 -> grid (B, 2): exercises halo handling across row-band boundaries.
    y = aspp_forward(x, params, rates, row_tile=8)
    y = jax.block_until_ready(y)

    y_ref = reference_forward(x, params, rates)
    assert y.shape == (B, Cout, H, W)
    # bf16 MXU operands vs f32 reference -> loosened tolerance
    err = float(jnp.max(jnp.abs(y - y_ref)))
    assert jnp.allclose(y, y_ref, atol=5e-2, rtol=5e-2), f"mismatch vs reference (max abs err {err})"

    print("KERNEL_OK")
</pallas_src>

<mosaic_0001>
module attributes {stable_mosaic.version = 11 : i64} {
  func.func @_aspp_fused_kernel(%arg0: i32, %arg1: i32, %arg2: memref<1x52x52x16xbf16, #tpu.memory_space<vmem>>, %arg3: memref<16x128xbf16, #tpu.memory_space<vmem>>, %arg4: memref<27x16x128xbf16, #tpu.memory_space<vmem>>, %arg5: memref<512x128xbf16, #tpu.memory_space<vmem>>, %arg6: memref<4x128xf32, #tpu.memory_space<vmem>>, %arg7: memref<1x1x128xf32, #tpu.memory_space<vmem>>, %arg8: memref<1x128x128xf32, #tpu.memory_space<vmem>>) attributes {dimension_semantics = [#tpu.dimension_semantics<parallel>, #tpu.dimension_semantics<parallel>], iteration_bounds = array<i64: 2, 2>, scalar_prefetch = 0 : i64, scratch_operands = 0 : i64, tpu.core_type = #tpu.core_type<tc>, window_params = [{transform_indices = @transform_0, window_bounds = array<i64: 1, 52, 52, 16>}, {pipeline_mode = #tpu.pipeline_mode<synchronous>, transform_indices = @transform_1, window_bounds = array<i64: 16, 128>}, {pipeline_mode = #tpu.pipeline_mode<synchronous>, transform_indices = @transform_2, window_bounds = array<i64: 27, 16, 128>}, {pipeline_mode = #tpu.pipeline_mode<synchronous>, transform_indices = @transform_3, window_bounds = array<i64: 512, 128>}, {pipeline_mode = #tpu.pipeline_mode<synchronous>, transform_indices = @transform_4, window_bounds = array<i64: 4, 128>}, {transform_indices = @transform_5, window_bounds = array<i64: 1, 1, 128>}, {transform_indices = @transform_6, window_bounds = array<i64: 1, 128, 128>}]} {
    %c8_i32 = arith.constant 8 : i32
    %0 = arith.muli %arg1, %c8_i32 : i32
    %c0 = arith.constant 0 : index
    %c0_0 = arith.constant 0 : index
    %1 = vector.load %arg6[%c0, %c0_0] : memref<4x128xf32, #tpu.memory_space<vmem>>, vector<4x128xf32>
    %c18_i32 = arith.constant 18 : i32
    %2 = arith.addi %0, %c18_i32 : i32
    %c0_i32 = arith.constant 0 : i32
    %3 = arith.addi %2, %c0_i32 : i32
    %c0_1 = arith.constant 0 : index
    %4 = arith.index_cast %3 : i32 to index
    %c18 = arith.constant 18 : index
    %c0_2 = arith.constant 0 : index
    %5 = vector.load %arg2[%c0_1, %4, %c18, %c0_2] : memref<1x52x52x16xbf16, #tpu.memory_space<vmem>>, vector<1x8x16x16xbf16>
    %6 = vector.shape_cast %5 : vector<1x8x16x16xbf16> to vector<8x16x16xbf16>
    %7 = vector.shape_cast %6 : vector<8x16x16xbf16> to vector<128x16xbf16>
    %c0_3 = arith.constant 0 : index
    %c0_4 = arith.constant 0 : index
    %8 = vector.load %arg3[%c0_3, %c0_4] : memref<16x128xbf16, #tpu.memory_space<vmem>>, vector<16x128xbf16>
    %cst = arith.constant dense<0.000000e+00> : vector<128x128xf32>
    %9 = tpu.matmul %7, %8, %cst {dimension_numbers = #tpu.dot_dimension_numbers<[1], [0], [0], [1], [0, 0, 1, 1], [], []>} : vector<128x16xbf16>, vector<16x128xbf16>, vector<128x128xf32> -> vector<128x128xf32>
    %10 = vector.extract_strided_slice %1 {offsets = [0, 0], sizes = [1, 128], strides = [1, 1]} : vector<4x128xf32> to vector<1x128xf32>
    %11 = vector.broadcast %10 : vector<1x128xf32> to vector<128x128xf32>
    %12 = arith.addf %9, %11 : vector<128x128xf32>
    %cst_5 = arith.constant 0.000000e+00 : f32
    %13 = vector.broadcast %cst_5 : f32 to vector<128x128xf32>
    %14 = arith.maximumf %12, %13 : vector<128x128xf32>
    %15 = arith.truncf %14 : vector<128x128xf32> to vector<128x128xbf16>
    %cst_6 = arith.constant 0.000000e+00 : f32
    %16 = vector.broadcast %cst_6 : f32 to vector<128x128xf32>
    %c0_7 = arith.constant 0 : index
    %c0_8 = arith.constant 0 : index
    %c0_9 = arith.constant 0 : index
    %17 = vector.load %arg4[%c0_7, %c0_8, %c0_9] : memref<27x16x128xbf16, #tpu.memory_space<vmem>>, vector<1x16x128xbf16>
    %18 = vector.shape_cast %17 : vector<1x16x128xbf16> to vector<16x128xbf16>
    %c18_i32_10 = arith.constant 18 : i32
    %19 = arith.addi %0, %c18_i32_10 : i32
    %c-6_i32 = arith.constant -6 : i32
    %20 = arith.addi %19, %c-6_i32 : i32
    %c0_11 = arith.constant 0 : index
    %21 = arith.index_cast %20 : i32 to index
    %c12 = arith.constant 12 : index
    %c0_12 = arith.constant 0 : index
    %22 = vector.load %arg2[%c0_11, %21, %c12, %c0_12] : memref<1x52x52x16xbf16, #tpu.memory_space<vmem>>, vector<1x8x16x16xbf16>
    %23 = vector.shape_cast %22 : vector<1x8x16x16xbf16> to vector<8x16x16xbf16>
    %24 = vector.shape_cast %23 : vector<8x16x16xbf16> to vector<128x16xbf16>
    %cst_13 = arith.constant dense<0.000000e+00> : vector<128x128xf32>
    %25 = tpu.matmul %24, %18, %cst_13 {dimension_numbers = #tpu.dot_dimension_numbers<[1], [0], [0], [1], [0, 0, 1, 1], [], []>} : vector<128x16xbf16>, vector<16x128xbf16>, vector<128x128xf32> -> vector<128x128xf32>
    %26 = arith.addf %16, %25 : vector<128x128xf32>
    %c1 = arith.constant 1 : index
    %c0_14 = arith.constant 0 : index
    %c0_15 = arith.constant 0 : index
    %27 = vector.load %arg4[%c1, %c0_14, %c0_15] : memref<27x16x128xbf16, #tpu.memory_space<vmem>>, vector<1x16x128xbf16>
    %28 = vector.shape_cast %27 : vector<1x16x128xbf16> to vector<16x128xbf16>
    %c18_i32_16 = arith.constant 18 : i32
    %29 = arith.addi %0, %c18_i32_16 : i32
    %c-6_i32_17 = arith.constant -6 : i32
    %30 = arith.addi %29, %c-6_i32_17 : i32
    %c0_18 = arith.constant 0 : index
    %31 = arith.index_cast %30 : i32 to index
    %c18_19 = arith.constant 18 : index
    %c0_20 = arith.constant 0 : index
    %32 = vector.load %arg2[%c0_18, %31, %c18_19, %c0_20] : memref<1x52x52x16xbf16, #tpu.memory_space<vmem>>, vector<1x8x16x16xbf16>
    %33 = vector.shape_cast %32 : vector<1x8x16x16xbf16> to vector<8x16x16xbf16>
    %34 = vector.shape_cast %33 : vector<8x16x16xbf16> to vector<128x16xbf16>
    %cst_21 = arith.constant dense<0.000000e+00> : vector<128x128xf32>
    %35 = tpu.matmul %34, %28, %cst_21 {dimension_numbers = #tpu.dot_dimension_numbers<[1], [0], [0], [1], [0, 0, 1, 1], [], []>} : vector<128x16xbf16>, vector<16x128xbf16>, vector<128x128xf32> -> vector<128x128xf32>
    %36 = arith.addf %26, %35 : vector<128x128xf32>
    %c2 = arith.constant 2 : index
    %c0_22 = arith.constant 0 : index
    %c0_23 = arith.constant 0 : index
    %37 = vector.load %arg4[%c2, %c0_22, %c0_23] : memref<27x16x128xbf16, #tpu.memory_space<vmem>>, vector<1x16x128xbf16>
    %38 = vector.shape_cast %37 : vector<1x16x128xbf16> to vector<16x128xbf16>
    %c18_i32_24 = arith.constant 18 : i32
    %39 = arith.addi %0, %c18_i32_24 : i32
    %c-6_i32_25 = arith.constant -6 : i32
    %40 = arith.addi %39, %c-6_i32_25 : i32
    %c0_26 = arith.constant 0 : index
    %41 = arith.index_cast %40 : i32 to index
    %c24 = arith.constant 24 : index
    %c0_27 = arith.constant 0 : index
    %42 = vector.load %arg2[%c0_26, %41, %c24, %c0_27] : memref<1x52x52x16xbf16, #tpu.memory_space<vmem>>, vector<1x8x16x16xbf16>
    %43 = vector.shape_cast %42 : vector<1x8x16x16xbf16> to vector<8x16x16xbf16>
    %44 = vector.shape_cast %43 : vector<8x16x16xbf16> to vector<128x16xbf16>
    %cst_28 = arith.constant dense<0.000000e+00> : vector<128x128xf32>
    %45 = tpu.matmul %44, %38, %cst_28 {dimension_numbers = #tpu.dot_dimension_numbers<[1], [0], [0], [1], [0, 0, 1, 1], [], []>} : vector<128x16xbf16>, vector<16x128xbf16>, vector<128x128xf32> -> vector<128x128xf32>
    %46 = arith.addf %36, %45 : vector<128x128xf32>
    %c3 = arith.constant 3 : index
    %c0_29 = arith.constant 0 : index
    %c0_30 = arith.constant 0 : index
    %47 = vector.load %arg4[%c3, %c0_29, %c0_30] : memref<27x16x128xbf16, #tpu.memory_space<vmem>>, vector<1x16x128xbf16>
    %48 = vector.shape_cast %47 : vector<1x16x128xbf16> to vector<16x128xbf16>
    %c18_i32_31 = arith.constant 18 : i32
    %49 = arith.addi %0, %c18_i32_31 : i32
    %c0_i32_32 = arith.constant 0 : i32
    %50 = arith.addi %49, %c0_i32_32 : i32
    %c0_33 = arith.constant 0 : index
    %51 = arith.index_cast %50 : i32 to index
    %c12_34 = arith.constant 12 : index
    %c0_35 = arith.constant 0 : index
    %52 = vector.load %arg2[%c0_33, %51, %c12_34, %c0_35] : memref<1x52x52x16xbf16, #tpu.memory_space<vmem>>, vector<1x8x16x16xbf16>
    %53 = vector.shape_cast %52 : vector<1x8x16x16xbf16> to vector<8x16x16xbf16>
    %54 = vector.shape_cast %53 : vector<8x16x16xbf16> to vector<128x16xbf16>
    %cst_36 = arith.constant dense<0.000000e+00> : vector<128x128xf32>
    %55 = tpu.matmul %54, %48, %cst_36 {dimension_numbers = #tpu.dot_dimension_numbers<[1], [0], [0], [1], [0, 0, 1, 1], [], []>} : vector<128x16xbf16>, vector<16x128xbf16>, vector<128x128xf32> -> vector<128x128xf32>
    %56 = arith.addf %46, %55 : vector<128x128xf32>
    %c4 = arith.constant 4 : index
    %c0_37 = arith.constant 0 : index
    %c0_38 = arith.constant 0 : index
    %57 = vector.load %arg4[%c4, %c0_37, %c0_38] : memref<27x16x128xbf16, #tpu.memory_space<vmem>>, vector<1x16x128xbf16>
    %58 = vector.shape_cast %57 : vector<1x16x128xbf16> to vector<16x128xbf16>
    %c18_i32_39 = arith.constant 18 : i32
    %59 = arith.addi %0, %c18_i32_39 : i32
    %c0_i32_40 = arith.constant 0 : i32
    %60 = arith.addi %59, %c0_i32_40 : i32
    %c0_41 = arith.constant 0 : index
    %61 = arith.index_cast %60 : i32 to index
    %c18_42 = arith.constant 18 : index
    %c0_43 = arith.constant 0 : index
    %62 = vector.load %arg2[%c0_41, %61, %c18_42, %c0_43] : memref<1x52x52x16xbf16, #tpu.memory_space<vmem>>, vector<1x8x16x16xbf16>
    %63 = vector.shape_cast %62 : vector<1x8x16x16xbf16> to vector<8x16x16xbf16>
    %64 = vector.shape_cast %63 : vector<8x16x16xbf16> to vector<128x16xbf16>
    %cst_44 = arith.constant dense<0.000000e+00> : vector<128x128xf32>
    %65 = tpu.matmul %64, %58, %cst_44 {dimension_numbers = #tpu.dot_dimension_numbers<[1], [0], [0], [1], [0, 0, 1, 1], [], []>} : vector<128x16xbf16>, vector<16x128xbf16>, vector<128x128xf32> -> vector<128x128xf32>
    %66 = arith.addf %56, %65 : vector<128x128xf32>
    %c5 = arith.constant 5 : index
    %c0_45 = arith.constant 0 : index
    %c0_46 = arith.constant 0 : index
    %67 = vector.load %arg4[%c5, %c0_45, %c0_46] : memref<27x16x128xbf16, #tpu.memory_space<vmem>>, vector<1x16x128xbf16>
    %68 = vector.shape_cast %67 : vector<1x16x128xbf16> to vector<16x128xbf16>
    %c18_i32_47 = arith.constant 18 : i32
    %69 = arith.addi %0, %c18_i32_47 : i32
    %c0_i32_48 = arith.constant 0 : i32
    %70 = arith.addi %69, %c0_i32_48 : i32
    %c0_49 = arith.constant 0 : index
    %71 = arith.index_cast %70 : i32 to index
    %c24_50 = arith.constant 24 : index
    %c0_51 = arith.constant 0 : index
    %72 = vector.load %arg2[%c0_49, %71, %c24_50, %c0_51] : memref<1x52x52x16xbf16, #tpu.memory_space<vmem>>, vector<1x8x16x16xbf16>
    %73 = vector.shape_cast %72 : vector<1x8x16x16xbf16> to vector<8x16x16xbf16>
    %74 = vector.shape_cast %73 : vector<8x16x16xbf16> to vector<128x16xbf16>
    %cst_52 = arith.constant dense<0.000000e+00> : vector<128x128xf32>
    %75 = tpu.matmul %74, %68, %cst_52 {dimension_numbers = #tpu.dot_dimension_numbers<[1], [0], [0], [1], [0, 0, 1, 1], [], []>} : vector<128x16xbf16>, vector<16x128xbf16>, vector<128x128xf32> -> vector<128x128xf32>
    %76 = arith.addf %66, %75 : vector<128x128xf32>
    %c6 = arith.constant 6 : index
    %c0_53 = arith.constant 0 : index
    %c0_54 = arith.constant 0 : index
    %77 = vector.load %arg4[%c6, %c0_53, %c0_54] : memref<27x16x128xbf16, #tpu.memory_space<vmem>>, vector<1x16x128xbf16>
    %78 = vector.shape_cast %77 : vector<1x16x128xbf16> to vector<16x128xbf16>
    %c18_i32_55 = arith.constant 18 : i32
    %79 = arith.addi %0, %c18_i32_55 : i32
    %c6_i32 = arith.constant 6 : i32
    %80 = arith.addi %79, %c6_i32 : i32
    %c0_56 = arith.constant 0 : index
    %81 = arith.index_cast %80 : i32 to index
    %c12_57 = arith.constant 12 : index
    %c0_58 = arith.constant 0 : index
    %82 = vector.load %arg2[%c0_56, %81, %c12_57, %c0_58] : memref<1x52x52x16xbf16, #tpu.memory_space<vmem>>, vector<1x8x16x16xbf16>
    %83 = vector.shape_cast %82 : vector<1x8x16x16xbf16> to vector<8x16x16xbf16>
    %84 = vector.shape_cast %83 : vector<8x16x16xbf16> to vector<128x16xbf16>
    %cst_59 = arith.constant dense<0.000000e+00> : vector<128x128xf32>
    %85 = tpu.matmul %84, %78, %cst_59 {dimension_numbers = #tpu.dot_dimension_numbers<[1], [0], [0], [1], [0, 0, 1, 1], [], []>} : vector<128x16xbf16>, vector<16x128xbf16>, vector<128x128xf32> -> vector<128x128xf32>
    %86 = arith.addf %76, %85 : vector<128x128xf32>
    %c7 = arith.constant 7 : index
    %c0_60 = arith.constant 0 : index
    %c0_61 = arith.constant 0 : index
    %87 = vector.load %arg4[%c7, %c0_60, %c0_61] : memref<27x16x128xbf16, #tpu.memory_space<vmem>>, vector<1x16x128xbf16>
    %88 = vector.shape_cast %87 : vector<1x16x128xbf16> to vector<16x128xbf16>
    %c18_i32_62 = arith.constant 18 : i32
    %89 = arith.addi %0, %c18_i32_62 : i32
    %c6_i32_63 = arith.constant 6 : i32
    %90 = arith.addi %89, %c6_i32_63 : i32
    %c0_64 = arith.constant 0 : index
    %91 = arith.index_cast %90 : i32 to index
    %c18_65 = arith.constant 18 : index
    %c0_66 = arith.constant 0 : index
    %92 = vector.load %arg2[%c0_64, %91, %c18_65, %c0_66] : memref<1x52x52x16xbf16, #tpu.memory_space<vmem>>, vector<1x8x16x16xbf16>
    %93 = vector.shape_cast %92 : vector<1x8x16x16xbf16> to vector<8x16x16xbf16>
    %94 = vector.shape_cast %93 : vector<8x16x16xbf16> to vector<128x16xbf16>
    %cst_67 = arith.constant dense<0.000000e+00> : vector<128x128xf32>
    %95 = tpu.matmul %94, %88, %cst_67 {dimension_numbers = #tpu.dot_dimension_numbers<[1], [0], [0], [1], [0, 0, 1, 1], [], []>} : vector<128x16xbf16>, vector<16x128xbf16>, vector<128x128xf32> -> vector<128x128xf32>
    %96 = arith.addf %86, %95 : vector<128x128xf32>
    %c8 = arith.constant 8 : index
    %c0_68 = arith.constant 0 : index
    %c0_69 = arith.constant 0 : index
    %97 = vector.load %arg4[%c8, %c0_68, %c0_69] : memref<27x16x128xbf16, #tpu.memory_space<vmem>>, vector<1x16x128xbf16>
    %98 = vector.shape_cast %97 : vector<1x16x128xbf16> to vector<16x128xbf16>
    %c18_i32_70 = arith.constant 18 : i32
    %99 = arith.addi %0, %c18_i32_70 : i32
    %c6_i32_71 = arith.constant 6 : i32
    %100 = arith.addi %99, %c6_i32_71 : i32
    %c0_72 = arith.constant 0 : index
    %101 = arith.index_cast %100 : i32 to index
    %c24_73 = arith.constant 24 : index
    %c0_74 = arith.constant 0 : index
    %102 = vector.load %arg2[%c0_72, %101, %c24_73, %c0_74] : memref<1x52x52x16xbf16, #tpu.memory_space<vmem>>, vector<1x8x16x16xbf16>
    %103 = vector.shape_cast %102 : vector<1x8x16x16xbf16> to vector<8x16x16xbf16>
    %104 = vector.shape_cast %103 : vector<8x16x16xbf16> to vector<128x16xbf16>
    %cst_75 = arith.constant dense<0.000000e+00> : vector<128x128xf32>
    %105 = tpu.matmul %104, %98, %cst_75 {dimension_numbers = #tpu.dot_dimension_numbers<[1], [0], [0], [1], [0, 0, 1, 1], [], []>} : vector<128x16xbf16>, vector<16x128xbf16>, vector<128x128xf32> -> vector<128x128xf32>
    %106 = arith.addf %96, %105 : vector<128x128xf32>
    %107 = vector.extract_strided_slice %1 {offsets = [1, 0], sizes = [1, 128], strides = [1, 1]} : vector<4x128xf32> to vector<1x128xf32>
    %108 = vector.broadcast %107 : vector<1x128xf32> to vector<128x128xf32>
    %109 = arith.addf %106, %108 : vector<128x128xf32>
    %cst_76 = arith.constant 0.000000e+00 : f32
    %110 = vector.broadcast %cst_76 : f32 to vector<128x128xf32>
    %111 = arith.maximumf %109, %110 : vector<128x128xf32>
    %112 = arith.truncf %111 : vector<128x128xf32> to vector<128x128xbf16>
    %cst_77 = arith.constant 0.000000e+00 : f32
    %113 = vector.broadcast %cst_77 : f32 to vector<128x128xf32>
    %c9 = arith.constant 9 : index
    %c0_78 = arith.constant 0 : index
    %c0_79 = arith.constant 0 : index
    %114 = vector.load %arg4[%c9, %c0_78, %c0_79] : memref<27x16x128xbf16, #tpu.memory_space<vmem>>, vector<1x16x128xbf16>
    %115 = vector.shape_cast %114 : vector<1x16x128xbf16> to vector<16x128xbf16>
    %c18_i32_80 = arith.constant 18 : i32
    %116 = arith.addi %0, %c18_i32_80 : i32
    %c-12_i32 = arith.constant -12 : i32
    %117 = arith.addi %116, %c-12_i32 : i32
    %c0_81 = arith.constant 0 : index
    %118 = arith.index_cast %117 : i32 to index
    %c6_82 = arith.constant 6 : index
    %c0_83 = arith.constant 0 : index
    %119 = vector.load %arg2[%c0_81, %118, %c6_82, %c0_83] : memref<1x52x52x16xbf16, #tpu.memory_space<vmem>>, vector<1x8x16x16xbf16>
    %120 = vector.shape_cast %119 : vector<1x8x16x16xbf16> to vector<8x16x16xbf16>
    %121 = vector.shape_cast %120 : vector<8x16x16xbf16> to vector<128x16xbf16>
    %cst_84 = arith.constant dense<0.000000e+00> : vector<128x128xf32>
    %122 = tpu.matmul %121, %115, %cst_84 {dimension_numbers = #tpu.dot_dimension_numbers<[1], [0], [0], [1], [0, 0, 1, 1], [], []>} : vector<128x16xbf16>, vector<16x128xbf16>, vector<128x128xf32> -> vector<128x128xf32>
    %123 = arith.addf %113, %122 : vector<128x128xf32>
    %c10 = arith.constant 10 : index
    %c0_85 = arith.constant 0 : index
    %c0_86 = arith.constant 0 : index
    %124 = vector.load %arg4[%c10, %c0_85, %c0_86] : memref<27x16x128xbf16, #tpu.memory_space<vmem>>, vector<1x16x128xbf16>
    %125 = vector.shape_cast %124 : vector<1x16x128xbf16> to vector<16x128xbf16>
    %c18_i32_87 = arith.constant 18 : i32
    %126 = arith.addi %0, %c18_i32_87 : i32
    %c-12_i32_88 = arith.constant -12 : i32
    %127 = arith.addi %126, %c-12_i32_88 : i32
    %c0_89 = arith.constant 0 : index
    %128 = arith.index_cast %127 : i32 to index
    %c18_90 = arith.constant 18 : index
    %c0_91 = arith.constant 0 : index
    %129 = vector.load %arg2[%c0_89, %128, %c18_90, %c0_91] : memref<1x52x52x16xbf16, #tpu.memory_space<vmem>>, vector<1x8x16x16xbf16>
    %130 = vector.shape_cast %129 : vector<1x8x16x16xbf16> to vector<8x16x16xbf16>
    %131 = vector.shape_cast %130 : vector<8x16x16xbf16> to vector<128x16xbf16>
    %cst_92 = arith.constant dense<0.000000e+00> : vector<128x128xf32>
    %132 = tpu.matmul %131, %125, %cst_92 {dimension_numbers = #tpu.dot_dimension_numbers<[1], [0], [0], [1], [0, 0, 1, 1], [], []>} : vector<128x16xbf16>, vector<16x128xbf16>, vector<128x128xf32> -> vector<128x128xf32>
    %133 = arith.addf %123, %132 : vector<128x128xf32>
    %c11 = arith.constant 11 : index
    %c0_93 = arith.constant 0 : index
    %c0_94 = arith.constant 0 : index
    %134 = vector.load %arg4[%c11, %c0_93, %c0_94] : memref<27x16x128xbf16, #tpu.memory_space<vmem>>, vector<1x16x128xbf16>
    %135 = vector.shape_cast %134 : vector<1x16x128xbf16> to vector<16x128xbf16>
    %c18_i32_95 = arith.constant 18 : i32
    %136 = arith.addi %0, %c18_i32_95 : i32
    %c-12_i32_96 = arith.constant -12 : i32
    %137 = arith.addi %136, %c-12_i32_96 : i32
    %c0_97 = arith.constant 0 : index
    %138 = arith.index_cast %137 : i32 to index
    %c30 = arith.constant 30 : index
    %c0_98 = arith.constant 0 : index
    %139 = vector.load %arg2[%c0_97, %138, %c30, %c0_98] : memref<1x52x52x16xbf16, #tpu.memory_space<vmem>>, vector<1x8x16x16xbf16>
    %140 = vector.shape_cast %139 : vector<1x8x16x16xbf16> to vector<8x16x16xbf16>
    %141 = vector.shape_cast %140 : vector<8x16x16xbf16> to vector<128x16xbf16>
    %cst_99 = arith.constant dense<0.000000e+00> : vector<128x128xf32>
    %142 = tpu.matmul %141, %135, %cst_99 {dimension_numbers = #tpu.dot_dimension_numbers<[1], [0], [0], [1], [0, 0, 1, 1], [], []>} : vector<128x16xbf16>, vector<16x128xbf16>, vector<128x128xf32> -> vector<128x128xf32>
    %143 = arith.addf %133, %142 : vector<128x128xf32>
    %c12_100 = arith.constant 12 : index
    %c0_101 = arith.constant 0 : index
    %c0_102 = arith.constant 0 : index
    %144 = vector.load %arg4[%c12_100, %c0_101, %c0_102] : memref<27x16x128xbf16, #tpu.memory_space<vmem>>, vector<1x16x128xbf16>
    %145 = vector.shape_cast %144 : vector<1x16x128xbf16> to vector<16x128xbf16>
    %c18_i32_103 = arith.constant 18 : i32
    %146 = arith.addi %0, %c18_i32_103 : i32
    %c0_i32_104 = arith.constant 0 : i32
    %147 = arith.addi %146, %c0_i32_104 : i32
    %c0_105 = arith.constant 0 : index
    %148 = arith.index_cast %147 : i32 to index
    %c6_106 = arith.constant 6 : index
    %c0_107 = arith.constant 0 : index
    %149 = vector.load %arg2[%c0_105, %148, %c6_106, %c0_107] : memref<1x52x52x16xbf16, #tpu.memory_space<vmem>>, vector<1x8x16x16xbf16>
    %150 = vector.shape_cast %149 : vector<1x8x16x16xbf16> to vector<8x16x16xbf16>
    %151 = vector.shape_cast %150 : vector<8x16x16xbf16> to vector<128x16xbf16>
    %cst_108 = arith.constant dense<0.000000e+00> : vector<128x128xf32>
    %152 = tpu.matmul %151, %145, %cst_108 {dimension_numbers = #tpu.dot_dimension_numbers<[1], [0], [0], [1], [0, 0, 1, 1], [], []>} : vector<128x16xbf16>, vector<16x128xbf16>, vector<128x128xf32> -> vector<128x128xf32>
    %153 = arith.addf %143, %152 : vector<128x128xf32>
    %c13 = arith.constant 13 : index
    %c0_109 = arith.constant 0 : index
    %c0_110 = arith.constant 0 : index
    %154 = vector.load %arg4[%c13, %c0_109, %c0_110] : memref<27x16x128xbf16, #tpu.memory_space<vmem>>, vector<1x16x128xbf16>
    %155 = vector.shape_cast %154 : vector<1x16x128xbf16> to vector<16x128xbf16>
    %c18_i32_111 = arith.constant 18 : i32
    %156 = arith.addi %0, %c18_i32_111 : i32
    %c0_i32_112 = arith.constant 0 : i32
    %157 = arith.addi %156, %c0_i32_112 : i32
    %c0_113 = arith.constant 0 : index
    %158 = arith.index_cast %157 : i32 to index
    %c18_114 = arith.constant 18 : index
    %c0_115 = arith.constant 0 : index
    %159 = vector.load %arg2[%c0_113, %158, %c18_114, %c0_115] : memref<1x52x52x16xbf16, #tpu.memory_space<vmem>>, vector<1x8x16x16xbf16>
    %160 = vector.shape_cast %159 : vector<1x8x16x16xbf16> to vector<8x16x16xbf16>
    %161 = vector.shape_cast %160 : vector<8x16x16xbf16> to vector<128x16xbf16>
    %cst_116 = arith.constant dense<0.000000e+00> : vector<128x128xf32>
    %162 = tpu.matmul %161, %155, %cst_116 {dimension_numbers = #tpu.dot_dimension_numbers<[1], [0], [0], [1], [0, 0, 1, 1], [], []>} : vector<128x16xbf16>, vector<16x128xbf16>, vector<128x128xf32> -> vector<128x128xf32>
    %163 = arith.addf %153, %162 : vector<128x128xf32>
    %c14 = arith.constant 14 : index
    %c0_117 = arith.constant 0 : index
    %c0_118 = arith.constant 0 : index
    %164 = vector.load %arg4[%c14, %c0_117, %c0_118] : memref<27x16x128xbf16, #tpu.memory_space<vmem>>, vector<1x16x128xbf16>
    %165 = vector.shape_cast %164 : vector<1x16x128xbf16> to vector<16x128xbf16>
    %c18_i32_119 = arith.constant 18 : i32
    %166 = arith.addi %0, %c18_i32_119 : i32
    %c0_i32_120 = arith.constant 0 : i32
    %167 = arith.addi %166, %c0_i32_120 : i32
    %c0_121 = arith.constant 0 : index
    %168 = arith.index_cast %167 : i32 to index
    %c30_122 = arith.constant 30 : index
    %c0_123 = arith.constant 0 : index
    %169 = vector.load %arg2[%c0_121, %168, %c30_122, %c0_123] : memref<1x52x52x16xbf16, #tpu.memory_space<vmem>>, vector<1x8x16x16xbf16>
    %170 = vector.shape_cast %169 : vector<1x8x16x16xbf16> to vector<8x16x16xbf16>
    %171 = vector.shape_cast %170 : vector<8x16x16xbf16> to vector<128x16xbf16>
    %cst_124 = arith.constant dense<0.000000e+00> : vector<128x128xf32>
    %172 = tpu.matmul %171, %165, %cst_124 {dimension_numbers = #tpu.dot_dimension_numbers<[1], [0], [0], [1], [0, 0, 1, 1], [], []>} : vector<128x16xbf16>, vector<16x128xbf16>, vector<128x128xf32> -> vector<128x128xf32>
    %173 = arith.addf %163, %172 : vector<128x128xf32>
    %c15 = arith.constant 15 : index
    %c0_125 = arith.constant 0 : index
    %c0_126 = arith.constant 0 : index
    %174 = vector.load %arg4[%c15, %c0_125, %c0_126] : memref<27x16x128xbf16, #tpu.memory_space<vmem>>, vector<1x16x128xbf16>
    %175 = vector.shape_cast %174 : vector<1x16x128xbf16> to vector<16x128xbf16>
    %c18_i32_127 = arith.constant 18 : i32
    %176 = arith.addi %0, %c18_i32_127 : i32
    %c12_i32 = arith.constant 12 : i32
    %177 = arith.addi %176, %c12_i32 : i32
    %c0_128 = arith.constant 0 : index
    %178 = arith.index_cast %177 : i32 to index
    %c6_129 = arith.constant 6 : index
    %c0_130 = arith.constant 0 : index
    %179 = vector.load %arg2[%c0_128, %178, %c6_129, %c0_130] : memref<1x52x52x16xbf16, #tpu.memory_space<vmem>>, vector<1x8x16x16xbf16>
    %180 = vector.shape_cast %179 : vector<1x8x16x16xbf16> to vector<8x16x16xbf16>
    %181 = vector.shape_cast %180 : vector<8x16x16xbf16> to vector<128x16xbf16>
    %cst_131 = arith.constant dense<0.000000e+00> : vector<128x128xf32>
    %182 = tpu.matmul %181, %175, %cst_131 {dimension_numbers = #tpu.dot_dimension_numbers<[1], [0], [0], [1], [0, 0, 1, 1], [], []>} : vector<128x16xbf16>, vector<16x128xbf16>, vector<128x128xf32> -> vector<128x128xf32>
    %183 = arith.addf %173, %182 : vector<128x128xf32>
    %c16 = arith.constant 16 : index
    %c0_132 = arith.constant 0 : index
    %c0_133 = arith.constant 0 : index
    %184 = vector.load %arg4[%c16, %c0_132, %c0_133] : memref<27x16x128xbf16, #tpu.memory_space<vmem>>, vector<1x16x128xbf16>
    %185 = vector.shape_cast %184 : vector<1x16x128xbf16> to vector<16x128xbf16>
    %c18_i32_134 = arith.constant 18 : i32
    %186 = arith.addi %0, %c18_i32_134 : i32
    %c12_i32_135 = arith.constant 12 : i32
    %187 = arith.addi %186, %c12_i32_135 : i32
    %c0_136 = arith.constant 0 : index
    %188 = arith.index_cast %187 : i32 to index
    %c18_137 = arith.constant 18 : index
    %c0_138 = arith.constant 0 : index
    %189 = vector.load %arg2[%c0_136, %188, %c18_137, %c0_138] : memref<1x52x52x16xbf16, #tpu.memory_space<vmem>>, vector<1x8x16x16xbf16>
    %190 = vector.shape_cast %189 : vector<1x8x16x16xbf16> to vector<8x16x16xbf16>
    %191 = vector.shape_cast %190 : vector<8x16x16xbf16> to vector<128x16xbf16>
    %cst_139 = arith.constant dense<0.000000e+00> : vector<128x128xf32>
    %192 = tpu.matmul %191, %185, %cst_139 {dimension_numbers = #tpu.dot_dimension_numbers<[1], [0], [0], [1], [0, 0, 1, 1], [], []>} : vector<128x16xbf16>, vector<16x128xbf16>, vector<128x128xf32> -> vector<128x128xf32>
    %193 = arith.addf %183, %192 : vector<128x128xf32>
    %c17 = arith.constant 17 : index
    %c0_140 = arith.constant 0 : index
    %c0_141 = arith.constant 0 : index
    %194 = vector.load %arg4[%c17, %c0_140, %c0_141] : memref<27x16x128xbf16, #tpu.memory_space<vmem>>, vector<1x16x128xbf16>
    %195 = vector.shape_cast %194 : vector<1x16x128xbf16> to vector<16x128xbf16>
    %c18_i32_142 = arith.constant 18 : i32
    %196 = arith.addi %0, %c18_i32_142 : i32
    %c12_i32_143 = arith.constant 12 : i32
    %197 = arith.addi %196, %c12_i32_143 : i32
    %c0_144 = arith.constant 0 : index
    %198 = arith.index_cast %197 : i32 to index
    %c30_145 = arith.constant 30 : index
    %c0_146 = arith.constant 0 : index
    %199 = vector.load %arg2[%c0_144, %198, %c30_145, %c0_146] : memref<1x52x52x16xbf16, #tpu.memory_space<vmem>>, vector<1x8x16x16xbf16>
    %200 = vector.shape_cast %199 : vector<1x8x16x16xbf16> to vector<8x16x16xbf16>
    %201 = vector.shape_cast %200 : vector<8x16x16xbf16> to vector<128x16xbf16>
    %cst_147 = arith.constant dense<0.000000e+00> : vector<128x128xf32>
    %202 = tpu.matmul %201, %195, %cst_147 {dimension_numbers = #tpu.dot_dimension_numbers<[1], [0], [0], [1], [0, 0, 1, 1], [], []>} : vector<128x16xbf16>, vector<16x128xbf16>, vector<128x128xf32> -> vector<128x128xf32>
    %203 = arith.addf %193, %202 : vector<128x128xf32>
    %204 = vector.extract_strided_slice %1 {offsets = [2, 0], sizes = [1, 128], strides = [1, 1]} : vector<4x128xf32> to vector<1x128xf32>
    %205 = vector.broadcast %204 : vector<1x128xf32> to vector<128x128xf32>
    %206 = arith.addf %203, %205 : vector<128x128xf32>
    %cst_148 = arith.constant 0.000000e+00 : f32
    %207 = vector.broadcast %cst_148 : f32 to vector<128x128xf32>
    %208 = arith.maximumf %206, %207 : vector<128x128xf32>
    %209 = arith.truncf %208 : vector<128x128xf32> to vector<128x128xbf16>
    %cst_149 = arith.constant 0.000000e+00 : f32
    %210 = vector.broadcast %cst_149 : f32 to vector<128x128xf32>
    %c18_150 = arith.constant 18 : index
    %c0_151 = arith.constant 0 : index
    %c0_152 = arith.constant 0 : index
    %211 = vector.load %arg4[%c18_150, %c0_151, %c0_152] : memref<27x16x128xbf16, #tpu.memory_space<vmem>>, vector<1x16x128xbf16>
    %212 = vector.shape_cast %211 : vector<1x16x128xbf16> to vector<16x128xbf16>
    %c18_i32_153 = arith.constant 18 : i32
    %213 = arith.addi %0, %c18_i32_153 : i32
    %c-18_i32 = arith.constant -18 : i32
    %214 = arith.addi %213, %c-18_i32 : i32
    %c0_154 = arith.constant 0 : index
    %215 = arith.index_cast %214 : i32 to index
    %c0_155 = arith.constant 0 : index
    %c0_156 = arith.constant 0 : index
    %216 = vector.load %arg2[%c0_154, %215, %c0_155, %c0_156] : memref<1x52x52x16xbf16, #tpu.memory_space<vmem>>, vector<1x8x16x16xbf16>
    %217 = vector.shape_cast %216 : vector<1x8x16x16xbf16> to vector<8x16x16xbf16>
    %218 = vector.shape_cast %217 : vector<8x16x16xbf16> to vector<128x16xbf16>
    %cst_157 = arith.constant dense<0.000000e+00> : vector<128x128xf32>
    %219 = tpu.matmul %218, %212, %cst_157 {dimension_numbers = #tpu.dot_dimension_numbers<[1], [0], [0], [1], [0, 0, 1, 1], [], []>} : vector<128x16xbf16>, vector<16x128xbf16>, vector<128x128xf32> -> vector<128x128xf32>
    %220 = arith.addf %210, %219 : vector<128x128xf32>
    %c19 = arith.constant 19 : index
    %c0_158 = arith.constant 0 : index
    %c0_159 = arith.constant 0 : index
    %221 = vector.load %arg4[%c19, %c0_158, %c0_159] : memref<27x16x128xbf16, #tpu.memory_space<vmem>>, vector<1x16x128xbf16>
    %222 = vector.shape_cast %221 : vector<1x16x128xbf16> to vector<16x128xbf16>
    %c18_i32_160 = arith.constant 18 : i32
    %223 = arith.addi %0, %c18_i32_160 : i32
    %c-18_i32_161 = arith.constant -18 : i32
    %224 = arith.addi %223, %c-18_i32_161 : i32
    %c0_162 = arith.constant 0 : index
    %225 = arith.index_cast %224 : i32 to index
    %c18_163 = arith.constant 18 : index
    %c0_164 = arith.constant 0 : index
    %226 = vector.load %arg2[%c0_162, %225, %c18_163, %c0_164] : memref<1x52x52x16xbf16, #tpu.memory_space<vmem>>, vector<1x8x16x16xbf16>
    %227 = vector.shape_cast %226 : vector<1x8x16x16xbf16> to vector<8x16x16xbf16>
    %228 = vector.shape_cast %227 : vector<8x16x16xbf16> to vector<128x16xbf16>
    %cst_165 = arith.constant dense<0.000000e+00> : vector<128x128xf32>
    %229 = tpu.matmul %228, %222, %cst_165 {dimension_numbers = #tpu.dot_dimension_numbers<[1], [0], [0], [1], [0, 0, 1, 1], [], []>} : vector<128x16xbf16>, vector<16x128xbf16>, vector<128x128xf32> -> vector<128x128xf32>
    %230 = arith.addf %220, %229 : vector<128x128xf32>
    %c20 = arith.constant 20 : index
    %c0_166 = arith.constant 0 : index
    %c0_167 = arith.constant 0 : index
    %231 = vector.load %arg4[%c20, %c0_166, %c0_167] : memref<27x16x128xbf16, #tpu.memory_space<vmem>>, vector<1x16x128xbf16>
    %232 = vector.shape_cast %231 : vector<1x16x128xbf16> to vector<16x128xbf16>
    %c18_i32_168 = arith.constant 18 : i32
    %233 = arith.addi %0, %c18_i32_168 : i32
    %c-18_i32_169 = arith.constant -18 : i32
    %234 = arith.addi %233, %c-18_i32_169 : i32
    %c0_170 = arith.constant 0 : index
    %235 = arith.index_cast %234 : i32 to index
    %c36 = arith.constant 36 : index
    %c0_171 = arith.constant 0 : index
    %236 = vector.load %arg2[%c0_170, %235, %c36, %c0_171] : memref<1x52x52x16xbf16, #tpu.memory_space<vmem>>, vector<1x8x16x16xbf16>
    %237 = vector.shape_cast %236 : vector<1x8x16x16xbf16> to vector<8x16x16xbf16>
    %238 = vector.shape_cast %237 : vector<8x16x16xbf16> to vector<128x16xbf16>
    %cst_172 = arith.constant dense<0.000000e+00> : vector<128x128xf32>
    %239 = tpu.matmul %238, %232, %cst_172 {dimension_numbers = #tpu.dot_dimension_numbers<[1], [0], [0], [1], [0, 0, 1, 1], [], []>} : vector<128x16xbf16>, vector<16x128xbf16>, vector<128x128xf32> -> vector<128x128xf32>
    %240 = arith.addf %230, %239 : vector<128x128xf32>
    %c21 = arith.constant 21 : index
    %c0_173 = arith.constant 0 : index
    %c0_174 = arith.constant 0 : index
    %241 = vector.load %arg4[%c21, %c0_173, %c0_174] : memref<27x16x128xbf16, #tpu.memory_space<vmem>>, vector<1x16x128xbf16>
    %242 = vector.shape_cast %241 : vector<1x16x128xbf16> to vector<16x128xbf16>
    %c18_i32_175 = arith.constant 18 : i32
    %243 = arith.addi %0, %c18_i32_175 : i32
    %c0_i32_176 = arith.constant 0 : i32
    %244 = arith.addi %243, %c0_i32_176 : i32
    %c0_177 = arith.constant 0 : index
    %245 = arith.index_cast %244 : i32 to index
    %c0_178 = arith.constant 0 : index
    %c0_179 = arith.constant 0 : index
    %246 = vector.load %arg2[%c0_177, %245, %c0_178, %c0_179] : memref<1x52x52x16xbf16, #tpu.memory_space<vmem>>, vector<1x8x16x16xbf16>
    %247 = vector.shape_cast %246 : vector<1x8x16x16xbf16> to vector<8x16x16xbf16>
    %248 = vector.shape_cast %247 : vector<8x16x16xbf16> to vector<128x16xbf16>
    %cst_180 = arith.constant dense<0.000000e+00> : vector<128x128xf32>
    %249 = tpu.matmul %248, %242, %cst_180 {dimension_numbers = #tpu.dot_dimension_numbers<[1], [0], [0], [1], [0, 0, 1, 1], [], []>} : vector<128x16xbf16>, vector<16x128xbf16>, vector<128x128xf32> -> vector<128x128xf32>
    %250 = arith.addf %240, %249 : vector<128x128xf32>
    %c22 = arith.constant 22 : index
    %c0_181 = arith.constant 0 : index
    %c0_182 = arith.constant 0 : index
    %251 = vector.load %arg4[%c22, %c0_181, %c0_182] : memref<27x16x128xbf16, #tpu.memory_space<vmem>>, vector<1x16x128xbf16>
    %252 = vector.shape_cast %251 : vector<1x16x128xbf16> to vector<16x128xbf16>
    %c18_i32_183 = arith.constant 18 : i32
    %253 = arith.addi %0, %c18_i32_183 : i32
    %c0_i32_184 = arith.constant 0 : i32
    %254 = arith.addi %253, %c0_i32_184 : i32
    %c0_185 = arith.constant 0 : index
    %255 = arith.index_cast %254 : i32 to index
    %c18_186 = arith.constant 18 : index
    %c0_187 = arith.constant 0 : index
    %256 = vector.load %arg2[%c0_185, %255, %c18_186, %c0_187] : memref<1x52x52x16xbf16, #tpu.memory_space<vmem>>, vector<1x8x16x16xbf16>
    %257 = vector.shape_cast %256 : vector<1x8x16x16xbf16> to vector<8x16x16xbf16>
    %258 = vector.shape_cast %257 : vector<8x16x16xbf16> to vector<128x16xbf16>
    %cst_188 = arith.constant dense<0.000000e+00> : vector<128x128xf32>
    %259 = tpu.matmul %258, %252, %cst_188 {dimension_numbers = #tpu.dot_dimension_numbers<[1], [0], [0], [1], [0, 0, 1, 1], [], []>} : vector<128x16xbf16>, vector<16x128xbf16>, vector<128x128xf32> -> vector<128x128xf32>
    %260 = arith.addf %250, %259 : vector<128x128xf32>
    %c23 = arith.constant 23 : index
    %c0_189 = arith.constant 0 : index
    %c0_190 = arith.constant 0 : index
    %261 = vector.load %arg4[%c23, %c0_189, %c0_190] : memref<27x16x128xbf16, #tpu.memory_space<vmem>>, vector<1x16x128xbf16>
    %262 = vector.shape_cast %261 : vector<1x16x128xbf16> to vector<16x128xbf16>
    %c18_i32_191 = arith.constant 18 : i32
    %263 = arith.addi %0, %c18_i32_191 : i32
    %c0_i32_192 = arith.constant 0 : i32
    %264 = arith.addi %263, %c0_i32_192 : i32
    %c0_193 = arith.constant 0 : index
    %265 = arith.index_cast %264 : i32 to index
    %c36_194 = arith.constant 36 : index
    %c0_195 = arith.constant 0 : index
    %266 = vector.load %arg2[%c0_193, %265, %c36_194, %c0_195] : memref<1x52x52x16xbf16, #tpu.memory_space<vmem>>, vector<1x8x16x16xbf16>
    %267 = vector.shape_cast %266 : vector<1x8x16x16xbf16> to vector<8x16x16xbf16>
    %268 = vector.shape_cast %267 : vector<8x16x16xbf16> to vector<128x16xbf16>
    %cst_196 = arith.constant dense<0.000000e+00> : vector<128x128xf32>
    %269 = tpu.matmul %268, %262, %cst_196 {dimension_numbers = #tpu.dot_dimension_numbers<[1], [0], [0], [1], [0, 0, 1, 1], [], []>} : vector<128x16xbf16>, vector<16x128xbf16>, vector<128x128xf32> -> vector<128x128xf32>
    %270 = arith.addf %260, %269 : vector<128x128xf32>
    %c24_197 = arith.constant 24 : index
    %c0_198 = arith.constant 0 : index
    %c0_199 = arith.constant 0 : index
    %271 = vector.load %arg4[%c24_197, %c0_198, %c0_199] : memref<27x16x128xbf16, #tpu.memory_space<vmem>>, vector<1x16x128xbf16>
    %272 = vector.shape_cast %271 : vector<1x16x128xbf16> to vector<16x128xbf16>
    %c18_i32_200 = arith.constant 18 : i32
    %273 = arith.addi %0, %c18_i32_200 : i32
    %c18_i32_201 = arith.constant 18 : i32
    %274 = arith.addi %273, %c18_i32_201 : i32
    %c0_202 = arith.constant 0 : index
    %275 = arith.index_cast %274 : i32 to index
    %c0_203 = arith.constant 0 : index
    %c0_204 = arith.constant 0 : index
    %276 = vector.load %arg2[%c0_202, %275, %c0_203, %c0_204] : memref<1x52x52x16xbf16, #tpu.memory_space<vmem>>, vector<1x8x16x16xbf16>
    %277 = vector.shape_cast %276 : vector<1x8x16x16xbf16> to vector<8x16x16xbf16>
    %278 = vector.shape_cast %277 : vector<8x16x16xbf16> to vector<128x16xbf16>
    %cst_205 = arith.constant dense<0.000000e+00> : vector<128x128xf32>
    %279 = tpu.matmul %278, %272, %cst_205 {dimension_numbers = #tpu.dot_dimension_numbers<[1], [0], [0], [1], [0, 0, 1, 1], [], []>} : vector<128x16xbf16>, vector<16x128xbf16>, vector<128x128xf32> -> vector<128x128xf32>
    %280 = arith.addf %270, %279 : vector<128x128xf32>
    %c25 = arith.constant 25 : index
    %c0_206 = arith.constant 0 : index
    %c0_207 = arith.constant 0 : index
    %281 = vector.load %arg4[%c25, %c0_206, %c0_207] : memref<27x16x128xbf16, #tpu.memory_space<vmem>>, vector<1x16x128xbf16>
    %282 = vector.shape_cast %281 : vector<1x16x128xbf16> to vector<16x128xbf16>
    %c18_i32_208 = arith.constant 18 : i32
    %283 = arith.addi %0, %c18_i32_208 : i32
    %c18_i32_209 = arith.constant 18 : i32
    %284 = arith.addi %283, %c18_i32_209 : i32
    %c0_210 = arith.constant 0 : index
    %285 = arith.index_cast %284 : i32 to index
    %c18_211 = arith.constant 18 : index
    %c0_212 = arith.constant 0 : index
    %286 = vector.load %arg2[%c0_210, %285, %c18_211, %c0_212] : memref<1x52x52x16xbf16, #tpu.memory_space<vmem>>, vector<1x8x16x16xbf16>
    %287 = vector.shape_cast %286 : vector<1x8x16x16xbf16> to vector<8x16x16xbf16>
    %288 = vector.shape_cast %287 : vector<8x16x16xbf16> to vector<128x16xbf16>
    %cst_213 = arith.constant dense<0.000000e+00> : vector<128x128xf32>
    %289 = tpu.matmul %288, %282, %cst_213 {dimension_numbers = #tpu.dot_dimension_numbers<[1], [0], [0], [1], [0, 0, 1, 1], [], []>} : vector<128x16xbf16>, vector<16x128xbf16>, vector<128x128xf32> -> vector<128x128xf32>
    %290 = arith.addf %280, %289 : vector<128x128xf32>
    %c26 = arith.constant 26 : index
    %c0_214 = arith.constant 0 : index
    %c0_215 = arith.constant 0 : index
    %291 = vector.load %arg4[%c26, %c0_214, %c0_215] : memref<27x16x128xbf16, #tpu.memory_space<vmem>>, vector<1x16x128xbf16>
    %292 = vector.shape_cast %291 : vector<1x16x128xbf16> to vector<16x128xbf16>
    %c18_i32_216 = arith.constant 18 : i32
    %293 = arith.addi %0, %c18_i32_216 : i32
    %c18_i32_217 = arith.constant 18 : i32
    %294 = arith.addi %293, %c18_i32_217 : i32
    %c0_218 = arith.constant 0 : index
    %295 = arith.index_cast %294 : i32 to index
    %c36_219 = arith.constant 36 : index
    %c0_220 = arith.constant 0 : index
    %296 = vector.load %arg2[%c0_218, %295, %c36_219, %c0_220] : memref<1x52x52x16xbf16, #tpu.memory_space<vmem>>, vector<1x8x16x16xbf16>
    %297 = vector.shape_cast %296 : vector<1x8x16x16xbf16> to vector<8x16x16xbf16>
    %298 = vector.shape_cast %297 : vector<8x16x16xbf16> to vector<128x16xbf16>
    %cst_221 = arith.constant dense<0.000000e+00> : vector<128x128xf32>
    %299 = tpu.matmul %298, %292, %cst_221 {dimension_numbers = #tpu.dot_dimension_numbers<[1], [0], [0], [1], [0, 0, 1, 1], [], []>} : vector<128x16xbf16>, vector<16x128xbf16>, vector<128x128xf32> -> vector<128x128xf32>
    %300 = arith.addf %290, %299 : vector<128x128xf32>
    %301 = vector.extract_strided_slice %1 {offsets = [3, 0], sizes = [1, 128], strides = [1, 1]} : vector<4x128xf32> to vector<1x128xf32>
    %302 = vector.broadcast %301 : vector<1x128xf32> to vector<128x128xf32>
    %303 = arith.addf %300, %302 : vector<128x128xf32>
    %cst_222 = arith.constant 0.000000e+00 : f32
    %304 = vector.broadcast %cst_222 : f32 to vector<128x128xf32>
    %305 = arith.maximumf %303, %304 : vector<128x128xf32>
    %306 = arith.truncf %305 : vector<128x128xf32> to vector<128x128xbf16>
    %307 = tpu.concatenate %15, %112, %209, %306 in 1 : vector<128x128xbf16>, vector<128x128xbf16>, vector<128x128xbf16>, vector<128x128xbf16> -> vector<128x512xbf16>
    %c0_223 = arith.constant 0 : index
    %c0_224 = arith.constant 0 : index
    %308 = vector.load %arg5[%c0_223, %c0_224] : memref<512x128xbf16, #tpu.memory_space<vmem>>, vector<512x128xbf16>
    %cst_225 = arith.constant dense<0.000000e+00> : vector<128x128xf32>
    %309 = tpu.matmul %307, %308, %cst_225 {dimension_numbers = #tpu.dot_dimension_numbers<[1], [0], [0], [1], [0, 0, 1, 1], [], []>} : vector<128x512xbf16>, vector<512x128xbf16>, vector<128x128xf32> -> vector<128x128xf32>
    %c0_226 = arith.constant 0 : index
    %c0_227 = arith.constant 0 : index
    %c0_228 = arith.constant 0 : index
    %310 = vector.load %arg7[%c0_226, %c0_227, %c0_228] : memref<1x1x128xf32, #tpu.memory_space<vmem>>, vector<1x1x128xf32>
    %311 = vector.shape_cast %310 : vector<1x1x128xf32> to vector<1x128xf32>
    %312 = vector.broadcast %311 : vector<1x128xf32> to vector<128x128xf32>
    %313 = arith.addf %309, %312 : vector<128x128xf32>
    %c0_229 = arith.constant 0 : index
    %c0_230 = arith.constant 0 : index
    %c0_231 = arith.constant 0 : index
    %314 = vector.load %arg8[%c0_229, %c0_230, %c0_231] : memref<1x128x128xf32, #tpu.memory_space<vmem>>, vector<1x128x128xf32>
    %315 = vector.shape_cast %314 : vector<1x128x128xf32> to vector<128x128xf32>
    %316 = vector.shape_cast %313 : vector<128x128xf32> to vector<1x128x128xf32>
    tpu.vector_store %arg8[%c0_229, %c0_230, %c0_231], %316 {strides = array<i32>} : memref<1x128x128xf32, #tpu.memory_space<vmem>>, vector<1x128x128xf32>,
    return
  }
  func.func @transform_0(%arg0: i32, %arg1: i32) -> (i32, i32, i32, i32) {
    %c0_i32 = arith.constant 0 : i32
    %c0_i32_0 = arith.constant 0 : i32
    %c0_i32_1 = arith.constant 0 : i32
    %c0_i32_2 = arith.constant 0 : i32
    return %arg0, %c0_i32, %c0_i32_0, %c0_i32_1 : i32, i32, i32, i32
  }
  func.func @transform_1(%arg0: i32, %arg1: i32) -> (i32, i32) {
    %c0_i32 = arith.constant 0 : i32
    %c0_i32_0 = arith.constant 0 : i32
    %c0_i32_1 = arith.constant 0 : i32
    return %c0_i32, %c0_i32_0 : i32, i32
  }
  func.func @transform_2(%arg0: i32, %arg1: i32) -> (i32, i32, i32) {
    %c0_i32 = arith.constant 0 : i32
    %c0_i32_0 = arith.constant 0 : i32
    %c0_i32_1 = arith.constant 0 : i32
    %c0_i32_2 = arith.constant 0 : i32
    return %c0_i32, %c0_i32_0, %c0_i32_1 : i32, i32, i32
  }
  func.func @transform_3(%arg0: i32, %arg1: i32) -> (i32, i32) {
    %c0_i32 = arith.constant 0 : i32
    %c0_i32_0 = arith.constant 0 : i32
    %c0_i32_1 = arith.constant 0 : i32
    return %c0_i32, %c0_i32_0 : i32, i32
  }
  func.func @transform_4(%arg0: i32, %arg1: i32) -> (i32, i32) {
    %c0_i32 = arith.constant 0 : i32
    %c0_i32_0 = arith.constant 0 : i32
    %c0_i32_1 = arith.constant 0 : i32
    return %c0_i32, %c0_i32_0 : i32, i32
  }
  func.func @transform_5(%arg0: i32, %arg1: i32) -> (i32, i32, i32) {
    %c0_i32 = arith.constant 0 : i32
    %c0_i32_0 = arith.constant 0 : i32
    %c0_i32_1 = arith.constant 0 : i32
    return %arg0, %c0_i32, %c0_i32_0 : i32, i32, i32
  }
  func.func @transform_6(%arg0: i32, %arg1: i32) -> (i32, i32, i32) {
    %c0_i32 = arith.constant 0 : i32
    %c0_i32_0 = arith.constant 0 : i32
    return %arg0, %arg1, %c0_i32 : i32, i32, i32
  }
}

</mosaic_0001>

<llo_original>
// kernel: tpu_custom_call.1
$region0: #{tpu_custom_call.1}
  #allocation0 [shape = 'u32[]', space=smem, size = 0x4, offset = 0x4, fixed_abs, tag = 'smem constant byte address 0x4 - core index']
  #allocation1 [shape = 'u32[144,128]{1,0:T(1,128)}', space=vmem, size = 0x12000, scoped, tag = 'internal scratch']
  %s0 = inlined_call_operand.vmem [shape: bf16[2,52,52,16], index: 0, kind: input, shape index: {}]
  %s1 = inlined_call_operand.vmem [shape: bf16[16,128], index: 1, kind: input, shape index: {}]
  %s2 = inlined_call_operand.vmem [shape: bf16[27,16,128], index: 2, kind: input, shape index: {}]
  %s3 = inlined_call_operand.vmem [shape: bf16[512,128], index: 3, kind: input, shape index: {}]
  %s4 = inlined_call_operand.vmem [shape: f32[4,128], index: 4, kind: input, shape index: {}]
  %s5 = inlined_call_operand.vmem [shape: f32[2,1,128], index: 5, kind: input, shape index: {}]
  %s6 = inlined_call_operand.hbm [shape: f32[2,256,128], index: 6, kind: output, shape index: {}]
  %s7 = sld [smem:[#allocation0]]
  $region57: #{tpu_custom_call.1} parent=0
    _
  %s9 = ssub.s32 1, %s7
  %s10 = scalar_select 0, %s9, %s7
  $region1: #{tpu_custom_call.1} parent=0
    #allocation2 [shape = 'u8[131072]{0}', space=vmem, size = 0x20000, scoped, tag = 'output window, operand 0']
    #allocation3 [shape = 's32[2]{0}', space=sflag, size = 0x8, scoped, tag = 'scoped memory for tpu_custom_call.1']
    %11 = vsyncpa [#allocation3], 0
    %s12 = scalar_lea.sflag [#allocation3], 1
    %13 = vsyncpa %s12, 0
    loop: start=0, step=1, limit=6
    $region2: #{tpu_custom_call.1} parent=1 // loop_pre_header
      _
    $region3: #{tpu_custom_call.1} parent=1 // loop_header
      %s15 = sphi 0, %s19
      %p16 = scmp.ge.s32.totalorder %s15, 6
      %s22 = sphi 0, %s34
      %s23 = sphi 0, %s30
      %s24 = sphi 0, %s22
      %s25 = sphi 0, %s23
      %s26 = sphi 0, %s24
      %s27 = sphi 0, %s25
      %s37 = sphi 0, %s39
      %s40 = sphi 0, %s37
      %s41 = sphi 0, %s40
      %s57 = sphi 0, %s41
      %s61 = sphi 0, %s61
      %s63 = sphi 0, %s61
      %s64 = sphi 0, %s63
      %s78 = sphi 0, %s64
      %s82 = sphi 0, %s82
      %s84 = sphi 0, %s82
      %s85 = sphi 0, %s84
      %s99 = sphi 0, %s85
      %s103 = sphi 0, %s103
      %s105 = sphi 0, %s103
      %s106 = sphi 0, %s105
      %s120 = sphi 0, %s106
      %s124 = sphi 0, %s124
      %s126 = sphi 0, %s124
      %s127 = sphi 0, %s126
      %s141 = sphi 0, %s127
      %s147 = sphi 0, %s149
      %s150 = sphi 0, %s147
      %s151 = sphi 0, %s150
      %s167 = sphi 0, %s151
      %s175 = sphi 0, %s177
      %s178 = sphi 0, %s175
      %s179 = sphi 0, %s178
      %s195 = sphi 0, %s179
    $region4: #{tpu_custom_call.1} parent=1 // loop_header_branch
      %18 = sbr.rel (%p16) target = $region8
    $region5: #{tpu_custom_call.1} parent=1 // loop_body
      %s20 = ssub.s32 %s15, 1
      %s21 = ssub.s32 %s15, 2
      %s28 = sadd.s32 1, %s23
      %p29 = scmp.ge.s32.totalorder %s28, 2
      %s30 = scalar_select %p29, 0, %s28
      %s31 = sadd.s32 1, %s22
      %s32 = scalar_select %p29, %s31, %s22
      %p33 = scmp.ge.s32.totalorder %s32, 2
      %s34 = scalar_select %p33, 0, %s32
      %s35 = ssub.s32 %s22, %s34
      %p36 = scmp.eq.s32.totalorder %s35, 0
      %s38 = sadd.s32 %s37, 1
      %s39 = scalar_select %p36, %s37, %s38
      %p42 = pneg %p36
      %p43 = scmp.eq.s32.totalorder %s15, 3
      %p44 = por %p42, %p43
      %p45 = scmp.ne.s32.totalorder %s37, %s40
      %p46 = scmp.eq.s32.totalorder %s15, 0
      %p47 = por %p45, %p46
      %p48 = scmp.ne.s32.totalorder %s37, %s40
      %p49 = scmp.eq.s32.totalorder %s20, 3
      %p50 = por %p48, %p49
      %p51 = scmp.ne.s32.totalorder %s40, %s41
      %p52 = scmp.eq.s32.totalorder %s20, 0
      %p53 = por %p51, %p52
      %p54 = scmp.ne.s32.totalorder %s40, %s41
      %p55 = scmp.eq.s32.totalorder %s21, 3
      %p56 = por %p54, %p55
      %p58 = scmp.ne.s32.totalorder %s41, %s57
      %p59 = scmp.eq.s32.totalorder %s21, 0
      %p60 = por %p58, %p59
      %s62 = sadd.s32 %s61, 1
      %p65 = scmp.eq.s32.totalorder %s15, 3
      %p66 = scmp.ne.s32.totalorder %s61, %s63
      %p67 = scmp.eq.s32.totalorder %s15, 0
      %p68 = por %p66, %p67
      %p69 = scmp.ne.s32.totalorder %s61, %s63
      %p70 = scmp.eq.s32.totalorder %s20, 3
      %p71 = por %p69, %p70
      %p72 = scmp.ne.s32.totalorder %s63, %s64
      %p73 = scmp.eq.s32.totalorder %s20, 0
      %p74 = por %p72, %p73
      %p75 = scmp.ne.s32.totalorder %s63, %s64
      %p76 = scmp.eq.s32.totalorder %s21, 3
      %p77 = por %p75, %p76
      %p79 = scmp.ne.s32.totalorder %s64, %s78
      %p80 = scmp.eq.s32.totalorder %s21, 0
      %p81 = por %p79, %p80
      %s83 = sadd.s32 %s82, 1
      %p86 = scmp.eq.s32.totalorder %s15, 3
      %p87 = scmp.ne.s32.totalorder %s82, %s84
      %p88 = scmp.eq.s32.totalorder %s15, 0
      %p89 = por %p87, %p88
      %p90 = scmp.ne.s32.totalorder %s82, %s84
      %p91 = scmp.eq.s32.totalorder %s20, 3
      %p92 = por %p90, %p91
      %p93 = scmp.ne.s32.totalorder %s84, %s85
      %p94 = scmp.eq.s32.totalorder %s20, 0
      %p95 = por %p93, %p94
      %p96 = scmp.ne.s32.totalorder %s84, %s85
      %p97 = scmp.eq.s32.totalorder %s21, 3
      %p98 = por %p96, %p97
      %p100 = scmp.ne.s32.totalorder %s85, %s99
      %p101 = scmp.eq.s32.totalorder %s21, 0
      %p102 = por %p100, %p101
      %s104 = sadd.s32 %s103, 1
      %p107 = scmp.eq.s32.totalorder %s15, 3
      %p108 = scmp.ne.s32.totalorder %s103, %s105
      %p109 = scmp.eq.s32.totalorder %s15, 0
      %p110 = por %p108, %p109
      %p111 = scmp.ne.s32.totalorder %s103, %s105
      %p112 = scmp.eq.s32.totalorder %s20, 3
      %p113 = por %p111, %p112
      %p114 = scmp.ne.s32.totalorder %s105, %s106
      %p115 = scmp.eq.s32.totalorder %s20, 0
      %p116 = por %p114, %p115
      %p117 = scmp.ne.s32.totalorder %s105, %s106
      %p118 = scmp.eq.s32.totalorder %s21, 3
      %p119 = por %p117, %p118
      %p121 = scmp.ne.s32.totalorder %s106, %s120
      %p122 = scmp.eq.s32.totalorder %s21, 0
      %p123 = por %p121, %p122
      %s125 = sadd.s32 %s124, 1
      %p128 = scmp.eq.s32.totalorder %s15, 3
      %p129 = scmp.ne.s32.totalorder %s124, %s126
      %p130 = scmp.eq.s32.totalorder %s15, 0
      %p131 = por %p129, %p130
      %p132 = scmp.ne.s32.totalorder %s124, %s126
      %p133 = scmp.eq.s32.totalorder %s20, 3
      %p134 = por %p132, %p133
      %p135 = scmp.ne.s32.totalorder %s126, %s127
      %p136 = scmp.eq.s32.totalorder %s20, 0
      %p137 = por %p135, %p136
      %p138 = scmp.ne.s32.totalorder %s126, %s127
      %p139 = scmp.eq.s32.totalorder %s21, 3
      %p140 = por %p138, %p139
      %p142 = scmp.ne.s32.totalorder %s127, %s141
      %p143 = scmp.eq.s32.totalorder %s21, 0
      %p144 = por %p142, %p143
      %s145 = ssub.s32 %s22, %s34
      %p146 = scmp.eq.s32.totalorder %s145, 0
      %s148 = sadd.s32 %s147, 1
      %s149 = scalar_select %p146, %s147, %s148
      %p152 = pneg %p146
      %p153 = scmp.eq.s32.totalorder %s15, 3
      %p154 = por %p152, %p153
      %p155 = scmp.ne.s32.totalorder %s147, %s150
      %p156 = scmp.eq.s32.totalorder %s15, 0
      %p157 = por %p155, %p156
      %p158 = scmp.ne.s32.totalorder %s147, %s150
      %p159 = scmp.eq.s32.totalorder %s20, 3
      %p160 = por %p158, %p159
      %p161 = scmp.ne.s32.totalorder %s150, %s151
      %p162 = scmp.eq.s32.totalorder %s20, 0
      %p163 = por %p161, %p162
      %p164 = scmp.ne.s32.totalorder %s150, %s151
      %p165 = scmp.eq.s32.totalorder %s21, 3
      %p166 = por %p164, %p165
      %p168 = scmp.ne.s32.totalorder %s151, %s167
      %p169 = scmp.eq.s32.totalorder %s21, 0
      %p170 = por %p168, %p169
      %s171 = ssub.s32 %s22, %s34
      %s172 = ssub.s32 %s23, %s30
      %s173 = sor.u32 %s171, %s172
      %p174 = scmp.eq.s32.totalorder %s173, 0
      %s176 = sadd.s32 %s175, 1
      %s177 = scalar_select %p174, %s175, %s176
      %p180 = pneg %p174
      %p181 = scmp.eq.s32.totalorder %s15, 3
      %p182 = por %p180, %p181
      %p183 = scmp.ne.s32.totalorder %s175, %s178
      %p184 = scmp.eq.s32.totalorder %s15, 0
      %p185 = por %p183, %p184
      %p186 = scmp.ne.s32.totalorder %s175, %s178
      %p187 = scmp.eq.s32.totalorder %s20, 3
      %p188 = por %p186, %p187
      %p189 = scmp.ne.s32.totalorder %s178, %s179
      %p190 = scmp.eq.s32.totalorder %s20, 0
      %p191 = por %p189, %p190
      %p192 = scmp.ne.s32.totalorder %s178, %s179
      %p193 = scmp.eq.s32.totalorder %s21, 3
      %p194 = por %p192, %p193
      %p196 = scmp.ne.s32.totalorder %s179, %s195
      %p197 = scmp.eq.s32.totalorder %s21, 0
      %p198 = por %p196, %p197
      %p199 = scmp.le.s32.totalorder 1, %s15
      %p200 = scmp.lt.s32.totalorder %s15, 5
      %p201 = pnand %p199, %p200
      %p202 = pneg %p201
      // Predicated region
      $region9: #{tpu_custom_call.1} parent=5 // pred_check
        _
      $region10: #{tpu_custom_call.1} parent=5 // pred_check_branch
        %204 = sbr.rel (%p201) target = $region12
      $region11: #{tpu_custom_call.1} parent=5 // pred_region
        %s205 = ssub.s32 %s15, 1
        // Predicated region
        $region13: #{tpu_custom_call.1} parent=11 // pred_check
          %p206 = pneg %p74
        $region14: #{tpu_custom_call.1} parent=11 // pred_check_branch
          %208 = sbr.rel (%p206) target = $region16
        $region15: #{tpu_custom_call.1} parent=11 // pred_region
          _
        $region16: #{tpu_custom_call.1} parent=11 // pred_fallthru
          _
        // Predicated region
        $region17: #{tpu_custom_call.1} parent=11 // pred_check
          %p209 = pneg %p95
        $region18: #{tpu_custom_call.1} parent=11 // pred_check_branch
          %211 = sbr.rel (%p209) target = $region20
        $region19: #{tpu_custom_call.1} parent=11 // pred_region
          _
        $region20: #{tpu_custom_call.1} parent=11 // pred_fallthru
          _
        // Predicated region
        $region21: #{tpu_custom_call.1} parent=11 // pred_check
          %p212 = pneg %p116
        $region22: #{tpu_custom_call.1} parent=11 // pred_check_branch
          %214 = sbr.rel (%p212) target = $region24
        $region23: #{tpu_custom_call.1} parent=11 // pred_region
          _
        $region24: #{tpu_custom_call.1} parent=11 // pred_fallthru
          _
        // Predicated region
        $region25: #{tpu_custom_call.1} parent=11 // pred_check
          %p215 = pneg %p137
        $region26: #{tpu_custom_call.1} parent=11 // pred_check_branch
          %217 = sbr.rel (%p215) target = $region28
        $region27: #{tpu_custom_call.1} parent=11 // pred_region
          _
        $region28: #{tpu_custom_call.1} parent=11 // pred_fallthru
          _
      $region12: #{tpu_custom_call.1} parent=5 // pred_fallthru
        _
      %p218 = scmp.lt.s32.totalorder %s15, 4
      // Predicated region
      $region29: #{tpu_custom_call.1} parent=5 // pred_check
        %p219 = pneg %p218
      $region30: #{tpu_custom_call.1} parent=5 // pred_check_branch
        %221 = sbr.rel (%p219) target = $region32
      $region31: #{tpu_custom_call.1} parent=5 // pred_region
        // Predicated region
        $region33: #{tpu_custom_call.1} parent=31 // pred_check
          %p222 = pneg %p47
        $region34: #{tpu_custom_call.1} parent=31 // pred_check_branch
          %224 = sbr.rel (%p222) target = $region36
        $region35: #{tpu_custom_call.1} parent=31 // pred_region
          %p225 = scmp.lt.s32.totalorder %s22, 1
          %s226 = scalar_select %p225, %s22, 1
          %s227 = smul.addr %s226, 364
          %s228 = smul.addr %s227, 4
          %s229 = scalar_lea.vmem %s0, %s228
        $region36: #{tpu_custom_call.1} parent=31 // pred_fallthru
          _
        // Predicated region
        $region37: #{tpu_custom_call.1} parent=31 // pred_check
          %p230 = pneg %p157
        $region38: #{tpu_custom_call.1} parent=31 // pred_check_branch
          %232 = sbr.rel (%p230) target = $region40
        $region39: #{tpu_custom_call.1} parent=31 // pred_region
          %p233 = scmp.lt.s32.totalorder %s22, 1
          %s234 = scalar_select %p233, %s22, 1
          %s235 = scalar_lea.vmem %s5, %s234
        $region40: #{tpu_custom_call.1} parent=31 // pred_fallthru
          _
      $region32: #{tpu_custom_call.1} parent=5 // pred_fallthru
        _
      %p236 = scmp.le.s32.totalorder 1, %s15
      %p237 = scmp.lt.s32.totalorder %s15, 5
      %p238 = pnand %p236, %p237
      %p239 = pneg %p238
      // Predicated region
      $region41: #{tpu_custom_call.1} parent=5 // pred_check
        _
      $region42: #{tpu_custom_call.1} parent=5 // pred_check_branch
        %241 = sbr.rel (%p238) target = $region44
      $region43: #{tpu_custom_call.1} parent=5 // pred_region
        %s242 = ssub.s32 %s15, 1
        %p243 = scmp.lt.s32.totalorder %s24, 1
        %s244 = scalar_select %p243, %s24, 1
        %s245 = smul.addr %s244, 364
        %s246 = smul.addr %s245, 4
        %s247 = scalar_lea.vmem %s0, %s246
        %p248 = pneg %p53
        %p249 = pneg %p50
        %p250 = pneg %p74
        %p251 = pneg %p71
        %p252 = pneg %p95
        %p253 = pneg %p92
        %p254 = pneg %p116
        %p255 = pneg %p113
        %p256 = pneg %p137
        %p257 = pneg %p134
        %p258 = scmp.lt.s32.totalorder %s24, 1
        %s259 = scalar_select %p258, %s24, 1
        %s260 = scalar_lea.vmem %s5, %s259
        %p261 = pneg %p163
        %p262 = pneg %p160
        %p263 = pneg %p191
        %p264 = pneg %p188
        %s265 = sand.u32 %s178, 1
        %s266 = scalar_lea.sflag [#allocation3], %s265
        %s267 = sand.u32 %s178, 1
        %s268 = smul.addr %s267, 128
        %s269 = scalar_lea.vmem [#allocation2], %s268
        %p270 = scmp.lt.s32.totalorder %s24, 1
        %s271 = scalar_select %p270, %s24, 1
        %s272 = smul.addr %s271, 364
        %s273 = smul.addr %s272, 4
        %s274 = scalar_lea.vmem %s0, %s273
        %p275 = scmp.lt.s32.totalorder %s24, 1
        %s276 = scalar_select %p275, %s24, 1
        %s277 = scalar_lea.vmem %s5, %s276
        %s278 = smul.u32 16, %s25
        %s280 = smul.u32 %s25, 8
        %v281 = vld [vmem:[%s4] sm:$0xf]
        %s282 = sadd.s32 %s280, 18
        %s283 = smul.u32 %s282, 7
        %s284 = smul.addr %s283, 4
        %s285 = scalar_lea.vmem %s274, %s284
        %v286 = vld [vmem:[%s285 + $0x8] sm:$0xe]
        %v287 = vld [vmem:[%s285 + $0xc] sm:$0xf]
        %v288 = vld [vmem:[%s285 + $0x10] sm:$0x1]
        %v289 = vld [vmem:[%s285 + $0x24] sm:$0xe]
        %v290 = vld [vmem:[%s285 + $0x28] sm:$0xf]
        %v291 = vld [vmem:[%s285 + $0x2c] sm:$0x1]
        %v292 = vld [vmem:[%s285 + $0x40] sm:$0xe]
        %v293 = vld [vmem:[%s285 + $0x44] sm:$0xf]
        %v294 = vld [vmem:[%s285 + $0x48] sm:$0x1]
        %v295 = vld [vmem:[%s285 + $0x5c] sm:$0xe]
        %v296 = vld [vmem:[%s285 + $0x60] sm:$0xf]
        %v297 = vld [vmem:[%s285 + $0x64] sm:$0x1]
        %v298 = vld [vmem:[%s285 + $0x78] sm:$0xe]
        %v299 = vld [vmem:[%s285 + $0x7c] sm:$0xf]
        %v300 = vld [vmem:[%s285 + $0x80] sm:$0x1]
        %v301 = vld [vmem:[%s285 + $0x94] sm:$0xe]
        %v302 = vld [vmem:[%s285 + $0x98] sm:$0xf]
        %v303 = vld [vmem:[%s285 + $0x9c] sm:$0x1]
        %v304 = vld [vmem:[%s285 + $0xb0] sm:$0xe]
        %v305 = vld [vmem:[%s285 + $0xb4] sm:$0xf]
        %v306 = vld [vmem:[%s285 + $0xb8] sm:$0x1]
        %v307 = vld [vmem:[%s285 + $0xcc] sm:$0xe]
        %v308 = vld [vmem:[%s285 + $0xd0] sm:$0xf]
        %v309 = vld [vmem:[%s285 + $0xd4] sm:$0x1]
        %vm334 = vcmask 1042432
        %vm335 = vcmask 1046532
        %vm336 = vmor %vm334, %vm335
        %v337 = vrot.slane %v286, 5
        %v338 = vrot.slane %v337, 4
        %v339 = vrot.slane %v287, 5
        %v340 = vsel %vm336, %v338, %v339
        %v341 = vrot.slane %v339, 4
        %v342 = vrot.slane %v288, 5
        %v343 = vsel %vm336, %v341, %v342
        %v344 = vrot.slane %v289, 5
        %v345 = vrot.slane %v344, 4
        %v346 = vrot.slane %v290, 5
        %v347 = vsel %vm336, %v345, %v346
        %v348 = vrot.slane %v346, 4
        %v349 = vrot.slane %v291, 5
        %v350 = vsel %vm336, %v348, %v349
        %v351 = vrot.slane %v292, 5
        %v352 = vrot.slane %v351, 4
        %v353 = vrot.slane %v293, 5
        %v354 = vsel %vm336, %v352, %v353
        %v355 = vrot.slane %v353, 4
        %v356 = vrot.slane %v294, 5
        %v357 = vsel %vm336, %v355, %v356
        %v358 = vrot.slane %v295, 5
        %v359 = vrot.slane %v358, 4
        %v360 = vrot.slane %v296, 5
        %v361 = vsel %vm336, %v359, %v360
        %v362 = vrot.slane %v360, 4
        %v363 = vrot.slane %v297, 5
        %v364 = vsel %vm336, %v362, %v363
        %v365 = vrot.slane %v298, 5
        %v366 = vrot.slane %v365, 4
        %v367 = vrot.slane %v299, 5
        %v368 = vsel %vm336, %v366, %v367
        %v369 = vrot.slane %v367, 4
        %v370 = vrot.slane %v300, 5
        %v371 = vsel %vm336, %v369, %v370
        %v372 = vrot.slane %v301, 5
        %v373 = vrot.slane %v372, 4
        %v374 = vrot.slane %v302, 5
        %v375 = vsel %vm336, %v373, %v374
        %v376 = vrot.slane %v374, 4
        %v377 = vrot.slane %v303, 5
        %v378 = vsel %vm336, %v376, %v377
        %v379 = vrot.slane %v304, 5
        %v380 = vrot.slane %v379, 4
        %v381 = vrot.slane %v305, 5
        %v382 = vsel %vm336, %v380, %v381
        %v383 = vrot.slane %v381, 4
        %v384 = vrot.slane %v306, 5
        %v385 = vsel %vm336, %v383, %v384
        %v386 = vrot.slane %v307, 5
        %v387 = vrot.slane %v386, 4
        %v388 = vrot.slane %v308, 5
        %v389 = vsel %vm336, %v387, %v388
        %v390 = vrot.slane %v388, 4
        %v391 = vrot.slane %v309, 5
        %v392 = vsel %vm336, %v390, %v391
        %v393 = vld [vmem:[%s1] sm:$0xf]
        %v394 = vld [vmem:[%s1 + $0x4] sm:$0xf]
        %v395 = vlaneseq
        %v396 = vshrl.u32 %v395, 7
        %v397 = vsub.s32 0, %v396
        %v398 = vrot.slane %v281, %v397
        %v399 = vunpack.c.l.b16 %v340
        %v400 = vunpack.c.l.b16 %v343
        %v401 = vunpack.c.l.b16 %v347
        %v402 = vunpack.c.l.b16 %v350
        %v403 = vunpack.c.l.b16 %v354
        %v404 = vunpack.c.l.b16 %v357
        %v405 = vunpack.c.l.b16 %v361
        %v406 = vunpack.c.l.b16 %v364
        %v407 = vunpack.c.l.b16 %v368
        %v408 = vunpack.c.l.b16 %v371
        %v409 = vunpack.c.l.b16 %v375
        %v410 = vunpack.c.l.b16 %v378
        %v411 = vunpack.c.l.b16 %v382
        %v412 = vunpack.c.l.b16 %v385
        %v413 = vunpack.c.l.b16 %v389
        %v414 = vunpack.c.l.b16 %v392
        %v415 = vpack.c.b16 %v400, %v399
        %v416 = vpack.c.b16 %v402, %v401
        %v417 = vpack.c.b16 %v404, %v403
        %v418 = vpack.c.b16 %v406, %v405
        %v419 = vpack.c.b16 %v408, %v407
        %v420 = vpack.c.b16 %v410, %v409
        %v421 = vpack.c.b16 %v412, %v411
        %v422 = vpack.c.b16 %v414, %v413
        %v425 = vunpack.c.l.b16 %v393
        %v426 = vunpack.c.l.b16 %v394
        %v427 = vpack.c.b16 %v426, %v425
        %vm429 = vcmask 130048
        %v431 = vsel %vm429, %v415, 0
        %v434 = vsel %vm429, %v416, 0
        %v437 = vsel %vm429, %v417, 0
        %v440 = vsel %vm429, %v418, 0
        %v443 = vsel %vm429, %v419, 0
        %v446 = vsel %vm429, %v420, 0
        %v449 = vsel %vm429, %v421, 0
        %v452 = vsel %vm429, %v422, 0
        %454 = vmatprep.subr.bf16.mxu0 0
        %455 = vmatpush1.bf16.msra.mxu0 %v427
        %456 = vmatprep.subr.bf16.mxu0 0
        %457 = vmatpush1.bf16.msra.mxu0 0
        %458 = vmatprep.subr.bf16.mxu0 0
        %459 = vmatpush1.bf16.msra.mxu0 0
        %460 = vmatprep.subr.bf16.mxu0 0
        %461 = vmatpush1.bf16.msra.mxu0 0
        %462 = vmatprep.subr.bf16.mxu0 0
        %463 = vmatpush1.bf16.msra.mxu0 0
        %464 = vmatprep.subr.bf16.mxu0 0
        %465 = vmatpush1.bf16.msra.mxu0 0
        %466 = vmatprep.subr.bf16.mxu0 0
        %467 = vmatpush1.bf16.msra.mxu0 0
        %468 = vmatprep.subr.bf16.mxu0 0
        %469 = vmatpush1.bf16.msra.mxu0 0
        %470 = vmatprep.subr.bf16.mxu0 0
        %471 = vmatpush1.bf16.msra.mxu0 0
        %472 = vmatprep.subr.bf16.mxu0 0
        %473 = vmatpush1.bf16.msra.mxu0 0
        %474 = vmatprep.subr.bf16.mxu0 0
        %475 = vmatpush1.bf16.msra.mxu0 0
        %476 = vmatprep.subr.bf16.mxu0 0
        %477 = vmatpush1.bf16.msra.mxu0 0
        %478 = vmatprep.subr.bf16.mxu0 0
        %479 = vmatpush1.bf16.msra.mxu0 0
        %480 = vmatprep.subr.bf16.mxu0 0
        %481 = vmatpush1.bf16.msra.mxu0 0
        %482 = vmatprep.subr.bf16.mxu0 0
        %483 = vmatpush1.bf16.msra.mxu0 0
        %484 = vmatprep.subr.bf16.mxu0 0
        %485 = vmatpush1.bf16.msra.mxu0 0
        %486 = vmatprep.mubr.bf16.mxu0 0
        %487 = vmatmul.mubr.bf16.gmra.mrb[0].mxu0 %v431
        %v488 = vpop.f32.mrb[0].mxu0
        %v489 = vadd.f32 %v398, %v488
        %v490 = vpop.f32.mrb[0].mxu0
        %v491 = vpop.f32.mrb[0].mxu0
        %v492 = vadd.f32 %v398, %v491
        %v493 = vpop.f32.mrb[0].mxu0
        %494 = vmatprep.mubr.bf16.mxu0 0
        %495 = vmatmul.mubr.bf16.gmra.mrb[0].mxu0 %v434
        %v496 = vpop.f32.mrb[0].mxu0
        %v497 = vadd.f32 %v398, %v496
        %v498 = vpop.f32.mrb[0].mxu0
        %v499 = vpop.f32.mrb[0].mxu0
        %v500 = vadd.f32 %v398, %v499
        %v501 = vpop.f32.mrb[0].mxu0
        %502 = vmatprep.mubr.bf16.mxu0 0
        %503 = vmatmul.mubr.bf16.gmra.mrb[0].mxu0 %v437
        %v504 = vpop.f32.mrb[0].mxu0
        %v505 = vadd.f32 %v398, %v504
        %v506 = vpop.f32.mrb[0].mxu0
        %v507 = vpop.f32.mrb[0].mxu0
        %v508 = vadd.f32 %v398, %v507
        %v509 = vpop.f32.mrb[0].mxu0
        %510 = vmatprep.mubr.bf16.mxu0 0
        %511 = vmatmul.mubr.bf16.gmra.mrb[0].mxu0 %v440
        %v512 = vpop.f32.mrb[0].mxu0
        %v513 = vadd.f32 %v398, %v512
        %v514 = vpop.f32.mrb[0].mxu0
        %v515 = vpop.f32.mrb[0].mxu0
        %v516 = vadd.f32 %v398, %v515
        %v517 = vpop.f32.mrb[0].mxu0
        %518 = vmatprep.mubr.bf16.mxu0 0
        %519 = vmatmul.mubr.bf16.gmra.mrb[0].mxu0 %v443
        %v520 = vpop.f32.mrb[0].mxu0
        %v521 = vadd.f32 %v398, %v520
        %v522 = vpop.f32.mrb[0].mxu0
        %v523 = vpop.f32.mrb[0].mxu0
        %v524 = vadd.f32 %v398, %v523
        %v525 = vpop.f32.mrb[0].mxu0
        %526 = vmatprep.mubr.bf16.mxu0 0
        %527 = vmatmul.mubr.bf16.gmra.mrb[0].mxu0 %v446
        %v528 = vpop.f32.mrb[0].mxu0
        %v529 = vadd.f32 %v398, %v528
        %v530 = vpop.f32.mrb[0].mxu0
        %v531 = vpop.f32.mrb[0].mxu0
        %v532 = vadd.f32 %v398, %v531
        %v533 = vpop.f32.mrb[0].mxu0
        %534 = vmatprep.mubr.bf16.mxu0 0
        %535 = vmatmul.mubr.bf16.gmra.mrb[0].mxu0 %v449
        %v536 = vpop.f32.mrb[0].mxu0
        %v537 = vadd.f32 %v398, %v536
        %v538 = vpop.f32.mrb[0].mxu0
        %v539 = vpop.f32.mrb[0].mxu0
        %v540 = vadd.f32 %v398, %v539
        %v541 = vpop.f32.mrb[0].mxu0
        %542 = vmatprep.mubr.bf16.mxu0 0
        %543 = vmatmul.mubr.bf16.gmra.mrb[0].mxu0 %v452
        %v544 = vpop.f32.mrb[0].mxu0
        %v545 = vadd.f32 %v398, %v544
        %v546 = vpop.f32.mrb[0].mxu0
        %v547 = vpop.f32.mrb[0].mxu0
        %v548 = vadd.f32 %v398, %v547
        %v549 = vpop.f32.mrb[0].mxu0
        %550 = vdwg.mxu0
        %v551 = vmax.f32 %v489, 0.0
        %v552 = vmax.f32 %v492, 0.0
        %v553 = vmax.f32 %v497, 0.0
        %v554 = vmax.f32 %v500, 0.0
        %v555 = vmax.f32 %v505, 0.0
        %v556 = vmax.f32 %v508, 0.0
        %v557 = vmax.f32 %v513, 0.0
        %v558 = vmax.f32 %v516, 0.0
        %v559 = vmax.f32 %v521, 0.0
        %v560 = vmax.f32 %v524, 0.0
        %v561 = vmax.f32 %v529, 0.0
        %v562 = vmax.f32 %v532, 0.0
        %v563 = vmax.f32 %v537, 0.0
        %v564 = vmax.f32 %v540, 0.0
        %v565 = vmax.f32 %v545, 0.0
        %v566 = vmax.f32 %v548, 0.0
        %v567 = vpack.c.bf16 %v552, %v551
        %v568 = vpack.c.bf16 %v554, %v553
        %v569 = vpack.c.bf16 %v556, %v555
        %v570 = vpack.c.bf16 %v558, %v557
        %v571 = vpack.c.bf16 %v560, %v559
        %v572 = vpack.c.bf16 %v562, %v561
        %v573 = vpack.c.bf16 %v564, %v563
        %v574 = vpack.c.bf16 %v566, %v565
        %v575 = vld [vmem:[%s2] sm:$0xf]
        %v576 = vld [vmem:[%s2 + $0x4] sm:$0xf]
        %s577 = sadd.s32 %s280, 12
        %s578 = smul.u32 %s577, 7
        %s579 = smul.addr %s578, 4
        %s580 = scalar_lea.vmem %s274, %s579
        %v581 = vld [vmem:[%s580 + $0x4] sm:$0xc]
        %v582 = vld [vmem:[%s580 + $0x8] sm:$0xf]
        %v583 = vld [vmem:[%s580 + $0xc] sm:$0x3]
        %v584 = vld [vmem:[%s580 + $0x20] sm:$0xc]
        %v585 = vld [vmem:[%s580 + $0x24] sm:$0xf]
        %v586 = vld [vmem:[%s580 + $0x28] sm:$0x3]
        %v587 = vld [vmem:[%s580 + $0x3c] sm:$0xc]
        %v588 = vld [vmem:[%s580 + $0x40] sm:$0xf]
        %v589 = vld [vmem:[%s580 + $0x44] sm:$0x3]
        %v590 = vld [vmem:[%s580 + $0x58] sm:$0xc]
        %v591 = vld [vmem:[%s580 + $0x5c] sm:$0xf]
        %v592 = vld [vmem:[%s580 + $0x60] sm:$0x3]
        %v593 = vld [vmem:[%s580 + $0x74] sm:$0xc]
        %v594 = vld [vmem:[%s580 + $0x78] sm:$0xf]
        %v595 = vld [vmem:[%s580 + $0x7c] sm:$0x3]
        %v596 = vld [vmem:[%s580 + $0x90] sm:$0xc]
        %v597 = vld [vmem:[%s580 + $0x94] sm:$0xf]
        %v598 = vld [vmem:[%s580 + $0x98] sm:$0x3]
        %v599 = vld [vmem:[%s580 + $0xac] sm:$0xc]
        %v600 = vld [vmem:[%s580 + $0xb0] sm:$0xf]
        %v601 = vld [vmem:[%s580 + $0xb4] sm:$0x3]
        %v602 = vld [vmem:[%s580 + $0xc8] sm:$0xc]
        %v603 = vld [vmem:[%s580 + $0xcc] sm:$0xf]
        %v604 = vld [vmem:[%s580 + $0xd0] sm:$0x3]
        %vm629 = vcmask 1041408
        %vm630 = vcmask 1045508
        %vm631 = vmor %vm629, %vm630
        %v632 = vrot.slane %v581, 6
        %v633 = vrot.slane %v632, 4
        %v634 = vrot.slane %v582, 6
        %v635 = vsel %vm631, %v633, %v634
        %v636 = vrot.slane %v634, 4
        %v637 = vrot.slane %v583, 6
        %v638 = vsel %vm631, %v636, %v637
        %v639 = vrot.slane %v584, 6
        %v640 = vrot.slane %v639, 4
        %v641 = vrot.slane %v585, 6
        %v642 = vsel %vm631, %v640, %v641
        %v643 = vrot.slane %v641, 4
        %v644 = vrot.slane %v586, 6
        %v645 = vsel %vm631, %v643, %v644
        %v646 = vrot.slane %v587, 6
        %v647 = vrot.slane %v646, 4
        %v648 = vrot.slane %v588, 6
        %v649 = vsel %vm631, %v647, %v648
        %v650 = vrot.slane %v648, 4
        %v651 = vrot.slane %v589, 6
        %v652 = vsel %vm631, %v650, %v651
        %v653 = vrot.slane %v590, 6
        %v654 = vrot.slane %v653, 4
        %v655 = vrot.slane %v591, 6
        %v656 = vsel %vm631, %v654, %v655
        %v657 = vrot.slane %v655, 4
        %v658 = vrot.slane %v592, 6
        %v659 = vsel %vm631, %v657, %v658
        %v660 = vrot.slane %v593, 6
        %v661 = vrot.slane %v660, 4
        %v662 = vrot.slane %v594, 6
        %v663 = vsel %vm631, %v661, %v662
        %v664 = vrot.slane %v662, 4
        %v665 = vrot.slane %v595, 6
        %v666 = vsel %vm631, %v664, %v665
        %v667 = vrot.slane %v596, 6
        %v668 = vrot.slane %v667, 4
        %v669 = vrot.slane %v597, 6
        %v670 = vsel %vm631, %v668, %v669
        %v671 = vrot.slane %v669, 4
        %v672 = vrot.slane %v598, 6
        %v673 = vsel %vm631, %v671, %v672
        %v674 = vrot.slane %v599, 6
        %v675 = vrot.slane %v674, 4
        %v676 = vrot.slane %v600, 6
        %v677 = vsel %vm631, %v675, %v676
        %v678 = vrot.slane %v676, 4
        %v679 = vrot.slane %v601, 6
        %v680 = vsel %vm631, %v678, %v679
        %v681 = vrot.slane %v602, 6
        %v682 = vrot.slane %v681, 4
        %v683 = vrot.slane %v603, 6
        %v684 = vsel %vm631, %v682, %v683
        %v685 = vrot.slane %v683, 4
        %v686 = vrot.slane %v604, 6
        %v687 = vsel %vm631, %v685, %v686
        %s688 = scalar_lea.vmem %s2, 8
        %v689 = vld [vmem:[%s688] sm:$0xf]
        %v690 = vld [vmem:[%s688 + $0x4] sm:$0xf]
        %v691 = vld [vmem:[%s580 + $0x8] sm:$0xe]
        %v692 = vld [vmem:[%s580 + $0xc] sm:$0xf]
        %v693 = vld [vmem:[%s580 + $0x10] sm:$0x1]
        %v694 = vld [vmem:[%s580 + $0x24] sm:$0xe]
        %v695 = vld [vmem:[%s580 + $0x28] sm:$0xf]
        %v696 = vld [vmem:[%s580 + $0x2c] sm:$0x1]
        %v697 = vld [vmem:[%s580 + $0x40] sm:$0xe]
        %v698 = vld [vmem:[%s580 + $0x44] sm:$0xf]
        %v699 = vld [vmem:[%s580 + $0x48] sm:$0x1]
        %v700 = vld [vmem:[%s580 + $0x5c] sm:$0xe]
        %v701 = vld [vmem:[%s580 + $0x60] sm:$0xf]
        %v702 = vld [vmem:[%s580 + $0x64] sm:$0x1]
        %v703 = vld [vmem:[%s580 + $0x78] sm:$0xe]
        %v704 = vld [vmem:[%s580 + $0x7c] sm:$0xf]
        %v705 = vld [vmem:[%s580 + $0x80] sm:$0x1]
        %v706 = vld [vmem:[%s580 + $0x94] sm:$0xe]
        %v707 = vld [vmem:[%s580 + $0x98] sm:$0xf]
        %v708 = vld [vmem:[%s580 + $0x9c] sm:$0x1]
        %v709 = vld [vmem:[%s580 + $0xb0] sm:$0xe]
        %v710 = vld [vmem:[%s580 + $0xb4] sm:$0xf]
        %v711 = vld [vmem:[%s580 + $0xb8] sm:$0x1]
        %v712 = vld [vmem:[%s580 + $0xcc] sm:$0xe]
        %v713 = vld [vmem:[%s580 + $0xd0] sm:$0xf]
        %v714 = vld [vmem:[%s580 + $0xd4] sm:$0x1]
        %v739 = vrot.slane %v691, 5
        %v740 = vrot.slane %v739, 4
        %v741 = vrot.slane %v692, 5
        %v742 = vsel %vm336, %v740, %v741
        %v743 = vrot.slane %v741, 4
        %v744 = vrot.slane %v693, 5
        %v745 = vsel %vm336, %v743, %v744
        %v746 = vrot.slane %v694, 5
        %v747 = vrot.slane %v746, 4
        %v748 = vrot.slane %v695, 5
        %v749 = vsel %vm336, %v747, %v748
        %v750 = vrot.slane %v748, 4
        %v751 = vrot.slane %v696, 5
        %v752 = vsel %vm336, %v750, %v751
        %v753 = vrot.slane %v697, 5
        %v754 = vrot.slane %v753, 4
        %v755 = vrot.slane %v698, 5
        %v756 = vsel %vm336, %v754, %v755
        %v757 = vrot.slane %v755, 4
        %v758 = vrot.slane %v699, 5
        %v759 = vsel %vm336, %v757, %v758
        %v760 = vrot.slane %v700, 5
        %v761 = vrot.slane %v760, 4
        %v762 = vrot.slane %v701, 5
        %v763 = vsel %vm336, %v761, %v762
        %v764 = vrot.slane %v762, 4
        %v765 = vrot.slane %v702, 5
        %v766 = vsel %vm336, %v764, %v765
        %v767 = vrot.slane %v703, 5
        %v768 = vrot.slane %v767, 4
        %v769 = vrot.slane %v704, 5
        %v770 = vsel %vm336, %v768, %v769
        %v771 = vrot.slane %v769, 4
        %v772 = vrot.slane %v705, 5
        %v773 = vsel %vm336, %v771, %v772
        %v774 = vrot.slane %v706, 5
        %v775 = vrot.slane %v774, 4
        %v776 = vrot.slane %v707, 5
        %v777 = vsel %vm336, %v775, %v776
        %v778 = vrot.slane %v776, 4
        %v779 = vrot.slane %v708, 5
        %v780 = vsel %vm336, %v778, %v779
        %v781 = vrot.slane %v709, 5
        %v782 = vrot.slane %v781, 4
        %v783 = vrot.slane %v710, 5
        %v784 = vsel %vm336, %v782, %v783
        %v785 = vrot.slane %v783, 4
        %v786 = vrot.slane %v711, 5
        %v787 = vsel %vm336, %v785, %v786
        %v788 = vrot.slane %v712, 5
        %v789 = vrot.slane %v788, 4
        %v790 = vrot.slane %v713, 5
        %v791 = vsel %vm336, %v789, %v790
        %v792 = vrot.slane %v790, 4
        %v793 = vrot.slane %v714, 5
        %v794 = vsel %vm336, %v792, %v793
        %v795 = vunpack.c.l.b16 %v742
        %v796 = vunpack.c.l.b16 %v745
        %v797 = vunpack.c.l.b16 %v749
        %v798 = vunpack.c.l.b16 %v752
        %v799 = vunpack.c.l.b16 %v756
        %v800 = vunpack.c.l.b16 %v759
        %v801 = vunpack.c.l.b16 %v763
        %v802 = vunpack.c.l.b16 %v766
        %v803 = vunpack.c.l.b16 %v770
        %v804 = vunpack.c.l.b16 %v773
        %v805 = vunpack.c.l.b16 %v777
        %v806 = vunpack.c.l.b16 %v780
        %v807 = vunpack.c.l.b16 %v784
        %v808 = vunpack.c.l.b16 %v787
        %v809 = vunpack.c.l.b16 %v791
        %v810 = vunpack.c.l.b16 %v794
        %v811 = vpack.c.b16 %v796, %v795
        %v812 = vpack.c.b16 %v798, %v797
        %v813 = vpack.c.b16 %v800, %v799
        %v814 = vpack.c.b16 %v802, %v801
        %v815 = vpack.c.b16 %v804, %v803
        %v816 = vpack.c.b16 %v806, %v805
        %v817 = vpack.c.b16 %v808, %v807
        %v818 = vpack.c.b16 %v810, %v809
        %v821 = vunpack.c.l.b16 %v689
        %v822 = vunpack.c.l.b16 %v690
        %v823 = vpack.c.b16 %v822, %v821
        %v826 = vsel %vm429, %v811, 0
        %v829 = vsel %vm429, %v812, 0
        %v832 = vsel %vm429, %v813, 0
        %v835 = vsel %vm429, %v814, 0
        %v838 = vsel %vm429, %v815, 0
        %v841 = vsel %vm429, %v816, 0
        %v844 = vsel %vm429, %v817, 0
        %v847 = vsel %vm429, %v818, 0
        %849 = vmatprep.subr.bf16.mxu0 0
        %850 = vmatpush1.bf16.msra.mxu0 %v823
        %851 = vmatprep.subr.bf16.mxu0 0
        %852 = vmatpush1.bf16.msra.mxu0 0
        %853 = vmatprep.subr.bf16.mxu0 0
        %854 = vmatpush1.bf16.msra.mxu0 0
        %855 = vmatprep.subr.bf16.mxu0 0
        %856 = vmatpush1.bf16.msra.mxu0 0
        %857 = vmatprep.subr.bf16.mxu0 0
        %858 = vmatpush1.bf16.msra.mxu0 0
        %859 = vmatprep.subr.bf16.mxu0 0
        %860 = vmatpush1.bf16.msra.mxu0 0
        %861 = vmatprep.subr.bf16.mxu0 0
        %862 = vmatpush1.bf16.msra.mxu0 0
        %863 = vmatprep.subr.bf16.mxu0 0
        %864 = vmatpush1.bf16.msra.mxu0 0
        %865 = vmatprep.subr.bf16.mxu0 0
        %866 = vmatpush1.bf16.msra.mxu0 0
        %867 = vmatprep.subr.bf16.mxu0 0
        %868 = vmatpush1.bf16.msra.mxu0 0
        %869 = vmatprep.subr.bf16.mxu0 0
        %870 = vmatpush1.bf16.msra.mxu0 0
        %871 = vmatprep.subr.bf16.mxu0 0
        %872 = vmatpush1.bf16.msra.mxu0 0
        %873 = vmatprep.subr.bf16.mxu0 0
        %874 = vmatpush1.bf16.msra.mxu0 0
        %875 = vmatprep.subr.bf16.mxu0 0
        %876 = vmatpush1.bf16.msra.mxu0 0
        %877 = vmatprep.subr.bf16.mxu0 0
        %878 = vmatpush1.bf16.msra.mxu0 0
        %879 = vmatprep.subr.bf16.mxu0 0
        %880 = vmatpush1.bf16.msra.mxu0 0
        %881 = vmatprep.mubr.bf16.mxu0 0
        %882 = vmatmul.mubr.bf16.gmra.mrb[0].mxu0 %v826
        %v883 = vpop.f32.mrb[0].mxu0
        %v884 = vadd.f32 0.0, %v883
        %v885 = vpop.f32.mrb[0].mxu0
        %v886 = vpop.f32.mrb[0].mxu0
        %v887 = vadd.f32 0.0, %v886
        %v888 = vpop.f32.mrb[0].mxu0
        %889 = vmatprep.mubr.bf16.mxu0 0
        %890 = vmatmul.mubr.bf16.gmra.mrb[0].mxu0 %v829
        %v891 = vpop.f32.mrb[0].mxu0
        %v892 = vadd.f32 0.0, %v891
        %v893 = vpop.f32.mrb[0].mxu0
        %v894 = vpop.f32.mrb[0].mxu0
        %v895 = vadd.f32 0.0, %v894
        %v896 = vpop.f32.mrb[0].mxu0
        %897 = vmatprep.mubr.bf16.mxu0 0
        %898 = vmatmul.mubr.bf16.gmra.mrb[0].mxu0 %v832
        %v899 = vpop.f32.mrb[0].mxu0
        %v900 = vadd.f32 0.0, %v899
        %v901 = vpop.f32.mrb[0].mxu0
        %v902 = vpop.f32.mrb[0].mxu0
        %v903 = vadd.f32 0.0, %v902
        %v904 = vpop.f32.mrb[0].mxu0
        %905 = vmatprep.mubr.bf16.mxu0 0
        %906 = vmatmul.mubr.bf16.gmra.mrb[0].mxu0 %v835
        %v907 = vpop.f32.mrb[0].mxu0
        %v908 = vadd.f32 0.0, %v907
        %v909 = vpop.f32.mrb[0].mxu0
        %v910 = vpop.f32.mrb[0].mxu0
        %v911 = vadd.f32 0.0, %v910
        %v912 = vpop.f32.mrb[0].mxu0
        %913 = vmatprep.mubr.bf16.mxu0 0
        %914 = vmatmul.mubr.bf16.gmra.mrb[0].mxu0 %v838
        %v915 = vpop.f32.mrb[0].mxu0
        %v916 = vadd.f32 0.0, %v915
        %v917 = vpop.f32.mrb[0].mxu0
        %v918 = vpop.f32.mrb[0].mxu0
        %v919 = vadd.f32 0.0, %v918
        %v920 = vpop.f32.mrb[0].mxu0
        %921 = vmatprep.mubr.bf16.mxu0 0
        %922 = vmatmul.mubr.bf16.gmra.mrb[0].mxu0 %v841
        %v923 = vpop.f32.mrb[0].mxu0
        %v924 = vadd.f32 0.0, %v923
        %v925 = vpop.f32.mrb[0].mxu0
        %v926 = vpop.f32.mrb[0].mxu0
        %v927 = vadd.f32 0.0, %v926
        %v928 = vpop.f32.mrb[0].mxu0
        %929 = vmatprep.mubr.bf16.mxu0 0
        %930 = vmatmul.mubr.bf16.gmra.mrb[0].mxu0 %v844
        %v931 = vpop.f32.mrb[0].mxu0
        %v932 = vadd.f32 0.0, %v931
        %v933 = vpop.f32.mrb[0].mxu0
        %v934 = vpop.f32.mrb[0].mxu0
        %v935 = vadd.f32 0.0, %v934
        %v936 = vpop.f32.mrb[0].mxu0
        %937 = vmatprep.mubr.bf16.mxu0 0
        %938 = vmatmul.mubr.bf16.gmra.mrb[0].mxu0 %v847
        %v939 = vpop.f32.mrb[0].mxu0
        %v940 = vadd.f32 0.0, %v939
        %v941 = vpop.f32.mrb[0].mxu0
        %v942 = vpop.f32.mrb[0].mxu0
        %v943 = vadd.f32 0.0, %v942
        %v944 = vpop.f32.mrb[0].mxu0
        %945 = vdwg.mxu0
        %v946 = vunpack.c.l.b16 %v635
        %v947 = vunpack.c.l.b16 %v638
        %v948 = vunpack.c.l.b16 %v642
        %v949 = vunpack.c.l.b16 %v645
        %v950 = vunpack.c.l.b16 %v649
        %v951 = vunpack.c.l.b16 %v652
        %v952 = vunpack.c.l.b16 %v656
        %v953 = vunpack.c.l.b16 %v659
        %v954 = vunpack.c.l.b16 %v663
        %v955 = vunpack.c.l.b16 %v666
        %v956 = vunpack.c.l.b16 %v670
        %v957 = vunpack.c.l.b16 %v673
        %v958 = vunpack.c.l.b16 %v677
        %v959 = vunpack.c.l.b16 %v680
        %v960 = vunpack.c.l.b16 %v684
        %v961 = vunpack.c.l.b16 %v687
        %v962 = vpack.c.b16 %v947, %v946
        %v963 = vpack.c.b16 %v949, %v948
        %v964 = vpack.c.b16 %v951, %v950
        %v965 = vpack.c.b16 %v953, %v952
        %v966 = vpack.c.b16 %v955, %v954
        %v967 = vpack.c.b16 %v957, %v956
        %v968 = vpack.c.b16 %v959, %v958
        %v969 = vpack.c.b16 %v961, %v960
        %v972 = vunpack.c.l.b16 %v575
        %v973 = vunpack.c.l.b16 %v576
        %v974 = vpack.c.b16 %v973, %v972
        %v977 = vsel %vm429, %v962, 0
        %v980 = vsel %vm429, %v963, 0
        %v983 = vsel %vm429, %v964, 0
        %v986 = vsel %vm429, %v965, 0
        %v989 = vsel %vm429, %v966, 0
        %v992 = vsel %vm429, %v967, 0
        %v995 = vsel %vm429, %v968, 0
        %v998 = vsel %vm429, %v969, 0
        %1000 = vmatprep.subr.bf16.mxu0 0
        %1001 = vmatpush1.bf16.msra.mxu0 %v974
        %1002 = vmatprep.subr.bf16.mxu0 0
        %1003 = vmatpush1.bf16.msra.mxu0 0
        %1004 = vmatprep.subr.bf16.mxu0 0
        %1005 = vmatpush1.bf16.msra.mxu0 0
        %1006 = vmatprep.subr.bf16.mxu0 0
        %1007 = vmatpush1.bf16.msra.mxu0 0
        %1008 = vmatprep.subr.bf16.mxu0 0
        %1009 = vmatpush1.bf16.msra.mxu0 0
        %1010 = vmatprep.subr.bf16.mxu0 0
        %1011 = vmatpush1.bf16.msra.mxu0 0
        %1012 = vmatprep.subr.bf16.mxu0 0
        %1013 = vmatpush1.bf16.msra.mxu0 0
        %1014 = vmatprep.subr.bf16.mxu0 0
        %1015 = vmatpush1.bf16.msra.mxu0 0
        %1016 = vmatprep.subr.bf16.mxu0 0
        %1017 = vmatpush1.bf16.msra.mxu0 0
        %1018 = vmatprep.subr.bf16.mxu0 0
        %1019 = vmatpush1.bf16.msra.mxu0 0
        %1020 = vmatprep.subr.bf16.mxu0 0
        %1021 = vmatpush1.bf16.msra.mxu0 0
        %1022 = vmatprep.subr.bf16.mxu0 0
        %1023 = vmatpush1.bf16.msra.mxu0 0
        %1024 = vmatprep.subr.bf16.mxu0 0
        %1025 = vmatpush1.bf16.msra.mxu0 0
        %1026 = vmatprep.subr.bf16.mxu0 0
        %1027 = vmatpush1.bf16.msra.mxu0 0
        %1028 = vmatprep.subr.bf16.mxu0 0
        %1029 = vmatpush1.bf16.msra.mxu0 0
        %1030 = vmatprep.subr.bf16.mxu0 0
        %1031 = vmatpush1.bf16.msra.mxu0 0
        %1032 = vmatprep.mubr.bf16.mxu0 0
        %1033 = vmatmul.mubr.bf16.gmra.mrb[0].mxu0 %v977
        %v1034 = vpop.f32.mrb[0].mxu0
        %v1035 = vadd.f32 %v884, %v1034
        %v1036 = vpop.f32.mrb[0].mxu0
        %v1037 = vpop.f32.mrb[0].mxu0
        %v1038 = vadd.f32 %v887, %v1037
        %v1039 = vpop.f32.mrb[0].mxu0
        %1040 = vmatprep.mubr.bf16.mxu0 0
        %1041 = vmatmul.mubr.bf16.gmra.mrb[0].mxu0 %v980
        %v1042 = vpop.f32.mrb[0].mxu0
        %v1043 = vadd.f32 %v892, %v1042
        %v1044 = vpop.f32.mrb[0].mxu0
        %v1045 = vpop.f32.mrb[0].mxu0
        %v1046 = vadd.f32 %v895, %v1045
        %v1047 = vpop.f32.mrb[0].mxu0
        %1048 = vmatprep.mubr.bf16.mxu0 0
        %1049 = vmatmul.mubr.bf16.gmra.mrb[0].mxu0 %v983
        %v1050 = vpop.f32.mrb[0].mxu0
        %v1051 = vadd.f32 %v900, %v1050
        %v1052 = vpop.f32.mrb[0].mxu0
        %v1053 = vpop.f32.mrb[0].mxu0
        %v1054 = vadd.f32 %v903, %v1053
        %v1055 = vpop.f32.mrb[0].mxu0
        %1056 = vmatprep.mubr.bf16.mxu0 0
        %1057 = vmatmul.mubr.bf16.gmra.mrb[0].mxu0 %v986
        %v1058 = vpop.f32.mrb[0].mxu0
        %v1059 = vadd.f32 %v908, %v1058
        %v1060 = vpop.f32.mrb[0].mxu0
        %v1061 = vpop.f32.mrb[0].mxu0
        %v1062 = vadd.f32 %v911, %v1061
        %v1063 = vpop.f32.mrb[0].mxu0
        %1064 = vmatprep.mubr.bf16.mxu0 0
        %1065 = vmatmul.mubr.bf16.gmra.mrb[0].mxu0 %v989
        %v1066 = vpop.f32.mrb[0].mxu0
        %v1067 = vadd.f32 %v916, %v1066
        %v1068 = vpop.f32.mrb[0].mxu0
        %v1069 = vpop.f32.mrb[0].mxu0
        %v1070 = vadd.f32 %v919, %v1069
        %v1071 = vpop.f32.mrb[0].mxu0
        %1072 = vmatprep.mubr.bf16.mxu0 0
        %1073 = vmatmul.mubr.bf16.gmra.mrb[0].mxu0 %v992
        %v1074 = vpop.f32.mrb[0].mxu0
        %v1075 = vadd.f32 %v924, %v1074
        %v1076 = vpop.f32.mrb[0].mxu0
        %v1077 = vpop.f32.mrb[0].mxu0
        %v1078 = vadd.f32 %v927, %v1077
        %v1079 = vpop.f32.mrb[0].mxu0
        %1080 = vmatprep.mubr.bf16.mxu0 0
        %1081 = vmatmul.mubr.bf16.gmra.mrb[0].mxu0 %v995
        %v1082 = vpop.f32.mrb[0].mxu0
        %v1083 = vadd.f32 %v932, %v1082
        %v1084 = vpop.f32.mrb[0].mxu0
        %v1085 = vpop.f32.mrb[0].mxu0
        %v1086 = vadd.f32 %v935, %v1085
        %v1087 = vpop.f32.mrb[0].mxu0
        %1088 = vmatprep.mubr.bf16.mxu0 0
        %1089 = vmatmul.mubr.bf16.gmra.mrb[0].mxu0 %v998
        %v1090 = vpop.f32.mrb[0].mxu0
        %v1091 = vadd.f32 %v940, %v1090
        %v1092 = vpop.f32.mrb[0].mxu0
        %v1093 = vpop.f32.mrb[0].mxu0
        %v1094 = vadd.f32 %v943, %v1093
        %v1095 = vpop.f32.mrb[0].mxu0
        %1096 = vdwg.mxu0
        %s1097 = scalar_lea.vmem %s2, 16
        %v1098 = vld [vmem:[%s1097] sm:$0xf]
        %v1099 = vld [vmem:[%s1097 + $0x4] sm:$0xf]
        %v1100 = vld [vmem:[%s580 + $0x10] sm:$0xf]
        %v1101 = vld [vmem:[%s580 + $0x2c] sm:$0xf]
        %v1102 = vld [vmem:[%s580 + $0x48] sm:$0xf]
        %v1103 = vld [vmem:[%s580 + $0x64] sm:$0xf]
        %v1104 = vld [vmem:[%s580 + $0x80] sm:$0xf]
        %v1105 = vld [vmem:[%s580 + $0x9c] sm:$0xf]
        %v1106 = vld [vmem:[%s580 + $0xb8] sm:$0xf]
        %v1107 = vld [vmem:[%s580 + $0xd4] sm:$0xf]
        %v1116 = vunpack.c.l.b16 %v692
        %v1117 = vunpack.c.l.b16 %v1100
        %v1118 = vunpack.c.l.b16 %v695
        %v1119 = vunpack.c.l.b16 %v1101
        %v1120 = vunpack.c.l.b16 %v698
        %v1121 = vunpack.c.l.b16 %v1102
        %v1122 = vunpack.c.l.b16 %v701
        %v1123 = vunpack.c.l.b16 %v1103
        %v1124 = vunpack.c.l.b16 %v704
        %v1125 = vunpack.c.l.b16 %v1104
        %v1126 = vunpack.c.l.b16 %v707
        %v1127 = vunpack.c.l.b16 %v1105
        %v1128 = vunpack.c.l.b16 %v710
        %v1129 = vunpack.c.l.b16 %v1106
        %v1130 = vunpack.c.l.b16 %v713
        %v1131 = vunpack.c.l.b16 %v1107
        %v1132 = vpack.c.b16 %v1117, %v1116
        %v1133 = vpack.c.b16 %v1119, %v1118
        %v1134 = vpack.c.b16 %v1121, %v1120
        %v1135 = vpack.c.b16 %v1123, %v1122
        %v1136 = vpack.c.b16 %v1125, %v1124
        %v1137 = vpack.c.b16 %v1127, %v1126
        %v1138 = vpack.c.b16 %v1129, %v1128
        %v1139 = vpack.c.b16 %v1131, %v1130
        %v1142 = vunpack.c.l.b16 %v1098
        %v1143 = vunpack.c.l.b16 %v1099
        %v1144 = vpack.c.b16 %v1143, %v1142
        %v1147 = vsel %vm429, %v1132, 0
        %v1150 = vsel %vm429, %v1133, 0
        %v1153 = vsel %vm429, %v1134, 0
        %v1156 = vsel %vm429, %v1135, 0
        %v1159 = vsel %vm429, %v1136, 0
        %v1162 = vsel %vm429, %v1137, 0
        %v1165 = vsel %vm429, %v1138, 0
        %v1168 = vsel %vm429, %v1139, 0
        %1170 = vmatprep.subr.bf16.mxu0 0
        %1171 = vmatpush1.bf16.msra.mxu0 %v1144
        %1172 = vmatprep.subr.bf16.mxu0 0
        %1173 = vmatpush1.bf16.msra.mxu0 0
        %1174 = vmatprep.subr.bf16.mxu0 0
        %1175 = vmatpush1.bf16.msra.mxu0 0
        %1176 = vmatprep.subr.bf16.mxu0 0
        %1177 = vmatpush1.bf16.msra.mxu0 0
        %1178 = vmatprep.subr.bf16.mxu0 0
        %1179 = vmatpush1.bf16.msra.mxu0 0
        %1180 = vmatprep.subr.bf16.mxu0 0
        %1181 = vmatpush1.bf16.msra.mxu0 0
        %1182 = vmatprep.subr.bf16.mxu0 0
        %1183 = vmatpush1.bf16.msra.mxu0 0
        %1184 = vmatprep.subr.bf16.mxu0 0
        %1185 = vmatpush1.bf16.msra.mxu0 0
        %1186 = vmatprep.subr.bf16.mxu0 0
        %1187 = vmatpush1.bf16.msra.mxu0 0
        %1188 = vmatprep.subr.bf16.mxu0 0
        %1189 = vmatpush1.bf16.msra.mxu0 0
        %1190 = vmatprep.subr.bf16.mxu0 0
        %1191 = vmatpush1.bf16.msra.mxu0 0
        %1192 = vmatprep.subr.bf16.mxu0 0
        %1193 = vmatpush1.bf16.msra.mxu0 0
        %1194 = vmatprep.subr.bf16.mxu0 0
        %1195 = vmatpush1.bf16.msra.mxu0 0
        %1196 = vmatprep.subr.bf16.mxu0 0
        %1197 = vmatpush1.bf16.msra.mxu0 0
        %1198 = vmatprep.subr.bf16.mxu0 0
        %1199 = vmatpush1.bf16.msra.mxu0 0
        %1200 = vmatprep.subr.bf16.mxu0 0
        %1201 = vmatpush1.bf16.msra.mxu0 0
        %1202 = vmatprep.mubr.bf16.mxu0 0
        %1203 = vmatmul.mubr.bf16.gmra.mrb[0].mxu0 %v1147
        %v1204 = vpop.f32.mrb[0].mxu0
        %v1205 = vadd.f32 0.0, %v1204
        %v1206 = vpop.f32.mrb[0].mxu0
        %v1207 = vpop.f32.mrb[0].mxu0
        %v1208 = vadd.f32 0.0, %v1207
        %v1209 = vpop.f32.mrb[0].mxu0
        %1210 = vmatprep.mubr.bf16.mxu0 0
        %1211 = vmatmul.mubr.bf16.gmra.mrb[0].mxu0 %v1150
        %v1212 = vpop.f32.mrb[0].mxu0
        %v1213 = vadd.f32 0.0, %v1212
        %v1214 = vpop.f32.mrb[0].mxu0
        %v1215 = vpop.f32.mrb[0].mxu0
        %v1216 = vadd.f32 0.0, %v1215
        %v1217 = vpop.f32.mrb[0].mxu0
        %1218 = vmatprep.mubr.bf16.mxu0 0
        %1219 = vmatmul.mubr.bf16.gmra.mrb[0].mxu0 %v1153
        %v1220 = vpop.f32.mrb[0].mxu0
        %v1221 = vadd.f32 0.0, %v1220
        %v1222 = vpop.f32.mrb[0].mxu0
        %v1223 = vpop.f32.mrb[0].mxu0
        %v1224 = vadd.f32 0.0, %v1223
        %v1225 = vpop.f32.mrb[0].mxu0
        %1226 = vmatprep.mubr.bf16.mxu0 0
        %1227 = vmatmul.mubr.bf16.gmra.mrb[0].mxu0 %v1156
        %v1228 = vpop.f32.mrb[0].mxu0
        %v1229 = vadd.f32 0.0, %v1228
        %v1230 = vpop.f32.mrb[0].mxu0
        %v1231 = vpop.f32.mrb[0].mxu0
        %v1232 = vadd.f32 0.0, %v1231
        %v1233 = vpop.f32.mrb[0].mxu0
        %1234 = vmatprep.mubr.bf16.mxu0 0
        %1235 = vmatmul.mubr.bf16.gmra.mrb[0].mxu0 %v1159
        %v1236 = vpop.f32.mrb[0].mxu0
        %v1237 = vadd.f32 0.0, %v1236
        %v1238 = vpop.f32.mrb[0].mxu0
        %v1239 = vpop.f32.mrb[0].mxu0
        %v1240 = vadd.f32 0.0, %v1239
        %v1241 = vpop.f32.mrb[0].mxu0
        %1242 = vmatprep.mubr.bf16.mxu0 0
        %1243 = vmatmul.mubr.bf16.gmra.mrb[0].mxu0 %v1162
        %v1244 = vpop.f32.mrb[0].mxu0
        %v1245 = vadd.f32 0.0, %v1244
        %v1246 = vpop.f32.mrb[0].mxu0
        %v1247 = vpop.f32.mrb[0].mxu0
        %v1248 = vadd.f32 0.0, %v1247
        %v1249 = vpop.f32.mrb[0].mxu0
        %1250 = vmatprep.mubr.bf16.mxu0 0
        %1251 = vmatmul.mubr.bf16.gmra.mrb[0].mxu0 %v1165
        %v1252 = vpop.f32.mrb[0].mxu0
        %v1253 = vadd.f32 0.0, %v1252
        %v1254 = vpop.f32.mrb[0].mxu0
        %v1255 = vpop.f32.mrb[0].mxu0
        %v1256 = vadd.f32 0.0, %v1255
        %v1257 = vpop.f32.mrb[0].mxu0
        %1258 = vmatprep.mubr.bf16.mxu0 0
        %1259 = vmatmul.mubr.bf16.gmra.mrb[0].mxu0 %v1168
        %v1260 = vpop.f32.mrb[0].mxu0
        %v1261 = vadd.f32 0.0, %v1260
        %v1262 = vpop.f32.mrb[0].mxu0
        %v1263 = vpop.f32.mrb[0].mxu0
        %v1264 = vadd.f32 0.0, %v1263
        %v1265 = vpop.f32.mrb[0].mxu0
        %1266 = vdwg.mxu0
        %v1267 = vadd.f32 %v1035, %v1205
        %v1268 = vadd.f32 %v1038, %v1208
        %v1269 = vadd.f32 %v1043, %v1213
        %v1270 = vadd.f32 %v1046, %v1216
        %v1271 = vadd.f32 %v1051, %v1221
        %v1272 = vadd.f32 %v1054, %v1224
        %v1273 = vadd.f32 %v1059, %v1229
        %v1274 = vadd.f32 %v1062, %v1232
        %v1275 = vadd.f32 %v1067, %v1237
        %v1276 = vadd.f32 %v1070, %v1240
        %v1277 = vadd.f32 %v1075, %v1245
        %v1278 = vadd.f32 %v1078, %v1248
        %v1279 = vadd.f32 %v1083, %v1253
        %v1280 = vadd.f32 %v1086, %v1256
        %v1281 = vadd.f32 %v1091, %v1261
        %v1282 = vadd.f32 %v1094, %v1264
        %s1283 = scalar_lea.vmem %s2, 24
        %v1284 = vld [vmem:[%s1283] sm:$0xf]
        %v1285 = vld [vmem:[%s1283 + $0x4] sm:$0xf]
        %v1286 = vld [vmem:[%s285 + $0x4] sm:$0xc]
        %v1287 = vld [vmem:[%s285 + $0x8] sm:$0xf]
        %v1288 = vld [vmem:[%s285 + $0xc] sm:$0x3]
        %v1289 = vld [vmem:[%s285 + $0x20] sm:$0xc]
        %v1290 = vld [vmem:[%s285 + $0x24] sm:$0xf]
        %v1291 = vld [vmem:[%s285 + $0x28] sm:$0x3]
        %v1292 = vld [vmem:[%s285 + $0x3c] sm:$0xc]
        %v1293 = vld [vmem:[%s285 + $0x40] sm:$0xf]
        %v1294 = vld [vmem:[%s285 + $0x44] sm:$0x3]
        %v1295 = vld [vmem:[%s285 + $0x58] sm:$0xc]
        %v1296 = vld [vmem:[%s285 + $0x5c] sm:$0xf]
        %v1297 = vld [vmem:[%s285 + $0x60] sm:$0x3]
        %v1298 = vld [vmem:[%s285 + $0x74] sm:$0xc]
        %v1299 = vld [vmem:[%s285 + $0x78] sm:$0xf]
        %v1300 = vld [vmem:[%s285 + $0x7c] sm:$0x3]
        %v1301 = vld [vmem:[%s285 + $0x90] sm:$0xc]
        %v1302 = vld [vmem:[%s285 + $0x94] sm:$0xf]
        %v1303 = vld [vmem:[%s285 + $0x98] sm:$0x3]
        %v1304 = vld [vmem:[%s285 + $0xac] sm:$0xc]
        %v1305 = vld [vmem:[%s285 + $0xb0] sm:$0xf]
        %v1306 = vld [vmem:[%s285 + $0xb4] sm:$0x3]
        %v1307 = vld [vmem:[%s285 + $0xc8] sm:$0xc]
        %v1308 = vld [vmem:[%s285 + $0xcc] sm:$0xf]
        %v1309 = vld [vmem:[%s285 + $0xd0] sm:$0x3]
        %v1334 = vrot.slane %v1286, 6
        %v1335 = vrot.slane %v1334, 4
        %v1336 = vrot.slane %v1287, 6
        %v1337 = vsel %vm631, %v1335, %v1336
        %v1338 = vrot.slane %v1336, 4
        %v1339 = vrot.slane %v1288, 6
        %v1340 = vsel %vm631, %v1338, %v1339
        %v1341 = vrot.slane %v1289, 6
        %v1342 = vrot.slane %v1341, 4
        %v1343 = vrot.slane %v1290, 6
        %v1344 = vsel %vm631, %v1342, %v1343
        %v1345 = vrot.slane %v1343, 4
        %v1346 = vrot.slane %v1291, 6
        %v1347 = vsel %vm631, %v1345, %v1346
        %v1348 = vrot.slane %v1292, 6
        %v1349 = vrot.slane %v1348, 4
        %v1350 = vrot.slane %v1293, 6
        %v1351 = vsel %vm631, %v1349, %v1350
        %v1352 = vrot.slane %v1350, 4
        %v1353 = vrot.slane %v1294, 6
        %v1354 = vsel %vm631, %v1352, %v1353
        %v1355 = vrot.slane %v1295, 6
        %v1356 = vrot.slane %v1355, 4
        %v1357 = vrot.slane %v1296, 6
        %v1358 = vsel %vm631, %v1356, %v1357
        %v1359 = vrot.slane %v1357, 4
        %v1360 = vrot.slane %v1297, 6
        %v1361 = vsel %vm631, %v1359, %v1360
        %v1362 = vrot.slane %v1298, 6
        %v1363 = vrot.slane %v1362, 4
        %v1364 = vrot.slane %v1299, 6
        %v1365 = vsel %vm631, %v1363, %v1364
        %v1366 = vrot.slane %v1364, 4
        %v1367 = vrot.slane %v1300, 6
        %v1368 = vsel %vm631, %v1366, %v1367
        %v1369 = vrot.slane %v1301, 6
        %v1370 = vrot.slane %v1369, 4
        %v1371 = vrot.slane %v1302, 6
        %v1372 = vsel %vm631, %v1370, %v1371
        %v1373 = vrot.slane %v1371, 4
        %v1374 = vrot.slane %v1303, 6
        %v1375 = vsel %vm631, %v1373, %v1374
        %v1376 = vrot.slane %v1304, 6
        %v1377 = vrot.slane %v1376, 4
        %v1378 = vrot.slane %v1305, 6
        %v1379 = vsel %vm631, %v1377, %v1378
        %v1380 = vrot.slane %v1378, 4
        %v1381 = vrot.slane %v1306, 6
        %v1382 = vsel %vm631, %v1380, %v1381
        %v1383 = vrot.slane %v1307, 6
        %v1384 = vrot.slane %v1383, 4
        %v1385 = vrot.slane %v1308, 6
        %v1386 = vsel %vm631, %v1384, %v1385
        %v1387 = vrot.slane %v1385, 4
        %v1388 = vrot.slane %v1309, 6
        %v1389 = vsel %vm631, %v1387, %v1388
        %v1390 = vunpack.c.l.b16 %v1337
        %v1391 = vunpack.c.l.b16 %v1340
        %v1392 = vunpack.c.l.b16 %v1344
        %v1393 = vunpack.c.l.b16 %v1347
        %v1394 = vunpack.c.l.b16 %v1351
        %v1395 = vunpack.c.l.b16 %v1354
        %v1396 = vunpack.c.l.b16 %v1358
        %v1397 = vunpack.c.l.b16 %v1361
        %v1398 = vunpack.c.l.b16 %v1365
        %v1399 = vunpack.c.l.b16 %v1368
        %v1400 = vunpack.c.l.b16 %v1372
        %v1401 = vunpack.c.l.b16 %v1375
        %v1402 = vunpack.c.l.b16 %v1379
        %v1403 = vunpack.c.l.b16 %v1382
        %v1404 = vunpack.c.l.b16 %v1386
        %v1405 = vunpack.c.l.b16 %v1389
        %v1406 = vpack.c.b16 %v1391, %v1390
        %v1407 = vpack.c.b16 %v1393, %v1392
        %v1408 = vpack.c.b16 %v1395, %v1394
        %v1409 = vpack.c.b16 %v1397, %v1396
        %v1410 = vpack.c.b16 %v1399, %v1398
        %v1411 = vpack.c.b16 %v1401, %v1400
        %v1412 = vpack.c.b16 %v1403, %v1402
        %v1413 = vpack.c.b16 %v1405, %v1404
        %v1416 = vunpack.c.l.b16 %v1284
        %v1417 = vunpack.c.l.b16 %v1285
        %v1418 = vpack.c.b16 %v1417, %v1416
        %v1421 = vsel %vm429, %v1406, 0
        %v1424 = vsel %vm429, %v1407, 0
        %v1427 = vsel %vm429, %v1408, 0
        %v1430 = vsel %vm429, %v1409, 0
        %v1433 = vsel %vm429, %v1410, 0
        %v1436 = vsel %vm429, %v1411, 0
        %v1439 = vsel %vm429, %v1412, 0
        %v1442 = vsel %vm429, %v1413, 0
        %1444 = vmatprep.subr.bf16.mxu0 0
        %1445 = vmatpush1.bf16.msra.mxu0 %v1418
        %1446 = vmatprep.subr.bf16.mxu0 0
        %1447 = vmatpush1.bf16.msra.mxu0 0
        %1448 = vmatprep.subr.bf16.mxu0 0
        %1449 = vmatpush1.bf16.msra.mxu0 0
        %1450 = vmatprep.subr.bf16.mxu0 0
        %1451 = vmatpush1.bf16.msra.mxu0 0
        %1452 = vmatprep.subr.bf16.mxu0 0
        %1453 = vmatpush1.bf16.msra.mxu0 0
        %1454 = vmatprep.subr.bf16.mxu0 0
        %1455 = vmatpush1.bf16.msra.mxu0 0
        %1456 = vmatprep.subr.bf16.mxu0 0
        %1457 = vmatpush1.bf16.msra.mxu0 0
        %1458 = vmatprep.subr.bf16.mxu0 0
        %1459 = vmatpush1.bf16.msra.mxu0 0
        %1460 = vmatprep.subr.bf16.mxu0 0
        %1461 = vmatpush1.bf16.msra.mxu0 0
        %1462 = vmatprep.subr.bf16.mxu0 0
        %1463 = vmatpush1.bf16.msra.mxu0 0
        %1464 = vmatprep.subr.bf16.mxu0 0
        %1465 = vmatpush1.bf16.msra.mxu0 0
        %1466 = vmatprep.subr.bf16.mxu0 0
        %1467 = vmatpush1.bf16.msra.mxu0 0
        %1468 = vmatprep.subr.bf16.mxu0 0
        %1469 = vmatpush1.bf16.msra.mxu0 0
        %1470 = vmatprep.subr.bf16.mxu0 0
        %1471 = vmatpush1.bf16.msra.mxu0 0
        %1472 = vmatprep.subr.bf16.mxu0 0
        %1473 = vmatpush1.bf16.msra.mxu0 0
        %1474 = vmatprep.subr.bf16.mxu0 0
        %1475 = vmatpush1.bf16.msra.mxu0 0
        %1476 = vmatprep.mubr.bf16.mxu0 0
        %1477 = vmatmul.mubr.bf16.gmra.mrb[0].mxu0 %v1421
        %v1478 = vpop.f32.mrb[0].mxu0
        %v1479 = vadd.f32 0.0, %v1478
        %v1480 = vpop.f32.mrb[0].mxu0
        %v1481 = vpop.f32.mrb[0].mxu0
        %v1482 = vadd.f32 0.0, %v1481
        %v1483 = vpop.f32.mrb[0].mxu0
        %1484 = vmatprep.mubr.bf16.mxu0 0
        %1485 = vmatmul.mubr.bf16.gmra.mrb[0].mxu0 %v1424
        %v1486 = vpop.f32.mrb[0].mxu0
        %v1487 = vadd.f32 0.0, %v1486
        %v1488 = vpop.f32.mrb[0].mxu0
        %v1489 = vpop.f32.mrb[0].mxu0
        %v1490 = vadd.f32 0.0, %v1489
        %v1491 = vpop.f32.mrb[0].mxu0
        %1492 = vmatprep.mubr.bf16.mxu0 0
        %1493 = vmatmul.mubr.bf16.gmra.mrb[0].mxu0 %v1427
        %v1494 = vpop.f32.mrb[0].mxu0
        %v1495 = vadd.f32 0.0, %v1494
        %v1496 = vpop.f32.mrb[0].mxu0
        %v1497 = vpop.f32.mrb[0].mxu0
        %v1498 = vadd.f32 0.0, %v1497
        %v1499 = vpop.f32.mrb[0].mxu0
        %1500 = vmatprep.mubr.bf16.mxu0 0
        %1501 = vmatmul.mubr.bf16.gmra.mrb[0].mxu0 %v1430
        %v1502 = vpop.f32.mrb[0].mxu0
        %v1503 = vadd.f32 0.0, %v1502
        %v1504 = vpop.f32.mrb[0].mxu0
        %v1505 = vpop.f32.mrb[0].mxu0
        %v1506 = vadd.f32 0.0, %v1505
        %v1507 = vpop.f32.mrb[0].mxu0
        %1508 = vmatprep.mubr.bf16.mxu0 0
        %1509 = vmatmul.mubr.bf16.gmra.mrb[0].mxu0 %v1433
        %v1510 = vpop.f32.mrb[0].mxu0
        %v1511 = vadd.f32 0.0, %v1510
        %v1512 = vpop.f32.mrb[0].mxu0
        %v1513 = vpop.f32.mrb[0].mxu0
        %v1514 = vadd.f32 0.0, %v1513
        %v1515 = vpop.f32.mrb[0].mxu0
        %1516 = vmatprep.mubr.bf16.mxu0 0
        %1517 = vmatmul.mubr.bf16.gmra.mrb[0].mxu0 %v1436
        %v1518 = vpop.f32.mrb[0].mxu0
        %v1519 = vadd.f32 0.0, %v1518
        %v1520 = vpop.f32.mrb[0].mxu0
        %v1521 = vpop.f32.mrb[0].mxu0
        %v1522 = vadd.f32 0.0, %v1521
        %v1523 = vpop.f32.mrb[0].mxu0
        %1524 = vmatprep.mubr.bf16.mxu0 0
        %1525 = vmatmul.mubr.bf16.gmra.mrb[0].mxu0 %v1439
        %v1526 = vpop.f32.mrb[0].mxu0
        %v1527 = vadd.f32 0.0, %v1526
        %v1528 = vpop.f32.mrb[0].mxu0
        %v1529 = vpop.f32.mrb[0].mxu0
        %v1530 = vadd.f32 0.0, %v1529
        %v1531 = vpop.f32.mrb[0].mxu0
        %1532 = vmatprep.mubr.bf16.mxu0 0
        %1533 = vmatmul.mubr.bf16.gmra.mrb[0].mxu0 %v1442
        %v1534 = vpop.f32.mrb[0].mxu0
        %v1535 = vadd.f32 0.0, %v1534
        %v1536 = vpop.f32.mrb[0].mxu0
        %v1537 = vpop.f32.mrb[0].mxu0
        %v1538 = vadd.f32 0.0, %v1537
        %v1539 = vpop.f32.mrb[0].mxu0
        %1540 = vdwg.mxu0
        %v1541 = vadd.f32 %v1267, %v1479
        %v1542 = vadd.f32 %v1268, %v1482
        %v1543 = vadd.f32 %v1269, %v1487
        %v1544 = vadd.f32 %v1270, %v1490
        %v1545 = vadd.f32 %v1271, %v1495
        %v1546 = vadd.f32 %v1272, %v1498
        %v1547 = vadd.f32 %v1273, %v1503
        %v1548 = vadd.f32 %v1274, %v1506
        %v1549 = vadd.f32 %v1275, %v1511
        %v1550 = vadd.f32 %v1276, %v1514
        %v1551 = vadd.f32 %v1277, %v1519
        %v1552 = vadd.f32 %v1278, %v1522
        %v1553 = vadd.f32 %v1279, %v1527
        %v1554 = vadd.f32 %v1280, %v1530
        %v1555 = vadd.f32 %v1281, %v1535
        %v1556 = vadd.f32 %v1282, %v1538
        %s1557 = scalar_lea.vmem %s2, 32
        %v1558 = vld [vmem:[%s1557] sm:$0xf]
        %v1559 = vld [vmem:[%s1557 + $0x4] sm:$0xf]
        %v1562 = vunpack.c.l.b16 %v1558
        %v1563 = vunpack.c.l.b16 %v1559
        %v1564 = vpack.c.b16 %v1563, %v1562
        %1566 = vmatprep.subr.bf16.mxu0 0
        %1567 = vmatpush1.bf16.msra.mxu0 %v1564
        %1568 = vmatprep.subr.bf16.mxu0 0
        %1569 = vmatpush1.bf16.msra.mxu0 0
        %1570 = vmatprep.subr.bf16.mxu0 0
        %1571 = vmatpush1.bf16.msra.mxu0 0
        %1572 = vmatprep.subr.bf16.mxu0 0
        %1573 = vmatpush1.bf16.msra.mxu0 0
        %1574 = vmatprep.subr.bf16.mxu0 0
        %1575 = vmatpush1.bf16.msra.mxu0 0
        %1576 = vmatprep.subr.bf16.mxu0 0
        %1577 = vmatpush1.bf16.msra.mxu0 0
        %1578 = vmatprep.subr.bf16.mxu0 0
        %1579 = vmatpush1.bf16.msra.mxu0 0
        %1580 = vmatprep.subr.bf16.mxu0 0
        %1581 = vmatpush1.bf16.msra.mxu0 0
        %1582 = vmatprep.subr.bf16.mxu0 0
        %1583 = vmatpush1.bf16.msra.mxu0 0
        %1584 = vmatprep.subr.bf16.mxu0 0
        %1585 = vmatpush1.bf16.msra.mxu0 0
        %1586 = vmatprep.subr.bf16.mxu0 0
        %1587 = vmatpush1.bf16.msra.mxu0 0
        %1588 = vmatprep.subr.bf16.mxu0 0
        %1589 = vmatpush1.bf16.msra.mxu0 0
        %1590 = vmatprep.subr.bf16.mxu0 0
        %1591 = vmatpush1.bf16.msra.mxu0 0
        %1592 = vmatprep.subr.bf16.mxu0 0
        %1593 = vmatpush1.bf16.msra.mxu0 0
        %1594 = vmatprep.subr.bf16.mxu0 0
        %1595 = vmatpush1.bf16.msra.mxu0 0
        %1596 = vmatprep.subr.bf16.mxu0 0
        %1597 = vmatpush1.bf16.msra.mxu0 0
        %1598 = vmatprep.mubr.bf16.mxu0 0
        %1599 = vmatmul.mubr.bf16.gmra.mrb[0].mxu0 %v431
        %v1600 = vpop.f32.mrb[0].mxu0
        %v1601 = vadd.f32 0.0, %v1600
        %v1602 = vpop.f32.mrb[0].mxu0
        %v1603 = vpop.f32.mrb[0].mxu0
        %v1604 = vadd.f32 0.0, %v1603
        %v1605 = vpop.f32.mrb[0].mxu0
        %1606 = vmatprep.mubr.bf16.mxu0 0
        %1607 = vmatmul.mubr.bf16.gmra.mrb[0].mxu0 %v434
        %v1608 = vpop.f32.mrb[0].mxu0
        %v1609 = vadd.f32 0.0, %v1608
        %v1610 = vpop.f32.mrb[0].mxu0
        %v1611 = vpop.f32.mrb[0].mxu0
        %v1612 = vadd.f32 0.0, %v1611
        %v1613 = vpop.f32.mrb[0].mxu0
        %1614 = vmatprep.mubr.bf16.mxu0 0
        %1615 = vmatmul.mubr.bf16.gmra.mrb[0].mxu0 %v437
        %v1616 = vpop.f32.mrb[0].mxu0
        %v1617 = vadd.f32 0.0, %v1616
        %v1618 = vpop.f32.mrb[0].mxu0
        %v1619 = vpop.f32.mrb[0].mxu0
        %v1620 = vadd.f32 0.0, %v1619
        %v1621 = vpop.f32.mrb[0].mxu0
        %1622 = vmatprep.mubr.bf16.mxu0 0
        %1623 = vmatmul.mubr.bf16.gmra.mrb[0].mxu0 %v440
        %v1624 = vpop.f32.mrb[0].mxu0
        %v1625 = vadd.f32 0.0, %v1624
        %v1626 = vpop.f32.mrb[0].mxu0
        %v1627 = vpop.f32.mrb[0].mxu0
        %v1628 = vadd.f32 0.0, %v1627
        %v1629 = vpop.f32.mrb[0].mxu0
        %1630 = vmatprep.mubr.bf16.mxu0 0
        %1631 = vmatmul.mubr.bf16.gmra.mrb[0].mxu0 %v443
        %v1632 = vpop.f32.mrb[0].mxu0
        %v1633 = vadd.f32 0.0, %v1632
        %v1634 = vpop.f32.mrb[0].mxu0
        %v1635 = vpop.f32.mrb[0].mxu0
        %v1636 = vadd.f32 0.0, %v1635
        %v1637 = vpop.f32.mrb[0].mxu0
        %1638 = vmatprep.mubr.bf16.mxu0 0
        %1639 = vmatmul.mubr.bf16.gmra.mrb[0].mxu0 %v446
        %v1640 = vpop.f32.mrb[0].mxu0
        %v1641 = vadd.f32 0.0, %v1640
        %v1642 = vpop.f32.mrb[0].mxu0
        %v1643 = vpop.f32.mrb[0].mxu0
        %v1644 = vadd.f32 0.0, %v1643
        %v1645 = vpop.f32.mrb[0].mxu0
        %1646 = vmatprep.mubr.bf16.mxu0 0
        %1647 = vmatmul.mubr.bf16.gmra.mrb[0].mxu0 %v449
        %v1648 = vpop.f32.mrb[0].mxu0
        %v1649 = vadd.f32 0.0, %v1648
        %v1650 = vpop.f32.mrb[0].mxu0
        %v1651 = vpop.f32.mrb[0].mxu0
        %v1652 = vadd.f32 0.0, %v1651
        %v1653 = vpop.f32.mrb[0].mxu0
        %1654 = vmatprep.mubr.bf16.mxu0 0
        %1655 = vmatmul.mubr.bf16.gmra.mrb[0].mxu0 %v452
        %v1656 = vpop.f32.mrb[0].mxu0
        %v1657 = vadd.f32 0.0, %v1656
        %v1658 = vpop.f32.mrb[0].mxu0
        %v1659 = vpop.f32.mrb[0].mxu0
        %v1660 = vadd.f32 0.0, %v1659
        %v1661 = vpop.f32.mrb[0].mxu0
        %1662 = vdwg.mxu0
        %v1663 = vadd.f32 %v1541, %v1601
        %v1664 = vadd.f32 %v1542, %v1604
        %v1665 = vadd.f32 %v1543, %v1609
        %v1666 = vadd.f32 %v1544, %v1612
        %v1667 = vadd.f32 %v1545, %v1617
        %v1668 = vadd.f32 %v1546, %v1620
        %v1669 = vadd.f32 %v1547, %v1625
        %v1670 = vadd.f32 %v1548, %v1628
        %v1671 = vadd.f32 %v1549, %v1633
        %v1672 = vadd.f32 %v1550, %v1636
        %v1673 = vadd.f32 %v1551, %v1641
        %v1674 = vadd.f32 %v1552, %v1644
        %v1675 = vadd.f32 %v1553, %v1649
        %v1676 = vadd.f32 %v1554, %v1652
        %v1677 = vadd.f32 %v1555, %v1657
        %v1678 = vadd.f32 %v1556, %v1660
        %s1679 = scalar_lea.vmem %s2, 40
        %v1680 = vld [vmem:[%s1679] sm:$0xf]
        %v1681 = vld [vmem:[%s1679 + $0x4] sm:$0xf]
        %v1682 = vld [vmem:[%s285 + $0x10] sm:$0xf]
        %v1683 = vld [vmem:[%s285 + $0x2c] sm:$0xf]
        %v1684 = vld [vmem:[%s285 + $0x48] sm:$0xf]
        %v1685 = vld [vmem:[%s285 + $0x64] sm:$0xf]
        %v1686 = vld [vmem:[%s285 + $0x80] sm:$0xf]
        %v1687 = vld [vmem:[%s285 + $0x9c] sm:$0xf]
        %v1688 = vld [vmem:[%s285 + $0xb8] sm:$0xf]
        %v1689 = vld [vmem:[%s285 + $0xd4] sm:$0xf]
        %v1698 = vunpack.c.l.b16 %v287
        %v1699 = vunpack.c.l.b16 %v1682
        %v1700 = vunpack.c.l.b16 %v290
        %v1701 = vunpack.c.l.b16 %v1683
        %v1702 = vunpack.c.l.b16 %v293
        %v1703 = vunpack.c.l.b16 %v1684
        %v1704 = vunpack.c.l.b16 %v296
        %v1705 = vunpack.c.l.b16 %v1685
        %v1706 = vunpack.c.l.b16 %v299
        %v1707 = vunpack.c.l.b16 %v1686
        %v1708 = vunpack.c.l.b16 %v302
        %v1709 = vunpack.c.l.b16 %v1687
        %v1710 = vunpack.c.l.b16 %v305
        %v1711 = vunpack.c.l.b16 %v1688
        %v1712 = vunpack.c.l.b16 %v308
        %v1713 = vunpack.c.l.b16 %v1689
        %v1714 = vpack.c.b16 %v1699, %v1698
        %v1715 = vpack.c.b16 %v1701, %v1700
        %v1716 = vpack.c.b16 %v1703, %v1702
        %v1717 = vpack.c.b16 %v1705, %v1704
        %v1718 = vpack.c.b16 %v1707, %v1706
        %v1719 = vpack.c.b16 %v1709, %v1708
        %v1720 = vpack.c.b16 %v1711, %v1710
        %v1721 = vpack.c.b16 %v1713, %v1712
        %v1724 = vunpack.c.l.b16 %v1680
        %v1725 = vunpack.c.l.b16 %v1681
        %v1726 = vpack.c.b16 %v1725, %v1724
        %v1729 = vsel %vm429, %v1714, 0
        %v1732 = vsel %vm429, %v1715, 0
        %v1735 = vsel %vm429, %v1716, 0
        %v1738 = vsel %vm429, %v1717, 0
        %v1741 = vsel %vm429, %v1718, 0
        %v1744 = vsel %vm429, %v1719, 0
        %v1747 = vsel %vm429, %v1720, 0
        %v1750 = vsel %vm429, %v1721, 0
        %1752 = vmatprep.subr.bf16.mxu0 0
        %1753 = vmatpush1.bf16.msra.mxu0 %v1726
        %1754 = vmatprep.subr.bf16.mxu0 0
        %1755 = vmatpush1.bf16.msra.mxu0 0
        %1756 = vmatprep.subr.bf16.mxu0 0
        %1757 = vmatpush1.bf16.msra.mxu0 0
        %1758 = vmatprep.subr.bf16.mxu0 0
        %1759 = vmatpush1.bf16.msra.mxu0 0
        %1760 = vmatprep.subr.bf16.mxu0 0
        %1761 = vmatpush1.bf16.msra.mxu0 0
        %1762 = vmatprep.subr.bf16.mxu0 0
        %1763 = vmatpush1.bf16.msra.mxu0 0
        %1764 = vmatprep.subr.bf16.mxu0 0
        %1765 = vmatpush1.bf16.msra.mxu0 0
        %1766 = vmatprep.subr.bf16.mxu0 0
        %1767 = vmatpush1.bf16.msra.mxu0 0
        %1768 = vmatprep.subr.bf16.mxu0 0
        %1769 = vmatpush1.bf16.msra.mxu0 0
        %1770 = vmatprep.subr.bf16.mxu0 0
        %1771 = vmatpush1.bf16.msra.mxu0 0
        %1772 = vmatprep.subr.bf16.mxu0 0
        %1773 = vmatpush1.bf16.msra.mxu0 0
        %1774 = vmatprep.subr.bf16.mxu0 0
        %1775 = vmatpush1.bf16.msra.mxu0 0
        %1776 = vmatprep.subr.bf16.mxu0 0
        %1777 = vmatpush1.bf16.msra.mxu0 0
        %1778 = vmatprep.subr.bf16.mxu0 0
        %1779 = vmatpush1.bf16.msra.mxu0 0
        %1780 = vmatprep.subr.bf16.mxu0 0
        %1781 = vmatpush1.bf16.msra.mxu0 0
        %1782 = vmatprep.subr.bf16.mxu0 0
        %1783 = vmatpush1.bf16.msra.mxu0 0
        %1784 = vmatprep.mubr.bf16.mxu0 0
        %1785 = vmatmul.mubr.bf16.gmra.mrb[0].mxu0 %v1729
        %v1786 = vpop.f32.mrb[0].mxu0
        %v1787 = vadd.f32 0.0, %v1786
        %v1788 = vpop.f32.mrb[0].mxu0
        %v1789 = vpop.f32.mrb[0].mxu0
        %v1790 = vadd.f32 0.0, %v1789
        %v1791 = vpop.f32.mrb[0].mxu0
        %1792 = vmatprep.mubr.bf16.mxu0 0
        %1793 = vmatmul.mubr.bf16.gmra.mrb[0].mxu0 %v1732
        %v1794 = vpop.f32.mrb[0].mxu0
        %v1795 = vadd.f32 0.0, %v1794
        %v1796 = vpop.f32.mrb[0].mxu0
        %v1797 = vpop.f32.mrb[0].mxu0
        %v1798 = vadd.f32 0.0, %v1797
        %v1799 = vpop.f32.mrb[0].mxu0
        %1800 = vmatprep.mubr.bf16.mxu0 0
        %1801 = vmatmul.mubr.bf16.gmra.mrb[0].mxu0 %v1735
        %v1802 = vpop.f32.mrb[0].mxu0
        %v1803 = vadd.f32 0.0, %v1802
        %v1804 = vpop.f32.mrb[0].mxu0
        %v1805 = vpop.f32.mrb[0].mxu0
        %v1806 = vadd.f32 0.0, %v1805
        %v1807 = vpop.f32.mrb[0].mxu0
        %1808 = vmatprep.mubr.bf16.mxu0 0
        %1809 = vmatmul.mubr.bf16.gmra.mrb[0].mxu0 %v1738
        %v1810 = vpop.f32.mrb[0].mxu0
        %v1811 = vadd.f32 0.0, %v1810
        %v1812 = vpop.f32.mrb[0].mxu0
        %v1813 = vpop.f32.mrb[0].mxu0
        %v1814 = vadd.f32 0.0, %v1813
        %v1815 = vpop.f32.mrb[0].mxu0
        %1816 = vmatprep.mubr.bf16.mxu0 0
        %1817 = vmatmul.mubr.bf16.gmra.mrb[0].mxu0 %v1741
        %v1818 = vpop.f32.mrb[0].mxu0
        %v1819 = vadd.f32 0.0, %v1818
        %v1820 = vpop.f32.mrb[0].mxu0
        %v1821 = vpop.f32.mrb[0].mxu0
        %v1822 = vadd.f32 0.0, %v1821
        %v1823 = vpop.f32.mrb[0].mxu0
        %1824 = vmatprep.mubr.bf16.mxu0 0
        %1825 = vmatmul.mubr.bf16.gmra.mrb[0].mxu0 %v1744
        %v1826 = vpop.f32.mrb[0].mxu0
        %v1827 = vadd.f32 0.0, %v1826
        %v1828 = vpop.f32.mrb[0].mxu0
        %v1829 = vpop.f32.mrb[0].mxu0
        %v1830 = vadd.f32 0.0, %v1829
        %v1831 = vpop.f32.mrb[0].mxu0
        %1832 = vmatprep.mubr.bf16.mxu0 0
        %1833 = vmatmul.mubr.bf16.gmra.mrb[0].mxu0 %v1747
        %v1834 = vpop.f32.mrb[0].mxu0
        %v1835 = vadd.f32 0.0, %v1834
        %v1836 = vpop.f32.mrb[0].mxu0
        %v1837 = vpop.f32.mrb[0].mxu0
        %v1838 = vadd.f32 0.0, %v1837
        %v1839 = vpop.f32.mrb[0].mxu0
        %1840 = vmatprep.mubr.bf16.mxu0 0
        %1841 = vmatmul.mubr.bf16.gmra.mrb[0].mxu0 %v1750
        %v1842 = vpop.f32.mrb[0].mxu0
        %v1843 = vadd.f32 0.0, %v1842
        %v1844 = vpop.f32.mrb[0].mxu0
        %v1845 = vpop.f32.mrb[0].mxu0
        %v1846 = vadd.f32 0.0, %v1845
        %v1847 = vpop.f32.mrb[0].mxu0
        %1848 = vdwg.mxu0
        %v1849 = vadd.f32 %v1663, %v1787
        %v1850 = vadd.f32 %v1664, %v1790
        %v1851 = vadd.f32 %v1665, %v1795
        %v1852 = vadd.f32 %v1666, %v1798
        %v1853 = vadd.f32 %v1667, %v1803
        %v1854 = vadd.f32 %v1668, %v1806
        %v1855 = vadd.f32 %v1669, %v1811
        %v1856 = vadd.f32 %v1670, %v1814
        %v1857 = vadd.f32 %v1671, %v1819
        %v1858 = vadd.f32 %v1672, %v1822
        %v1859 = vadd.f32 %v1673, %v1827
        %v1860 = vadd.f32 %v1674, %v1830
        %v1861 = vadd.f32 %v1675, %v1835
        %v1862 = vadd.f32 %v1676, %v1838
        %v1863 = vadd.f32 %v1677, %v1843
        %v1864 = vadd.f32 %v1678, %v1846
        %s1865 = scalar_lea.vmem %s2, 48
        %v1866 = vld [vmem:[%s1865] sm:$0xf]
        %v1867 = vld [vmem:[%s1865 + $0x4] sm:$0xf]
        %s1868 = sadd.s32 %s280, 24
        %s1869 = smul.u32 %s1868, 7
        %s1870 = smul.addr %s1869, 4
        %s1871 = scalar_lea.vmem %s274, %s1870
        %v1872 = vld [vmem:[%s1871 + $0x4] sm:$0xc]
        %v1873 = vld [vmem:[%s1871 + $0x8] sm:$0xf]
        %v1874 = vld [vmem:[%s1871 + $0xc] sm:$0x3]
        %v1875 = vld [vmem:[%s1871 + $0x20] sm:$0xc]
        %v1876 = vld [vmem:[%s1871 + $0x24] sm:$0xf]
        %v1877 = vld [vmem:[%s1871 + $0x28] sm:$0x3]
        %v1878 = vld [vmem:[%s1871 + $0x3c] sm:$0xc]
        %v1879 = vld [vmem:[%s1871 + $0x40] sm:$0xf]
        %v1880 = vld [vmem:[%s1871 + $0x44] sm:$0x3]
        %v1881 = vld [vmem:[%s1871 + $0x58] sm:$0xc]
        %v1882 = vld [vmem:[%s1871 + $0x5c] sm:$0xf]
        %v1883 = vld [vmem:[%s1871 + $0x60] sm:$0x3]
        %v1884 = vld [vmem:[%s1871 + $0x74] sm:$0xc]
        %v1885 = vld [vmem:[%s1871 + $0x78] sm:$0xf]
        %v1886 = vld [vmem:[%s1871 + $0x7c] sm:$0x3]
        %v1887 = vld [vmem:[%s1871 + $0x90] sm:$0xc]
        %v1888 = vld [vmem:[%s1871 + $0x94] sm:$0xf]
        %v1889 = vld [vmem:[%s1871 + $0x98] sm:$0x3]
        %v1890 = vld [vmem:[%s1871 + $0xac] sm:$0xc]
        %v1891 = vld [vmem:[%s1871 + $0xb0] sm:$0xf]
        %v1892 = vld [vmem:[%s1871 + $0xb4] sm:$0x3]
        %v1893 = vld [vmem:[%s1871 + $0xc8] sm:$0xc]
        %v1894 = vld [vmem:[%s1871 + $0xcc] sm:$0xf]
        %v1895 = vld [vmem:[%s1871 + $0xd0] sm:$0x3]
        %v1920 = vrot.slane %v1872, 6
        %v1921 = vrot.slane %v1920, 4
        %v1922 = vrot.slane %v1873, 6
        %v1923 = vsel %vm631, %v1921, %v1922
        %v1924 = vrot.slane %v1922, 4
        %v1925 = vrot.slane %v1874, 6
        %v1926 = vsel %vm631, %v1924, %v1925
        %v1927 = vrot.slane %v1875, 6
        %v1928 = vrot.slane %v1927, 4
        %v1929 = vrot.slane %v1876, 6
        %v1930 = vsel %vm631, %v1928, %v1929
        %v1931 = vrot.slane %v1929, 4
        %v1932 = vrot.slane %v1877, 6
        %v1933 = vsel %vm631, %v1931, %v1932
        %v1934 = vrot.slane %v1878, 6
        %v1935 = vrot.slane %v1934, 4
        %v1936 = vrot.slane %v1879, 6
        %v1937 = vsel %vm631, %v1935, %v1936
        %v1938 = vrot.slane %v1936, 4
        %v1939 = vrot.slane %v1880, 6
        %v1940 = vsel %vm631, %v1938, %v1939
        %v1941 = vrot.slane %v1881, 6
        %v1942 = vrot.slane %v1941, 4
        %v1943 = vrot.slane %v1882, 6
        %v1944 = vsel %vm631, %v1942, %v1943
        %v1945 = vrot.slane %v1943, 4
        %v1946 = vrot.slane %v1883, 6
        %v1947 = vsel %vm631, %v1945, %v1946
        %v1948 = vrot.slane %v1884, 6
        %v1949 = vrot.slane %v1948, 4
        %v1950 = vrot.slane %v1885, 6
        %v1951 = vsel %vm631, %v1949, %v1950
        %v1952 = vrot.slane %v1950, 4
        %v1953 = vrot.slane %v1886, 6
        %v1954 = vsel %vm631, %v1952, %v1953
        %v1955 = vrot.slane %v1887, 6
        %v1956 = vrot.slane %v1955, 4
        %v1957 = vrot.slane %v1888, 6
        %v1958 = vsel %vm631, %v1956, %v1957
        %v1959 = vrot.slane %v1957, 4
        %v1960 = vrot.slane %v1889, 6
        %v1961 = vsel %vm631, %v1959, %v1960
        %v1962 = vrot.slane %v1890, 6
        %v1963 = vrot.slane %v1962, 4
        %v1964 = vrot.slane %v1891, 6
        %v1965 = vsel %vm631, %v1963, %v1964
        %v1966 = vrot.slane %v1964, 4
        %v1967 = vrot.slane %v1892, 6
        %v1968 = vsel %vm631, %v1966, %v1967
        %v1969 = vrot.slane %v1893, 6
        %v1970 = vrot.slane %v1969, 4
        %v1971 = vrot.slane %v1894, 6
        %v1972 = vsel %vm631, %v1970, %v1971
        %v1973 = vrot.slane %v1971, 4
        %v1974 = vrot.slane %v1895, 6
        %v1975 = vsel %vm631, %v1973, %v1974
        %v1976 = vunpack.c.l.b16 %v1923
        %v1977 = vunpack.c.l.b16 %v1926
        %v1978 = vunpack.c.l.b16 %v1930
        %v1979 = vunpack.c.l.b16 %v1933
        %v1980 = vunpack.c.l.b16 %v1937
        %v1981 = vunpack.c.l.b16 %v1940
        %v1982 = vunpack.c.l.b16 %v1944
        %v1983 = vunpack.c.l.b16 %v1947
        %v1984 = vunpack.c.l.b16 %v1951
        %v1985 = vunpack.c.l.b16 %v1954
        %v1986 = vunpack.c.l.b16 %v1958
        %v1987 = vunpack.c.l.b16 %v1961
        %v1988 = vunpack.c.l.b16 %v1965
        %v1989 = vunpack.c.l.b16 %v1968
        %v1990 = vunpack.c.l.b16 %v1972
        %v1991 = vunpack.c.l.b16 %v1975
        %v1992 = vpack.c.b16 %v1977, %v1976
        %v1993 = vpack.c.b16 %v1979, %v1978
        %v1994 = vpack.c.b16 %v1981, %v1980
        %v1995 = vpack.c.b16 %v1983, %v1982
        %v1996 = vpack.c.b16 %v1985, %v1984
        %v1997 = vpack.c.b16 %v1987, %v1986
        %v1998 = vpack.c.b16 %v1989, %v1988
        %v1999 = vpack.c.b16 %v1991, %v1990
        %v2002 = vunpack.c.l.b16 %v1866
        %v2003 = vunpack.c.l.b16 %v1867
        %v2004 = vpack.c.b16 %v2003, %v2002
        %v2007 = vsel %vm429, %v1992, 0
        %v2010 = vsel %vm429, %v1993, 0
        %v2013 = vsel %vm429, %v1994, 0
        %v2016 = vsel %vm429, %v1995, 0
        %v2019 = vsel %vm429, %v1996, 0
        %v2022 = vsel %vm429, %v1997, 0
        %v2025 = vsel %vm429, %v1998, 0
        %v2028 = vsel %vm429, %v1999, 0
        %2030 = vmatprep.subr.bf16.mxu0 0
        %2031 = vmatpush1.bf16.msra.mxu0 %v2004
        %2032 = vmatprep.subr.bf16.mxu0 0
        %2033 = vmatpush1.bf16.msra.mxu0 0
        %2034 = vmatprep.subr.bf16.mxu0 0
        %2035 = vmatpush1.bf16.msra.mxu0 0
        %2036 = vmatprep.subr.bf16.mxu0 0
        %2037 = vmatpush1.bf16.msra.mxu0 0
        %2038 = vmatprep.subr.bf16.mxu0 0
        %2039 = vmatpush1.bf16.msra.mxu0 0
        %2040 = vmatprep.subr.bf16.mxu0 0
        %2041 = vmatpush1.bf16.msra.mxu0 0
        %2042 = vmatprep.subr.bf16.mxu0 0
        %2043 = vmatpush1.bf16.msra.mxu0 0
        %2044 = vmatprep.subr.bf16.mxu0 0
        %2045 = vmatpush1.bf16.msra.mxu0 0
        %2046 = vmatprep.subr.bf16.mxu0 0
        %2047 = vmatpush1.bf16.msra.mxu0 0
        %2048 = vmatprep.subr.bf16.mxu0 0
        %2049 = vmatpush1.bf16.msra.mxu0 0
        %2050 = vmatprep.subr.bf16.mxu0 0
        %2051 = vmatpush1.bf16.msra.mxu0 0
        %2052 = vmatprep.subr.bf16.mxu0 0
        %2053 = vmatpush1.bf16.msra.mxu0 0
        %2054 = vmatprep.subr.bf16.mxu0 0
        %2055 = vmatpush1.bf16.msra.mxu0 0
        %2056 = vmatprep.subr.bf16.mxu0 0
        %2057 = vmatpush1.bf16.msra.mxu0 0
        %2058 = vmatprep.subr.bf16.mxu0 0
        %2059 = vmatpush1.bf16.msra.mxu0 0
        %2060 = vmatprep.subr.bf16.mxu0 0
        %2061 = vmatpush1.bf16.msra.mxu0 0
        %2062 = vmatprep.mubr.bf16.mxu0 0
        %2063 = vmatmul.mubr.bf16.gmra.mrb[0].mxu0 %v2007
        %v2064 = vpop.f32.mrb[0].mxu0
        %v2065 = vadd.f32 0.0, %v2064
        %v2066 = vpop.f32.mrb[0].mxu0
        %v2067 = vpop.f32.mrb[0].mxu0
        %v2068 = vadd.f32 0.0, %v2067
        %v2069 = vpop.f32.mrb[0].mxu0
        %2070 = vmatprep.mubr.bf16.mxu0 0
        %2071 = vmatmul.mubr.bf16.gmra.mrb[0].mxu0 %v2010
        %v2072 = vpop.f32.mrb[0].mxu0
        %v2073 = vadd.f32 0.0, %v2072
        %v2074 = vpop.f32.mrb[0].mxu0
        %v2075 = vpop.f32.mrb[0].mxu0
        %v2076 = vadd.f32 0.0, %v2075
        %v2077 = vpop.f32.mrb[0].mxu0
        %2078 = vmatprep.mubr.bf16.mxu0 0
        %2079 = vmatmul.mubr.bf16.gmra.mrb[0].mxu0 %v2013
        %v2080 = vpop.f32.mrb[0].mxu0
        %v2081 = vadd.f32 0.0, %v2080
        %v2082 = vpop.f32.mrb[0].mxu0
        %v2083 = vpop.f32.mrb[0].mxu0
        %v2084 = vadd.f32 0.0, %v2083
        %v2085 = vpop.f32.mrb[0].mxu0
        %2086 = vmatprep.mubr.bf16.mxu0 0
        %2087 = vmatmul.mubr.bf16.gmra.mrb[0].mxu0 %v2016
        %v2088 = vpop.f32.mrb[0].mxu0
        %v2089 = vadd.f32 0.0, %v2088
        %v2090 = vpop.f32.mrb[0].mxu0
        %v2091 = vpop.f32.mrb[0].mxu0
        %v2092 = vadd.f32 0.0, %v2091
        %v2093 = vpop.f32.mrb[0].mxu0
        %2094 = vmatprep.mubr.bf16.mxu0 0
        %2095 = vmatmul.mubr.bf16.gmra.mrb[0].mxu0 %v2019
        %v2096 = vpop.f32.mrb[0].mxu0
        %v2097 = vadd.f32 0.0, %v2096
        %v2098 = vpop.f32.mrb[0].mxu0
        %v2099 = vpop.f32.mrb[0].mxu0
        %v2100 = vadd.f32 0.0, %v2099
        %v2101 = vpop.f32.mrb[0].mxu0
        %2102 = vmatprep.mubr.bf16.mxu0 0
        %2103 = vmatmul.mubr.bf16.gmra.mrb[0].mxu0 %v2022
        %v2104 = vpop.f32.mrb[0].mxu0
        %v2105 = vadd.f32 0.0, %v2104
        %v2106 = vpop.f32.mrb[0].mxu0
        %v2107 = vpop.f32.mrb[0].mxu0
        %v2108 = vadd.f32 0.0, %v2107
        %v2109 = vpop.f32.mrb[0].mxu0
        %2110 = vmatprep.mubr.bf16.mxu0 0
        %2111 = vmatmul.mubr.bf16.gmra.mrb[0].mxu0 %v2025
        %v2112 = vpop.f32.mrb[0].mxu0
        %v2113 = vadd.f32 0.0, %v2112
        %v2114 = vpop.f32.mrb[0].mxu0
        %v2115 = vpop.f32.mrb[0].mxu0
        %v2116 = vadd.f32 0.0, %v2115
        %v2117 = vpop.f32.mrb[0].mxu0
        %2118 = vmatprep.mubr.bf16.mxu0 0
        %2119 = vmatmul.mubr.bf16.gmra.mrb[0].mxu0 %v2028
        %v2120 = vpop.f32.mrb[0].mxu0
        %v2121 = vadd.f32 0.0, %v2120
        %v2122 = vpop.f32.mrb[0].mxu0
        %v2123 = vpop.f32.mrb[0].mxu0
        %v2124 = vadd.f32 0.0, %v2123
        %v2125 = vpop.f32.mrb[0].mxu0
        %2126 = vdwg.mxu0
        %v2127 = vadd.f32 %v1849, %v2065
        %v2128 = vadd.f32 %v1850, %v2068
        %v2129 = vadd.f32 %v1851, %v2073
        %v2130 = vadd.f32 %v1852, %v2076
        %v2131 = vadd.f32 %v1853, %v2081
        %v2132 = vadd.f32 %v1854, %v2084
        %v2133 = vadd.f32 %v1855, %v2089
        %v2134 = vadd.f32 %v1856, %v2092
        %v2135 = vadd.f32 %v1857, %v2097
        %v2136 = vadd.f32 %v1858, %v2100
        %v2137 = vadd.f32 %v1859, %v2105
        %v2138 = vadd.f32 %v1860, %v2108
        %v2139 = vadd.f32 %v1861, %v2113
        %v2140 = vadd.f32 %v1862, %v2116
        %v2141 = vadd.f32 %v1863, %v2121
        %v2142 = vadd.f32 %v1864, %v2124
        %s2143 = scalar_lea.vmem %s2, 56
        %v2144 = vld [vmem:[%s2143] sm:$0xf]
        %v2145 = vld [vmem:[%s2143 + $0x4] sm:$0xf]
        %v2146 = vld [vmem:[%s1871 + $0x8] sm:$0xe]
        %v2147 = vld [vmem:[%s1871 + $0xc] sm:$0xf]
        %v2148 = vld [vmem:[%s1871 + $0x10] sm:$0x1]
        %v2149 = vld [vmem:[%s1871 + $0x24] sm:$0xe]
        %v2150 = vld [vmem:[%s1871 + $0x28] sm:$0xf]
        %v2151 = vld [vmem:[%s1871 + $0x2c] sm:$0x1]
        %v2152 = vld [vmem:[%s1871 + $0x40] sm:$0xe]
        %v2153 = vld [vmem:[%s1871 + $0x44] sm:$0xf]
        %v2154 = vld [vmem:[%s1871 + $0x48] sm:$0x1]
        %v2155 = vld [vmem:[%s1871 + $0x5c] sm:$0xe]
        %v2156 = vld [vmem:[%s1871 + $0x60] sm:$0xf]
        %v2157 = vld [vmem:[%s1871 + $0x64] sm:$0x1]
        %v2158 = vld [vmem:[%s1871 + $0x78] sm:$0xe]
        %v2159 = vld [vmem:[%s1871 + $0x7c] sm:$0xf]
        %v2160 = vld [vmem:[%s1871 + $0x80] sm:$0x1]
        %v2161 = vld [vmem:[%s1871 + $0x94] sm:$0xe]
        %v2162 = vld [vmem:[%s1871 + $0x98] sm:$0xf]
        %v2163 = vld [vmem:[%s1871 + $0x9c] sm:$0x1]
        %v2164 = vld [vmem:[%s1871 + $0xb0] sm:$0xe]
        %v2165 = vld [vmem:[%s1871 + $0xb4] sm:$0xf]
        %v2166 = vld [vmem:[%s1871 + $0xb8] sm:$0x1]
        %v2167 = vld [vmem:[%s1871 + $0xcc] sm:$0xe]
        %v2168 = vld [vmem:[%s1871 + $0xd0] sm:$0xf]
        %v2169 = vld [vmem:[%s1871 + $0xd4] sm:$0x1]
        %v2194 = vrot.slane %v2146, 5
        %v2195 = vrot.slane %v2194, 4
        %v2196 = vrot.slane %v2147, 5
        %v2197 = vsel %vm336, %v2195, %v2196
        %v2198 = vrot.slane %v2196, 4
        %v2199 = vrot.slane %v2148, 5
        %v2200 = vsel %vm336, %v2198, %v2199
        %v2201 = vrot.slane %v2149, 5
        %v2202 = vrot.slane %v2201, 4
        %v2203 = vrot.slane %v2150, 5
        %v2204 = vsel %vm336, %v2202, %v2203
        %v2205 = vrot.slane %v2203, 4
        %v2206 = vrot.slane %v2151, 5
        %v2207 = vsel %vm336, %v2205, %v2206
        %v2208 = vrot.slane %v2152, 5
        %v2209 = vrot.slane %v2208, 4
        %v2210 = vrot.slane %v2153, 5
        %v2211 = vsel %vm336, %v2209, %v2210
        %v2212 = vrot.slane %v2210, 4
        %v2213 = vrot.slane %v2154, 5
        %v2214 = vsel %vm336, %v2212, %v2213
        %v2215 = vrot.slane %v2155, 5
        %v2216 = vrot.slane %v2215, 4
        %v2217 = vrot.slane %v2156, 5
        %v2218 = vsel %vm336, %v2216, %v2217
        %v2219 = vrot.slane %v2217, 4
        %v2220 = vrot.slane %v2157, 5
        %v2221 = vsel %vm336, %v2219, %v2220
        %v2222 = vrot.slane %v2158, 5
        %v2223 = vrot.slane %v2222, 4
        %v2224 = vrot.slane %v2159, 5
        %v2225 = vsel %vm336, %v2223, %v2224
        %v2226 = vrot.slane %v2224, 4
        %v2227 = vrot.slane %v2160, 5
        %v2228 = vsel %vm336, %v2226, %v2227
        %v2229 = vrot.slane %v2161, 5
        %v2230 = vrot.slane %v2229, 4
        %v2231 = vrot.slane %v2162, 5
        %v2232 = vsel %vm336, %v2230, %v2231
        %v2233 = vrot.slane %v2231, 4
        %v2234 = vrot.slane %v2163, 5
        %v2235 = vsel %vm336, %v2233, %v2234
        %v2236 = vrot.slane %v2164, 5
        %v2237 = vrot.slane %v2236, 4
        %v2238 = vrot.slane %v2165, 5
        %v2239 = vsel %vm336, %v2237, %v2238
        %v2240 = vrot.slane %v2238, 4
        %v2241 = vrot.slane %v2166, 5
        %v2242 = vsel %vm336, %v2240, %v2241
        %v2243 = vrot.slane %v2167, 5
        %v2244 = vrot.slane %v2243, 4
        %v2245 = vrot.slane %v2168, 5
        %v2246 = vsel %vm336, %v2244, %v2245
        %v2247 = vrot.slane %v2245, 4
        %v2248 = vrot.slane %v2169, 5
        %v2249 = vsel %vm336, %v2247, %v2248
        %v2250 = vunpack.c.l.b16 %v2197
        %v2251 = vunpack.c.l.b16 %v2200
        %v2252 = vunpack.c.l.b16 %v2204
        %v2253 = vunpack.c.l.b16 %v2207
        %v2254 = vunpack.c.l.b16 %v2211
        %v2255 = vunpack.c.l.b16 %v2214
        %v2256 = vunpack.c.l.b16 %v2218
        %v2257 = vunpack.c.l.b16 %v2221
        %v2258 = vunpack.c.l.b16 %v2225
        %v2259 = vunpack.c.l.b16 %v2228
        %v2260 = vunpack.c.l.b16 %v2232
        %v2261 = vunpack.c.l.b16 %v2235
        %v2262 = vunpack.c.l.b16 %v2239
        %v2263 = vunpack.c.l.b16 %v2242
        %v2264 = vunpack.c.l.b16 %v2246
        %v2265 = vunpack.c.l.b16 %v2249
        %v2266 = vpack.c.b16 %v2251, %v2250
        %v2267 = vpack.c.b16 %v2253, %v2252
        %v2268 = vpack.c.b16 %v2255, %v2254
        %v2269 = vpack.c.b16 %v2257, %v2256
        %v2270 = vpack.c.b16 %v2259, %v2258
        %v2271 = vpack.c.b16 %v2261, %v2260
        %v2272 = vpack.c.b16 %v2263, %v2262
        %v2273 = vpack.c.b16 %v2265, %v2264
        %v2276 = vunpack.c.l.b16 %v2144
        %v2277 = vunpack.c.l.b16 %v2145
        %v2278 = vpack.c.b16 %v2277, %v2276
        %v2281 = vsel %vm429, %v2266, 0
        %v2284 = vsel %vm429, %v2267, 0
        %v2287 = vsel %vm429, %v2268, 0
        %v2290 = vsel %vm429, %v2269, 0
        %v2293 = vsel %vm429, %v2270, 0
        %v2296 = vsel %vm429, %v2271, 0
        %v2299 = vsel %vm429, %v2272, 0
        %v2302 = vsel %vm429, %v2273, 0
        %2304 = vmatprep.subr.bf16.mxu0 0
        %2305 = vmatpush1.bf16.msra.mxu0 %v2278
        %2306 = vmatprep.subr.bf16.mxu0 0
        %2307 = vmatpush1.bf16.msra.mxu0 0
        %2308 = vmatprep.subr.bf16.mxu0 0
        %2309 = vmatpush1.bf16.msra.mxu0 0
        %2310 = vmatprep.subr.bf16.mxu0 0
        %2311 = vmatpush1.bf16.msra.mxu0 0
        %2312 = vmatprep.subr.bf16.mxu0 0
        %2313 = vmatpush1.bf16.msra.mxu0 0
        %2314 = vmatprep.subr.bf16.mxu0 0
        %2315 = vmatpush1.bf16.msra.mxu0 0
        %2316 = vmatprep.subr.bf16.mxu0 0
        %2317 = vmatpush1.bf16.msra.mxu0 0
        %2318 = vmatprep.subr.bf16.mxu0 0
        %2319 = vmatpush1.bf16.msra.mxu0 0
        %2320 = vmatprep.subr.bf16.mxu0 0
        %2321 = vmatpush1.bf16.msra.mxu0 0
        %2322 = vmatprep.subr.bf16.mxu0 0
        %2323 = vmatpush1.bf16.msra.mxu0 0
        %2324 = vmatprep.subr.bf16.mxu0 0
        %2325 = vmatpush1.bf16.msra.mxu0 0
        %2326 = vmatprep.subr.bf16.mxu0 0
        %2327 = vmatpush1.bf16.msra.mxu0 0
        %2328 = vmatprep.subr.bf16.mxu0 0
        %2329 = vmatpush1.bf16.msra.mxu0 0
        %2330 = vmatprep.subr.bf16.mxu0 0
        %2331 = vmatpush1.bf16.msra.mxu0 0
        %2332 = vmatprep.subr.bf16.mxu0 0
        %2333 = vmatpush1.bf16.msra.mxu0 0
        %2334 = vmatprep.subr.bf16.mxu0 0
        %2335 = vmatpush1.bf16.msra.mxu0 0
        %2336 = vmatprep.mubr.bf16.mxu0 0
        %2337 = vmatmul.mubr.bf16.gmra.mrb[0].mxu0 %v2281
        %v2338 = vpop.f32.mrb[0].mxu0
        %v2339 = vadd.f32 0.0, %v2338
        %v2340 = vpop.f32.mrb[0].mxu0
        %v2341 = vpop.f32.mrb[0].mxu0
        %v2342 = vadd.f32 0.0, %v2341
        %v2343 = vpop.f32.mrb[0].mxu0
        %2344 = vmatprep.mubr.bf16.mxu0 0
        %2345 = vmatmul.mubr.bf16.gmra.mrb[0].mxu0 %v2284
        %v2346 = vpop.f32.mrb[0].mxu0
        %v2347 = vadd.f32 0.0, %v2346
        %v2348 = vpop.f32.mrb[0].mxu0
        %v2349 = vpop.f32.mrb[0].mxu0
        %v2350 = vadd.f32 0.0, %v2349
        %v2351 = vpop.f32.mrb[0].mxu0
        %2352 = vmatprep.mubr.bf16.mxu0 0
        %2353 = vmatmul.mubr.bf16.gmra.mrb[0].mxu0 %v2287
        %v2354 = vpop.f32.mrb[0].mxu0
        %v2355 = vadd.f32 0.0, %v2354
        %v2356 = vpop.f32.mrb[0].mxu0
        %v2357 = vpop.f32.mrb[0].mxu0
        %v2358 = vadd.f32 0.0, %v2357
        %v2359 = vpop.f32.mrb[0].mxu0
        %2360 = vmatprep.mubr.bf16.mxu0 0
        %2361 = vmatmul.mubr.bf16.gmra.mrb[0].mxu0 %v2290
        %v2362 = vpop.f32.mrb[0].mxu0
        %v2363 = vadd.f32 0.0, %v2362
        %v2364 = vpop.f32.mrb[0].mxu0
        %v2365 = vpop.f32.mrb[0].mxu0
        %v2366 = vadd.f32 0.0, %v2365
        %v2367 = vpop.f32.mrb[0].mxu0
        %2368 = vmatprep.mubr.bf16.mxu0 0
        %2369 = vmatmul.mubr.bf16.gmra.mrb[0].mxu0 %v2293
        %v2370 = vpop.f32.mrb[0].mxu0
        %v2371 = vadd.f32 0.0, %v2370
        %v2372 = vpop.f32.mrb[0].mxu0
        %v2373 = vpop.f32.mrb[0].mxu0
        %v2374 = vadd.f32 0.0, %v2373
        %v2375 = vpop.f32.mrb[0].mxu0
        %2376 = vmatprep.mubr.bf16.mxu0 0
        %2377 = vmatmul.mubr.bf16.gmra.mrb[0].mxu0 %v2296
        %v2378 = vpop.f32.mrb[0].mxu0
        %v2379 = vadd.f32 0.0, %v2378
        %v2380 = vpop.f32.mrb[0].mxu0
        %v2381 = vpop.f32.mrb[0].mxu0
        %v2382 = vadd.f32 0.0, %v2381
        %v2383 = vpop.f32.mrb[0].mxu0
        %2384 = vmatprep.mubr.bf16.mxu0 0
        %2385 = vmatmul.mubr.bf16.gmra.mrb[0].mxu0 %v2299
        %v2386 = vpop.f32.mrb[0].mxu0
        %v2387 = vadd.f32 0.0, %v2386
        %v2388 = vpop.f32.mrb[0].mxu0
        %v2389 = vpop.f32.mrb[0].mxu0
        %v2390 = vadd.f32 0.0, %v2389
        %v2391 = vpop.f32.mrb[0].mxu0
        %2392 = vmatprep.mubr.bf16.mxu0 0
        %2393 = vmatmul.mubr.bf16.gmra.mrb[0].mxu0 %v2302
        %v2394 = vpop.f32.mrb[0].mxu0
        %v2395 = vadd.f32 0.0, %v2394
        %v2396 = vpop.f32.mrb[0].mxu0
        %v2397 = vpop.f32.mrb[0].mxu0
        %v2398 = vadd.f32 0.0, %v2397
        %v2399 = vpop.f32.mrb[0].mxu0
        %2400 = vdwg.mxu0
        %v2401 = vadd.f32 %v2127, %v2339
        %v2402 = vadd.f32 %v2128, %v2342
        %v2403 = vadd.f32 %v2129, %v2347
        %v2404 = vadd.f32 %v2130, %v2350
        %v2405 = vadd.f32 %v2131, %v2355
        %v2406 = vadd.f32 %v2132, %v2358
        %v2407 = vadd.f32 %v2133, %v2363
        %v2408 = vadd.f32 %v2134, %v2366
        %v2409 = vadd.f32 %v2135, %v2371
        %v2410 = vadd.f32 %v2136, %v2374
        %v2411 = vadd.f32 %v2137, %v2379
        %v2412 = vadd.f32 %v2138, %v2382
        %v2413 = vadd.f32 %v2139, %v2387
        %v2414 = vadd.f32 %v2140, %v2390
        %v2415 = vadd.f32 %v2141, %v2395
        %v2416 = vadd.f32 %v2142, %v2398
        %s2417 = scalar_lea.vmem %s2, 64
        %v2418 = vld [vmem:[%s2417] sm:$0xf]
        %v2419 = vld [vmem:[%s2417 + $0x4] sm:$0xf]
        %v2420 = vld [vmem:[%s1871 + $0x10] sm:$0xf]
        %v2421 = vld [vmem:[%s1871 + $0x2c] sm:$0xf]
        %v2422 = vld [vmem:[%s1871 + $0x48] sm:$0xf]
        %v2423 = vld [vmem:[%s1871 + $0x64] sm:$0xf]
        %v2424 = vld [vmem:[%s1871 + $0x80] sm:$0xf]
        %v2425 = vld [vmem:[%s1871 + $0x9c] sm:$0xf]
        %v2426 = vld [vmem:[%s1871 + $0xb8] sm:$0xf]
        %v2427 = vld [vmem:[%s1871 + $0xd4] sm:$0xf]
        %v2436 = vunpack.c.l.b16 %v2147
        %v2437 = vunpack.c.l.b16 %v2420
        %v2438 = vunpack.c.l.b16 %v2150
        %v2439 = vunpack.c.l.b16 %v2421
        %v2440 = vunpack.c.l.b16 %v2153
        %v2441 = vunpack.c.l.b16 %v2422
        %v2442 = vunpack.c.l.b16 %v2156
        %v2443 = vunpack.c.l.b16 %v2423
        %v2444 = vunpack.c.l.b16 %v2159
        %v2445 = vunpack.c.l.b16 %v2424
        %v2446 = vunpack.c.l.b16 %v2162
        %v2447 = vunpack.c.l.b16 %v2425
        %v2448 = vunpack.c.l.b16 %v2165
        %v2449 = vunpack.c.l.b16 %v2426
        %v2450 = vunpack.c.l.b16 %v2168
        %v2451 = vunpack.c.l.b16 %v2427
        %v2452 = vpack.c.b16 %v2437, %v2436
        %v2453 = vpack.c.b16 %v2439, %v2438
        %v2454 = vpack.c.b16 %v2441, %v2440
        %v2455 = vpack.c.b16 %v2443, %v2442
        %v2456 = vpack.c.b16 %v2445, %v2444
        %v2457 = vpack.c.b16 %v2447, %v2446
        %v2458 = vpack.c.b16 %v2449, %v2448
        %v2459 = vpack.c.b16 %v2451, %v2450
        %v2462 = vunpack.c.l.b16 %v2418
        %v2463 = vunpack.c.l.b16 %v2419
        %v2464 = vpack.c.b16 %v2463, %v2462
        %v2467 = vsel %vm429, %v2452, 0
        %v2470 = vsel %vm429, %v2453, 0
        %v2473 = vsel %vm429, %v2454, 0
        %v2476 = vsel %vm429, %v2455, 0
        %v2479 = vsel %vm429, %v2456, 0
        %v2482 = vsel %vm429, %v2457, 0
        %v2485 = vsel %vm429, %v2458, 0
        %v2488 = vsel %vm429, %v2459, 0
        %2490 = vmatprep.subr.bf16.mxu0 0
        %2491 = vmatpush1.bf16.msra.mxu0 %v2464
        %2492 = vmatprep.subr.bf16.mxu0 0
        %2493 = vmatpush1.bf16.msra.mxu0 0
        %2494 = vmatprep.subr.bf16.mxu0 0
        %2495 = vmatpush1.bf16.msra.mxu0 0
        %2496 = vmatprep.subr.bf16.mxu0 0
        %2497 = vmatpush1.bf16.msra.mxu0 0
        %2498 = vmatprep.subr.bf16.mxu0 0
        %2499 = vmatpush1.bf16.msra.mxu0 0
        %2500 = vmatprep.subr.bf16.mxu0 0
        %2501 = vmatpush1.bf16.msra.mxu0 0
        %2502 = vmatprep.subr.bf16.mxu0 0
        %2503 = vmatpush1.bf16.msra.mxu0 0
        %2504 = vmatprep.subr.bf16.mxu0 0
        %2505 = vmatpush1.bf16.msra.mxu0 0
        %2506 = vmatprep.subr.bf16.mxu0 0
        %2507 = vmatpush1.bf16.msra.mxu0 0
        %2508 = vmatprep.subr.bf16.mxu0 0
        %2509 = vmatpush1.bf16.msra.mxu0 0
        %2510 = vmatprep.subr.bf16.mxu0 0
        %2511 = vmatpush1.bf16.msra.mxu0 0
        %2512 = vmatprep.subr.bf16.mxu0 0
        %2513 = vmatpush1.bf16.msra.mxu0 0
        %2514 = vmatprep.subr.bf16.mxu0 0
        %2515 = vmatpush1.bf16.msra.mxu0 0
        %2516 = vmatprep.subr.bf16.mxu0 0
        %2517 = vmatpush1.bf16.msra.mxu0 0
        %2518 = vmatprep.subr.bf16.mxu0 0
        %2519 = vmatpush1.bf16.msra.mxu0 0
        %2520 = vmatprep.subr.bf16.mxu0 0
        %2521 = vmatpush1.bf16.msra.mxu0 0
        %2522 = vmatprep.mubr.bf16.mxu0 0
        %2523 = vmatmul.mubr.bf16.gmra.mrb[0].mxu0 %v2467
        %v2524 = vpop.f32.mrb[0].mxu0
        %v2525 = vadd.f32 0.0, %v2524
        %v2526 = vpop.f32.mrb[0].mxu0
        %v2527 = vpop.f32.mrb[0].mxu0
        %v2528 = vadd.f32 0.0, %v2527
        %v2529 = vpop.f32.mrb[0].mxu0
        %2530 = vmatprep.mubr.bf16.mxu0 0
        %2531 = vmatmul.mubr.bf16.gmra.mrb[0].mxu0 %v2470
        %v2532 = vpop.f32.mrb[0].mxu0
        %v2533 = vadd.f32 0.0, %v2532
        %v2534 = vpop.f32.mrb[0].mxu0
        %v2535 = vpop.f32.mrb[0].mxu0
        %v2536 = vadd.f32 0.0, %v2535
        %v2537 = vpop.f32.mrb[0].mxu0
        %2538 = vmatprep.mubr.bf16.mxu0 0
        %2539 = vmatmul.mubr.bf16.gmra.mrb[0].mxu0 %v2473
        %v2540 = vpop.f32.mrb[0].mxu0
        %v2541 = vadd.f32 0.0, %v2540
        %v2542 = vpop.f32.mrb[0].mxu0
        %v2543 = vpop.f32.mrb[0].mxu0
        %v2544 = vadd.f32 0.0, %v2543
        %v2545 = vpop.f32.mrb[0].mxu0
        %2546 = vmatprep.mubr.bf16.mxu0 0
        %2547 = vmatmul.mubr.bf16.gmra.mrb[0].mxu0 %v2476
        %v2548 = vpop.f32.mrb[0].mxu0
        %v2549 = vadd.f32 0.0, %v2548
        %v2550 = vpop.f32.mrb[0].mxu0
        %v2551 = vpop.f32.mrb[0].mxu0
        %v2552 = vadd.f32 0.0, %v2551
        %v2553 = vpop.f32.mrb[0].mxu0
        %2554 = vmatprep.mubr.bf16.mxu0 0
        %2555 = vmatmul.mubr.bf16.gmra.mrb[0].mxu0 %v2479
        %v2556 = vpop.f32.mrb[0].mxu0
        %v2557 = vadd.f32 0.0, %v2556
        %v2558 = vpop.f32.mrb[0].mxu0
        %v2559 = vpop.f32.mrb[0].mxu0
        %v2560 = vadd.f32 0.0, %v2559
        %v2561 = vpop.f32.mrb[0].mxu0
        %2562 = vmatprep.mubr.bf16.mxu0 0
        %2563 = vmatmul.mubr.bf16.gmra.mrb[0].mxu0 %v2482
        %v2564 = vpop.f32.mrb[0].mxu0
        %v2565 = vadd.f32 0.0, %v2564
        %v2566 = vpop.f32.mrb[0].mxu0
        %v2567 = vpop.f32.mrb[0].mxu0
        %v2568 = vadd.f32 0.0, %v2567
        %v2569 = vpop.f32.mrb[0].mxu0
        %2570 = vmatprep.mubr.bf16.mxu0 0
        %2571 = vmatmul.mubr.bf16.gmra.mrb[0].mxu0 %v2485
        %v2572 = vpop.f32.mrb[0].mxu0
        %v2573 = vadd.f32 0.0, %v2572
        %v2574 = vpop.f32.mrb[0].mxu0
        %v2575 = vpop.f32.mrb[0].mxu0
        %v2576 = vadd.f32 0.0, %v2575
        %v2577 = vpop.f32.mrb[0].mxu0
        %2578 = vmatprep.mubr.bf16.mxu0 0
        %2579 = vmatmul.mubr.bf16.gmra.mrb[0].mxu0 %v2488
        %v2580 = vpop.f32.mrb[0].mxu0
        %v2581 = vadd.f32 0.0, %v2580
        %v2582 = vpop.f32.mrb[0].mxu0
        %v2583 = vpop.f32.mrb[0].mxu0
        %v2584 = vadd.f32 0.0, %v2583
        %v2585 = vpop.f32.mrb[0].mxu0
        %2586 = vdwg.mxu0
        %v2587 = vadd.f32 %v2401, %v2525
        %v2588 = vadd.f32 %v2402, %v2528
        %v2589 = vadd.f32 %v2403, %v2533
        %v2590 = vadd.f32 %v2404, %v2536
        %v2591 = vadd.f32 %v2405, %v2541
        %v2592 = vadd.f32 %v2406, %v2544
        %v2593 = vadd.f32 %v2407, %v2549
        %v2594 = vadd.f32 %v2408, %v2552
        %v2595 = vadd.f32 %v2409, %v2557
        %v2596 = vadd.f32 %v2410, %v2560
        %v2597 = vadd.f32 %v2411, %v2565
        %v2598 = vadd.f32 %v2412, %v2568
        %v2599 = vadd.f32 %v2413, %v2573
        %v2600 = vadd.f32 %v2414, %v2576
        %v2601 = vadd.f32 %v2415, %v2581
        %v2602 = vadd.f32 %v2416, %v2584
        %v2603 = vlaneseq
        %v2604 = vshrl.u32 %v2603, 7
        %v2605 = vsub.s32 1, %v2604
        %v2606 = vrot.slane %v281, %v2605
        %v2607 = vadd.f32 %v2587, %v2606
        %v2608 = vadd.f32 %v2588, %v2606
        %v2609 = vadd.f32 %v2589, %v2606
        %v2610 = vadd.f32 %v2590, %v2606
        %v2611 = vadd.f32 %v2591, %v2606
        %v2612 = vadd.f32 %v2592, %v2606
        %v2613 = vadd.f32 %v2593, %v2606
        %v2614 = vadd.f32 %v2594, %v2606
        %v2615 = vadd.f32 %v2595, %v2606
        %v2616 = vadd.f32 %v2596, %v2606
        %v2617 = vadd.f32 %v2597, %v2606
        %v2618 = vadd.f32 %v2598, %v2606
        %v2619 = vadd.f32 %v2599, %v2606
        %v2620 = vadd.f32 %v2600, %v2606
        %v2621 = vadd.f32 %v2601, %v2606
        %v2622 = vadd.f32 %v2602, %v2606
        %v2623 = vmax.f32 %v2607, 0.0
        %v2624 = vmax.f32 %v2608, 0.0
        %v2625 = vmax.f32 %v2609, 0.0
        %v2626 = vmax.f32 %v2610, 0.0
        %v2627 = vmax.f32 %v2611, 0.0
        %v2628 = vmax.f32 %v2612, 0.0
        %v2629 = vmax.f32 %v2613, 0.0
        %v2630 = vmax.f32 %v2614, 0.0
        %v2631 = vmax.f32 %v2615, 0.0
        %v2632 = vmax.f32 %v2616, 0.0
        %v2633 = vmax.f32 %v2617, 0.0
        %v2634 = vmax.f32 %v2618, 0.0
        %v2635 = vmax.f32 %v2619, 0.0
        %v2636 = vmax.f32 %v2620, 0.0
        %v2637 = vmax.f32 %v2621, 0.0
        %v2638 = vmax.f32 %v2622, 0.0
        %v2639 = vpack.c.bf16 %v2624, %v2623
        %v2640 = vpack.c.bf16 %v2626, %v2625
        %v2641 = vpack.c.bf16 %v2628, %v2627
        %v2642 = vpack.c.bf16 %v2630, %v2629
        %v2643 = vpack.c.bf16 %v2632, %v2631
        %v2644 = vpack.c.bf16 %v2634, %v2633
        %v2645 = vpack.c.bf16 %v2636, %v2635
        %v2646 = vpack.c.bf16 %v2638, %v2637
        %s2647 = scalar_lea.vmem %s2, 72
        %v2648 = vld [vmem:[%s2647] sm:$0xf]
        %v2649 = vld [vmem:[%s2647 + $0x4] sm:$0xf]
        %s2650 = sadd.s32 %s280, 6
        %s2651 = smul.u32 %s2650, 7
        %s2652 = smul.addr %s2651, 4
        %s2653 = scalar_lea.vmem %s274, %s2652
        %v2654 = vld [vmem:[%s2653] sm:$0x8]
        %v2655 = vld [vmem:[%s2653 + $0x4] sm:$0xf]
        %v2656 = vld [vmem:[%s2653 + $0x8] sm:$0x7]
        %v2657 = vld [vmem:[%s2653 + $0x1c] sm:$0x8]
        %v2658 = vld [vmem:[%s2653 + $0x20] sm:$0xf]
        %v2659 = vld [vmem:[%s2653 + $0x24] sm:$0x7]
        %v2660 = vld [vmem:[%s2653 + $0x38] sm:$0x8]
        %v2661 = vld [vmem:[%s2653 + $0x3c] sm:$0xf]
        %v2662 = vld [vmem:[%s2653 + $0x40] sm:$0x7]
        %v2663 = vld [vmem:[%s2653 + $0x54] sm:$0x8]
        %v2664 = vld [vmem:[%s2653 + $0x58] sm:$0xf]
        %v2665 = vld [vmem:[%s2653 + $0x5c] sm:$0x7]
        %v2666 = vld [vmem:[%s2653 + $0x70] sm:$0x8]
        %v2667 = vld [vmem:[%s2653 + $0x74] sm:$0xf]
        %v2668 = vld [vmem:[%s2653 + $0x78] sm:$0x7]
        %v2669 = vld [vmem:[%s2653 + $0x8c] sm:$0x8]
        %v2670 = vld [vmem:[%s2653 + $0x90] sm:$0xf]
        %v2671 = vld [vmem:[%s2653 + $0x94] sm:$0x7]
        %v2672 = vld [vmem:[%s2653 + $0xa8] sm:$0x8]
        %v2673 = vld [vmem:[%s2653 + $0xac] sm:$0xf]
        %v2674 = vld [vmem:[%s2653 + $0xb0] sm:$0x7]
        %v2675 = vld [vmem:[%s2653 + $0xc4] sm:$0x8]
        %v2676 = vld [vmem:[%s2653 + $0xc8] sm:$0xf]
        %v2677 = vld [vmem:[%s2653 + $0xcc] sm:$0x7]
        %vm2702 = vcmask 1040384
        %vm2703 = vcmask 1044484
        %vm2704 = vmor %vm2702, %vm2703
        %v2705 = vrot.slane %v2654, 7
        %v2706 = vrot.slane %v2705, 4
        %v2707 = vrot.slane %v2655, 7
        %v2708 = vsel %vm2704, %v2706, %v2707
        %v2709 = vrot.slane %v2707, 4
        %v2710 = vrot.slane %v2656, 7
        %v2711 = vsel %vm2704, %v2709, %v2710
        %v2712 = vrot.slane %v2657, 7
        %v2713 = vrot.slane %v2712, 4
        %v2714 = vrot.slane %v2658, 7
        %v2715 = vsel %vm2704, %v2713, %v2714
        %v2716 = vrot.slane %v2714, 4
        %v2717 = vrot.slane %v2659, 7
        %v2718 = vsel %vm2704, %v2716, %v2717
        %v2719 = vrot.slane %v2660, 7
        %v2720 = vrot.slane %v2719, 4
        %v2721 = vrot.slane %v2661, 7
        %v2722 = vsel %vm2704, %v2720, %v2721
        %v2723 = vrot.slane %v2721, 4
        %v2724 = vrot.slane %v2662, 7
        %v2725 = vsel %vm2704, %v2723, %v2724
        %v2726 = vrot.slane %v2663, 7
        %v2727 = vrot.slane %v2726, 4
        %v2728 = vrot.slane %v2664, 7
        %v2729 = vsel %vm2704, %v2727, %v2728
        %v2730 = vrot.slane %v2728, 4
        %v2731 = vrot.slane %v2665, 7
        %v2732 = vsel %vm2704, %v2730, %v2731
        %v2733 = vrot.slane %v2666, 7
        %v2734 = vrot.slane %v2733, 4
        %v2735 = vrot.slane %v2667, 7
        %v2736 = vsel %vm2704, %v2734, %v2735
        %v2737 = vrot.slane %v2735, 4
        %v2738 = vrot.slane %v2668, 7
        %v2739 = vsel %vm2704, %v2737, %v2738
        %v2740 = vrot.slane %v2669, 7
        %v2741 = vrot.slane %v2740, 4
        %v2742 = vrot.slane %v2670, 7
        %v2743 = vsel %vm2704, %v2741, %v2742
        %v2744 = vrot.slane %v2742, 4
        %v2745 = vrot.slane %v2671, 7
        %v2746 = vsel %vm2704, %v2744, %v2745
        %v2747 = vrot.slane %v2672, 7
        %v2748 = vrot.slane %v2747, 4
        %v2749 = vrot.slane %v2673, 7
        %v2750 = vsel %vm2704, %v2748, %v2749
        %v2751 = vrot.slane %v2749, 4
        %v2752 = vrot.slane %v2674, 7
        %v2753 = vsel %vm2704, %v2751, %v2752
        %v2754 = vrot.slane %v2675, 7
        %v2755 = vrot.slane %v2754, 4
        %v2756 = vrot.slane %v2676, 7
        %v2757 = vsel %vm2704, %v2755, %v2756
        %v2758 = vrot.slane %v2756, 4
        %v2759 = vrot.slane %v2677, 7
        %v2760 = vsel %vm2704, %v2758, %v2759
        %s2761 = scalar_lea.vmem %s2, 80
        %v2762 = vld [vmem:[%s2761] sm:$0xf]
        %v2763 = vld [vmem:[%s2761 + $0x4] sm:$0xf]
        %v2764 = vld [vmem:[%s2653 + $0x8] sm:$0xe]
        %v2765 = vld [vmem:[%s2653 + $0xc] sm:$0xf]
        %v2766 = vld [vmem:[%s2653 + $0x10] sm:$0x1]
        %v2767 = vld [vmem:[%s2653 + $0x24] sm:$0xe]
        %v2768 = vld [vmem:[%s2653 + $0x28] sm:$0xf]
        %v2769 = vld [vmem:[%s2653 + $0x2c] sm:$0x1]
        %v2770 = vld [vmem:[%s2653 + $0x40] sm:$0xe]
        %v2771 = vld [vmem:[%s2653 + $0x44] sm:$0xf]
        %v2772 = vld [vmem:[%s2653 + $0x48] sm:$0x1]
        %v2773 = vld [vmem:[%s2653 + $0x5c] sm:$0xe]
        %v2774 = vld [vmem:[%s2653 + $0x60] sm:$0xf]
        %v2775 = vld [vmem:[%s2653 + $0x64] sm:$0x1]
        %v2776 = vld [vmem:[%s2653 + $0x78] sm:$0xe]
        %v2777 = vld [vmem:[%s2653 + $0x7c] sm:$0xf]
        %v2778 = vld [vmem:[%s2653 + $0x80] sm:$0x1]
        %v2779 = vld [vmem:[%s2653 + $0x94] sm:$0xe]
        %v2780 = vld [vmem:[%s2653 + $0x98] sm:$0xf]
        %v2781 = vld [vmem:[%s2653 + $0x9c] sm:$0x1]
        %v2782 = vld [vmem:[%s2653 + $0xb0] sm:$0xe]
        %v2783 = vld [vmem:[%s2653 + $0xb4] sm:$0xf]
        %v2784 = vld [vmem:[%s2653 + $0xb8] sm:$0x1]
        %v2785 = vld [vmem:[%s2653 + $0xcc] sm:$0xe]
        %v2786 = vld [vmem:[%s2653 + $0xd0] sm:$0xf]
        %v2787 = vld [vmem:[%s2653 + $0xd4] sm:$0x1]
        %v2812 = vrot.slane %v2764, 5
        %v2813 = vrot.slane %v2812, 4
        %v2814 = vrot.slane %v2765, 5
        %v2815 = vsel %vm336, %v2813, %v2814
        %v2816 = vrot.slane %v2814, 4
        %v2817 = vrot.slane %v2766, 5
        %v2818 = vsel %vm336, %v2816, %v2817
        %v2819 = vrot.slane %v2767, 5
        %v2820 = vrot.slane %v2819, 4
        %v2821 = vrot.slane %v2768, 5
        %v2822 = vsel %vm336, %v2820, %v2821
        %v2823 = vrot.slane %v2821, 4
        %v2824 = vrot.slane %v2769, 5
        %v2825 = vsel %vm336, %v2823, %v2824
        %v2826 = vrot.slane %v2770, 5
        %v2827 = vrot.slane %v2826, 4
        %v2828 = vrot.slane %v2771, 5
        %v2829 = vsel %vm336, %v2827, %v2828
        %v2830 = vrot.slane %v2828, 4
        %v2831 = vrot.slane %v2772, 5
        %v2832 = vsel %vm336, %v2830, %v2831
        %v2833 = vrot.slane %v2773, 5
        %v2834 = vrot.slane %v2833, 4
        %v2835 = vrot.slane %v2774, 5
        %v2836 = vsel %vm336, %v2834, %v2835
        %v2837 = vrot.slane %v2835, 4
        %v2838 = vrot.slane %v2775, 5
        %v2839 = vsel %vm336, %v2837, %v2838
        %v2840 = vrot.slane %v2776, 5
        %v2841 = vrot.slane %v2840, 4
        %v2842 = vrot.slane %v2777, 5
        %v2843 = vsel %vm336, %v2841, %v2842
        %v2844 = vrot.slane %v2842, 4
        %v2845 = vrot.slane %v2778, 5
        %v2846 = vsel %vm336, %v2844, %v2845
        %v2847 = vrot.slane %v2779, 5
        %v2848 = vrot.slane %v2847, 4
        %v2849 = vrot.slane %v2780, 5
        %v2850 = vsel %vm336, %v2848, %v2849
        %v2851 = vrot.slane %v2849, 4
        %v2852 = vrot.slane %v2781, 5
        %v2853 = vsel %vm336, %v2851, %v2852
        %v2854 = vrot.slane %v2782, 5
        %v2855 = vrot.slane %v2854, 4
        %v2856 = vrot.slane %v2783, 5
        %v2857 = vsel %vm336, %v2855, %v2856
        %v2858 = vrot.slane %v2856, 4
        %v2859 = vrot.slane %v2784, 5
        %v2860 = vsel %vm336, %v2858, %v2859
        %v2861 = vrot.slane %v2785, 5
        %v2862 = vrot.slane %v2861, 4
        %v2863 = vrot.slane %v2786, 5
        %v2864 = vsel %vm336, %v2862, %v2863
        %v2865 = vrot.slane %v2863, 4
        %v2866 = vrot.slane %v2787, 5
        %v2867 = vsel %vm336, %v2865, %v2866
        %v2868 = vunpack.c.l.b16 %v2815
        %v2869 = vunpack.c.l.b16 %v2818
        %v2870 = vunpack.c.l.b16 %v2822
        %v2871 = vunpack.c.l.b16 %v2825
        %v2872 = vunpack.c.l.b16 %v2829
        %v2873 = vunpack.c.l.b16 %v2832
        %v2874 = vunpack.c.l.b16 %v2836
        %v2875 = vunpack.c.l.b16 %v2839
        %v2876 = vunpack.c.l.b16 %v2843
        %v2877 = vunpack.c.l.b16 %v2846
        %v2878 = vunpack.c.l.b16 %v2850
        %v2879 = vunpack.c.l.b16 %v2853
        %v2880 = vunpack.c.l.b16 %v2857
        %v2881 = vunpack.c.l.b16 %v2860
        %v2882 = vunpack.c.l.b16 %v2864
        %v2883 = vunpack.c.l.b16 %v2867
        %v2884 = vpack.c.b16 %v2869, %v2868
        %v2885 = vpack.c.b16 %v2871, %v2870
        %v2886 = vpack.c.b16 %v2873, %v2872
        %v2887 = vpack.c.b16 %v2875, %v2874
        %v2888 = vpack.c.b16 %v2877, %v2876
        %v2889 = vpack.c.b16 %v2879, %v2878
        %v2890 = vpack.c.b16 %v2881, %v2880
        %v2891 = vpack.c.b16 %v2883, %v2882
        %v2894 = vunpack.c.l.b16 %v2762
        %v2895 = vunpack.c.l.b16 %v2763
        %v2896 = vpack.c.b16 %v2895, %v2894
        %v2899 = vsel %vm429, %v2884, 0
        %v2902 = vsel %vm429, %v2885, 0
        %v2905 = vsel %vm429, %v2886, 0
        %v2908 = vsel %vm429, %v2887, 0
        %v2911 = vsel %vm429, %v2888, 0
        %v2914 = vsel %vm429, %v2889, 0
        %v2917 = vsel %vm429, %v2890, 0
        %v2920 = vsel %vm429, %v2891, 0
        %2922 = vmatprep.subr.bf16.mxu0 0
        %2923 = vmatpush1.bf16.msra.mxu0 %v2896
        %2924 = vmatprep.subr.bf16.mxu0 0
        %2925 = vmatpush1.bf16.msra.mxu0 0
        %2926 = vmatprep.subr.bf16.mxu0 0
        %2927 = vmatpush1.bf16.msra.mxu0 0
        %2928 = vmatprep.subr.bf16.mxu0 0
        %2929 = vmatpush1.bf16.msra.mxu0 0
        %2930 = vmatprep.subr.bf16.mxu0 0
        %2931 = vmatpush1.bf16.msra.mxu0 0
        %2932 = vmatprep.subr.bf16.mxu0 0
        %2933 = vmatpush1.bf16.msra.mxu0 0
        %2934 = vmatprep.subr.bf16.mxu0 0
        %2935 = vmatpush1.bf16.msra.mxu0 0
        %2936 = vmatprep.subr.bf16.mxu0 0
        %2937 = vmatpush1.bf16.msra.mxu0 0
        %2938 = vmatprep.subr.bf16.mxu0 0
        %2939 = vmatpush1.bf16.msra.mxu0 0
        %2940 = vmatprep.subr.bf16.mxu0 0
        %2941 = vmatpush1.bf16.msra.mxu0 0
        %2942 = vmatprep.subr.bf16.mxu0 0
        %2943 = vmatpush1.bf16.msra.mxu0 0
        %2944 = vmatprep.subr.bf16.mxu0 0
        %2945 = vmatpush1.bf16.msra.mxu0 0
        %2946 = vmatprep.subr.bf16.mxu0 0
        %2947 = vmatpush1.bf16.msra.mxu0 0
        %2948 = vmatprep.subr.bf16.mxu0 0
        %2949 = vmatpush1.bf16.msra.mxu0 0
        %2950 = vmatprep.subr.bf16.mxu0 0
        %2951 = vmatpush1.bf16.msra.mxu0 0
        %2952 = vmatprep.subr.bf16.mxu0 0
        %2953 = vmatpush1.bf16.msra.mxu0 0
        %2954 = vmatprep.mubr.bf16.mxu0 0
        %2955 = vmatmul.mubr.bf16.gmra.mrb[0].mxu0 %v2899
        %v2956 = vpop.f32.mrb[0].mxu0
        %v2957 = vadd.f32 0.0, %v2956
        %v2958 = vpop.f32.mrb[0].mxu0
        %v2959 = vpop.f32.mrb[0].mxu0
        %v2960 = vadd.f32 0.0, %v2959
        %v2961 = vpop.f32.mrb[0].mxu0
        %2962 = vmatprep.mubr.bf16.mxu0 0
        %2963 = vmatmul.mubr.bf16.gmra.mrb[0].mxu0 %v2902
        %v2964 = vpop.f32.mrb[0].mxu0
        %v2965 = vadd.f32 0.0, %v2964
        %v2966 = vpop.f32.mrb[0].mxu0
        %v2967 = vpop.f32.mrb[0].mxu0
        %v2968 = vadd.f32 0.0, %v2967
        %v2969 = vpop.f32.mrb[0].mxu0
        %2970 = vmatprep.mubr.bf16.mxu0 0
        %2971 = vmatmul.mubr.bf16.gmra.mrb[0].mxu0 %v2905
        %v2972 = vpop.f32.mrb[0].mxu0
        %v2973 = vadd.f32 0.0, %v2972
        %v2974 = vpop.f32.mrb[0].mxu0
        %v2975 = vpop.f32.mrb[0].mxu0
        %v2976 = vadd.f32 0.0, %v2975
        %v2977 = vpop.f32.mrb[0].mxu0
        %2978 = vmatprep.mubr.bf16.mxu0 0
        %2979 = vmatmul.mubr.bf16.gmra.mrb[0].mxu0 %v2908
        %v2980 = vpop.f32.mrb[0].mxu0
        %v2981 = vadd.f32 0.0, %v2980
        %v2982 = vpop.f32.mrb[0].mxu0
        %v2983 = vpop.f32.mrb[0].mxu0
        %v2984 = vadd.f32 0.0, %v2983
        %v2985 = vpop.f32.mrb[0].mxu0
        %2986 = vmatprep.mubr.bf16.mxu0 0
        %2987 = vmatmul.mubr.bf16.gmra.mrb[0].mxu0 %v2911
        %v2988 = vpop.f32.mrb[0].mxu0
        %v2989 = vadd.f32 0.0, %v2988
        %v2990 = vpop.f32.mrb[0].mxu0
        %v2991 = vpop.f32.mrb[0].mxu0
        %v2992 = vadd.f32 0.0, %v2991
        %v2993 = vpop.f32.mrb[0].mxu0
        %2994 = vmatprep.mubr.bf16.mxu0 0
        %2995 = vmatmul.mubr.bf16.gmra.mrb[0].mxu0 %v2914
        %v2996 = vpop.f32.mrb[0].mxu0
        %v2997 = vadd.f32 0.0, %v2996
        %v2998 = vpop.f32.mrb[0].mxu0
        %v2999 = vpop.f32.mrb[0].mxu0
        %v3000 = vadd.f32 0.0, %v2999
        %v3001 = vpop.f32.mrb[0].mxu0
        %3002 = vmatprep.mubr.bf16.mxu0 0
        %3003 = vmatmul.mubr.bf16.gmra.mrb[0].mxu0 %v2917
        %v3004 = vpop.f32.mrb[0].mxu0
        %v3005 = vadd.f32 0.0, %v3004
        %v3006 = vpop.f32.mrb[0].mxu0
        %v3007 = vpop.f32.mrb[0].mxu0
        %v3008 = vadd.f32 0.0, %v3007
        %v3009 = vpop.f32.mrb[0].mxu0
        %3010 = vmatprep.mubr.bf16.mxu0 0
        %3011 = vmatmul.mubr.bf16.gmra.mrb[0].mxu0 %v2920
        %v3012 = vpop.f32.mrb[0].mxu0
        %v3013 = vadd.f32 0.0, %v3012
        %v3014 = vpop.f32.mrb[0].mxu0
        %v3015 = vpop.f32.mrb[0].mxu0
        %v3016 = vadd.f32 0.0, %v3015
        %v3017 = vpop.f32.mrb[0].mxu0
        %3018 = vdwg.mxu0
        %v3019 = vunpack.c.l.b16 %v2708
        %v3020 = vunpack.c.l.b16 %v2711
        %v3021 = vunpack.c.l.b16 %v2715
        %v3022 = vunpack.c.l.b16 %v2718
        %v3023 = vunpack.c.l.b16 %v2722
        %v3024 = vunpack.c.l.b16 %v2725
        %v3025 = vunpack.c.l.b16 %v2729
        %v3026 = vunpack.c.l.b16 %v2732
        %v3027 = vunpack.c.l.b16 %v2736
        %v3028 = vunpack.c.l.b16 %v2739
        %v3029 = vunpack.c.l.b16 %v2743
        %v3030 = vunpack.c.l.b16 %v2746
        %v3031 = vunpack.c.l.b16 %v2750
        %v3032 = vunpack.c.l.b16 %v2753
        %v3033 = vunpack.c.l.b16 %v2757
        %v3034 = vunpack.c.l.b16 %v2760
        %v3035 = vpack.c.b16 %v3020, %v3019
        %v3036 = vpack.c.b16 %v3022, %v3021
        %v3037 = vpack.c.b16 %v3024, %v3023
        %v3038 = vpack.c.b16 %v3026, %v3025
        %v3039 = vpack.c.b16 %v3028, %v3027
        %v3040 = vpack.c.b16 %v3030, %v3029
        %v3041 = vpack.c.b16 %v3032, %v3031
        %v3042 = vpack.c.b16 %v3034, %v3033
        %v3045 = vunpack.c.l.b16 %v2648
        %v3046 = vunpack.c.l.b16 %v2649
        %v3047 = vpack.c.b16 %v3046, %v3045
        %v3050 = vsel %vm429, %v3035, 0
        %v3053 = vsel %vm429, %v3036, 0
        %v3056 = vsel %vm429, %v3037, 0
        %v3059 = vsel %vm429, %v3038, 0
        %v3062 = vsel %vm429, %v3039, 0
        %v3065 = vsel %vm429, %v3040, 0
        %v3068 = vsel %vm429, %v3041, 0
        %v3071 = vsel %vm429, %v3042, 0
        %3073 = vmatprep.subr.bf16.mxu0 0
        %3074 = vmatpush1.bf16.msra.mxu0 %v3047
        %3075 = vmatprep.subr.bf16.mxu0 0
        %3076 = vmatpush1.bf16.msra.mxu0 0
        %3077 = vmatprep.subr.bf16.mxu0 0
        %3078 = vmatpush1.bf16.msra.mxu0 0
        %3079 = vmatprep.subr.bf16.mxu0 0
        %3080 = vmatpush1.bf16.msra.mxu0 0
        %3081 = vmatprep.subr.bf16.mxu0 0
        %3082 = vmatpush1.bf16.msra.mxu0 0
        %3083 = vmatprep.subr.bf16.mxu0 0
        %3084 = vmatpush1.bf16.msra.mxu0 0
        %3085 = vmatprep.subr.bf16.mxu0 0
        %3086 = vmatpush1.bf16.msra.mxu0 0
        %3087 = vmatprep.subr.bf16.mxu0 0
        %3088 = vmatpush1.bf16.msra.mxu0 0
        %3089 = vmatprep.subr.bf16.mxu0 0
        %3090 = vmatpush1.bf16.msra.mxu0 0
        %3091 = vmatprep.subr.bf16.mxu0 0
        %3092 = vmatpush1.bf16.msra.mxu0 0
        %3093 = vmatprep.subr.bf16.mxu0 0
        %3094 = vmatpush1.bf16.msra.mxu0 0
        %3095 = vmatprep.subr.bf16.mxu0 0
        %3096 = vmatpush1.bf16.msra.mxu0 0
        %3097 = vmatprep.subr.bf16.mxu0 0
        %3098 = vmatpush1.bf16.msra.mxu0 0
        %3099 = vmatprep.subr.bf16.mxu0 0
        %3100 = vmatpush1.bf16.msra.mxu0 0
        %3101 = vmatprep.subr.bf16.mxu0 0
        %3102 = vmatpush1.bf16.msra.mxu0 0
        %3103 = vmatprep.subr.bf16.mxu0 0
        %3104 = vmatpush1.bf16.msra.mxu0 0
        %3105 = vmatprep.mubr.bf16.mxu0 0
        %3106 = vmatmul.mubr.bf16.gmra.mrb[0].mxu0 %v3050
        %v3107 = vpop.f32.mrb[0].mxu0
        %v3108 = vadd.f32 %v2957, %v3107
        %v3109 = vpop.f32.mrb[0].mxu0
        %v3110 = vpop.f32.mrb[0].mxu0
        %v3111 = vadd.f32 %v2960, %v3110
        %v3112 = vpop.f32.mrb[0].mxu0
        %3113 = vmatprep.mubr.bf16.mxu0 0
        %3114 = vmatmul.mubr.bf16.gmra.mrb[0].mxu0 %v3053
        %v3115 = vpop.f32.mrb[0].mxu0
        %v3116 = vadd.f32 %v2965, %v3115
        %v3117 = vpop.f32.mrb[0].mxu0
        %v3118 = vpop.f32.mrb[0].mxu0
        %v3119 = vadd.f32 %v2968, %v3118
        %v3120 = vpop.f32.mrb[0].mxu0
        %3121 = vmatprep.mubr.bf16.mxu0 0
        %3122 = vmatmul.mubr.bf16.gmra.mrb[0].mxu0 %v3056
        %v3123 = vpop.f32.mrb[0].mxu0
        %v3124 = vadd.f32 %v2973, %v3123
        %v3125 = vpop.f32.mrb[0].mxu0
        %v3126 = vpop.f32.mrb[0].mxu0
        %v3127 = vadd.f32 %v2976, %v3126
        %v3128 = vpop.f32.mrb[0].mxu0
        %3129 = vmatprep.mubr.bf16.mxu0 0
        %3130 = vmatmul.mubr.bf16.gmra.mrb[0].mxu0 %v3059
        %v3131 = vpop.f32.mrb[0].mxu0
        %v3132 = vadd.f32 %v2981, %v3131
        %v3133 = vpop.f32.mrb[0].mxu0
        %v3134 = vpop.f32.mrb[0].mxu0
        %v3135 = vadd.f32 %v2984, %v3134
        %v3136 = vpop.f32.mrb[0].mxu0
        %3137 = vmatprep.mubr.bf16.mxu0 0
        %3138 = vmatmul.mubr.bf16.gmra.mrb[0].mxu0 %v3062
        %v3139 = vpop.f32.mrb[0].mxu0
        %v3140 = vadd.f32 %v2989, %v3139
        %v3141 = vpop.f32.mrb[0].mxu0
        %v3142 = vpop.f32.mrb[0].mxu0
        %v3143 = vadd.f32 %v2992, %v3142
        %v3144 = vpop.f32.mrb[0].mxu0
        %3145 = vmatprep.mubr.bf16.mxu0 0
        %3146 = vmatmul.mubr.bf16.gmra.mrb[0].mxu0 %v3065
        %v3147 = vpop.f32.mrb[0].mxu0
        %v3148 = vadd.f32 %v2997, %v3147
        %v3149 = vpop.f32.mrb[0].mxu0
        %v3150 = vpop.f32.mrb[0].mxu0
        %v3151 = vadd.f32 %v3000, %v3150
        %v3152 = vpop.f32.mrb[0].mxu0
        %3153 = vmatprep.mubr.bf16.mxu0 0
        %3154 = vmatmul.mubr.bf16.gmra.mrb[0].mxu0 %v3068
        %v3155 = vpop.f32.mrb[0].mxu0
        %v3156 = vadd.f32 %v3005, %v3155
        %v3157 = vpop.f32.mrb[0].mxu0
        %v3158 = vpop.f32.mrb[0].mxu0
        %v3159 = vadd.f32 %v3008, %v3158
        %v3160 = vpop.f32.mrb[0].mxu0
        %3161 = vmatprep.mubr.bf16.mxu0 0
        %3162 = vmatmul.mubr.bf16.gmra.mrb[0].mxu0 %v3071
        %v3163 = vpop.f32.mrb[0].mxu0
        %v3164 = vadd.f32 %v3013, %v3163
        %v3165 = vpop.f32.mrb[0].mxu0
        %v3166 = vpop.f32.mrb[0].mxu0
        %v3167 = vadd.f32 %v3016, %v3166
        %v3168 = vpop.f32.mrb[0].mxu0
        %3169 = vdwg.mxu0
        %s3170 = scalar_lea.vmem %s2, 88
        %v3171 = vld [vmem:[%s3170] sm:$0xf]
        %v3172 = vld [vmem:[%s3170 + $0x4] sm:$0xf]
        %v3173 = vld [vmem:[%s2653 + $0xc] sm:$0x8]
        %v3174 = vld [vmem:[%s2653 + $0x10] sm:$0xf]
        %v3175 = vld [vmem:[%s2653 + $0x14] sm:$0x7]
        %v3176 = vld [vmem:[%s2653 + $0x28] sm:$0x8]
        %v3177 = vld [vmem:[%s2653 + $0x2c] sm:$0xf]
        %v3178 = vld [vmem:[%s2653 + $0x30] sm:$0x7]
        %v3179 = vld [vmem:[%s2653 + $0x44] sm:$0x8]
        %v3180 = vld [vmem:[%s2653 + $0x48] sm:$0xf]
        %v3181 = vld [vmem:[%s2653 + $0x4c] sm:$0x7]
        %v3182 = vld [vmem:[%s2653 + $0x60] sm:$0x8]
        %v3183 = vld [vmem:[%s2653 + $0x64] sm:$0xf]
        %v3184 = vld [vmem:[%s2653 + $0x68] sm:$0x7]
        %v3185 = vld [vmem:[%s2653 + $0x7c] sm:$0x8]
        %v3186 = vld [vmem:[%s2653 + $0x80] sm:$0xf]
        %v3187 = vld [vmem:[%s2653 + $0x84] sm:$0x7]
        %v3188 = vld [vmem:[%s2653 + $0x98] sm:$0x8]
        %v3189 = vld [vmem:[%s2653 + $0x9c] sm:$0xf]
        %v3190 = vld [vmem:[%s2653 + $0xa0] sm:$0x7]
        %v3191 = vld [vmem:[%s2653 + $0xb4] sm:$0x8]
        %v3192 = vld [vmem:[%s2653 + $0xb8] sm:$0xf]
        %v3193 = vld [vmem:[%s2653 + $0xbc] sm:$0x7]
        %v3194 = vld [vmem:[%s2653 + $0xd0] sm:$0x8]
        %v3195 = vld [vmem:[%s2653 + $0xd4] sm:$0xf]
        %v3196 = vld [vmem:[%s2653 + $0xd8] sm:$0x7]
        %v3221 = vrot.slane %v3173, 7
        %v3222 = vrot.slane %v3221, 4
        %v3223 = vrot.slane %v3174, 7
        %v3224 = vsel %vm2704, %v3222, %v3223
        %v3225 = vrot.slane %v3223, 4
        %v3226 = vrot.slane %v3175, 7
        %v3227 = vsel %vm2704, %v3225, %v3226
        %v3228 = vrot.slane %v3176, 7
        %v3229 = vrot.slane %v3228, 4
        %v3230 = vrot.slane %v3177, 7
        %v3231 = vsel %vm2704, %v3229, %v3230
        %v3232 = vrot.slane %v3230, 4
        %v3233 = vrot.slane %v3178, 7
        %v3234 = vsel %vm2704, %v3232, %v3233
        %v3235 = vrot.slane %v3179, 7
        %v3236 = vrot.slane %v3235, 4
        %v3237 = vrot.slane %v3180, 7
        %v3238 = vsel %vm2704, %v3236, %v3237
        %v3239 = vrot.slane %v3237, 4
        %v3240 = vrot.slane %v3181, 7
        %v3241 = vsel %vm2704, %v3239, %v3240
        %v3242 = vrot.slane %v3182, 7
        %v3243 = vrot.slane %v3242, 4
        %v3244 = vrot.slane %v3183, 7
        %v3245 = vsel %vm2704, %v3243, %v3244
        %v3246 = vrot.slane %v3244, 4
        %v3247 = vrot.slane %v3184, 7
        %v3248 = vsel %vm2704, %v3246, %v3247
        %v3249 = vrot.slane %v3185, 7
        %v3250 = vrot.slane %v3249, 4
        %v3251 = vrot.slane %v3186, 7
        %v3252 = vsel %vm2704, %v3250, %v3251
        %v3253 = vrot.slane %v3251, 4
        %v3254 = vrot.slane %v3187, 7
        %v3255 = vsel %vm2704, %v3253, %v3254
        %v3256 = vrot.slane %v3188, 7
        %v3257 = vrot.slane %v3256, 4
        %v3258 = vrot.slane %v3189, 7
        %v3259 = vsel %vm2704, %v3257, %v3258
        %v3260 = vrot.slane %v3258, 4
        %v3261 = vrot.slane %v3190, 7
        %v3262 = vsel %vm2704, %v3260, %v3261
        %v3263 = vrot.slane %v3191, 7
        %v3264 = vrot.slane %v3263, 4
        %v3265 = vrot.slane %v3192, 7
        %v3266 = vsel %vm2704, %v3264, %v3265
        %v3267 = vrot.slane %v3265, 4
        %v3268 = vrot.slane %v3193, 7
        %v3269 = vsel %vm2704, %v3267, %v3268
        %v3270 = vrot.slane %v3194, 7
        %v3271 = vrot.slane %v3270, 4
        %v3272 = vrot.slane %v3195, 7
        %v3273 = vsel %vm2704, %v3271, %v3272
        %v3274 = vrot.slane %v3272, 4
        %v3275 = vrot.slane %v3196, 7
        %v3276 = vsel %vm2704, %v3274, %v3275
        %v3277 = vunpack.c.l.b16 %v3224
        %v3278 = vunpack.c.l.b16 %v3227
        %v3279 = vunpack.c.l.b16 %v3231
        %v3280 = vunpack.c.l.b16 %v3234
        %v3281 = vunpack.c.l.b16 %v3238
        %v3282 = vunpack.c.l.b16 %v3241
        %v3283 = vunpack.c.l.b16 %v3245
        %v3284 = vunpack.c.l.b16 %v3248
        %v3285 = vunpack.c.l.b16 %v3252
        %v3286 = vunpack.c.l.b16 %v3255
        %v3287 = vunpack.c.l.b16 %v3259
        %v3288 = vunpack.c.l.b16 %v3262
        %v3289 = vunpack.c.l.b16 %v3266
        %v3290 = vunpack.c.l.b16 %v3269
        %v3291 = vunpack.c.l.b16 %v3273
        %v3292 = vunpack.c.l.b16 %v3276
        %v3293 = vpack.c.b16 %v3278, %v3277
        %v3294 = vpack.c.b16 %v3280, %v3279
        %v3295 = vpack.c.b16 %v3282, %v3281
        %v3296 = vpack.c.b16 %v3284, %v3283
        %v3297 = vpack.c.b16 %v3286, %v3285
        %v3298 = vpack.c.b16 %v3288, %v3287
        %v3299 = vpack.c.b16 %v3290, %v3289
        %v3300 = vpack.c.b16 %v3292, %v3291
        %v3303 = vunpack.c.l.b16 %v3171
        %v3304 = vunpack.c.l.b16 %v3172
        %v3305 = vpack.c.b16 %v3304, %v3303
        %v3308 = vsel %vm429, %v3293, 0
        %v3311 = vsel %vm429, %v3294, 0
        %v3314 = vsel %vm429, %v3295, 0
        %v3317 = vsel %vm429, %v3296, 0
        %v3320 = vsel %vm429, %v3297, 0
        %v3323 = vsel %vm429, %v3298, 0
        %v3326 = vsel %vm429, %v3299, 0
        %v3329 = vsel %vm429, %v3300, 0
        %3331 = vmatprep.subr.bf16.mxu0 0
        %3332 = vmatpush1.bf16.msra.mxu0 %v3305
        %3333 = vmatprep.subr.bf16.mxu0 0
        %3334 = vmatpush1.bf16.msra.mxu0 0
        %3335 = vmatprep.subr.bf16.mxu0 0
        %3336 = vmatpush1.bf16.msra.mxu0 0
        %3337 = vmatprep.subr.bf16.mxu0 0
        %3338 = vmatpush1.bf16.msra.mxu0 0
        %3339 = vmatprep.subr.bf16.mxu0 0
        %3340 = vmatpush1.bf16.msra.mxu0 0
        %3341 = vmatprep.subr.bf16.mxu0 0
        %3342 = vmatpush1.bf16.msra.mxu0 0
        %3343 = vmatprep.subr.bf16.mxu0 0
        %3344 = vmatpush1.bf16.msra.mxu0 0
        %3345 = vmatprep.subr.bf16.mxu0 0
        %3346 = vmatpush1.bf16.msra.mxu0 0
        %3347 = vmatprep.subr.bf16.mxu0 0
        %3348 = vmatpush1.bf16.msra.mxu0 0
        %3349 = vmatprep.subr.bf16.mxu0 0
        %3350 = vmatpush1.bf16.msra.mxu0 0
        %3351 = vmatprep.subr.bf16.mxu0 0
        %3352 = vmatpush1.bf16.msra.mxu0 0
        %3353 = vmatprep.subr.bf16.mxu0 0
        %3354 = vmatpush1.bf16.msra.mxu0 0
        %3355 = vmatprep.subr.bf16.mxu0 0
        %3356 = vmatpush1.bf16.msra.mxu0 0
        %3357 = vmatprep.subr.bf16.mxu0 0
        %3358 = vmatpush1.bf16.msra.mxu0 0
        %3359 = vmatprep.subr.bf16.mxu0 0
        %3360 = vmatpush1.bf16.msra.mxu0 0
        %3361 = vmatprep.subr.bf16.mxu0 0
        %3362 = vmatpush1.bf16.msra.mxu0 0
        %3363 = vmatprep.mubr.bf16.mxu0 0
        %3364 = vmatmul.mubr.bf16.gmra.mrb[0].mxu0 %v3308
        %v3365 = vpop.f32.mrb[0].mxu0
        %v3366 = vadd.f32 0.0, %v3365
        %v3367 = vpop.f32.mrb[0].mxu0
        %v3368 = vpop.f32.mrb[0].mxu0
        %v3369 = vadd.f32 0.0, %v3368
        %v3370 = vpop.f32.mrb[0].mxu0
        %3371 = vmatprep.mubr.bf16.mxu0 0
        %3372 = vmatmul.mubr.bf16.gmra.mrb[0].mxu0 %v3311
        %v3373 = vpop.f32.mrb[0].mxu0
        %v3374 = vadd.f32 0.0, %v3373
        %v3375 = vpop.f32.mrb[0].mxu0
        %v3376 = vpop.f32.mrb[0].mxu0
        %v3377 = vadd.f32 0.0, %v3376
        %v3378 = vpop.f32.mrb[0].mxu0
        %3379 = vmatprep.mubr.bf16.mxu0 0
        %3380 = vmatmul.mubr.bf16.gmra.mrb[0].mxu0 %v3314
        %v3381 = vpop.f32.mrb[0].mxu0
        %v3382 = vadd.f32 0.0, %v3381
        %v3383 = vpop.f32.mrb[0].mxu0
        %v3384 = vpop.f32.mrb[0].mxu0
        %v3385 = vadd.f32 0.0, %v3384
        %v3386 = vpop.f32.mrb[0].mxu0
        %3387 = vmatprep.mubr.bf16.mxu0 0
        %3388 = vmatmul.mubr.bf16.gmra.mrb[0].mxu0 %v3317
        %v3389 = vpop.f32.mrb[0].mxu0
        %v3390 = vadd.f32 0.0, %v3389
        %v3391 = vpop.f32.mrb[0].mxu0
        %v3392 = vpop.f32.mrb[0].mxu0
        %v3393 = vadd.f32 0.0, %v3392
        %v3394 = vpop.f32.mrb[0].mxu0
        %3395 = vmatprep.mubr.bf16.mxu0 0
        %3396 = vmatmul.mubr.bf16.gmra.mrb[0].mxu0 %v3320
        %v3397 = vpop.f32.mrb[0].mxu0
        %v3398 = vadd.f32 0.0, %v3397
        %v3399 = vpop.f32.mrb[0].mxu0
        %v3400 = vpop.f32.mrb[0].mxu0
        %v3401 = vadd.f32 0.0, %v3400
        %v3402 = vpop.f32.mrb[0].mxu0
        %3403 = vmatprep.mubr.bf16.mxu0 0
        %3404 = vmatmul.mubr.bf16.gmra.mrb[0].mxu0 %v3323
        %v3405 = vpop.f32.mrb[0].mxu0
        %v3406 = vadd.f32 0.0, %v3405
        %v3407 = vpop.f32.mrb[0].mxu0
        %v3408 = vpop.f32.mrb[0].mxu0
        %v3409 = vadd.f32 0.0, %v3408
        %v3410 = vpop.f32.mrb[0].mxu0
        %3411 = vmatprep.mubr.bf16.mxu0 0
        %3412 = vmatmul.mubr.bf16.gmra.mrb[0].mxu0 %v3326
        %v3413 = vpop.f32.mrb[0].mxu0
        %v3414 = vadd.f32 0.0, %v3413
        %v3415 = vpop.f32.mrb[0].mxu0
        %v3416 = vpop.f32.mrb[0].mxu0
        %v3417 = vadd.f32 0.0, %v3416
        %v3418 = vpop.f32.mrb[0].mxu0
        %3419 = vmatprep.mubr.bf16.mxu0 0
        %3420 = vmatmul.mubr.bf16.gmra.mrb[0].mxu0 %v3329
        %v3421 = vpop.f32.mrb[0].mxu0
        %v3422 = vadd.f32 0.0, %v3421
        %v3423 = vpop.f32.mrb[0].mxu0
        %v3424 = vpop.f32.mrb[0].mxu0
        %v3425 = vadd.f32 0.0, %v3424
        %v3426 = vpop.f32.mrb[0].mxu0
        %3427 = vdwg.mxu0
        %v3428 = vadd.f32 %v3108, %v3366
        %v3429 = vadd.f32 %v3111, %v3369
        %v3430 = vadd.f32 %v3116, %v3374
        %v3431 = vadd.f32 %v3119, %v3377
        %v3432 = vadd.f32 %v3124, %v3382
        %v3433 = vadd.f32 %v3127, %v3385
        %v3434 = vadd.f32 %v3132, %v3390
        %v3435 = vadd.f32 %v3135, %v3393
        %v3436 = vadd.f32 %v3140, %v3398
        %v3437 = vadd.f32 %v3143, %v3401
        %v3438 = vadd.f32 %v3148, %v3406
        %v3439 = vadd.f32 %v3151, %v3409
        %v3440 = vadd.f32 %v3156, %v3414
        %v3441 = vadd.f32 %v3159, %v3417
        %v3442 = vadd.f32 %v3164, %v3422
        %v3443 = vadd.f32 %v3167, %v3425
        %s3444 = scalar_lea.vmem %s2, 96
        %v3445 = vld [vmem:[%s3444] sm:$0xf]
        %v3446 = vld [vmem:[%s3444 + $0x4] sm:$0xf]
        %v3447 = vld [vmem:[%s285] sm:$0x8]
        %v3448 = vld [vmem:[%s285 + $0x4] sm:$0xf]
        %v3449 = vld [vmem:[%s285 + $0x8] sm:$0x7]
        %v3450 = vld [vmem:[%s285 + $0x1c] sm:$0x8]
        %v3451 = vld [vmem:[%s285 + $0x20] sm:$0xf]
        %v3452 = vld [vmem:[%s285 + $0x24] sm:$0x7]
        %v3453 = vld [vmem:[%s285 + $0x38] sm:$0x8]
        %v3454 = vld [vmem:[%s285 + $0x3c] sm:$0xf]
        %v3455 = vld [vmem:[%s285 + $0x40] sm:$0x7]
        %v3456 = vld [vmem:[%s285 + $0x54] sm:$0x8]
        %v3457 = vld [vmem:[%s285 + $0x58] sm:$0xf]
        %v3458 = vld [vmem:[%s285 + $0x5c] sm:$0x7]
        %v3459 = vld [vmem:[%s285 + $0x70] sm:$0x8]
        %v3460 = vld [vmem:[%s285 + $0x74] sm:$0xf]
        %v3461 = vld [vmem:[%s285 + $0x78] sm:$0x7]
        %v3462 = vld [vmem:[%s285 + $0x8c] sm:$0x8]
        %v3463 = vld [vmem:[%s285 + $0x90] sm:$0xf]
        %v3464 = vld [vmem:[%s285 + $0x94] sm:$0x7]
        %v3465 = vld [vmem:[%s285 + $0xa8] sm:$0x8]
        %v3466 = vld [vmem:[%s285 + $0xac] sm:$0xf]
        %v3467 = vld [vmem:[%s285 + $0xb0] sm:$0x7]
        %v3468 = vld [vmem:[%s285 + $0xc4] sm:$0x8]
        %v3469 = vld [vmem:[%s285 + $0xc8] sm:$0xf]
        %v3470 = vld [vmem:[%s285 + $0xcc] sm:$0x7]
        %v3495 = vrot.slane %v3447, 7
        %v3496 = vrot.slane %v3495, 4
        %v3497 = vrot.slane %v3448, 7
        %v3498 = vsel %vm2704, %v3496, %v3497
        %v3499 = vrot.slane %v3497, 4
        %v3500 = vrot.slane %v3449, 7
        %v3501 = vsel %vm2704, %v3499, %v3500
        %v3502 = vrot.slane %v3450, 7
        %v3503 = vrot.slane %v3502, 4
        %v3504 = vrot.slane %v3451, 7
        %v3505 = vsel %vm2704, %v3503, %v3504
        %v3506 = vrot.slane %v3504, 4
        %v3507 = vrot.slane %v3452, 7
        %v3508 = vsel %vm2704, %v3506, %v3507
        %v3509 = vrot.slane %v3453, 7
        %v3510 = vrot.slane %v3509, 4
        %v3511 = vrot.slane %v3454, 7
        %v3512 = vsel %vm2704, %v3510, %v3511
        %v3513 = vrot.slane %v3511, 4
        %v3514 = vrot.slane %v3455, 7
        %v3515 = vsel %vm2704, %v3513, %v3514
        %v3516 = vrot.slane %v3456, 7
        %v3517 = vrot.slane %v3516, 4
        %v3518 = vrot.slane %v3457, 7
        %v3519 = vsel %vm2704, %v3517, %v3518
        %v3520 = vrot.slane %v3518, 4
        %v3521 = vrot.slane %v3458, 7
        %v3522 = vsel %vm2704, %v3520, %v3521
        %v3523 = vrot.slane %v3459, 7
        %v3524 = vrot.slane %v3523, 4
        %v3525 = vrot.slane %v3460, 7
        %v3526 = vsel %vm2704, %v3524, %v3525
        %v3527 = vrot.slane %v3525, 4
        %v3528 = vrot.slane %v3461, 7
        %v3529 = vsel %vm2704, %v3527, %v3528
        %v3530 = vrot.slane %v3462, 7
        %v3531 = vrot.slane %v3530, 4
        %v3532 = vrot.slane %v3463, 7
        %v3533 = vsel %vm2704, %v3531, %v3532
        %v3534 = vrot.slane %v3532, 4
        %v3535 = vrot.slane %v3464, 7
        %v3536 = vsel %vm2704, %v3534, %v3535
        %v3537 = vrot.slane %v3465, 7
        %v3538 = vrot.slane %v3537, 4
        %v3539 = vrot.slane %v3466, 7
        %v3540 = vsel %vm2704, %v3538, %v3539
        %v3541 = vrot.slane %v3539, 4
        %v3542 = vrot.slane %v3467, 7
        %v3543 = vsel %vm2704, %v3541, %v3542
        %v3544 = vrot.slane %v3468, 7
        %v3545 = vrot.slane %v3544, 4
        %v3546 = vrot.slane %v3469, 7
        %v3547 = vsel %vm2704, %v3545, %v3546
        %v3548 = vrot.slane %v3546, 4
        %v3549 = vrot.slane %v3470, 7
        %v3550 = vsel %vm2704, %v3548, %v3549
        %v3551 = vunpack.c.l.b16 %v3498
        %v3552 = vunpack.c.l.b16 %v3501
        %v3553 = vunpack.c.l.b16 %v3505
        %v3554 = vunpack.c.l.b16 %v3508
        %v3555 = vunpack.c.l.b16 %v3512
        %v3556 = vunpack.c.l.b16 %v3515
        %v3557 = vunpack.c.l.b16 %v3519
        %v3558 = vunpack.c.l.b16 %v3522
        %v3559 = vunpack.c.l.b16 %v3526
        %v3560 = vunpack.c.l.b16 %v3529
        %v3561 = vunpack.c.l.b16 %v3533
        %v3562 = vunpack.c.l.b16 %v3536
        %v3563 = vunpack.c.l.b16 %v3540
        %v3564 = vunpack.c.l.b16 %v3543
        %v3565 = vunpack.c.l.b16 %v3547
        %v3566 = vunpack.c.l.b16 %v3550
        %v3567 = vpack.c.b16 %v3552, %v3551
        %v3568 = vpack.c.b16 %v3554, %v3553
        %v3569 = vpack.c.b16 %v3556, %v3555
        %v3570 = vpack.c.b16 %v3558, %v3557
        %v3571 = vpack.c.b16 %v3560, %v3559
        %v3572 = vpack.c.b16 %v3562, %v3561
        %v3573 = vpack.c.b16 %v3564, %v3563
        %v3574 = vpack.c.b16 %v3566, %v3565
        %v3577 = vunpack.c.l.b16 %v3445
        %v3578 = vunpack.c.l.b16 %v3446
        %v3579 = vpack.c.b16 %v3578, %v3577
        %v3582 = vsel %vm429, %v3567, 0
        %v3585 = vsel %vm429, %v3568, 0
        %v3588 = vsel %vm429, %v3569, 0
        %v3591 = vsel %vm429, %v3570, 0
        %v3594 = vsel %vm429, %v3571, 0
        %v3597 = vsel %vm429, %v3572, 0
        %v3600 = vsel %vm429, %v3573, 0
        %v3603 = vsel %vm429, %v3574, 0
        %3605 = vmatprep.subr.bf16.mxu0 0
        %3606 = vmatpush1.bf16.msra.mxu0 %v3579
        %3607 = vmatprep.subr.bf16.mxu0 0
        %3608 = vmatpush1.bf16.msra.mxu0 0
        %3609 = vmatprep.subr.bf16.mxu0 0
        %3610 = vmatpush1.bf16.msra.mxu0 0
        %3611 = vmatprep.subr.bf16.mxu0 0
        %3612 = vmatpush1.bf16.msra.mxu0 0
        %3613 = vmatprep.subr.bf16.mxu0 0
        %3614 = vmatpush1.bf16.msra.mxu0 0
        %3615 = vmatprep.subr.bf16.mxu0 0
        %3616 = vmatpush1.bf16.msra.mxu0 0
        %3617 = vmatprep.subr.bf16.mxu0 0
        %3618 = vmatpush1.bf16.msra.mxu0 0
        %3619 = vmatprep.subr.bf16.mxu0 0
        %3620 = vmatpush1.bf16.msra.mxu0 0
        %3621 = vmatprep.subr.bf16.mxu0 0
        %3622 = vmatpush1.bf16.msra.mxu0 0
        %3623 = vmatprep.subr.bf16.mxu0 0
        %3624 = vmatpush1.bf16.msra.mxu0 0
        %3625 = vmatprep.subr.bf16.mxu0 0
        %3626 = vmatpush1.bf16.msra.mxu0 0
        %3627 = vmatprep.subr.bf16.mxu0 0
        %3628 = vmatpush1.bf16.msra.mxu0 0
        %3629 = vmatprep.subr.bf16.mxu0 0
        %3630 = vmatpush1.bf16.msra.mxu0 0
        %3631 = vmatprep.subr.bf16.mxu0 0
        %3632 = vmatpush1.bf16.msra.mxu0 0
        %3633 = vmatprep.subr.bf16.mxu0 0
        %3634 = vmatpush1.bf16.msra.mxu0 0
        %3635 = vmatprep.subr.bf16.mxu0 0
        %3636 = vmatpush1.bf16.msra.mxu0 0
        %3637 = vmatprep.mubr.bf16.mxu0 0
        %3638 = vmatmul.mubr.bf16.gmra.mrb[0].mxu0 %v3582
        %v3639 = vpop.f32.mrb[0].mxu0
        %v3640 = vadd.f32 0.0, %v3639
        %v3641 = vpop.f32.mrb[0].mxu0
        %v3642 = vpop.f32.mrb[0].mxu0
        %v3643 = vadd.f32 0.0, %v3642
        %v3644 = vpop.f32.mrb[0].mxu0
        %3645 = vmatprep.mubr.bf16.mxu0 0
        %3646 = vmatmul.mubr.bf16.gmra.mrb[0].mxu0 %v3585
        %v3647 = vpop.f32.mrb[0].mxu0
        %v3648 = vadd.f32 0.0, %v3647
        %v3649 = vpop.f32.mrb[0].mxu0
        %v3650 = vpop.f32.mrb[0].mxu0
        %v3651 = vadd.f32 0.0, %v3650
        %v3652 = vpop.f32.mrb[0].mxu0
        %3653 = vmatprep.mubr.bf16.mxu0 0
        %3654 = vmatmul.mubr.bf16.gmra.mrb[0].mxu0 %v3588
        %v3655 = vpop.f32.mrb[0].mxu0
        %v3656 = vadd.f32 0.0, %v3655
        %v3657 = vpop.f32.mrb[0].mxu0
        %v3658 = vpop.f32.mrb[0].mxu0
        %v3659 = vadd.f32 0.0, %v3658
        %v3660 = vpop.f32.mrb[0].mxu0
        %3661 = vmatprep.mubr.bf16.mxu0 0
        %3662 = vmatmul.mubr.bf16.gmra.mrb[0].mxu0 %v3591
        %v3663 = vpop.f32.mrb[0].mxu0
        %v3664 = vadd.f32 0.0, %v3663
        %v3665 = vpop.f32.mrb[0].mxu0
        %v3666 = vpop.f32.mrb[0].mxu0
        %v3667 = vadd.f32 0.0, %v3666
        %v3668 = vpop.f32.mrb[0].mxu0
        %3669 = vmatprep.mubr.bf16.mxu0 0
        %3670 = vmatmul.mubr.bf16.gmra.mrb[0].mxu0 %v3594
        %v3671 = vpop.f32.mrb[0].mxu0
        %v3672 = vadd.f32 0.0, %v3671
        %v3673 = vpop.f32.mrb[0].mxu0
        %v3674 = vpop.f32.mrb[0].mxu0
        %v3675 = vadd.f32 0.0, %v3674
        %v3676 = vpop.f32.mrb[0].mxu0
        %3677 = vmatprep.mubr.bf16.mxu0 0
        %3678 = vmatmul.mubr.bf16.gmra.mrb[0].mxu0 %v3597
        %v3679 = vpop.f32.mrb[0].mxu0
        %v3680 = vadd.f32 0.0, %v3679
        %v3681 = vpop.f32.mrb[0].mxu0
        %v3682 = vpop.f32.mrb[0].mxu0
        %v3683 = vadd.f32 0.0, %v3682
        %v3684 = vpop.f32.mrb[0].mxu0
        %3685 = vmatprep.mubr.bf16.mxu0 0
        %3686 = vmatmul.mubr.bf16.gmra.mrb[0].mxu0 %v3600
        %v3687 = vpop.f32.mrb[0].mxu0
        %v3688 = vadd.f32 0.0, %v3687
        %v3689 = vpop.f32.mrb[0].mxu0
        %v3690 = vpop.f32.mrb[0].mxu0
        %v3691 = vadd.f32 0.0, %v3690
        %v3692 = vpop.f32.mrb[0].mxu0
        %3693 = vmatprep.mubr.bf16.mxu0 0
        %3694 = vmatmul.mubr.bf16.gmra.mrb[0].mxu0 %v3603
        %v3695 = vpop.f32.mrb[0].mxu0
        %v3696 = vadd.f32 0.0, %v3695
        %v3697 = vpop.f32.mrb[0].mxu0
        %v3698 = vpop.f32.mrb[0].mxu0
        %v3699 = vadd.f32 0.0, %v3698
        %v3700 = vpop.f32.mrb[0].mxu0
        %3701 = vdwg.mxu0
        %v3702 = vadd.f32 %v3428, %v3640
        %v3703 = vadd.f32 %v3429, %v3643
        %v3704 = vadd.f32 %v3430, %v3648
        %v3705 = vadd.f32 %v3431, %v3651
        %v3706 = vadd.f32 %v3432, %v3656
        %v3707 = vadd.f32 %v3433, %v3659
        %v3708 = vadd.f32 %v3434, %v3664
        %v3709 = vadd.f32 %v3435, %v3667
        %v3710 = vadd.f32 %v3436, %v3672
        %v3711 = vadd.f32 %v3437, %v3675
        %v3712 = vadd.f32 %v3438, %v3680
        %v3713 = vadd.f32 %v3439, %v3683
        %v3714 = vadd.f32 %v3440, %v3688
        %v3715 = vadd.f32 %v3441, %v3691
        %v3716 = vadd.f32 %v3442, %v3696
        %v3717 = vadd.f32 %v3443, %v3699
        %s3718 = scalar_lea.vmem %s2, 104
        %v3719 = vld [vmem:[%s3718] sm:$0xf]
        %v3720 = vld [vmem:[%s3718 + $0x4] sm:$0xf]
        %v3723 = vunpack.c.l.b16 %v3719
        %v3724 = vunpack.c.l.b16 %v3720
        %v3725 = vpack.c.b16 %v3724, %v3723
        %3727 = vmatprep.subr.bf16.mxu0 0
        %3728 = vmatpush1.bf16.msra.mxu0 %v3725
        %3729 = vmatprep.subr.bf16.mxu0 0
        %3730 = vmatpush1.bf16.msra.mxu0 0
        %3731 = vmatprep.subr.bf16.mxu0 0
        %3732 = vmatpush1.bf16.msra.mxu0 0
        %3733 = vmatprep.subr.bf16.mxu0 0
        %3734 = vmatpush1.bf16.msra.mxu0 0
        %3735 = vmatprep.subr.bf16.mxu0 0
        %3736 = vmatpush1.bf16.msra.mxu0 0
        %3737 = vmatprep.subr.bf16.mxu0 0
        %3738 = vmatpush1.bf16.msra.mxu0 0
        %3739 = vmatprep.subr.bf16.mxu0 0
        %3740 = vmatpush1.bf16.msra.mxu0 0
        %3741 = vmatprep.subr.bf16.mxu0 0
        %3742 = vmatpush1.bf16.msra.mxu0 0
        %3743 = vmatprep.subr.bf16.mxu0 0
        %3744 = vmatpush1.bf16.msra.mxu0 0
        %3745 = vmatprep.subr.bf16.mxu0 0
        %3746 = vmatpush1.bf16.msra.mxu0 0
        %3747 = vmatprep.subr.bf16.mxu0 0
        %3748 = vmatpush1.bf16.msra.mxu0 0
        %3749 = vmatprep.subr.bf16.mxu0 0
        %3750 = vmatpush1.bf16.msra.mxu0 0
        %3751 = vmatprep.subr.bf16.mxu0 0
        %3752 = vmatpush1.bf16.msra.mxu0 0
        %3753 = vmatprep.subr.bf16.mxu0 0
        %3754 = vmatpush1.bf16.msra.mxu0 0
        %3755 = vmatprep.subr.bf16.mxu0 0
        %3756 = vmatpush1.bf16.msra.mxu0 0
        %3757 = vmatprep.subr.bf16.mxu0 0
        %3758 = vmatpush1.bf16.msra.mxu0 0
        %3759 = vmatprep.mubr.bf16.mxu0 0
        %3760 = vmatmul.mubr.bf16.gmra.mrb[0].mxu0 %v431
        %v3761 = vpop.f32.mrb[0].mxu0
        %v3762 = vadd.f32 0.0, %v3761
        %v3763 = vpop.f32.mrb[0].mxu0
        %v3764 = vpop.f32.mrb[0].mxu0
        %v3765 = vadd.f32 0.0, %v3764
        %v3766 = vpop.f32.mrb[0].mxu0
        %3767 = vmatprep.mubr.bf16.mxu0 0
        %3768 = vmatmul.mubr.bf16.gmra.mrb[0].mxu0 %v434
        %v3769 = vpop.f32.mrb[0].mxu0
        %v3770 = vadd.f32 0.0, %v3769
        %v3771 = vpop.f32.mrb[0].mxu0
        %v3772 = vpop.f32.mrb[0].mxu0
        %v3773 = vadd.f32 0.0, %v3772
        %v3774 = vpop.f32.mrb[0].mxu0
        %3775 = vmatprep.mubr.bf16.mxu0 0
        %3776 = vmatmul.mubr.bf16.gmra.mrb[0].mxu0 %v437
        %v3777 = vpop.f32.mrb[0].mxu0
        %v3778 = vadd.f32 0.0, %v3777
        %v3779 = vpop.f32.mrb[0].mxu0
        %v3780 = vpop.f32.mrb[0].mxu0
        %v3781 = vadd.f32 0.0, %v3780
        %v3782 = vpop.f32.mrb[0].mxu0
        %3783 = vmatprep.mubr.bf16.mxu0 0
        %3784 = vmatmul.mubr.bf16.gmra.mrb[0].mxu0 %v440
        %v3785 = vpop.f32.mrb[0].mxu0
        %v3786 = vadd.f32 0.0, %v3785
        %v3787 = vpop.f32.mrb[0].mxu0
        %v3788 = vpop.f32.mrb[0].mxu0
        %v3789 = vadd.f32 0.0, %v3788
        %v3790 = vpop.f32.mrb[0].mxu0
        %3791 = vmatprep.mubr.bf16.mxu0 0
        %3792 = vmatmul.mubr.bf16.gmra.mrb[0].mxu0 %v443
        %v3793 = vpop.f32.mrb[0].mxu0
        %v3794 = vadd.f32 0.0, %v3793
        %v3795 = vpop.f32.mrb[0].mxu0
        %v3796 = vpop.f32.mrb[0].mxu0
        %v3797 = vadd.f32 0.0, %v3796
        %v3798 = vpop.f32.mrb[0].mxu0
        %3799 = vmatprep.mubr.bf16.mxu0 0
        %3800 = vmatmul.mubr.bf16.gmra.mrb[0].mxu0 %v446
        %v3801 = vpop.f32.mrb[0].mxu0
        %v3802 = vadd.f32 0.0, %v3801
        %v3803 = vpop.f32.mrb[0].mxu0
        %v3804 = vpop.f32.mrb[0].mxu0
        %v3805 = vadd.f32 0.0, %v3804
        %v3806 = vpop.f32.mrb[0].mxu0
        %3807 = vmatprep.mubr.bf16.mxu0 0
        %3808 = vmatmul.mubr.bf16.gmra.mrb[0].mxu0 %v449
        %v3809 = vpop.f32.mrb[0].mxu0
        %v3810 = vadd.f32 0.0, %v3809
        %v3811 = vpop.f32.mrb[0].mxu0
        %v3812 = vpop.f32.mrb[0].mxu0
        %v3813 = vadd.f32 0.0, %v3812
        %v3814 = vpop.f32.mrb[0].mxu0
        %3815 = vmatprep.mubr.bf16.mxu0 0
        %3816 = vmatmul.mubr.bf16.gmra.mrb[0].mxu0 %v452
        %v3817 = vpop.f32.mrb[0].mxu0
        %v3818 = vadd.f32 0.0, %v3817
        %v3819 = vpop.f32.mrb[0].mxu0
        %v3820 = vpop.f32.mrb[0].mxu0
        %v3821 = vadd.f32 0.0, %v3820
        %v3822 = vpop.f32.mrb[0].mxu0
        %3823 = vdwg.mxu0
        %v3824 = vadd.f32 %v3702, %v3762
        %v3825 = vadd.f32 %v3703, %v3765
        %v3826 = vadd.f32 %v3704, %v3770
        %v3827 = vadd.f32 %v3705, %v3773
        %v3828 = vadd.f32 %v3706, %v3778
        %v3829 = vadd.f32 %v3707, %v3781
        %v3830 = vadd.f32 %v3708, %v3786
        %v3831 = vadd.f32 %v3709, %v3789
        %v3832 = vadd.f32 %v3710, %v3794
        %v3833 = vadd.f32 %v3711, %v3797
        %v3834 = vadd.f32 %v3712, %v3802
        %v3835 = vadd.f32 %v3713, %v3805
        %v3836 = vadd.f32 %v3714, %v3810
        %v3837 = vadd.f32 %v3715, %v3813
        %v3838 = vadd.f32 %v3716, %v3818
        %v3839 = vadd.f32 %v3717, %v3821
        %s3840 = scalar_lea.vmem %s2, 112
        %v3841 = vld [vmem:[%s3840] sm:$0xf]
        %v3842 = vld [vmem:[%s3840 + $0x4] sm:$0xf]
        %v3843 = vld [vmem:[%s285 + $0xc] sm:$0x8]
        %v3844 = vld [vmem:[%s285 + $0x10] sm:$0xf]
        %v3845 = vld [vmem:[%s285 + $0x14] sm:$0x7]
        %v3846 = vld [vmem:[%s285 + $0x28] sm:$0x8]
        %v3847 = vld [vmem:[%s285 + $0x2c] sm:$0xf]
        %v3848 = vld [vmem:[%s285 + $0x30] sm:$0x7]
        %v3849 = vld [vmem:[%s285 + $0x44] sm:$0x8]
        %v3850 = vld [vmem:[%s285 + $0x48] sm:$0xf]
        %v3851 = vld [vmem:[%s285 + $0x4c] sm:$0x7]
        %v3852 = vld [vmem:[%s285 + $0x60] sm:$0x8]
        %v3853 = vld [vmem:[%s285 + $0x64] sm:$0xf]
        %v3854 = vld [vmem:[%s285 + $0x68] sm:$0x7]
        %v3855 = vld [vmem:[%s285 + $0x7c] sm:$0x8]
        %v3856 = vld [vmem:[%s285 + $0x80] sm:$0xf]
        %v3857 = vld [vmem:[%s285 + $0x84] sm:$0x7]
        %v3858 = vld [vmem:[%s285 + $0x98] sm:$0x8]
        %v3859 = vld [vmem:[%s285 + $0x9c] sm:$0xf]
        %v3860 = vld [vmem:[%s285 + $0xa0] sm:$0x7]
        %v3861 = vld [vmem:[%s285 + $0xb4] sm:$0x8]
        %v3862 = vld [vmem:[%s285 + $0xb8] sm:$0xf]
        %v3863 = vld [vmem:[%s285 + $0xbc] sm:$0x7]
        %v3864 = vld [vmem:[%s285 + $0xd0] sm:$0x8]
        %v3865 = vld [vmem:[%s285 + $0xd4] sm:$0xf]
        %v3866 = vld [vmem:[%s285 + $0xd8] sm:$0x7]
        %v3891 = vrot.slane %v3843, 7
        %v3892 = vrot.slane %v3891, 4
        %v3893 = vrot.slane %v3844, 7
        %v3894 = vsel %vm2704, %v3892, %v3893
        %v3895 = vrot.slane %v3893, 4
        %v3896 = vrot.slane %v3845, 7
        %v3897 = vsel %vm2704, %v3895, %v3896
        %v3898 = vrot.slane %v3846, 7
        %v3899 = vrot.slane %v3898, 4
        %v3900 = vrot.slane %v3847, 7
        %v3901 = vsel %vm2704, %v3899, %v3900
        %v3902 = vrot.slane %v3900, 4
        %v3903 = vrot.slane %v3848, 7
        %v3904 = vsel %vm2704, %v3902, %v3903
        %v3905 = vrot.slane %v3849, 7
        %v3906 = vrot.slane %v3905, 4
        %v3907 = vrot.slane %v3850, 7
        %v3908 = vsel %vm2704, %v3906, %v3907
        %v3909 = vrot.slane %v3907, 4
        %v3910 = vrot.slane %v3851, 7
        %v3911 = vsel %vm2704, %v3909, %v3910
        %v3912 = vrot.slane %v3852, 7
        %v3913 = vrot.slane %v3912, 4
        %v3914 = vrot.slane %v3853, 7
        %v3915 = vsel %vm2704, %v3913, %v3914
        %v3916 = vrot.slane %v3914, 4
        %v3917 = vrot.slane %v3854, 7
        %v3918 = vsel %vm2704, %v3916, %v3917
        %v3919 = vrot.slane %v3855, 7
        %v3920 = vrot.slane %v3919, 4
        %v3921 = vrot.slane %v3856, 7
        %v3922 = vsel %vm2704, %v3920, %v3921
        %v3923 = vrot.slane %v3921, 4
        %v3924 = vrot.slane %v3857, 7
        %v3925 = vsel %vm2704, %v3923, %v3924
        %v3926 = vrot.slane %v3858, 7
        %v3927 = vrot.slane %v3926, 4
        %v3928 = vrot.slane %v3859, 7
        %v3929 = vsel %vm2704, %v3927, %v3928
        %v3930 = vrot.slane %v3928, 4
        %v3931 = vrot.slane %v3860, 7
        %v3932 = vsel %vm2704, %v3930, %v3931
        %v3933 = vrot.slane %v3861, 7
        %v3934 = vrot.slane %v3933, 4
        %v3935 = vrot.slane %v3862, 7
        %v3936 = vsel %vm2704, %v3934, %v3935
        %v3937 = vrot.slane %v3935, 4
        %v3938 = vrot.slane %v3863, 7
        %v3939 = vsel %vm2704, %v3937, %v3938
        %v3940 = vrot.slane %v3864, 7
        %v3941 = vrot.slane %v3940, 4
        %v3942 = vrot.slane %v3865, 7
        %v3943 = vsel %vm2704, %v3941, %v3942
        %v3944 = vrot.slane %v3942, 4
        %v3945 = vrot.slane %v3866, 7
        %v3946 = vsel %vm2704, %v3944, %v3945
        %v3947 = vunpack.c.l.b16 %v3894
        %v3948 = vunpack.c.l.b16 %v3897
        %v3949 = vunpack.c.l.b16 %v3901
        %v3950 = vunpack.c.l.b16 %v3904
        %v3951 = vunpack.c.l.b16 %v3908
        %v3952 = vunpack.c.l.b16 %v3911
        %v3953 = vunpack.c.l.b16 %v3915
        %v3954 = vunpack.c.l.b16 %v3918
        %v3955 = vunpack.c.l.b16 %v3922
        %v3956 = vunpack.c.l.b16 %v3925
        %v3957 = vunpack.c.l.b16 %v3929
        %v3958 = vunpack.c.l.b16 %v3932
        %v3959 = vunpack.c.l.b16 %v3936
        %v3960 = vunpack.c.l.b16 %v3939
        %v3961 = vunpack.c.l.b16 %v3943
        %v3962 = vunpack.c.l.b16 %v3946
        %v3963 = vpack.c.b16 %v3948, %v3947
        %v3964 = vpack.c.b16 %v3950, %v3949
        %v3965 = vpack.c.b16 %v3952, %v3951
        %v3966 = vpack.c.b16 %v3954, %v3953
        %v3967 = vpack.c.b16 %v3956, %v3955
        %v3968 = vpack.c.b16 %v3958, %v3957
        %v3969 = vpack.c.b16 %v3960, %v3959
        %v3970 = vpack.c.b16 %v3962, %v3961
        %v3973 = vunpack.c.l.b16 %v3841
        %v3974 = vunpack.c.l.b16 %v3842
        %v3975 = vpack.c.b16 %v3974, %v3973
        %v3978 = vsel %vm429, %v3963, 0
        %v3981 = vsel %vm429, %v3964, 0
        %v3984 = vsel %vm429, %v3965, 0
        %v3987 = vsel %vm429, %v3966, 0
        %v3990 = vsel %vm429, %v3967, 0
        %v3993 = vsel %vm429, %v3968, 0
        %v3996 = vsel %vm429, %v3969, 0
        %v3999 = vsel %vm429, %v3970, 0
        %4001 = vmatprep.subr.bf16.mxu0 0
        %4002 = vmatpush1.bf16.msra.mxu0 %v3975
        %4003 = vmatprep.subr.bf16.mxu0 0
        %4004 = vmatpush1.bf16.msra.mxu0 0
        %4005 = vmatprep.subr.bf16.mxu0 0
        %4006 = vmatpush1.bf16.msra.mxu0 0
        %4007 = vmatprep.subr.bf16.mxu0 0
        %4008 = vmatpush1.bf16.msra.mxu0 0
        %4009 = vmatprep.subr.bf16.mxu0 0
        %4010 = vmatpush1.bf16.msra.mxu0 0
        %4011 = vmatprep.subr.bf16.mxu0 0
        %4012 = vmatpush1.bf16.msra.mxu0 0
        %4013 = vmatprep.subr.bf16.mxu0 0
        %4014 = vmatpush1.bf16.msra.mxu0 0
        %4015 = vmatprep.subr.bf16.mxu0 0
        %4016 = vmatpush1.bf16.msra.mxu0 0
        %4017 = vmatprep.subr.bf16.mxu0 0
        %4018 = vmatpush1.bf16.msra.mxu0 0
        %4019 = vmatprep.subr.bf16.mxu0 0
        %4020 = vmatpush1.bf16.msra.mxu0 0
        %4021 = vmatprep.subr.bf16.mxu0 0
        %4022 = vmatpush1.bf16.msra.mxu0 0
        %4023 = vmatprep.subr.bf16.mxu0 0
        %4024 = vmatpush1.bf16.msra.mxu0 0
        %4025 = vmatprep.subr.bf16.mxu0 0
        %4026 = vmatpush1.bf16.msra.mxu0 0
        %4027 = vmatprep.subr.bf16.mxu0 0
        %4028 = vmatpush1.bf16.msra.mxu0 0
        %4029 = vmatprep.subr.bf16.mxu0 0
        %4030 = vmatpush1.bf16.msra.mxu0 0
        %4031 = vmatprep.subr.bf16.mxu0 0
        %4032 = vmatpush1.bf16.msra.mxu0 0
        %4033 = vmatprep.mubr.bf16.mxu0 0
        %4034 = vmatmul.mubr.bf16.gmra.mrb[0].mxu0 %v3978
        %v4035 = vpop.f32.mrb[0].mxu0
        %v4036 = vadd.f32 0.0, %v4035
        %v4037 = vpop.f32.mrb[0].mxu0
        %v4038 = vpop.f32.mrb[0].mxu0
        %v4039 = vadd.f32 0.0, %v4038
        %v4040 = vpop.f32.mrb[0].mxu0
        %4041 = vmatprep.mubr.bf16.mxu0 0
        %4042 = vmatmul.mubr.bf16.gmra.mrb[0].mxu0 %v3981
        %v4043 = vpop.f32.mrb[0].mxu0
        %v4044 = vadd.f32 0.0, %v4043
        %v4045 = vpop.f32.mrb[0].mxu0
        %v4046 = vpop.f32.mrb[0].mxu0
        %v4047 = vadd.f32 0.0, %v4046
        %v4048 = vpop.f32.mrb[0].mxu0
        %4049 = vmatprep.mubr.bf16.mxu0 0
        %4050 = vmatmul.mubr.bf16.gmra.mrb[0].mxu0 %v3984
        %v4051 = vpop.f32.mrb[0].mxu0
        %v4052 = vadd.f32 0.0, %v4051
        %v4053 = vpop.f32.mrb[0].mxu0
        %v4054 = vpop.f32.mrb[0].mxu0
        %v4055 = vadd.f32 0.0, %v4054
        %v4056 = vpop.f32.mrb[0].mxu0
        %4057 = vmatprep.mubr.bf16.mxu0 0
        %4058 = vmatmul.mubr.bf16.gmra.mrb[0].mxu0 %v3987
        %v4059 = vpop.f32.mrb[0].mxu0
        %v4060 = vadd.f32 0.0, %v4059
        %v4061 = vpop.f32.mrb[0].mxu0
        %v4062 = vpop.f32.mrb[0].mxu0
        %v4063 = vadd.f32 0.0, %v4062
        %v4064 = vpop.f32.mrb[0].mxu0
        %4065 = vmatprep.mubr.bf16.mxu0 0
        %4066 = vmatmul.mubr.bf16.gmra.mrb[0].mxu0 %v3990
        %v4067 = vpop.f32.mrb[0].mxu0
        %v4068 = vadd.f32 0.0, %v4067
        %v4069 = vpop.f32.mrb[0].mxu0
        %v4070 = vpop.f32.mrb[0].mxu0
        %v4071 = vadd.f32 0.0, %v4070
        %v4072 = vpop.f32.mrb[0].mxu0
        %4073 = vmatprep.mubr.bf16.mxu0 0
        %4074 = vmatmul.mubr.bf16.gmra.mrb[0].mxu0 %v3993
        %v4075 = vpop.f32.mrb[0].mxu0
        %v4076 = vadd.f32 0.0, %v4075
        %v4077 = vpop.f32.mrb[0].mxu0
        %v4078 = vpop.f32.mrb[0].mxu0
        %v4079 = vadd.f32 0.0, %v4078
        %v4080 = vpop.f32.mrb[0].mxu0
        %4081 = vmatprep.mubr.bf16.mxu0 0
        %4082 = vmatmul.mubr.bf16.gmra.mrb[0].mxu0 %v3996
        %v4083 = vpop.f32.mrb[0].mxu0
        %v4084 = vadd.f32 0.0, %v4083
        %v4085 = vpop.f32.mrb[0].mxu0
        %v4086 = vpop.f32.mrb[0].mxu0
        %v4087 = vadd.f32 0.0, %v4086
        %v4088 = vpop.f32.mrb[0].mxu0
        %4089 = vmatprep.mubr.bf16.mxu0 0
        %4090 = vmatmul.mubr.bf16.gmra.mrb[0].mxu0 %v3999
        %v4091 = vpop.f32.mrb[0].mxu0
        %v4092 = vadd.f32 0.0, %v4091
        %v4093 = vpop.f32.mrb[0].mxu0
        %v4094 = vpop.f32.mrb[0].mxu0
        %v4095 = vadd.f32 0.0, %v4094
        %v4096 = vpop.f32.mrb[0].mxu0
        %4097 = vdwg.mxu0
        %v4098 = vadd.f32 %v3824, %v4036
        %v4099 = vadd.f32 %v3825, %v4039
        %v4100 = vadd.f32 %v3826, %v4044
        %v4101 = vadd.f32 %v3827, %v4047
        %v4102 = vadd.f32 %v3828, %v4052
        %v4103 = vadd.f32 %v3829, %v4055
        %v4104 = vadd.f32 %v3830, %v4060
        %v4105 = vadd.f32 %v3831, %v4063
        %v4106 = vadd.f32 %v3832, %v4068
        %v4107 = vadd.f32 %v3833, %v4071
        %v4108 = vadd.f32 %v3834, %v4076
        %v4109 = vadd.f32 %v3835, %v4079
        %v4110 = vadd.f32 %v3836, %v4084
        %v4111 = vadd.f32 %v3837, %v4087
        %v4112 = vadd.f32 %v3838, %v4092
        %v4113 = vadd.f32 %v3839, %v4095
        %s4114 = scalar_lea.vmem %s2, 120
        %v4115 = vld [vmem:[%s4114] sm:$0xf]
        %v4116 = vld [vmem:[%s4114 + $0x4] sm:$0xf]
        %s4117 = sadd.s32 %s280, 30
        %s4118 = smul.u32 %s4117, 7
        %s4119 = smul.addr %s4118, 4
        %s4120 = scalar_lea.vmem %s274, %s4119
        %v4121 = vld [vmem:[%s4120] sm:$0x8]
        %v4122 = vld [vmem:[%s4120 + $0x4] sm:$0xf]
        %v4123 = vld [vmem:[%s4120 + $0x8] sm:$0x7]
        %v4124 = vld [vmem:[%s4120 + $0x1c] sm:$0x8]
        %v4125 = vld [vmem:[%s4120 + $0x20] sm:$0xf]
        %v4126 = vld [vmem:[%s4120 + $0x24] sm:$0x7]
        %v4127 = vld [vmem:[%s4120 + $0x38] sm:$0x8]
        %v4128 = vld [vmem:[%s4120 + $0x3c] sm:$0xf]
        %v4129 = vld [vmem:[%s4120 + $0x40] sm:$0x7]
        %v4130 = vld [vmem:[%s4120 + $0x54] sm:$0x8]
        %v4131 = vld [vmem:[%s4120 + $0x58] sm:$0xf]
        %v4132 = vld [vmem:[%s4120 + $0x5c] sm:$0x7]
        %v4133 = vld [vmem:[%s4120 + $0x70] sm:$0x8]
        %v4134 = vld [vmem:[%s4120 + $0x74] sm:$0xf]
        %v4135 = vld [vmem:[%s4120 + $0x78] sm:$0x7]
        %v4136 = vld [vmem:[%s4120 + $0x8c] sm:$0x8]
        %v4137 = vld [vmem:[%s4120 + $0x90] sm:$0xf]
        %v4138 = vld [vmem:[%s4120 + $0x94] sm:$0x7]
        %v4139 = vld [vmem:[%s4120 + $0xa8] sm:$0x8]
        %v4140 = vld [vmem:[%s4120 + $0xac] sm:$0xf]
        %v4141 = vld [vmem:[%s4120 + $0xb0] sm:$0x7]
        %v4142 = vld [vmem:[%s4120 + $0xc4] sm:$0x8]
        %v4143 = vld [vmem:[%s4120 + $0xc8] sm:$0xf]
        %v4144 = vld [vmem:[%s4120 + $0xcc] sm:$0x7]
        %v4169 = vrot.slane %v4121, 7
        %v4170 = vrot.slane %v4169, 4
        %v4171 = vrot.slane %v4122, 7
        %v4172 = vsel %vm2704, %v4170, %v4171
        %v4173 = vrot.slane %v4171, 4
        %v4174 = vrot.slane %v4123, 7
        %v4175 = vsel %vm2704, %v4173, %v4174
        %v4176 = vrot.slane %v4124, 7
        %v4177 = vrot.slane %v4176, 4
        %v4178 = vrot.slane %v4125, 7
        %v4179 = vsel %vm2704, %v4177, %v4178
        %v4180 = vrot.slane %v4178, 4
        %v4181 = vrot.slane %v4126, 7
        %v4182 = vsel %vm2704, %v4180, %v4181
        %v4183 = vrot.slane %v4127, 7
        %v4184 = vrot.slane %v4183, 4
        %v4185 = vrot.slane %v4128, 7
        %v4186 = vsel %vm2704, %v4184, %v4185
        %v4187 = vrot.slane %v4185, 4
        %v4188 = vrot.slane %v4129, 7
        %v4189 = vsel %vm2704, %v4187, %v4188
        %v4190 = vrot.slane %v4130, 7
        %v4191 = vrot.slane %v4190, 4
        %v4192 = vrot.slane %v4131, 7
        %v4193 = vsel %vm2704, %v4191, %v4192
        %v4194 = vrot.slane %v4192, 4
        %v4195 = vrot.slane %v4132, 7
        %v4196 = vsel %vm2704, %v4194, %v4195
        %v4197 = vrot.slane %v4133, 7
        %v4198 = vrot.slane %v4197, 4
        %v4199 = vrot.slane %v4134, 7
        %v4200 = vsel %vm2704, %v4198, %v4199
        %v4201 = vrot.slane %v4199, 4
        %v4202 = vrot.slane %v4135, 7
        %v4203 = vsel %vm2704, %v4201, %v4202
        %v4204 = vrot.slane %v4136, 7
        %v4205 = vrot.slane %v4204, 4
        %v4206 = vrot.slane %v4137, 7
        %v4207 = vsel %vm2704, %v4205, %v4206
        %v4208 = vrot.slane %v4206, 4
        %v4209 = vrot.slane %v4138, 7
        %v4210 = vsel %vm2704, %v4208, %v4209
        %v4211 = vrot.slane %v4139, 7
        %v4212 = vrot.slane %v4211, 4
        %v4213 = vrot.slane %v4140, 7
        %v4214 = vsel %vm2704, %v4212, %v4213
        %v4215 = vrot.slane %v4213, 4
        %v4216 = vrot.slane %v4141, 7
        %v4217 = vsel %vm2704, %v4215, %v4216
        %v4218 = vrot.slane %v4142, 7
        %v4219 = vrot.slane %v4218, 4
        %v4220 = vrot.slane %v4143, 7
        %v4221 = vsel %vm2704, %v4219, %v4220
        %v4222 = vrot.slane %v4220, 4
        %v4223 = vrot.slane %v4144, 7
        %v4224 = vsel %vm2704, %v4222, %v4223
        %v4225 = vunpack.c.l.b16 %v4172
        %v4226 = vunpack.c.l.b16 %v4175
        %v4227 = vunpack.c.l.b16 %v4179
        %v4228 = vunpack.c.l.b16 %v4182
        %v4229 = vunpack.c.l.b16 %v4186
        %v4230 = vunpack.c.l.b16 %v4189
        %v4231 = vunpack.c.l.b16 %v4193
        %v4232 = vunpack.c.l.b16 %v4196
        %v4233 = vunpack.c.l.b16 %v4200
        %v4234 = vunpack.c.l.b16 %v4203
        %v4235 = vunpack.c.l.b16 %v4207
        %v4236 = vunpack.c.l.b16 %v4210
        %v4237 = vunpack.c.l.b16 %v4214
        %v4238 = vunpack.c.l.b16 %v4217
        %v4239 = vunpack.c.l.b16 %v4221
        %v4240 = vunpack.c.l.b16 %v4224
        %v4241 = vpack.c.b16 %v4226, %v4225
        %v4242 = vpack.c.b16 %v4228, %v4227
        %v4243 = vpack.c.b16 %v4230, %v4229
        %v4244 = vpack.c.b16 %v4232, %v4231
        %v4245 = vpack.c.b16 %v4234, %v4233
        %v4246 = vpack.c.b16 %v4236, %v4235
        %v4247 = vpack.c.b16 %v4238, %v4237
        %v4248 = vpack.c.b16 %v4240, %v4239
        %v4251 = vunpack.c.l.b16 %v4115
        %v4252 = vunpack.c.l.b16 %v4116
        %v4253 = vpack.c.b16 %v4252, %v4251
        %v4256 = vsel %vm429, %v4241, 0
        %v4259 = vsel %vm429, %v4242, 0
        %v4262 = vsel %vm429, %v4243, 0
        %v4265 = vsel %vm429, %v4244, 0
        %v4268 = vsel %vm429, %v4245, 0
        %v4271 = vsel %vm429, %v4246, 0
        %v4274 = vsel %vm429, %v4247, 0
        %v4277 = vsel %vm429, %v4248, 0
        %4279 = vmatprep.subr.bf16.mxu0 0
        %4280 = vmatpush1.bf16.msra.mxu0 %v4253
        %4281 = vmatprep.subr.bf16.mxu0 0
        %4282 = vmatpush1.bf16.msra.mxu0 0
        %4283 = vmatprep.subr.bf16.mxu0 0
        %4284 = vmatpush1.bf16.msra.mxu0 0
        %4285 = vmatprep.subr.bf16.mxu0 0
        %4286 = vmatpush1.bf16.msra.mxu0 0
        %4287 = vmatprep.subr.bf16.mxu0 0
        %4288 = vmatpush1.bf16.msra.mxu0 0
        %4289 = vmatprep.subr.bf16.mxu0 0
        %4290 = vmatpush1.bf16.msra.mxu0 0
        %4291 = vmatprep.subr.bf16.mxu0 0
        %4292 = vmatpush1.bf16.msra.mxu0 0
        %4293 = vmatprep.subr.bf16.mxu0 0
        %4294 = vmatpush1.bf16.msra.mxu0 0
        %4295 = vmatprep.subr.bf16.mxu0 0
        %4296 = vmatpush1.bf16.msra.mxu0 0
        %4297 = vmatprep.subr.bf16.mxu0 0
        %4298 = vmatpush1.bf16.msra.mxu0 0
        %4299 = vmatprep.subr.bf16.mxu0 0
        %4300 = vmatpush1.bf16.msra.mxu0 0
        %4301 = vmatprep.subr.bf16.mxu0 0
        %4302 = vmatpush1.bf16.msra.mxu0 0
        %4303 = vmatprep.subr.bf16.mxu0 0
        %4304 = vmatpush1.bf16.msra.mxu0 0
        %4305 = vmatprep.subr.bf16.mxu0 0
        %4306 = vmatpush1.bf16.msra.mxu0 0
        %4307 = vmatprep.subr.bf16.mxu0 0
        %4308 = vmatpush1.bf16.msra.mxu0 0
        %4309 = vmatprep.subr.bf16.mxu0 0
        %4310 = vmatpush1.bf16.msra.mxu0 0
        %4311 = vmatprep.mubr.bf16.mxu0 0
        %4312 = vmatmul.mubr.bf16.gmra.mrb[0].mxu0 %v4256
        %v4313 = vpop.f32.mrb[0].mxu0
        %v4314 = vadd.f32 0.0, %v4313
        %v4315 = vpop.f32.mrb[0].mxu0
        %v4316 = vpop.f32.mrb[0].mxu0
        %v4317 = vadd.f32 0.0, %v4316
        %v4318 = vpop.f32.mrb[0].mxu0
        %4319 = vmatprep.mubr.bf16.mxu0 0
        %4320 = vmatmul.mubr.bf16.gmra.mrb[0].mxu0 %v4259
        %v4321 = vpop.f32.mrb[0].mxu0
        %v4322 = vadd.f32 0.0, %v4321
        %v4323 = vpop.f32.mrb[0].mxu0
        %v4324 = vpop.f32.mrb[0].mxu0
        %v4325 = vadd.f32 0.0, %v4324
        %v4326 = vpop.f32.mrb[0].mxu0
        %4327 = vmatprep.mubr.bf16.mxu0 0
        %4328 = vmatmul.mubr.bf16.gmra.mrb[0].mxu0 %v4262
        %v4329 = vpop.f32.mrb[0].mxu0
        %v4330 = vadd.f32 0.0, %v4329
        %v4331 = vpop.f32.mrb[0].mxu0
        %v4332 = vpop.f32.mrb[0].mxu0
        %v4333 = vadd.f32 0.0, %v4332
        %v4334 = vpop.f32.mrb[0].mxu0
        %4335 = vmatprep.mubr.bf16.mxu0 0
        %4336 = vmatmul.mubr.bf16.gmra.mrb[0].mxu0 %v4265
        %v4337 = vpop.f32.mrb[0].mxu0
        %v4338 = vadd.f32 0.0, %v4337
        %v4339 = vpop.f32.mrb[0].mxu0
        %v4340 = vpop.f32.mrb[0].mxu0
        %v4341 = vadd.f32 0.0, %v4340
        %v4342 = vpop.f32.mrb[0].mxu0
        %4343 = vmatprep.mubr.bf16.mxu0 0
        %4344 = vmatmul.mubr.bf16.gmra.mrb[0].mxu0 %v4268
        %v4345 = vpop.f32.mrb[0].mxu0
        %v4346 = vadd.f32 0.0, %v4345
        %v4347 = vpop.f32.mrb[0].mxu0
        %v4348 = vpop.f32.mrb[0].mxu0
        %v4349 = vadd.f32 0.0, %v4348
        %v4350 = vpop.f32.mrb[0].mxu0
        %4351 = vmatprep.mubr.bf16.mxu0 0
        %4352 = vmatmul.mubr.bf16.gmra.mrb[0].mxu0 %v4271
        %v4353 = vpop.f32.mrb[0].mxu0
        %v4354 = vadd.f32 0.0, %v4353
        %v4355 = vpop.f32.mrb[0].mxu0
        %v4356 = vpop.f32.mrb[0].mxu0
        %v4357 = vadd.f32 0.0, %v4356
        %v4358 = vpop.f32.mrb[0].mxu0
        %4359 = vmatprep.mubr.bf16.mxu0 0
        %4360 = vmatmul.mubr.bf16.gmra.mrb[0].mxu0 %v4274
        %v4361 = vpop.f32.mrb[0].mxu0
        %v4362 = vadd.f32 0.0, %v4361
        %v4363 = vpop.f32.mrb[0].mxu0
        %v4364 = vpop.f32.mrb[0].mxu0
        %v4365 = vadd.f32 0.0, %v4364
        %v4366 = vpop.f32.mrb[0].mxu0
        %4367 = vmatprep.mubr.bf16.mxu0 0
        %4368 = vmatmul.mubr.bf16.gmra.mrb[0].mxu0 %v4277
        %v4369 = vpop.f32.mrb[0].mxu0
        %v4370 = vadd.f32 0.0, %v4369
        %v4371 = vpop.f32.mrb[0].mxu0
        %v4372 = vpop.f32.mrb[0].mxu0
        %v4373 = vadd.f32 0.0, %v4372
        %v4374 = vpop.f32.mrb[0].mxu0
        %4375 = vdwg.mxu0
        %v4376 = vadd.f32 %v4098, %v4314
        %v4377 = vadd.f32 %v4099, %v4317
        %v4378 = vadd.f32 %v4100, %v4322
        %v4379 = vadd.f32 %v4101, %v4325
        %v4380 = vadd.f32 %v4102, %v4330
        %v4381 = vadd.f32 %v4103, %v4333
        %v4382 = vadd.f32 %v4104, %v4338
        %v4383 = vadd.f32 %v4105, %v4341
        %v4384 = vadd.f32 %v4106, %v4346
        %v4385 = vadd.f32 %v4107, %v4349
        %v4386 = vadd.f32 %v4108, %v4354
        %v4387 = vadd.f32 %v4109, %v4357
        %v4388 = vadd.f32 %v4110, %v4362
        %v4389 = vadd.f32 %v4111, %v4365
        %v4390 = vadd.f32 %v4112, %v4370
        %v4391 = vadd.f32 %v4113, %v4373
        %s4392 = scalar_lea.vmem %s2, 128
        %v4393 = vld [vmem:[%s4392] sm:$0xf]
        %v4394 = vld [vmem:[%s4392 + $0x4] sm:$0xf]
        %v4395 = vld [vmem:[%s4120 + $0x8] sm:$0xe]
        %v4396 = vld [vmem:[%s4120 + $0xc] sm:$0xf]
        %v4397 = vld [vmem:[%s4120 + $0x10] sm:$0x1]
        %v4398 = vld [vmem:[%s4120 + $0x24] sm:$0xe]
        %v4399 = vld [vmem:[%s4120 + $0x28] sm:$0xf]
        %v4400 = vld [vmem:[%s4120 + $0x2c] sm:$0x1]
        %v4401 = vld [vmem:[%s4120 + $0x40] sm:$0xe]
        %v4402 = vld [vmem:[%s4120 + $0x44] sm:$0xf]
        %v4403 = vld [vmem:[%s4120 + $0x48] sm:$0x1]
        %v4404 = vld [vmem:[%s4120 + $0x5c] sm:$0xe]
        %v4405 = vld [vmem:[%s4120 + $0x60] sm:$0xf]
        %v4406 = vld [vmem:[%s4120 + $0x64] sm:$0x1]
        %v4407 = vld [vmem:[%s4120 + $0x78] sm:$0xe]
        %v4408 = vld [vmem:[%s4120 + $0x7c] sm:$0xf]
        %v4409 = vld [vmem:[%s4120 + $0x80] sm:$0x1]
        %v4410 = vld [vmem:[%s4120 + $0x94] sm:$0xe]
        %v4411 = vld [vmem:[%s4120 + $0x98] sm:$0xf]
        %v4412 = vld [vmem:[%s4120 + $0x9c] sm:$0x1]
        %v4413 = vld [vmem:[%s4120 + $0xb0] sm:$0xe]
        %v4414 = vld [vmem:[%s4120 + $0xb4] sm:$0xf]
        %v4415 = vld [vmem:[%s4120 + $0xb8] sm:$0x1]
        %v4416 = vld [vmem:[%s4120 + $0xcc] sm:$0xe]
        %v4417 = vld [vmem:[%s4120 + $0xd0] sm:$0xf]
        %v4418 = vld [vmem:[%s4120 + $0xd4] sm:$0x1]
        %v4443 = vrot.slane %v4395, 5
        %v4444 = vrot.slane %v4443, 4
        %v4445 = vrot.slane %v4396, 5
        %v4446 = vsel %vm336, %v4444, %v4445
        %v4447 = vrot.slane %v4445, 4
        %v4448 = vrot.slane %v4397, 5
        %v4449 = vsel %vm336, %v4447, %v4448
        %v4450 = vrot.slane %v4398, 5
        %v4451 = vrot.slane %v4450, 4
        %v4452 = vrot.slane %v4399, 5
        %v4453 = vsel %vm336, %v4451, %v4452
        %v4454 = vrot.slane %v4452, 4
        %v4455 = vrot.slane %v4400, 5
        %v4456 = vsel %vm336, %v4454, %v4455
        %v4457 = vrot.slane %v4401, 5
        %v4458 = vrot.slane %v4457, 4
        %v4459 = vrot.slane %v4402, 5
        %v4460 = vsel %vm336, %v4458, %v4459
        %v4461 = vrot.slane %v4459, 4
        %v4462 = vrot.slane %v4403, 5
        %v4463 = vsel %vm336, %v4461, %v4462
        %v4464 = vrot.slane %v4404, 5
        %v4465 = vrot.slane %v4464, 4
        %v4466 = vrot.slane %v4405, 5
        %v4467 = vsel %vm336, %v4465, %v4466
        %v4468 = vrot.slane %v4466, 4
        %v4469 = vrot.slane %v4406, 5
        %v4470 = vsel %vm336, %v4468, %v4469
        %v4471 = vrot.slane %v4407, 5
        %v4472 = vrot.slane %v4471, 4
        %v4473 = vrot.slane %v4408, 5
        %v4474 = vsel %vm336, %v4472, %v4473
        %v4475 = vrot.slane %v4473, 4
        %v4476 = vrot.slane %v4409, 5
        %v4477 = vsel %vm336, %v4475, %v4476
        %v4478 = vrot.slane %v4410, 5
        %v4479 = vrot.slane %v4478, 4
        %v4480 = vrot.slane %v4411, 5
        %v4481 = vsel %vm336, %v4479, %v4480
        %v4482 = vrot.slane %v4480, 4
        %v4483 = vrot.slane %v4412, 5
        %v4484 = vsel %vm336, %v4482, %v4483
        %v4485 = vrot.slane %v4413, 5
        %v4486 = vrot.slane %v4485, 4
        %v4487 = vrot.slane %v4414, 5
        %v4488 = vsel %vm336, %v4486, %v4487
        %v4489 = vrot.slane %v4487, 4
        %v4490 = vrot.slane %v4415, 5
        %v4491 = vsel %vm336, %v4489, %v4490
        %v4492 = vrot.slane %v4416, 5
        %v4493 = vrot.slane %v4492, 4
        %v4494 = vrot.slane %v4417, 5
        %v4495 = vsel %vm336, %v4493, %v4494
        %v4496 = vrot.slane %v4494, 4
        %v4497 = vrot.slane %v4418, 5
        %v4498 = vsel %vm336, %v4496, %v4497
        %v4499 = vunpack.c.l.b16 %v4446
        %v4500 = vunpack.c.l.b16 %v4449
        %v4501 = vunpack.c.l.b16 %v4453
        %v4502 = vunpack.c.l.b16 %v4456
        %v4503 = vunpack.c.l.b16 %v4460
        %v4504 = vunpack.c.l.b16 %v4463
        %v4505 = vunpack.c.l.b16 %v4467
        %v4506 = vunpack.c.l.b16 %v4470
        %v4507 = vunpack.c.l.b16 %v4474
        %v4508 = vunpack.c.l.b16 %v4477
        %v4509 = vunpack.c.l.b16 %v4481
        %v4510 = vunpack.c.l.b16 %v4484
        %v4511 = vunpack.c.l.b16 %v4488
        %v4512 = vunpack.c.l.b16 %v4491
        %v4513 = vunpack.c.l.b16 %v4495
        %v4514 = vunpack.c.l.b16 %v4498
        %v4515 = vpack.c.b16 %v4500, %v4499
        %v4516 = vpack.c.b16 %v4502, %v4501
        %v4517 = vpack.c.b16 %v4504, %v4503
        %v4518 = vpack.c.b16 %v4506, %v4505
        %v4519 = vpack.c.b16 %v4508, %v4507
        %v4520 = vpack.c.b16 %v4510, %v4509
        %v4521 = vpack.c.b16 %v4512, %v4511
        %v4522 = vpack.c.b16 %v4514, %v4513
        %v4525 = vunpack.c.l.b16 %v4393
        %v4526 = vunpack.c.l.b16 %v4394
        %v4527 = vpack.c.b16 %v4526, %v4525
        %v4530 = vsel %vm429, %v4515, 0
        %v4533 = vsel %vm429, %v4516, 0
        %v4536 = vsel %vm429, %v4517, 0
        %v4539 = vsel %vm429, %v4518, 0
        %v4542 = vsel %vm429, %v4519, 0
        %v4545 = vsel %vm429, %v4520, 0
        %v4548 = vsel %vm429, %v4521, 0
        %v4551 = vsel %vm429, %v4522, 0
        %4553 = vmatprep.subr.bf16.mxu0 0
        %4554 = vmatpush1.bf16.msra.mxu0 %v4527
        %4555 = vmatprep.subr.bf16.mxu0 0
        %4556 = vmatpush1.bf16.msra.mxu0 0
        %4557 = vmatprep.subr.bf16.mxu0 0
        %4558 = vmatpush1.bf16.msra.mxu0 0
        %4559 = vmatprep.subr.bf16.mxu0 0
        %4560 = vmatpush1.bf16.msra.mxu0 0
        %4561 = vmatprep.subr.bf16.mxu0 0
        %4562 = vmatpush1.bf16.msra.mxu0 0
        %4563 = vmatprep.subr.bf16.mxu0 0
        %4564 = vmatpush1.bf16.msra.mxu0 0
        %4565 = vmatprep.subr.bf16.mxu0 0
        %4566 = vmatpush1.bf16.msra.mxu0 0
        %4567 = vmatprep.subr.bf16.mxu0 0
        %4568 = vmatpush1.bf16.msra.mxu0 0
        %4569 = vmatprep.subr.bf16.mxu0 0
        %4570 = vmatpush1.bf16.msra.mxu0 0
        %4571 = vmatprep.subr.bf16.mxu0 0
        %4572 = vmatpush1.bf16.msra.mxu0 0
        %4573 = vmatprep.subr.bf16.mxu0 0
        %4574 = vmatpush1.bf16.msra.mxu0 0
        %4575 = vmatprep.subr.bf16.mxu0 0
        %4576 = vmatpush1.bf16.msra.mxu0 0
        %4577 = vmatprep.subr.bf16.mxu0 0
        %4578 = vmatpush1.bf16.msra.mxu0 0
        %4579 = vmatprep.subr.bf16.mxu0 0
        %4580 = vmatpush1.bf16.msra.mxu0 0
        %4581 = vmatprep.subr.bf16.mxu0 0
        %4582 = vmatpush1.bf16.msra.mxu0 0
        %4583 = vmatprep.subr.bf16.mxu0 0
        %4584 = vmatpush1.bf16.msra.mxu0 0
        %4585 = vmatprep.mubr.bf16.mxu0 0
        %4586 = vmatmul.mubr.bf16.gmra.mrb[0].mxu0 %v4530
        %v4587 = vpop.f32.mrb[0].mxu0
        %v4588 = vadd.f32 0.0, %v4587
        %v4589 = vpop.f32.mrb[0].mxu0
        %v4590 = vpop.f32.mrb[0].mxu0
        %v4591 = vadd.f32 0.0, %v4590
        %v4592 = vpop.f32.mrb[0].mxu0
        %4593 = vmatprep.mubr.bf16.mxu0 0
        %4594 = vmatmul.mubr.bf16.gmra.mrb[0].mxu0 %v4533
        %v4595 = vpop.f32.mrb[0].mxu0
        %v4596 = vadd.f32 0.0, %v4595
        %v4597 = vpop.f32.mrb[0].mxu0
        %v4598 = vpop.f32.mrb[0].mxu0
        %v4599 = vadd.f32 0.0, %v4598
        %v4600 = vpop.f32.mrb[0].mxu0
        %4601 = vmatprep.mubr.bf16.mxu0 0
        %4602 = vmatmul.mubr.bf16.gmra.mrb[0].mxu0 %v4536
        %v4603 = vpop.f32.mrb[0].mxu0
        %v4604 = vadd.f32 0.0, %v4603
        %v4605 = vpop.f32.mrb[0].mxu0
        %v4606 = vpop.f32.mrb[0].mxu0
        %v4607 = vadd.f32 0.0, %v4606
        %v4608 = vpop.f32.mrb[0].mxu0
        %4609 = vmatprep.mubr.bf16.mxu0 0
        %4610 = vmatmul.mubr.bf16.gmra.mrb[0].mxu0 %v4539
        %v4611 = vpop.f32.mrb[0].mxu0
        %v4612 = vadd.f32 0.0, %v4611
        %v4613 = vpop.f32.mrb[0].mxu0
        %v4614 = vpop.f32.mrb[0].mxu0
        %v4615 = vadd.f32 0.0, %v4614
        %v4616 = vpop.f32.mrb[0].mxu0
        %4617 = vmatprep.mubr.bf16.mxu0 0
        %4618 = vmatmul.mubr.bf16.gmra.mrb[0].mxu0 %v4542
        %v4619 = vpop.f32.mrb[0].mxu0
        %v4620 = vadd.f32 0.0, %v4619
        %v4621 = vpop.f32.mrb[0].mxu0
        %v4622 = vpop.f32.mrb[0].mxu0
        %v4623 = vadd.f32 0.0, %v4622
        %v4624 = vpop.f32.mrb[0].mxu0
        %4625 = vmatprep.mubr.bf16.mxu0 0
        %4626 = vmatmul.mubr.bf16.gmra.mrb[0].mxu0 %v4545
        %v4627 = vpop.f32.mrb[0].mxu0
        %v4628 = vadd.f32 0.0, %v4627
        %v4629 = vpop.f32.mrb[0].mxu0
        %v4630 = vpop.f32.mrb[0].mxu0
        %v4631 = vadd.f32 0.0, %v4630
        %v4632 = vpop.f32.mrb[0].mxu0
        %4633 = vmatprep.mubr.bf16.mxu0 0
        %4634 = vmatmul.mubr.bf16.gmra.mrb[0].mxu0 %v4548
        %v4635 = vpop.f32.mrb[0].mxu0
        %v4636 = vadd.f32 0.0, %v4635
        %v4637 = vpop.f32.mrb[0].mxu0
        %v4638 = vpop.f32.mrb[0].mxu0
        %v4639 = vadd.f32 0.0, %v4638
        %v4640 = vpop.f32.mrb[0].mxu0
        %4641 = vmatprep.mubr.bf16.mxu0 0
        %4642 = vmatmul.mubr.bf16.gmra.mrb[0].mxu0 %v4551
        %v4643 = vpop.f32.mrb[0].mxu0
        %v4644 = vadd.f32 0.0, %v4643
        %v4645 = vpop.f32.mrb[0].mxu0
        %v4646 = vpop.f32.mrb[0].mxu0
        %v4647 = vadd.f32 0.0, %v4646
        %v4648 = vpop.f32.mrb[0].mxu0
        %4649 = vdwg.mxu0
        %v4650 = vadd.f32 %v4376, %v4588
        %v4651 = vadd.f32 %v4377, %v4591
        %v4652 = vadd.f32 %v4378, %v4596
        %v4653 = vadd.f32 %v4379, %v4599
        %v4654 = vadd.f32 %v4380, %v4604
        %v4655 = vadd.f32 %v4381, %v4607
        %v4656 = vadd.f32 %v4382, %v4612
        %v4657 = vadd.f32 %v4383, %v4615
        %v4658 = vadd.f32 %v4384, %v4620
        %v4659 = vadd.f32 %v4385, %v4623
        %v4660 = vadd.f32 %v4386, %v4628
        %v4661 = vadd.f32 %v4387, %v4631
        %v4662 = vadd.f32 %v4388, %v4636
        %v4663 = vadd.f32 %v4389, %v4639
        %v4664 = vadd.f32 %v4390, %v4644
        %v4665 = vadd.f32 %v4391, %v4647
        %s4666 = scalar_lea.vmem %s2, 136
        %v4667 = vld [vmem:[%s4666] sm:$0xf]
        %v4668 = vld [vmem:[%s4666 + $0x4] sm:$0xf]
        %v4669 = vld [vmem:[%s4120 + $0xc] sm:$0x8]
        %v4670 = vld [vmem:[%s4120 + $0x10] sm:$0xf]
        %v4671 = vld [vmem:[%s4120 + $0x14] sm:$0x7]
        %v4672 = vld [vmem:[%s4120 + $0x28] sm:$0x8]
        %v4673 = vld [vmem:[%s4120 + $0x2c] sm:$0xf]
        %v4674 = vld [vmem:[%s4120 + $0x30] sm:$0x7]
        %v4675 = vld [vmem:[%s4120 + $0x44] sm:$0x8]
        %v4676 = vld [vmem:[%s4120 + $0x48] sm:$0xf]
        %v4677 = vld [vmem:[%s4120 + $0x4c] sm:$0x7]
        %v4678 = vld [vmem:[%s4120 + $0x60] sm:$0x8]
        %v4679 = vld [vmem:[%s4120 + $0x64] sm:$0xf]
        %v4680 = vld [vmem:[%s4120 + $0x68] sm:$0x7]
        %v4681 = vld [vmem:[%s4120 + $0x7c] sm:$0x8]
        %v4682 = vld [vmem:[%s4120 + $0x80] sm:$0xf]
        %v4683 = vld [vmem:[%s4120 + $0x84] sm:$0x7]
        %v4684 = vld [vmem:[%s4120 + $0x98] sm:$0x8]
        %v4685 = vld [vmem:[%s4120 + $0x9c] sm:$0xf]
        %v4686 = vld [vmem:[%s4120 + $0xa0] sm:$0x7]
        %v4687 = vld [vmem:[%s4120 + $0xb4] sm:$0x8]
        %v4688 = vld [vmem:[%s4120 + $0xb8] sm:$0xf]
        %v4689 = vld [vmem:[%s4120 + $0xbc] sm:$0x7]
        %v4690 = vld [vmem:[%s4120 + $0xd0] sm:$0x8]
        %v4691 = vld [vmem:[%s4120 + $0xd4] sm:$0xf]
        %v4692 = vld [vmem:[%s4120 + $0xd8] sm:$0x7]
        %v4717 = vrot.slane %v4669, 7
        %v4718 = vrot.slane %v4717, 4
        %v4719 = vrot.slane %v4670, 7
        %v4720 = vsel %vm2704, %v4718, %v4719
        %v4721 = vrot.slane %v4719, 4
        %v4722 = vrot.slane %v4671, 7
        %v4723 = vsel %vm2704, %v4721, %v4722
        %v4724 = vrot.slane %v4672, 7
        %v4725 = vrot.slane %v4724, 4
        %v4726 = vrot.slane %v4673, 7
        %v4727 = vsel %vm2704, %v4725, %v4726
        %v4728 = vrot.slane %v4726, 4
        %v4729 = vrot.slane %v4674, 7
        %v4730 = vsel %vm2704, %v4728, %v4729
        %v4731 = vrot.slane %v4675, 7
        %v4732 = vrot.slane %v4731, 4
        %v4733 = vrot.slane %v4676, 7
        %v4734 = vsel %vm2704, %v4732, %v4733
        %v4735 = vrot.slane %v4733, 4
        %v4736 = vrot.slane %v4677, 7
        %v4737 = vsel %vm2704, %v4735, %v4736
        %v4738 = vrot.slane %v4678, 7
        %v4739 = vrot.slane %v4738, 4
        %v4740 = vrot.slane %v4679, 7
        %v4741 = vsel %vm2704, %v4739, %v4740
        %v4742 = vrot.slane %v4740, 4
        %v4743 = vrot.slane %v4680, 7
        %v4744 = vsel %vm2704, %v4742, %v4743
        %v4745 = vrot.slane %v4681, 7
        %v4746 = vrot.slane %v4745, 4
        %v4747 = vrot.slane %v4682, 7
        %v4748 = vsel %vm2704, %v4746, %v4747
        %v4749 = vrot.slane %v4747, 4
        %v4750 = vrot.slane %v4683, 7
        %v4751 = vsel %vm2704, %v4749, %v4750
        %v4752 = vrot.slane %v4684, 7
        %v4753 = vrot.slane %v4752, 4
        %v4754 = vrot.slane %v4685, 7
        %v4755 = vsel %vm2704, %v4753, %v4754
        %v4756 = vrot.slane %v4754, 4
        %v4757 = vrot.slane %v4686, 7
        %v4758 = vsel %vm2704, %v4756, %v4757
        %v4759 = vrot.slane %v4687, 7
        %v4760 = vrot.slane %v4759, 4
        %v4761 = vrot.slane %v4688, 7
        %v4762 = vsel %vm2704, %v4760, %v4761
        %v4763 = vrot.slane %v4761, 4
        %v4764 = vrot.slane %v4689, 7
        %v4765 = vsel %vm2704, %v4763, %v4764
        %v4766 = vrot.slane %v4690, 7
        %v4767 = vrot.slane %v4766, 4
        %v4768 = vrot.slane %v4691, 7
        %v4769 = vsel %vm2704, %v4767, %v4768
        %v4770 = vrot.slane %v4768, 4
        %v4771 = vrot.slane %v4692, 7
        %v4772 = vsel %vm2704, %v4770, %v4771
        %v4773 = vunpack.c.l.b16 %v4720
        %v4774 = vunpack.c.l.b16 %v4723
        %v4775 = vunpack.c.l.b16 %v4727
        %v4776 = vunpack.c.l.b16 %v4730
        %v4777 = vunpack.c.l.b16 %v4734
        %v4778 = vunpack.c.l.b16 %v4737
        %v4779 = vunpack.c.l.b16 %v4741
        %v4780 = vunpack.c.l.b16 %v4744
        %v4781 = vunpack.c.l.b16 %v4748
        %v4782 = vunpack.c.l.b16 %v4751
        %v4783 = vunpack.c.l.b16 %v4755
        %v4784 = vunpack.c.l.b16 %v4758
        %v4785 = vunpack.c.l.b16 %v4762
        %v4786 = vunpack.c.l.b16 %v4765
        %v4787 = vunpack.c.l.b16 %v4769
        %v4788 = vunpack.c.l.b16 %v4772
        %v4789 = vpack.c.b16 %v4774, %v4773
        %v4790 = vpack.c.b16 %v4776, %v4775
        %v4791 = vpack.c.b16 %v4778, %v4777
        %v4792 = vpack.c.b16 %v4780, %v4779
        %v4793 = vpack.c.b16 %v4782, %v4781
        %v4794 = vpack.c.b16 %v4784, %v4783
        %v4795 = vpack.c.b16 %v4786, %v4785
        %v4796 = vpack.c.b16 %v4788, %v4787
        %v4799 = vunpack.c.l.b16 %v4667
        %v4800 = vunpack.c.l.b16 %v4668
        %v4801 = vpack.c.b16 %v4800, %v4799
        %v4804 = vsel %vm429, %v4789, 0
        %v4807 = vsel %vm429, %v4790, 0
        %v4810 = vsel %vm429, %v4791, 0
        %v4813 = vsel %vm429, %v4792, 0
        %v4816 = vsel %vm429, %v4793, 0
        %v4819 = vsel %vm429, %v4794, 0
        %v4822 = vsel %vm429, %v4795, 0
        %v4825 = vsel %vm429, %v4796, 0
        %4827 = vmatprep.subr.bf16.mxu0 0
        %4828 = vmatpush1.bf16.msra.mxu0 %v4801
        %4829 = vmatprep.subr.bf16.mxu0 0
        %4830 = vmatpush1.bf16.msra.mxu0 0
        %4831 = vmatprep.subr.bf16.mxu0 0
        %4832 = vmatpush1.bf16.msra.mxu0 0
        %4833 = vmatprep.subr.bf16.mxu0 0
        %4834 = vmatpush1.bf16.msra.mxu0 0
        %4835 = vmatprep.subr.bf16.mxu0 0
        %4836 = vmatpush1.bf16.msra.mxu0 0
        %4837 = vmatprep.subr.bf16.mxu0 0
        %4838 = vmatpush1.bf16.msra.mxu0 0
        %4839 = vmatprep.subr.bf16.mxu0 0
        %4840 = vmatpush1.bf16.msra.mxu0 0
        %4841 = vmatprep.subr.bf16.mxu0 0
        %4842 = vmatpush1.bf16.msra.mxu0 0
        %4843 = vmatprep.subr.bf16.mxu0 0
        %4844 = vmatpush1.bf16.msra.mxu0 0
        %4845 = vmatprep.subr.bf16.mxu0 0
        %4846 = vmatpush1.bf16.msra.mxu0 0
        %4847 = vmatprep.subr.bf16.mxu0 0
        %4848 = vmatpush1.bf16.msra.mxu0 0
        %4849 = vmatprep.subr.bf16.mxu0 0
        %4850 = vmatpush1.bf16.msra.mxu0 0
        %4851 = vmatprep.subr.bf16.mxu0 0
        %4852 = vmatpush1.bf16.msra.mxu0 0
        %4853 = vmatprep.subr.bf16.mxu0 0
        %4854 = vmatpush1.bf16.msra.mxu0 0
        %4855 = vmatprep.subr.bf16.mxu0 0
        %4856 = vmatpush1.bf16.msra.mxu0 0
        %4857 = vmatprep.subr.bf16.mxu0 0
        %4858 = vmatpush1.bf16.msra.mxu0 0
        %4859 = vmatprep.mubr.bf16.mxu0 0
        %4860 = vmatmul.mubr.bf16.gmra.mrb[0].mxu0 %v4804
        %v4861 = vpop.f32.mrb[0].mxu0
        %v4862 = vadd.f32 0.0, %v4861
        %v4863 = vpop.f32.mrb[0].mxu0
        %v4864 = vpop.f32.mrb[0].mxu0
        %v4865 = vadd.f32 0.0, %v4864
        %v4866 = vpop.f32.mrb[0].mxu0
        %4867 = vmatprep.mubr.bf16.mxu0 0
        %4868 = vmatmul.mubr.bf16.gmra.mrb[0].mxu0 %v4807
        %v4869 = vpop.f32.mrb[0].mxu0
        %v4870 = vadd.f32 0.0, %v4869
        %v4871 = vpop.f32.mrb[0].mxu0
        %v4872 = vpop.f32.mrb[0].mxu0
        %v4873 = vadd.f32 0.0, %v4872
        %v4874 = vpop.f32.mrb[0].mxu0
        %4875 = vmatprep.mubr.bf16.mxu0 0
        %4876 = vmatmul.mubr.bf16.gmra.mrb[0].mxu0 %v4810
        %v4877 = vpop.f32.mrb[0].mxu0
        %v4878 = vadd.f32 0.0, %v4877
        %v4879 = vpop.f32.mrb[0].mxu0
        %v4880 = vpop.f32.mrb[0].mxu0
        %v4881 = vadd.f32 0.0, %v4880
        %v4882 = vpop.f32.mrb[0].mxu0
        %4883 = vmatprep.mubr.bf16.mxu0 0
        %4884 = vmatmul.mubr.bf16.gmra.mrb[0].mxu0 %v4813
        %v4885 = vpop.f32.mrb[0].mxu0
        %v4886 = vadd.f32 0.0, %v4885
        %v4887 = vpop.f32.mrb[0].mxu0
        %v4888 = vpop.f32.mrb[0].mxu0
        %v4889 = vadd.f32 0.0, %v4888
        %v4890 = vpop.f32.mrb[0].mxu0
        %4891 = vmatprep.mubr.bf16.mxu0 0
        %4892 = vmatmul.mubr.bf16.gmra.mrb[0].mxu0 %v4816
        %v4893 = vpop.f32.mrb[0].mxu0
        %v4894 = vadd.f32 0.0, %v4893
        %v4895 = vpop.f32.mrb[0].mxu0
        %v4896 = vpop.f32.mrb[0].mxu0
        %v4897 = vadd.f32 0.0, %v4896
        %v4898 = vpop.f32.mrb[0].mxu0
        %4899 = vmatprep.mubr.bf16.mxu0 0
        %4900 = vmatmul.mubr.bf16.gmra.mrb[0].mxu0 %v4819
        %v4901 = vpop.f32.mrb[0].mxu0
        %v4902 = vadd.f32 0.0, %v4901
        %v4903 = vpop.f32.mrb[0].mxu0
        %v4904 = vpop.f32.mrb[0].mxu0
        %v4905 = vadd.f32 0.0, %v4904
        %v4906 = vpop.f32.mrb[0].mxu0
        %4907 = vmatprep.mubr.bf16.mxu0 0
        %4908 = vmatmul.mubr.bf16.gmra.mrb[0].mxu0 %v4822
        %v4909 = vpop.f32.mrb[0].mxu0
        %v4910 = vadd.f32 0.0, %v4909
        %v4911 = vpop.f32.mrb[0].mxu0
        %v4912 = vpop.f32.mrb[0].mxu0
        %v4913 = vadd.f32 0.0, %v4912
        %v4914 = vpop.f32.mrb[0].mxu0
        %4915 = vmatprep.mubr.bf16.mxu0 0
        %4916 = vmatmul.mubr.bf16.gmra.mrb[0].mxu0 %v4825
        %v4917 = vpop.f32.mrb[0].mxu0
        %v4918 = vadd.f32 0.0, %v4917
        %v4919 = vpop.f32.mrb[0].mxu0
        %v4920 = vpop.f32.mrb[0].mxu0
        %v4921 = vadd.f32 0.0, %v4920
        %v4922 = vpop.f32.mrb[0].mxu0
        %4923 = vdwg.mxu0
        %v4924 = vadd.f32 %v4650, %v4862
        %v4925 = vadd.f32 %v4651, %v4865
        %v4926 = vadd.f32 %v4652, %v4870
        %v4927 = vadd.f32 %v4653, %v4873
        %v4928 = vadd.f32 %v4654, %v4878
        %v4929 = vadd.f32 %v4655, %v4881
        %v4930 = vadd.f32 %v4656, %v4886
        %v4931 = vadd.f32 %v4657, %v4889
        %v4932 = vadd.f32 %v4658, %v4894
        %v4933 = vadd.f32 %v4659, %v4897
        %v4934 = vadd.f32 %v4660, %v4902
        %v4935 = vadd.f32 %v4661, %v4905
        %v4936 = vadd.f32 %v4662, %v4910
        %v4937 = vadd.f32 %v4663, %v4913
        %v4938 = vadd.f32 %v4664, %v4918
        %v4939 = vadd.f32 %v4665, %v4921
        %v4940 = vlaneseq
        %v4941 = vshrl.u32 %v4940, 7
        %v4942 = vsub.s32 2, %v4941
        %v4943 = vrot.slane %v281, %v4942
        %v4944 = vadd.f32 %v4924, %v4943
        %v4945 = vadd.f32 %v4925, %v4943
        %v4946 = vadd.f32 %v4926, %v4943
        %v4947 = vadd.f32 %v4927, %v4943
        %v4948 = vadd.f32 %v4928, %v4943
        %v4949 = vadd.f32 %v4929, %v4943
        %v4950 = vadd.f32 %v4930, %v4943
        %v4951 = vadd.f32 %v4931, %v4943
        %v4952 = vadd.f32 %v4932, %v4943
        %v4953 = vadd.f32 %v4933, %v4943
        %v4954 = vadd.f32 %v4934, %v4943
        %v4955 = vadd.f32 %v4935, %v4943
        %v4956 = vadd.f32 %v4936, %v4943
        %v4957 = vadd.f32 %v4937, %v4943
        %v4958 = vadd.f32 %v4938, %v4943
        %v4959 = vadd.f32 %v4939, %v4943
        %v4960 = vmax.f32 %v4944, 0.0
        %v4961 = vmax.f32 %v4945, 0.0
        %v4962 = vmax.f32 %v4946, 0.0
        %v4963 = vmax.f32 %v4947, 0.0
        %v4964 = vmax.f32 %v4948, 0.0
        %v4965 = vmax.f32 %v4949, 0.0
        %v4966 = vmax.f32 %v4950, 0.0
        %v4967 = vmax.f32 %v4951, 0.0
        %v4968 = vmax.f32 %v4952, 0.0
        %v4969 = vmax.f32 %v4953, 0.0
        %v4970 = vmax.f32 %v4954, 0.0
        %v4971 = vmax.f32 %v4955, 0.0
        %v4972 = vmax.f32 %v4956, 0.0
        %v4973 = vmax.f32 %v4957, 0.0
        %v4974 = vmax.f32 %v4958, 0.0
        %v4975 = vmax.f32 %v4959, 0.0
        %v4976 = vpack.c.bf16 %v4961, %v4960
        %v4977 = vpack.c.bf16 %v4963, %v4962
        %v4978 = vpack.c.bf16 %v4965, %v4964
        %v4979 = vpack.c.bf16 %v4967, %v4966
        %v4980 = vpack.c.bf16 %v4969, %v4968
        %v4981 = vpack.c.bf16 %v4971, %v4970
        %v4982 = vpack.c.bf16 %v4973, %v4972
        %v4983 = vpack.c.bf16 %v4975, %v4974
        %s4984 = scalar_lea.vmem %s2, 144
        %v4985 = vld [vmem:[%s4984] sm:$0xf]
        %v4986 = vld [vmem:[%s4984 + $0x4] sm:$0xf]
        %s4987 = smul.u32 %s280, 7
        %s4988 = smul.addr %s4987, 4
        %s4989 = scalar_lea.vmem %s274, %s4988
        %v4990 = vld [vmem:[%s4989] sm:$0xf]
        %v4991 = vld [vmem:[%s4989 + $0x4] sm:$0xf]
        %v4992 = vld [vmem:[%s4989 + $0x1c] sm:$0xf]
        %v4993 = vld [vmem:[%s4989 + $0x20] sm:$0xf]
        %v4994 = vld [vmem:[%s4989 + $0x38] sm:$0xf]
        %v4995 = vld [vmem:[%s4989 + $0x3c] sm:$0xf]
        %v4996 = vld [vmem:[%s4989 + $0x54] sm:$0xf]
        %v4997 = vld [vmem:[%s4989 + $0x58] sm:$0xf]
        %v4998 = vld [vmem:[%s4989 + $0x70] sm:$0xf]
        %v4999 = vld [vmem:[%s4989 + $0x74] sm:$0xf]
        %v5000 = vld [vmem:[%s4989 + $0x8c] sm:$0xf]
        %v5001 = vld [vmem:[%s4989 + $0x90] sm:$0xf]
        %v5002 = vld [vmem:[%s4989 + $0xa8] sm:$0xf]
        %v5003 = vld [vmem:[%s4989 + $0xac] sm:$0xf]
        %v5004 = vld [vmem:[%s4989 + $0xc4] sm:$0xf]
        %v5005 = vld [vmem:[%s4989 + $0xc8] sm:$0xf]
        %s5006 = scalar_lea.vmem %s2, 152
        %v5007 = vld [vmem:[%s5006] sm:$0xf]
        %v5008 = vld [vmem:[%s5006 + $0x4] sm:$0xf]
        %v5009 = vld [vmem:[%s4989 + $0x8] sm:$0xe]
        %v5010 = vld [vmem:[%s4989 + $0xc] sm:$0xf]
        %v5011 = vld [vmem:[%s4989 + $0x10] sm:$0x1]
        %v5012 = vld [vmem:[%s4989 + $0x24] sm:$0xe]
        %v5013 = vld [vmem:[%s4989 + $0x28] sm:$0xf]
        %v5014 = vld [vmem:[%s4989 + $0x2c] sm:$0x1]
        %v5015 = vld [vmem:[%s4989 + $0x40] sm:$0xe]
        %v5016 = vld [vmem:[%s4989 + $0x44] sm:$0xf]
        %v5017 = vld [vmem:[%s4989 + $0x48] sm:$0x1]
        %v5018 = vld [vmem:[%s4989 + $0x5c] sm:$0xe]
        %v5019 = vld [vmem:[%s4989 + $0x60] sm:$0xf]
        %v5020 = vld [vmem:[%s4989 + $0x64] sm:$0x1]
        %v5021 = vld [vmem:[%s4989 + $0x78] sm:$0xe]
        %v5022 = vld [vmem:[%s4989 + $0x7c] sm:$0xf]
        %v5023 = vld [vmem:[%s4989 + $0x80] sm:$0x1]
        %v5024 = vld [vmem:[%s4989 + $0x94] sm:$0xe]
        %v5025 = vld [vmem:[%s4989 + $0x98] sm:$0xf]
        %v5026 = vld [vmem:[%s4989 + $0x9c] sm:$0x1]
        %v5027 = vld [vmem:[%s4989 + $0xb0] sm:$0xe]
        %v5028 = vld [vmem:[%s4989 + $0xb4] sm:$0xf]
        %v5029 = vld [vmem:[%s4989 + $0xb8] sm:$0x1]
        %v5030 = vld [vmem:[%s4989 + $0xcc] sm:$0xe]
        %v5031 = vld [vmem:[%s4989 + $0xd0] sm:$0xf]
        %v5032 = vld [vmem:[%s4989 + $0xd4] sm:$0x1]
        %v5057 = vrot.slane %v5009, 5
        %v5058 = vrot.slane %v5057, 4
        %v5059 = vrot.slane %v5010, 5
        %v5060 = vsel %vm336, %v5058, %v5059
        %v5061 = vrot.slane %v5059, 4
        %v5062 = vrot.slane %v5011, 5
        %v5063 = vsel %vm336, %v5061, %v5062
        %v5064 = vrot.slane %v5012, 5
        %v5065 = vrot.slane %v5064, 4
        %v5066 = vrot.slane %v5013, 5
        %v5067 = vsel %vm336, %v5065, %v5066
        %v5068 = vrot.slane %v5066, 4
        %v5069 = vrot.slane %v5014, 5
        %v5070 = vsel %vm336, %v5068, %v5069
        %v5071 = vrot.slane %v5015, 5
        %v5072 = vrot.slane %v5071, 4
        %v5073 = vrot.slane %v5016, 5
        %v5074 = vsel %vm336, %v5072, %v5073
        %v5075 = vrot.slane %v5073, 4
        %v5076 = vrot.slane %v5017, 5
        %v5077 = vsel %vm336, %v5075, %v5076
        %v5078 = vrot.slane %v5018, 5
        %v5079 = vrot.slane %v5078, 4
        %v5080 = vrot.slane %v5019, 5
        %v5081 = vsel %vm336, %v5079, %v5080
        %v5082 = vrot.slane %v5080, 4
        %v5083 = vrot.slane %v5020, 5
        %v5084 = vsel %vm336, %v5082, %v5083
        %v5085 = vrot.slane %v5021, 5
        %v5086 = vrot.slane %v5085, 4
        %v5087 = vrot.slane %v5022, 5
        %v5088 = vsel %vm336, %v5086, %v5087
        %v5089 = vrot.slane %v5087, 4
        %v5090 = vrot.slane %v5023, 5
        %v5091 = vsel %vm336, %v5089, %v5090
        %v5092 = vrot.slane %v5024, 5
        %v5093 = vrot.slane %v5092, 4
        %v5094 = vrot.slane %v5025, 5
        %v5095 = vsel %vm336, %v5093, %v5094
        %v5096 = vrot.slane %v5094, 4
        %v5097 = vrot.slane %v5026, 5
        %v5098 = vsel %vm336, %v5096, %v5097
        %v5099 = vrot.slane %v5027, 5
        %v5100 = vrot.slane %v5099, 4
        %v5101 = vrot.slane %v5028, 5
        %v5102 = vsel %vm336, %v5100, %v5101
        %v5103 = vrot.slane %v5101, 4
        %v5104 = vrot.slane %v5029, 5
        %v5105 = vsel %vm336, %v5103, %v5104
        %v5106 = vrot.slane %v5030, 5
        %v5107 = vrot.slane %v5106, 4
        %v5108 = vrot.slane %v5031, 5
        %v5109 = vsel %vm336, %v5107, %v5108
        %v5110 = vrot.slane %v5108, 4
        %v5111 = vrot.slane %v5032, 5
        %v5112 = vsel %vm336, %v5110, %v5111
        %v5113 = vunpack.c.l.b16 %v5060
        %v5114 = vunpack.c.l.b16 %v5063
        %v5115 = vunpack.c.l.b16 %v5067
        %v5116 = vunpack.c.l.b16 %v5070
        %v5117 = vunpack.c.l.b16 %v5074
        %v5118 = vunpack.c.l.b16 %v5077
        %v5119 = vunpack.c.l.b16 %v5081
        %v5120 = vunpack.c.l.b16 %v5084
        %v5121 = vunpack.c.l.b16 %v5088
        %v5122 = vunpack.c.l.b16 %v5091
        %v5123 = vunpack.c.l.b16 %v5095
        %v5124 = vunpack.c.l.b16 %v5098
        %v5125 = vunpack.c.l.b16 %v5102
        %v5126 = vunpack.c.l.b16 %v5105
        %v5127 = vunpack.c.l.b16 %v5109
        %v5128 = vunpack.c.l.b16 %v5112
        %v5129 = vpack.c.b16 %v5114, %v5113
        %v5130 = vpack.c.b16 %v5116, %v5115
        %v5131 = vpack.c.b16 %v5118, %v5117
        %v5132 = vpack.c.b16 %v5120, %v5119
        %v5133 = vpack.c.b16 %v5122, %v5121
        %v5134 = vpack.c.b16 %v5124, %v5123
        %v5135 = vpack.c.b16 %v5126, %v5125
        %v5136 = vpack.c.b16 %v5128, %v5127
        %v5139 = vunpack.c.l.b16 %v5007
        %v5140 = vunpack.c.l.b16 %v5008
        %v5141 = vpack.c.b16 %v5140, %v5139
        %v5144 = vsel %vm429, %v5129, 0
        %v5147 = vsel %vm429, %v5130, 0
        %v5150 = vsel %vm429, %v5131, 0
        %v5153 = vsel %vm429, %v5132, 0
        %v5156 = vsel %vm429, %v5133, 0
        %v5159 = vsel %vm429, %v5134, 0
        %v5162 = vsel %vm429, %v5135, 0
        %v5165 = vsel %vm429, %v5136, 0
        %5167 = vmatprep.subr.bf16.mxu0 0
        %5168 = vmatpush1.bf16.msra.mxu0 %v5141
        %5169 = vmatprep.subr.bf16.mxu0 0
        %5170 = vmatpush1.bf16.msra.mxu0 0
        %5171 = vmatprep.subr.bf16.mxu0 0
        %5172 = vmatpush1.bf16.msra.mxu0 0
        %5173 = vmatprep.subr.bf16.mxu0 0
        %5174 = vmatpush1.bf16.msra.mxu0 0
        %5175 = vmatprep.subr.bf16.mxu0 0
        %5176 = vmatpush1.bf16.msra.mxu0 0
        %5177 = vmatprep.subr.bf16.mxu0 0
        %5178 = vmatpush1.bf16.msra.mxu0 0
        %5179 = vmatprep.subr.bf16.mxu0 0
        %5180 = vmatpush1.bf16.msra.mxu0 0
        %5181 = vmatprep.subr.bf16.mxu0 0
        %5182 = vmatpush1.bf16.msra.mxu0 0
        %5183 = vmatprep.subr.bf16.mxu0 0
        %5184 = vmatpush1.bf16.msra.mxu0 0
        %5185 = vmatprep.subr.bf16.mxu0 0
        %5186 = vmatpush1.bf16.msra.mxu0 0
        %5187 = vmatprep.subr.bf16.mxu0 0
        %5188 = vmatpush1.bf16.msra.mxu0 0
        %5189 = vmatprep.subr.bf16.mxu0 0
        %5190 = vmatpush1.bf16.msra.mxu0 0
        %5191 = vmatprep.subr.bf16.mxu0 0
        %5192 = vmatpush1.bf16.msra.mxu0 0
        %5193 = vmatprep.subr.bf16.mxu0 0
        %5194 = vmatpush1.bf16.msra.mxu0 0
        %5195 = vmatprep.subr.bf16.mxu0 0
        %5196 = vmatpush1.bf16.msra.mxu0 0
        %5197 = vmatprep.subr.bf16.mxu0 0
        %5198 = vmatpush1.bf16.msra.mxu0 0
        %5199 = vmatprep.mubr.bf16.mxu0 0
        %5200 = vmatmul.mubr.bf16.gmra.mrb[0].mxu0 %v5144
        %v5201 = vpop.f32.mrb[0].mxu0
        %v5202 = vadd.f32 0.0, %v5201
        %v5203 = vpop.f32.mrb[0].mxu0
        %v5204 = vpop.f32.mrb[0].mxu0
        %v5205 = vadd.f32 0.0, %v5204
        %v5206 = vpop.f32.mrb[0].mxu0
        %5207 = vmatprep.mubr.bf16.mxu0 0
        %5208 = vmatmul.mubr.bf16.gmra.mrb[0].mxu0 %v5147
        %v5209 = vpop.f32.mrb[0].mxu0
        %v5210 = vadd.f32 0.0, %v5209
        %v5211 = vpop.f32.mrb[0].mxu0
        %v5212 = vpop.f32.mrb[0].mxu0
        %v5213 = vadd.f32 0.0, %v5212
        %v5214 = vpop.f32.mrb[0].mxu0
        %5215 = vmatprep.mubr.bf16.mxu0 0
        %5216 = vmatmul.mubr.bf16.gmra.mrb[0].mxu0 %v5150
        %v5217 = vpop.f32.mrb[0].mxu0
        %v5218 = vadd.f32 0.0, %v5217
        %v5219 = vpop.f32.mrb[0].mxu0
        %v5220 = vpop.f32.mrb[0].mxu0
        %v5221 = vadd.f32 0.0, %v5220
        %v5222 = vpop.f32.mrb[0].mxu0
        %5223 = vmatprep.mubr.bf16.mxu0 0
        %5224 = vmatmul.mubr.bf16.gmra.mrb[0].mxu0 %v5153
        %v5225 = vpop.f32.mrb[0].mxu0
        %v5226 = vadd.f32 0.0, %v5225
        %v5227 = vpop.f32.mrb[0].mxu0
        %v5228 = vpop.f32.mrb[0].mxu0
        %v5229 = vadd.f32 0.0, %v5228
        %v5230 = vpop.f32.mrb[0].mxu0
        %5231 = vmatprep.mubr.bf16.mxu0 0
        %5232 = vmatmul.mubr.bf16.gmra.mrb[0].mxu0 %v5156
        %v5233 = vpop.f32.mrb[0].mxu0
        %v5234 = vadd.f32 0.0, %v5233
        %v5235 = vpop.f32.mrb[0].mxu0
        %v5236 = vpop.f32.mrb[0].mxu0
        %v5237 = vadd.f32 0.0, %v5236
        %v5238 = vpop.f32.mrb[0].mxu0
        %5239 = vmatprep.mubr.bf16.mxu0 0
        %5240 = vmatmul.mubr.bf16.gmra.mrb[0].mxu0 %v5159
        %v5241 = vpop.f32.mrb[0].mxu0
        %v5242 = vadd.f32 0.0, %v5241
        %v5243 = vpop.f32.mrb[0].mxu0
        %v5244 = vpop.f32.mrb[0].mxu0
        %v5245 = vadd.f32 0.0, %v5244
        %v5246 = vpop.f32.mrb[0].mxu0
        %5247 = vmatprep.mubr.bf16.mxu0 0
        %5248 = vmatmul.mubr.bf16.gmra.mrb[0].mxu0 %v5162
        %v5249 = vpop.f32.mrb[0].mxu0
        %v5250 = vadd.f32 0.0, %v5249
        %v5251 = vpop.f32.mrb[0].mxu0
        %v5252 = vpop.f32.mrb[0].mxu0
        %v5253 = vadd.f32 0.0, %v5252
        %v5254 = vpop.f32.mrb[0].mxu0
        %5255 = vmatprep.mubr.bf16.mxu0 0
        %5256 = vmatmul.mubr.bf16.gmra.mrb[0].mxu0 %v5165
        %v5257 = vpop.f32.mrb[0].mxu0
        %v5258 = vadd.f32 0.0, %v5257
        %v5259 = vpop.f32.mrb[0].mxu0
        %v5260 = vpop.f32.mrb[0].mxu0
        %v5261 = vadd.f32 0.0, %v5260
        %v5262 = vpop.f32.mrb[0].mxu0
        %5263 = vdwg.mxu0
        %v5280 = vunpack.c.l.b16 %v4990
        %v5281 = vunpack.c.l.b16 %v4991
        %v5282 = vunpack.c.l.b16 %v4992
        %v5283 = vunpack.c.l.b16 %v4993
        %v5284 = vunpack.c.l.b16 %v4994
        %v5285 = vunpack.c.l.b16 %v4995
        %v5286 = vunpack.c.l.b16 %v4996
        %v5287 = vunpack.c.l.b16 %v4997
        %v5288 = vunpack.c.l.b16 %v4998
        %v5289 = vunpack.c.l.b16 %v4999
        %v5290 = vunpack.c.l.b16 %v5000
        %v5291 = vunpack.c.l.b16 %v5001
        %v5292 = vunpack.c.l.b16 %v5002
        %v5293 = vunpack.c.l.b16 %v5003
        %v5294 = vunpack.c.l.b16 %v5004
        %v5295 = vunpack.c.l.b16 %v5005
        %v5296 = vpack.c.b16 %v5281, %v5280
        %v5297 = vpack.c.b16 %v5283, %v5282
        %v5298 = vpack.c.b16 %v5285, %v5284
        %v5299 = vpack.c.b16 %v5287, %v5286
        %v5300 = vpack.c.b16 %v5289, %v5288
        %v5301 = vpack.c.b16 %v5291, %v5290
        %v5302 = vpack.c.b16 %v5293, %v5292
        %v5303 = vpack.c.b16 %v5295, %v5294
        %v5306 = vunpack.c.l.b16 %v4985
        %v5307 = vunpack.c.l.b16 %v4986
        %v5308 = vpack.c.b16 %v5307, %v5306
        %v5311 = vsel %vm429, %v5296, 0
        %v5314 = vsel %vm429, %v5297, 0
        %v5317 = vsel %vm429, %v5298, 0
        %v5320 = vsel %vm429, %v5299, 0
        %v5323 = vsel %vm429, %v5300, 0
        %v5326 = vsel %vm429, %v5301, 0
        %v5329 = vsel %vm429, %v5302, 0
        %v5332 = vsel %vm429, %v5303, 0
        %5334 = vmatprep.subr.bf16.mxu0 0
        %5335 = vmatpush1.bf16.msra.mxu0 %v5308
        %5336 = vmatprep.subr.bf16.mxu0 0
        %5337 = vmatpush1.bf16.msra.mxu0 0
        %5338 = vmatprep.subr.bf16.mxu0 0
        %5339 = vmatpush1.bf16.msra.mxu0 0
        %5340 = vmatprep.subr.bf16.mxu0 0
        %5341 = vmatpush1.bf16.msra.mxu0 0
        %5342 = vmatprep.subr.bf16.mxu0 0
        %5343 = vmatpush1.bf16.msra.mxu0 0
        %5344 = vmatprep.subr.bf16.mxu0 0
        %5345 = vmatpush1.bf16.msra.mxu0 0
        %5346 = vmatprep.subr.bf16.mxu0 0
        %5347 = vmatpush1.bf16.msra.mxu0 0
        %5348 = vmatprep.subr.bf16.mxu0 0
        %5349 = vmatpush1.bf16.msra.mxu0 0
        %5350 = vmatprep.subr.bf16.mxu0 0
        %5351 = vmatpush1.bf16.msra.mxu0 0
        %5352 = vmatprep.subr.bf16.mxu0 0
        %5353 = vmatpush1.bf16.msra.mxu0 0
        %5354 = vmatprep.subr.bf16.mxu0 0
        %5355 = vmatpush1.bf16.msra.mxu0 0
        %5356 = vmatprep.subr.bf16.mxu0 0
        %5357 = vmatpush1.bf16.msra.mxu0 0
        %5358 = vmatprep.subr.bf16.mxu0 0
        %5359 = vmatpush1.bf16.msra.mxu0 0
        %5360 = vmatprep.subr.bf16.mxu0 0
        %5361 = vmatpush1.bf16.msra.mxu0 0
        %5362 = vmatprep.subr.bf16.mxu0 0
        %5363 = vmatpush1.bf16.msra.mxu0 0
        %5364 = vmatprep.subr.bf16.mxu0 0
        %5365 = vmatpush1.bf16.msra.mxu0 0
        %5366 = vmatprep.mubr.bf16.mxu0 0
        %5367 = vmatmul.mubr.bf16.gmra.mrb[0].mxu0 %v5311
        %v5368 = vpop.f32.mrb[0].mxu0
        %v5369 = vadd.f32 %v5202, %v5368
        %v5370 = vpop.f32.mrb[0].mxu0
        %v5371 = vpop.f32.mrb[0].mxu0
        %v5372 = vadd.f32 %v5205, %v5371
        %v5373 = vpop.f32.mrb[0].mxu0
        %5374 = vmatprep.mubr.bf16.mxu0 0
        %5375 = vmatmul.mubr.bf16.gmra.mrb[0].mxu0 %v5314
        %v5376 = vpop.f32.mrb[0].mxu0
        %v5377 = vadd.f32 %v5210, %v5376
        %v5378 = vpop.f32.mrb[0].mxu0
        %v5379 = vpop.f32.mrb[0].mxu0
        %v5380 = vadd.f32 %v5213, %v5379
        %v5381 = vpop.f32.mrb[0].mxu0
        %5382 = vmatprep.mubr.bf16.mxu0 0
        %5383 = vmatmul.mubr.bf16.gmra.mrb[0].mxu0 %v5317
        %v5384 = vpop.f32.mrb[0].mxu0
        %v5385 = vadd.f32 %v5218, %v5384
        %v5386 = vpop.f32.mrb[0].mxu0
        %v5387 = vpop.f32.mrb[0].mxu0
        %v5388 = vadd.f32 %v5221, %v5387
        %v5389 = vpop.f32.mrb[0].mxu0
        %5390 = vmatprep.mubr.bf16.mxu0 0
        %5391 = vmatmul.mubr.bf16.gmra.mrb[0].mxu0 %v5320
        %v5392 = vpop.f32.mrb[0].mxu0
        %v5393 = vadd.f32 %v5226, %v5392
        %v5394 = vpop.f32.mrb[0].mxu0
        %v5395 = vpop.f32.mrb[0].mxu0
        %v5396 = vadd.f32 %v5229, %v5395
        %v5397 = vpop.f32.mrb[0].mxu0
        %5398 = vmatprep.mubr.bf16.mxu0 0
        %5399 = vmatmul.mubr.bf16.gmra.mrb[0].mxu0 %v5323
        %v5400 = vpop.f32.mrb[0].mxu0
        %v5401 = vadd.f32 %v5234, %v5400
        %v5402 = vpop.f32.mrb[0].mxu0
        %v5403 = vpop.f32.mrb[0].mxu0
        %v5404 = vadd.f32 %v5237, %v5403
        %v5405 = vpop.f32.mrb[0].mxu0
        %5406 = vmatprep.mubr.bf16.mxu0 0
        %5407 = vmatmul.mubr.bf16.gmra.mrb[0].mxu0 %v5326
        %v5408 = vpop.f32.mrb[0].mxu0
        %v5409 = vadd.f32 %v5242, %v5408
        %v5410 = vpop.f32.mrb[0].mxu0
        %v5411 = vpop.f32.mrb[0].mxu0
        %v5412 = vadd.f32 %v5245, %v5411
        %v5413 = vpop.f32.mrb[0].mxu0
        %5414 = vmatprep.mubr.bf16.mxu0 0
        %5415 = vmatmul.mubr.bf16.gmra.mrb[0].mxu0 %v5329
        %v5416 = vpop.f32.mrb[0].mxu0
        %v5417 = vadd.f32 %v5250, %v5416
        %v5418 = vpop.f32.mrb[0].mxu0
        %v5419 = vpop.f32.mrb[0].mxu0
        %v5420 = vadd.f32 %v5253, %v5419
        %v5421 = vpop.f32.mrb[0].mxu0
        %5422 = vmatprep.mubr.bf16.mxu0 0
        %5423 = vmatmul.mubr.bf16.gmra.mrb[0].mxu0 %v5332
        %v5424 = vpop.f32.mrb[0].mxu0
        %v5425 = vadd.f32 %v5258, %v5424
        %v5426 = vpop.f32.mrb[0].mxu0
        %v5427 = vpop.f32.mrb[0].mxu0
        %v5428 = vadd.f32 %v5261, %v5427
        %v5429 = vpop.f32.mrb[0].mxu0
        %5430 = vdwg.mxu0
        %s5431 = scalar_lea.vmem %s2, 160
        %v5432 = vld [vmem:[%s5431] sm:$0xf]
        %v5433 = vld [vmem:[%s5431 + $0x4] sm:$0xf]
        %v5434 = vld [vmem:[%s4989 + $0x10] sm:$0xc]
        %v5435 = vld [vmem:[%s4989 + $0x14] sm:$0xf]
        %v5436 = vld [vmem:[%s4989 + $0x18] sm:$0x3]
        %v5437 = vld [vmem:[%s4989 + $0x2c] sm:$0xc]
        %v5438 = vld [vmem:[%s4989 + $0x30] sm:$0xf]
        %v5439 = vld [vmem:[%s4989 + $0x34] sm:$0x3]
        %v5440 = vld [vmem:[%s4989 + $0x48] sm:$0xc]
        %v5441 = vld [vmem:[%s4989 + $0x4c] sm:$0xf]
        %v5442 = vld [vmem:[%s4989 + $0x50] sm:$0x3]
        %v5443 = vld [vmem:[%s4989 + $0x64] sm:$0xc]
        %v5444 = vld [vmem:[%s4989 + $0x68] sm:$0xf]
        %v5445 = vld [vmem:[%s4989 + $0x6c] sm:$0x3]
        %v5446 = vld [vmem:[%s4989 + $0x80] sm:$0xc]
        %v5447 = vld [vmem:[%s4989 + $0x84] sm:$0xf]
        %v5448 = vld [vmem:[%s4989 + $0x88] sm:$0x3]
        %v5449 = vld [vmem:[%s4989 + $0x9c] sm:$0xc]
        %v5450 = vld [vmem:[%s4989 + $0xa0] sm:$0xf]
        %v5451 = vld [vmem:[%s4989 + $0xa4] sm:$0x3]
        %v5452 = vld [vmem:[%s4989 + $0xb8] sm:$0xc]
        %v5453 = vld [vmem:[%s4989 + $0xbc] sm:$0xf]
        %v5454 = vld [vmem:[%s4989 + $0xc0] sm:$0x3]
        %v5455 = vld [vmem:[%s4989 + $0xd4] sm:$0xc]
        %v5456 = vld [vmem:[%s4989 + $0xd8] sm:$0xf]
        %v5457 = vld [vmem:[%s4989 + $0xdc] sm:$0x3]
        %v5482 = vrot.slane %v5434, 6
        %v5483 = vrot.slane %v5482, 4
        %v5484 = vrot.slane %v5435, 6
        %v5485 = vsel %vm631, %v5483, %v5484
        %v5486 = vrot.slane %v5484, 4
        %v5487 = vrot.slane %v5436, 6
        %v5488 = vsel %vm631, %v5486, %v5487
        %v5489 = vrot.slane %v5437, 6
        %v5490 = vrot.slane %v5489, 4
        %v5491 = vrot.slane %v5438, 6
        %v5492 = vsel %vm631, %v5490, %v5491
        %v5493 = vrot.slane %v5491, 4
        %v5494 = vrot.slane %v5439, 6
        %v5495 = vsel %vm631, %v5493, %v5494
        %v5496 = vrot.slane %v5440, 6
        %v5497 = vrot.slane %v5496, 4
        %v5498 = vrot.slane %v5441, 6
        %v5499 = vsel %vm631, %v5497, %v5498
        %v5500 = vrot.slane %v5498, 4
        %v5501 = vrot.slane %v5442, 6
        %v5502 = vsel %vm631, %v5500, %v5501
        %v5503 = vrot.slane %v5443, 6
        %v5504 = vrot.slane %v5503, 4
        %v5505 = vrot.slane %v5444, 6
        %v5506 = vsel %vm631, %v5504, %v5505
        %v5507 = vrot.slane %v5505, 4
        %v5508 = vrot.slane %v5445, 6
        %v5509 = vsel %vm631, %v5507, %v5508
        %v5510 = vrot.slane %v5446, 6
        %v5511 = vrot.slane %v5510, 4
        %v5512 = vrot.slane %v5447, 6
        %v5513 = vsel %vm631, %v5511, %v5512
        %v5514 = vrot.slane %v5512, 4
        %v5515 = vrot.slane %v5448, 6
        %v5516 = vsel %vm631, %v5514, %v5515
        %v5517 = vrot.slane %v5449, 6
        %v5518 = vrot.slane %v5517, 4
        %v5519 = vrot.slane %v5450, 6
        %v5520 = vsel %vm631, %v5518, %v5519
        %v5521 = vrot.slane %v5519, 4
        %v5522 = vrot.slane %v5451, 6
        %v5523 = vsel %vm631, %v5521, %v5522
        %v5524 = vrot.slane %v5452, 6
        %v5525 = vrot.slane %v5524, 4
        %v5526 = vrot.slane %v5453, 6
        %v5527 = vsel %vm631, %v5525, %v5526
        %v5528 = vrot.slane %v5526, 4
        %v5529 = vrot.slane %v5454, 6
        %v5530 = vsel %vm631, %v5528, %v5529
        %v5531 = vrot.slane %v5455, 6
        %v5532 = vrot.slane %v5531, 4
        %v5533 = vrot.slane %v5456, 6
        %v5534 = vsel %vm631, %v5532, %v5533
        %v5535 = vrot.slane %v5533, 4
        %v5536 = vrot.slane %v5457, 6
        %v5537 = vsel %vm631, %v5535, %v5536
        %v5538 = vunpack.c.l.b16 %v5485
        %v5539 = vunpack.c.l.b16 %v5488
        %v5540 = vunpack.c.l.b16 %v5492
        %v5541 = vunpack.c.l.b16 %v5495
        %v5542 = vunpack.c.l.b16 %v5499
        %v5543 = vunpack.c.l.b16 %v5502
        %v5544 = vunpack.c.l.b16 %v5506
        %v5545 = vunpack.c.l.b16 %v5509
        %v5546 = vunpack.c.l.b16 %v5513
        %v5547 = vunpack.c.l.b16 %v5516
        %v5548 = vunpack.c.l.b16 %v5520
        %v5549 = vunpack.c.l.b16 %v5523
        %v5550 = vunpack.c.l.b16 %v5527
        %v5551 = vunpack.c.l.b16 %v5530
        %v5552 = vunpack.c.l.b16 %v5534
        %v5553 = vunpack.c.l.b16 %v5537
        %v5554 = vpack.c.b16 %v5539, %v5538
        %v5555 = vpack.c.b16 %v5541, %v5540
        %v5556 = vpack.c.b16 %v5543, %v5542
        %v5557 = vpack.c.b16 %v5545, %v5544
        %v5558 = vpack.c.b16 %v5547, %v5546
        %v5559 = vpack.c.b16 %v5549, %v5548
        %v5560 = vpack.c.b16 %v5551, %v5550
        %v5561 = vpack.c.b16 %v5553, %v5552
        %v5564 = vunpack.c.l.b16 %v5432
        %v5565 = vunpack.c.l.b16 %v5433
        %v5566 = vpack.c.b16 %v5565, %v5564
        %v5569 = vsel %vm429, %v5554, 0
        %v5572 = vsel %vm429, %v5555, 0
        %v5575 = vsel %vm429, %v5556, 0
        %v5578 = vsel %vm429, %v5557, 0
        %v5581 = vsel %vm429, %v5558, 0
        %v5584 = vsel %vm429, %v5559, 0
        %v5587 = vsel %vm429, %v5560, 0
        %v5590 = vsel %vm429, %v5561, 0
        %5592 = vmatprep.subr.bf16.mxu0 0
        %5593 = vmatpush1.bf16.msra.mxu0 %v5566
        %5594 = vmatprep.subr.bf16.mxu0 0
        %5595 = vmatpush1.bf16.msra.mxu0 0
        %5596 = vmatprep.subr.bf16.mxu0 0
        %5597 = vmatpush1.bf16.msra.mxu0 0
        %5598 = vmatprep.subr.bf16.mxu0 0
        %5599 = vmatpush1.bf16.msra.mxu0 0
        %5600 = vmatprep.subr.bf16.mxu0 0
        %5601 = vmatpush1.bf16.msra.mxu0 0
        %5602 = vmatprep.subr.bf16.mxu0 0
        %5603 = vmatpush1.bf16.msra.mxu0 0
        %5604 = vmatprep.subr.bf16.mxu0 0
        %5605 = vmatpush1.bf16.msra.mxu0 0
        %5606 = vmatprep.subr.bf16.mxu0 0
        %5607 = vmatpush1.bf16.msra.mxu0 0
        %5608 = vmatprep.subr.bf16.mxu0 0
        %5609 = vmatpush1.bf16.msra.mxu0 0
        %5610 = vmatprep.subr.bf16.mxu0 0
        %5611 = vmatpush1.bf16.msra.mxu0 0
        %5612 = vmatprep.subr.bf16.mxu0 0
        %5613 = vmatpush1.bf16.msra.mxu0 0
        %5614 = vmatprep.subr.bf16.mxu0 0
        %5615 = vmatpush1.bf16.msra.mxu0 0
        %5616 = vmatprep.subr.bf16.mxu0 0
        %5617 = vmatpush1.bf16.msra.mxu0 0
        %5618 = vmatprep.subr.bf16.mxu0 0
        %5619 = vmatpush1.bf16.msra.mxu0 0
        %5620 = vmatprep.subr.bf16.mxu0 0
        %5621 = vmatpush1.bf16.msra.mxu0 0
        %5622 = vmatprep.subr.bf16.mxu0 0
        %5623 = vmatpush1.bf16.msra.mxu0 0
        %5624 = vmatprep.mubr.bf16.mxu0 0
        %5625 = vmatmul.mubr.bf16.gmra.mrb[0].mxu0 %v5569
        %v5626 = vpop.f32.mrb[0].mxu0
        %v5627 = vadd.f32 0.0, %v5626
        %v5628 = vpop.f32.mrb[0].mxu0
        %v5629 = vpop.f32.mrb[0].mxu0
        %v5630 = vadd.f32 0.0, %v5629
        %v5631 = vpop.f32.mrb[0].mxu0
        %5632 = vmatprep.mubr.bf16.mxu0 0
        %5633 = vmatmul.mubr.bf16.gmra.mrb[0].mxu0 %v5572
        %v5634 = vpop.f32.mrb[0].mxu0
        %v5635 = vadd.f32 0.0, %v5634
        %v5636 = vpop.f32.mrb[0].mxu0
        %v5637 = vpop.f32.mrb[0].mxu0
        %v5638 = vadd.f32 0.0, %v5637
        %v5639 = vpop.f32.mrb[0].mxu0
        %5640 = vmatprep.mubr.bf16.mxu0 0
        %5641 = vmatmul.mubr.bf16.gmra.mrb[0].mxu0 %v5575
        %v5642 = vpop.f32.mrb[0].mxu0
        %v5643 = vadd.f32 0.0, %v5642
        %v5644 = vpop.f32.mrb[0].mxu0
        %v5645 = vpop.f32.mrb[0].mxu0
        %v5646 = vadd.f32 0.0, %v5645
        %v5647 = vpop.f32.mrb[0].mxu0
        %5648 = vmatprep.mubr.bf16.mxu0 0
        %5649 = vmatmul.mubr.bf16.gmra.mrb[0].mxu0 %v5578
        %v5650 = vpop.f32.mrb[0].mxu0
        %v5651 = vadd.f32 0.0, %v5650
        %v5652 = vpop.f32.mrb[0].mxu0
        %v5653 = vpop.f32.mrb[0].mxu0
        %v5654 = vadd.f32 0.0, %v5653
        %v5655 = vpop.f32.mrb[0].mxu0
        %5656 = vmatprep.mubr.bf16.mxu0 0
        %5657 = vmatmul.mubr.bf16.gmra.mrb[0].mxu0 %v5581
        %v5658 = vpop.f32.mrb[0].mxu0
        %v5659 = vadd.f32 0.0, %v5658
        %v5660 = vpop.f32.mrb[0].mxu0
        %v5661 = vpop.f32.mrb[0].mxu0
        %v5662 = vadd.f32 0.0, %v5661
        %v5663 = vpop.f32.mrb[0].mxu0
        %5664 = vmatprep.mubr.bf16.mxu0 0
        %5665 = vmatmul.mubr.bf16.gmra.mrb[0].mxu0 %v5584
        %v5666 = vpop.f32.mrb[0].mxu0
        %v5667 = vadd.f32 0.0, %v5666
        %v5668 = vpop.f32.mrb[0].mxu0
        %v5669 = vpop.f32.mrb[0].mxu0
        %v5670 = vadd.f32 0.0, %v5669
        %v5671 = vpop.f32.mrb[0].mxu0
        %5672 = vmatprep.mubr.bf16.mxu0 0
        %5673 = vmatmul.mubr.bf16.gmra.mrb[0].mxu0 %v5587
        %v5674 = vpop.f32.mrb[0].mxu0
        %v5675 = vadd.f32 0.0, %v5674
        %v5676 = vpop.f32.mrb[0].mxu0
        %v5677 = vpop.f32.mrb[0].mxu0
        %v5678 = vadd.f32 0.0, %v5677
        %v5679 = vpop.f32.mrb[0].mxu0
        %5680 = vmatprep.mubr.bf16.mxu0 0
        %5681 = vmatmul.mubr.bf16.gmra.mrb[0].mxu0 %v5590
        %v5682 = vpop.f32.mrb[0].mxu0
        %v5683 = vadd.f32 0.0, %v5682
        %v5684 = vpop.f32.mrb[0].mxu0
        %v5685 = vpop.f32.mrb[0].mxu0
        %v5686 = vadd.f32 0.0, %v5685
        %v5687 = vpop.f32.mrb[0].mxu0
        %5688 = vdwg.mxu0
        %v5689 = vadd.f32 %v5369, %v5627
        %v5690 = vadd.f32 %v5372, %v5630
        %v5691 = vadd.f32 %v5377, %v5635
        %v5692 = vadd.f32 %v5380, %v5638
        %v5693 = vadd.f32 %v5385, %v5643
        %v5694 = vadd.f32 %v5388, %v5646
        %v5695 = vadd.f32 %v5393, %v5651
        %v5696 = vadd.f32 %v5396, %v5654
        %v5697 = vadd.f32 %v5401, %v5659
        %v5698 = vadd.f32 %v5404, %v5662
        %v5699 = vadd.f32 %v5409, %v5667
        %v5700 = vadd.f32 %v5412, %v5670
        %v5701 = vadd.f32 %v5417, %v5675
        %v5702 = vadd.f32 %v5420, %v5678
        %v5703 = vadd.f32 %v5425, %v5683
        %v5704 = vadd.f32 %v5428, %v5686
        %s5705 = scalar_lea.vmem %s2, 168
        %v5706 = vld [vmem:[%s5705] sm:$0xf]
        %v5707 = vld [vmem:[%s5705 + $0x4] sm:$0xf]
        %v5708 = vld [vmem:[%s285] sm:$0xf]
        %v5709 = vld [vmem:[%s285 + $0x4] sm:$0xf]
        %v5710 = vld [vmem:[%s285 + $0x1c] sm:$0xf]
        %v5711 = vld [vmem:[%s285 + $0x20] sm:$0xf]
        %v5712 = vld [vmem:[%s285 + $0x38] sm:$0xf]
        %v5713 = vld [vmem:[%s285 + $0x3c] sm:$0xf]
        %v5714 = vld [vmem:[%s285 + $0x54] sm:$0xf]
        %v5715 = vld [vmem:[%s285 + $0x58] sm:$0xf]
        %v5716 = vld [vmem:[%s285 + $0x70] sm:$0xf]
        %v5717 = vld [vmem:[%s285 + $0x74] sm:$0xf]
        %v5718 = vld [vmem:[%s285 + $0x8c] sm:$0xf]
        %v5719 = vld [vmem:[%s285 + $0x90] sm:$0xf]
        %v5720 = vld [vmem:[%s285 + $0xa8] sm:$0xf]
        %v5721 = vld [vmem:[%s285 + $0xac] sm:$0xf]
        %v5722 = vld [vmem:[%s285 + $0xc4] sm:$0xf]
        %v5723 = vld [vmem:[%s285 + $0xc8] sm:$0xf]
        %v5740 = vunpack.c.l.b16 %v5708
        %v5741 = vunpack.c.l.b16 %v5709
        %v5742 = vunpack.c.l.b16 %v5710
        %v5743 = vunpack.c.l.b16 %v5711
        %v5744 = vunpack.c.l.b16 %v5712
        %v5745 = vunpack.c.l.b16 %v5713
        %v5746 = vunpack.c.l.b16 %v5714
        %v5747 = vunpack.c.l.b16 %v5715
        %v5748 = vunpack.c.l.b16 %v5716
        %v5749 = vunpack.c.l.b16 %v5717
        %v5750 = vunpack.c.l.b16 %v5718
        %v5751 = vunpack.c.l.b16 %v5719
        %v5752 = vunpack.c.l.b16 %v5720
        %v5753 = vunpack.c.l.b16 %v5721
        %v5754 = vunpack.c.l.b16 %v5722
        %v5755 = vunpack.c.l.b16 %v5723
        %v5756 = vpack.c.b16 %v5741, %v5740
        %v5757 = vpack.c.b16 %v5743, %v5742
        %v5758 = vpack.c.b16 %v5745, %v5744
        %v5759 = vpack.c.b16 %v5747, %v5746
        %v5760 = vpack.c.b16 %v5749, %v5748
        %v5761 = vpack.c.b16 %v5751, %v5750
        %v5762 = vpack.c.b16 %v5753, %v5752
        %v5763 = vpack.c.b16 %v5755, %v5754
        %v5766 = vunpack.c.l.b16 %v5706
        %v5767 = vunpack.c.l.b16 %v5707
        %v5768 = vpack.c.b16 %v5767, %v5766
        %v5771 = vsel %vm429, %v5756, 0
        %v5774 = vsel %vm429, %v5757, 0
        %v5777 = vsel %vm429, %v5758, 0
        %v5780 = vsel %vm429, %v5759, 0
        %v5783 = vsel %vm429, %v5760, 0
        %v5786 = vsel %vm429, %v5761, 0
        %v5789 = vsel %vm429, %v5762, 0
        %v5792 = vsel %vm429, %v5763, 0
        %5794 = vmatprep.subr.bf16.mxu0 0
        %5795 = vmatpush1.bf16.msra.mxu0 %v5768
        %5796 = vmatprep.subr.bf16.mxu0 0
        %5797 = vmatpush1.bf16.msra.mxu0 0
        %5798 = vmatprep.subr.bf16.mxu0 0
        %5799 = vmatpush1.bf16.msra.mxu0 0
        %5800 = vmatprep.subr.bf16.mxu0 0
        %5801 = vmatpush1.bf16.msra.mxu0 0
        %5802 = vmatprep.subr.bf16.mxu0 0
        %5803 = vmatpush1.bf16.msra.mxu0 0
        %5804 = vmatprep.subr.bf16.mxu0 0
        %5805 = vmatpush1.bf16.msra.mxu0 0
        %5806 = vmatprep.subr.bf16.mxu0 0
        %5807 = vmatpush1.bf16.msra.mxu0 0
        %5808 = vmatprep.subr.bf16.mxu0 0
        %5809 = vmatpush1.bf16.msra.mxu0 0
        %5810 = vmatprep.subr.bf16.mxu0 0
        %5811 = vmatpush1.bf16.msra.mxu0 0
        %5812 = vmatprep.subr.bf16.mxu0 0
        %5813 = vmatpush1.bf16.msra.mxu0 0
        %5814 = vmatprep.subr.bf16.mxu0 0
        %5815 = vmatpush1.bf16.msra.mxu0 0
        %5816 = vmatprep.subr.bf16.mxu0 0
        %5817 = vmatpush1.bf16.msra.mxu0 0
        %5818 = vmatprep.subr.bf16.mxu0 0
        %5819 = vmatpush1.bf16.msra.mxu0 0
        %5820 = vmatprep.subr.bf16.mxu0 0
        %5821 = vmatpush1.bf16.msra.mxu0 0
        %5822 = vmatprep.subr.bf16.mxu0 0
        %5823 = vmatpush1.bf16.msra.mxu0 0
        %5824 = vmatprep.subr.bf16.mxu0 0
        %5825 = vmatpush1.bf16.msra.mxu0 0
        %5826 = vmatprep.mubr.bf16.mxu0 0
        %5827 = vmatmul.mubr.bf16.gmra.mrb[0].mxu0 %v5771
        %v5828 = vpop.f32.mrb[0].mxu0
        %v5829 = vadd.f32 0.0, %v5828
        %v5830 = vpop.f32.mrb[0].mxu0
        %v5831 = vpop.f32.mrb[0].mxu0
        %v5832 = vadd.f32 0.0, %v5831
        %v5833 = vpop.f32.mrb[0].mxu0
        %5834 = vmatprep.mubr.bf16.mxu0 0
        %5835 = vmatmul.mubr.bf16.gmra.mrb[0].mxu0 %v5774
        %v5836 = vpop.f32.mrb[0].mxu0
        %v5837 = vadd.f32 0.0, %v5836
        %v5838 = vpop.f32.mrb[0].mxu0
        %v5839 = vpop.f32.mrb[0].mxu0
        %v5840 = vadd.f32 0.0, %v5839
        %v5841 = vpop.f32.mrb[0].mxu0
        %5842 = vmatprep.mubr.bf16.mxu0 0
        %5843 = vmatmul.mubr.bf16.gmra.mrb[0].mxu0 %v5777
        %v5844 = vpop.f32.mrb[0].mxu0
        %v5845 = vadd.f32 0.0, %v5844
        %v5846 = vpop.f32.mrb[0].mxu0
        %v5847 = vpop.f32.mrb[0].mxu0
        %v5848 = vadd.f32 0.0, %v5847
        %v5849 = vpop.f32.mrb[0].mxu0
        %5850 = vmatprep.mubr.bf16.mxu0 0
        %5851 = vmatmul.mubr.bf16.gmra.mrb[0].mxu0 %v5780
        %v5852 = vpop.f32.mrb[0].mxu0
        %v5853 = vadd.f32 0.0, %v5852
        %v5854 = vpop.f32.mrb[0].mxu0
        %v5855 = vpop.f32.mrb[0].mxu0
        %v5856 = vadd.f32 0.0, %v5855
        %v5857 = vpop.f32.mrb[0].mxu0
        %5858 = vmatprep.mubr.bf16.mxu0 0
        %5859 = vmatmul.mubr.bf16.gmra.mrb[0].mxu0 %v5783
        %v5860 = vpop.f32.mrb[0].mxu0
        %v5861 = vadd.f32 0.0, %v5860
        %v5862 = vpop.f32.mrb[0].mxu0
        %v5863 = vpop.f32.mrb[0].mxu0
        %v5864 = vadd.f32 0.0, %v5863
        %v5865 = vpop.f32.mrb[0].mxu0
        %5866 = vmatprep.mubr.bf16.mxu0 0
        %5867 = vmatmul.mubr.bf16.gmra.mrb[0].mxu0 %v5786
        %v5868 = vpop.f32.mrb[0].mxu0
        %v5869 = vadd.f32 0.0, %v5868
        %v5870 = vpop.f32.mrb[0].mxu0
        %v5871 = vpop.f32.mrb[0].mxu0
        %v5872 = vadd.f32 0.0, %v5871
        %v5873 = vpop.f32.mrb[0].mxu0
        %5874 = vmatprep.mubr.bf16.mxu0 0
        %5875 = vmatmul.mubr.bf16.gmra.mrb[0].mxu0 %v5789
        %v5876 = vpop.f32.mrb[0].mxu0
        %v5877 = vadd.f32 0.0, %v5876
        %v5878 = vpop.f32.mrb[0].mxu0
        %v5879 = vpop.f32.mrb[0].mxu0
        %v5880 = vadd.f32 0.0, %v5879
        %v5881 = vpop.f32.mrb[0].mxu0
        %5882 = vmatprep.mubr.bf16.mxu0 0
        %5883 = vmatmul.mubr.bf16.gmra.mrb[0].mxu0 %v5792
        %v5884 = vpop.f32.mrb[0].mxu0
        %v5885 = vadd.f32 0.0, %v5884
        %v5886 = vpop.f32.mrb[0].mxu0
        %v5887 = vpop.f32.mrb[0].mxu0
        %v5888 = vadd.f32 0.0, %v5887
        %v5889 = vpop.f32.mrb[0].mxu0
        %5890 = vdwg.mxu0
        %v5891 = vadd.f32 %v5689, %v5829
        %v5892 = vadd.f32 %v5690, %v5832
        %v5893 = vadd.f32 %v5691, %v5837
        %v5894 = vadd.f32 %v5692, %v5840
        %v5895 = vadd.f32 %v5693, %v5845
        %v5896 = vadd.f32 %v5694, %v5848
        %v5897 = vadd.f32 %v5695, %v5853
        %v5898 = vadd.f32 %v5696, %v5856
        %v5899 = vadd.f32 %v5697, %v5861
        %v5900 = vadd.f32 %v5698, %v5864
        %v5901 = vadd.f32 %v5699, %v5869
        %v5902 = vadd.f32 %v5700, %v5872
        %v5903 = vadd.f32 %v5701, %v5877
        %v5904 = vadd.f32 %v5702, %v5880
        %v5905 = vadd.f32 %v5703, %v5885
        %v5906 = vadd.f32 %v5704, %v5888
        %s5907 = scalar_lea.vmem %s2, 176
        %v5908 = vld [vmem:[%s5907] sm:$0xf]
        %v5909 = vld [vmem:[%s5907 + $0x4] sm:$0xf]
        %v5912 = vunpack.c.l.b16 %v5908
        %v5913 = vunpack.c.l.b16 %v5909
        %v5914 = vpack.c.b16 %v5913, %v5912
        %5916 = vmatprep.subr.bf16.mxu0 0
        %5917 = vmatpush1.bf16.msra.mxu0 %v5914
        %5918 = vmatprep.subr.bf16.mxu0 0
        %5919 = vmatpush1.bf16.msra.mxu0 0
        %5920 = vmatprep.subr.bf16.mxu0 0
        %5921 = vmatpush1.bf16.msra.mxu0 0
        %5922 = vmatprep.subr.bf16.mxu0 0
        %5923 = vmatpush1.bf16.msra.mxu0 0
        %5924 = vmatprep.subr.bf16.mxu0 0
        %5925 = vmatpush1.bf16.msra.mxu0 0
        %5926 = vmatprep.subr.bf16.mxu0 0
        %5927 = vmatpush1.bf16.msra.mxu0 0
        %5928 = vmatprep.subr.bf16.mxu0 0
        %5929 = vmatpush1.bf16.msra.mxu0 0
        %5930 = vmatprep.subr.bf16.mxu0 0
        %5931 = vmatpush1.bf16.msra.mxu0 0
        %5932 = vmatprep.subr.bf16.mxu0 0
        %5933 = vmatpush1.bf16.msra.mxu0 0
        %5934 = vmatprep.subr.bf16.mxu0 0
        %5935 = vmatpush1.bf16.msra.mxu0 0
        %5936 = vmatprep.subr.bf16.mxu0 0
        %5937 = vmatpush1.bf16.msra.mxu0 0
        %5938 = vmatprep.subr.bf16.mxu0 0
        %5939 = vmatpush1.bf16.msra.mxu0 0
        %5940 = vmatprep.subr.bf16.mxu0 0
        %5941 = vmatpush1.bf16.msra.mxu0 0
        %5942 = vmatprep.subr.bf16.mxu0 0
        %5943 = vmatpush1.bf16.msra.mxu0 0
        %5944 = vmatprep.subr.bf16.mxu0 0
        %5945 = vmatpush1.bf16.msra.mxu0 0
        %5946 = vmatprep.subr.bf16.mxu0 0
        %5947 = vmatpush1.bf16.msra.mxu0 0
        %5948 = vmatprep.mubr.bf16.mxu0 0
        %5949 = vmatmul.mubr.bf16.gmra.mrb[0].mxu0 %v431
        %v5950 = vpop.f32.mrb[0].mxu0
        %v5951 = vadd.f32 0.0, %v5950
        %v5952 = vpop.f32.mrb[0].mxu0
        %v5953 = vpop.f32.mrb[0].mxu0
        %v5954 = vadd.f32 0.0, %v5953
        %v5955 = vpop.f32.mrb[0].mxu0
        %5956 = vmatprep.mubr.bf16.mxu0 0
        %5957 = vmatmul.mubr.bf16.gmra.mrb[0].mxu0 %v434
        %v5958 = vpop.f32.mrb[0].mxu0
        %v5959 = vadd.f32 0.0, %v5958
        %v5960 = vpop.f32.mrb[0].mxu0
        %v5961 = vpop.f32.mrb[0].mxu0
        %v5962 = vadd.f32 0.0, %v5961
        %v5963 = vpop.f32.mrb[0].mxu0
        %5964 = vmatprep.mubr.bf16.mxu0 0
        %5965 = vmatmul.mubr.bf16.gmra.mrb[0].mxu0 %v437
        %v5966 = vpop.f32.mrb[0].mxu0
        %v5967 = vadd.f32 0.0, %v5966
        %v5968 = vpop.f32.mrb[0].mxu0
        %v5969 = vpop.f32.mrb[0].mxu0
        %v5970 = vadd.f32 0.0, %v5969
        %v5971 = vpop.f32.mrb[0].mxu0
        %5972 = vmatprep.mubr.bf16.mxu0 0
        %5973 = vmatmul.mubr.bf16.gmra.mrb[0].mxu0 %v440
        %v5974 = vpop.f32.mrb[0].mxu0
        %v5975 = vadd.f32 0.0, %v5974
        %v5976 = vpop.f32.mrb[0].mxu0
        %v5977 = vpop.f32.mrb[0].mxu0
        %v5978 = vadd.f32 0.0, %v5977
        %v5979 = vpop.f32.mrb[0].mxu0
        %5980 = vmatprep.mubr.bf16.mxu0 0
        %5981 = vmatmul.mubr.bf16.gmra.mrb[0].mxu0 %v443
        %v5982 = vpop.f32.mrb[0].mxu0
        %v5983 = vadd.f32 0.0, %v5982
        %v5984 = vpop.f32.mrb[0].mxu0
        %v5985 = vpop.f32.mrb[0].mxu0
        %v5986 = vadd.f32 0.0, %v5985
        %v5987 = vpop.f32.mrb[0].mxu0
        %5988 = vmatprep.mubr.bf16.mxu0 0
        %5989 = vmatmul.mubr.bf16.gmra.mrb[0].mxu0 %v446
        %v5990 = vpop.f32.mrb[0].mxu0
        %v5991 = vadd.f32 0.0, %v5990
        %v5992 = vpop.f32.mrb[0].mxu0
        %v5993 = vpop.f32.mrb[0].mxu0
        %v5994 = vadd.f32 0.0, %v5993
        %v5995 = vpop.f32.mrb[0].mxu0
        %5996 = vmatprep.mubr.bf16.mxu0 0
        %5997 = vmatmul.mubr.bf16.gmra.mrb[0].mxu0 %v449
        %v5998 = vpop.f32.mrb[0].mxu0
        %v5999 = vadd.f32 0.0, %v5998
        %v6000 = vpop.f32.mrb[0].mxu0
        %v6001 = vpop.f32.mrb[0].mxu0
        %v6002 = vadd.f32 0.0, %v6001
        %v6003 = vpop.f32.mrb[0].mxu0
        %6004 = vmatprep.mubr.bf16.mxu0 0
        %6005 = vmatmul.mubr.bf16.gmra.mrb[0].mxu0 %v452
        %v6006 = vpop.f32.mrb[0].mxu0
        %v6007 = vadd.f32 0.0, %v6006
        %v6008 = vpop.f32.mrb[0].mxu0
        %v6009 = vpop.f32.mrb[0].mxu0
        %v6010 = vadd.f32 0.0, %v6009
        %v6011 = vpop.f32.mrb[0].mxu0
        %6012 = vdwg.mxu0
        %v6013 = vadd.f32 %v5891, %v5951
        %v6014 = vadd.f32 %v5892, %v5954
        %v6015 = vadd.f32 %v5893, %v5959
        %v6016 = vadd.f32 %v5894, %v5962
        %v6017 = vadd.f32 %v5895, %v5967
        %v6018 = vadd.f32 %v5896, %v5970
        %v6019 = vadd.f32 %v5897, %v5975
        %v6020 = vadd.f32 %v5898, %v5978
        %v6021 = vadd.f32 %v5899, %v5983
        %v6022 = vadd.f32 %v5900, %v5986
        %v6023 = vadd.f32 %v5901, %v5991
        %v6024 = vadd.f32 %v5902, %v5994
        %v6025 = vadd.f32 %v5903, %v5999
        %v6026 = vadd.f32 %v5904, %v6002
        %v6027 = vadd.f32 %v5905, %v6007
        %v6028 = vadd.f32 %v5906, %v6010
        %s6029 = scalar_lea.vmem %s2, 184
        %v6030 = vld [vmem:[%s6029] sm:$0xf]
        %v6031 = vld [vmem:[%s6029 + $0x4] sm:$0xf]
        %v6032 = vld [vmem:[%s285 + $0x10] sm:$0xc]
        %v6033 = vld [vmem:[%s285 + $0x14] sm:$0xf]
        %v6034 = vld [vmem:[%s285 + $0x18] sm:$0x3]
        %v6035 = vld [vmem:[%s285 + $0x2c] sm:$0xc]
        %v6036 = vld [vmem:[%s285 + $0x30] sm:$0xf]
        %v6037 = vld [vmem:[%s285 + $0x34] sm:$0x3]
        %v6038 = vld [vmem:[%s285 + $0x48] sm:$0xc]
        %v6039 = vld [vmem:[%s285 + $0x4c] sm:$0xf]
        %v6040 = vld [vmem:[%s285 + $0x50] sm:$0x3]
        %v6041 = vld [vmem:[%s285 + $0x64] sm:$0xc]
        %v6042 = vld [vmem:[%s285 + $0x68] sm:$0xf]
        %v6043 = vld [vmem:[%s285 + $0x6c] sm:$0x3]
        %v6044 = vld [vmem:[%s285 + $0x80] sm:$0xc]
        %v6045 = vld [vmem:[%s285 + $0x84] sm:$0xf]
        %v6046 = vld [vmem:[%s285 + $0x88] sm:$0x3]
        %v6047 = vld [vmem:[%s285 + $0x9c] sm:$0xc]
        %v6048 = vld [vmem:[%s285 + $0xa0] sm:$0xf]
        %v6049 = vld [vmem:[%s285 + $0xa4] sm:$0x3]
        %v6050 = vld [vmem:[%s285 + $0xb8] sm:$0xc]
        %v6051 = vld [vmem:[%s285 + $0xbc] sm:$0xf]
        %v6052 = vld [vmem:[%s285 + $0xc0] sm:$0x3]
        %v6053 = vld [vmem:[%s285 + $0xd4] sm:$0xc]
        %v6054 = vld [vmem:[%s285 + $0xd8] sm:$0xf]
        %v6055 = vld [vmem:[%s285 + $0xdc] sm:$0x3]
        %v6080 = vrot.slane %v6032, 6
        %v6081 = vrot.slane %v6080, 4
        %v6082 = vrot.slane %v6033, 6
        %v6083 = vsel %vm631, %v6081, %v6082
        %v6084 = vrot.slane %v6082, 4
        %v6085 = vrot.slane %v6034, 6
        %v6086 = vsel %vm631, %v6084, %v6085
        %v6087 = vrot.slane %v6035, 6
        %v6088 = vrot.slane %v6087, 4
        %v6089 = vrot.slane %v6036, 6
        %v6090 = vsel %vm631, %v6088, %v6089
        %v6091 = vrot.slane %v6089, 4
        %v6092 = vrot.slane %v6037, 6
        %v6093 = vsel %vm631, %v6091, %v6092
        %v6094 = vrot.slane %v6038, 6
        %v6095 = vrot.slane %v6094, 4
        %v6096 = vrot.slane %v6039, 6
        %v6097 = vsel %vm631, %v6095, %v6096
        %v6098 = vrot.slane %v6096, 4
        %v6099 = vrot.slane %v6040, 6
        %v6100 = vsel %vm631, %v6098, %v6099
        %v6101 = vrot.slane %v6041, 6
        %v6102 = vrot.slane %v6101, 4
        %v6103 = vrot.slane %v6042, 6
        %v6104 = vsel %vm631, %v6102, %v6103
        %v6105 = vrot.slane %v6103, 4
        %v6106 = vrot.slane %v6043, 6
        %v6107 = vsel %vm631, %v6105, %v6106
        %v6108 = vrot.slane %v6044, 6
        %v6109 = vrot.slane %v6108, 4
        %v6110 = vrot.slane %v6045, 6
        %v6111 = vsel %vm631, %v6109, %v6110
        %v6112 = vrot.slane %v6110, 4
        %v6113 = vrot.slane %v6046, 6
        %v6114 = vsel %vm631, %v6112, %v6113
        %v6115 = vrot.slane %v6047, 6
        %v6116 = vrot.slane %v6115, 4
        %v6117 = vrot.slane %v6048, 6
        %v6118 = vsel %vm631, %v6116, %v6117
        %v6119 = vrot.slane %v6117, 4
        %v6120 = vrot.slane %v6049, 6
        %v6121 = vsel %vm631, %v6119, %v6120
        %v6122 = vrot.slane %v6050, 6
        %v6123 = vrot.slane %v6122, 4
        %v6124 = vrot.slane %v6051, 6
        %v6125 = vsel %vm631, %v6123, %v6124
        %v6126 = vrot.slane %v6124, 4
        %v6127 = vrot.slane %v6052, 6
        %v6128 = vsel %vm631, %v6126, %v6127
        %v6129 = vrot.slane %v6053, 6
        %v6130 = vrot.slane %v6129, 4
        %v6131 = vrot.slane %v6054, 6
        %v6132 = vsel %vm631, %v6130, %v6131
        %v6133 = vrot.slane %v6131, 4
        %v6134 = vrot.slane %v6055, 6
        %v6135 = vsel %vm631, %v6133, %v6134
        %v6136 = vunpack.c.l.b16 %v6083
        %v6137 = vunpack.c.l.b16 %v6086
        %v6138 = vunpack.c.l.b16 %v6090
        %v6139 = vunpack.c.l.b16 %v6093
        %v6140 = vunpack.c.l.b16 %v6097
        %v6141 = vunpack.c.l.b16 %v6100
        %v6142 = vunpack.c.l.b16 %v6104
        %v6143 = vunpack.c.l.b16 %v6107
        %v6144 = vunpack.c.l.b16 %v6111
        %v6145 = vunpack.c.l.b16 %v6114
        %v6146 = vunpack.c.l.b16 %v6118
        %v6147 = vunpack.c.l.b16 %v6121
        %v6148 = vunpack.c.l.b16 %v6125
        %v6149 = vunpack.c.l.b16 %v6128
        %v6150 = vunpack.c.l.b16 %v6132
        %v6151 = vunpack.c.l.b16 %v6135
        %v6152 = vpack.c.b16 %v6137, %v6136
        %v6153 = vpack.c.b16 %v6139, %v6138
        %v6154 = vpack.c.b16 %v6141, %v6140
        %v6155 = vpack.c.b16 %v6143, %v6142
        %v6156 = vpack.c.b16 %v6145, %v6144
        %v6157 = vpack.c.b16 %v6147, %v6146
        %v6158 = vpack.c.b16 %v6149, %v6148
        %v6159 = vpack.c.b16 %v6151, %v6150
        %v6162 = vunpack.c.l.b16 %v6030
        %v6163 = vunpack.c.l.b16 %v6031
        %v6164 = vpack.c.b16 %v6163, %v6162
        %v6167 = vsel %vm429, %v6152, 0
        %v6170 = vsel %vm429, %v6153, 0
        %v6173 = vsel %vm429, %v6154, 0
        %v6176 = vsel %vm429, %v6155, 0
        %v6179 = vsel %vm429, %v6156, 0
        %v6182 = vsel %vm429, %v6157, 0
        %v6185 = vsel %vm429, %v6158, 0
        %v6188 = vsel %vm429, %v6159, 0
        %6190 = vmatprep.subr.bf16.mxu0 0
        %6191 = vmatpush1.bf16.msra.mxu0 %v6164
        %6192 = vmatprep.subr.bf16.mxu0 0
        %6193 = vmatpush1.bf16.msra.mxu0 0
        %6194 = vmatprep.subr.bf16.mxu0 0
        %6195 = vmatpush1.bf16.msra.mxu0 0
        %6196 = vmatprep.subr.bf16.mxu0 0
        %6197 = vmatpush1.bf16.msra.mxu0 0
        %6198 = vmatprep.subr.bf16.mxu0 0
        %6199 = vmatpush1.bf16.msra.mxu0 0
        %6200 = vmatprep.subr.bf16.mxu0 0
        %6201 = vmatpush1.bf16.msra.mxu0 0
        %6202 = vmatprep.subr.bf16.mxu0 0
        %6203 = vmatpush1.bf16.msra.mxu0 0
        %6204 = vmatprep.subr.bf16.mxu0 0
        %6205 = vmatpush1.bf16.msra.mxu0 0
        %6206 = vmatprep.subr.bf16.mxu0 0
        %6207 = vmatpush1.bf16.msra.mxu0 0
        %6208 = vmatprep.subr.bf16.mxu0 0
        %6209 = vmatpush1.bf16.msra.mxu0 0
        %6210 = vmatprep.subr.bf16.mxu0 0
        %6211 = vmatpush1.bf16.msra.mxu0 0
        %6212 = vmatprep.subr.bf16.mxu0 0
        %6213 = vmatpush1.bf16.msra.mxu0 0
        %6214 = vmatprep.subr.bf16.mxu0 0
        %6215 = vmatpush1.bf16.msra.mxu0 0
        %6216 = vmatprep.subr.bf16.mxu0 0
        %6217 = vmatpush1.bf16.msra.mxu0 0
        %6218 = vmatprep.subr.bf16.mxu0 0
        %6219 = vmatpush1.bf16.msra.mxu0 0
        %6220 = vmatprep.subr.bf16.mxu0 0
        %6221 = vmatpush1.bf16.msra.mxu0 0
        %6222 = vmatprep.mubr.bf16.mxu0 0
        %6223 = vmatmul.mubr.bf16.gmra.mrb[0].mxu0 %v6167
        %v6224 = vpop.f32.mrb[0].mxu0
        %v6225 = vadd.f32 0.0, %v6224
        %v6226 = vpop.f32.mrb[0].mxu0
        %v6227 = vpop.f32.mrb[0].mxu0
        %v6228 = vadd.f32 0.0, %v6227
        %v6229 = vpop.f32.mrb[0].mxu0
        %6230 = vmatprep.mubr.bf16.mxu0 0
        %6231 = vmatmul.mubr.bf16.gmra.mrb[0].mxu0 %v6170
        %v6232 = vpop.f32.mrb[0].mxu0
        %v6233 = vadd.f32 0.0, %v6232
        %v6234 = vpop.f32.mrb[0].mxu0
        %v6235 = vpop.f32.mrb[0].mxu0
        %v6236 = vadd.f32 0.0, %v6235
        %v6237 = vpop.f32.mrb[0].mxu0
        %6238 = vmatprep.mubr.bf16.mxu0 0
        %6239 = vmatmul.mubr.bf16.gmra.mrb[0].mxu0 %v6173
        %v6240 = vpop.f32.mrb[0].mxu0
        %v6241 = vadd.f32 0.0, %v6240
        %v6242 = vpop.f32.mrb[0].mxu0
        %v6243 = vpop.f32.mrb[0].mxu0
        %v6244 = vadd.f32 0.0, %v6243
        %v6245 = vpop.f32.mrb[0].mxu0
        %6246 = vmatprep.mubr.bf16.mxu0 0
        %6247 = vmatmul.mubr.bf16.gmra.mrb[0].mxu0 %v6176
        %v6248 = vpop.f32.mrb[0].mxu0
        %v6249 = vadd.f32 0.0, %v6248
        %v6250 = vpop.f32.mrb[0].mxu0
        %v6251 = vpop.f32.mrb[0].mxu0
        %v6252 = vadd.f32 0.0, %v6251
        %v6253 = vpop.f32.mrb[0].mxu0
        %6254 = vmatprep.mubr.bf16.mxu0 0
        %6255 = vmatmul.mubr.bf16.gmra.mrb[0].mxu0 %v6179
        %v6256 = vpop.f32.mrb[0].mxu0
        %v6257 = vadd.f32 0.0, %v6256
        %v6258 = vpop.f32.mrb[0].mxu0
        %v6259 = vpop.f32.mrb[0].mxu0
        %v6260 = vadd.f32 0.0, %v6259
        %v6261 = vpop.f32.mrb[0].mxu0
        %6262 = vmatprep.mubr.bf16.mxu0 0
        %6263 = vmatmul.mubr.bf16.gmra.mrb[0].mxu0 %v6182
        %v6264 = vpop.f32.mrb[0].mxu0
        %v6265 = vadd.f32 0.0, %v6264
        %v6266 = vpop.f32.mrb[0].mxu0
        %v6267 = vpop.f32.mrb[0].mxu0
        %v6268 = vadd.f32 0.0, %v6267
        %v6269 = vpop.f32.mrb[0].mxu0
        %6270 = vmatprep.mubr.bf16.mxu0 0
        %6271 = vmatmul.mubr.bf16.gmra.mrb[0].mxu0 %v6185
        %v6272 = vpop.f32.mrb[0].mxu0
        %v6273 = vadd.f32 0.0, %v6272
        %v6274 = vpop.f32.mrb[0].mxu0
        %v6275 = vpop.f32.mrb[0].mxu0
        %v6276 = vadd.f32 0.0, %v6275
        %v6277 = vpop.f32.mrb[0].mxu0
        %6278 = vmatprep.mubr.bf16.mxu0 0
        %6279 = vmatmul.mubr.bf16.gmra.mrb[0].mxu0 %v6188
        %v6280 = vpop.f32.mrb[0].mxu0
        %v6281 = vadd.f32 0.0, %v6280
        %v6282 = vpop.f32.mrb[0].mxu0
        %v6283 = vpop.f32.mrb[0].mxu0
        %v6284 = vadd.f32 0.0, %v6283
        %v6285 = vpop.f32.mrb[0].mxu0
        %6286 = vdwg.mxu0
        %v6287 = vadd.f32 %v6013, %v6225
        %v6288 = vadd.f32 %v6014, %v6228
        %v6289 = vadd.f32 %v6015, %v6233
        %v6290 = vadd.f32 %v6016, %v6236
        %v6291 = vadd.f32 %v6017, %v6241
        %v6292 = vadd.f32 %v6018, %v6244
        %v6293 = vadd.f32 %v6019, %v6249
        %v6294 = vadd.f32 %v6020, %v6252
        %v6295 = vadd.f32 %v6021, %v6257
        %v6296 = vadd.f32 %v6022, %v6260
        %v6297 = vadd.f32 %v6023, %v6265
        %v6298 = vadd.f32 %v6024, %v6268
        %v6299 = vadd.f32 %v6025, %v6273
        %v6300 = vadd.f32 %v6026, %v6276
        %v6301 = vadd.f32 %v6027, %v6281
        %v6302 = vadd.f32 %v6028, %v6284
        %s6303 = scalar_lea.vmem %s2, 192
        %v6304 = vld [vmem:[%s6303] sm:$0xf]
        %v6305 = vld [vmem:[%s6303 + $0x4] sm:$0xf]
        %s6306 = sadd.s32 %s280, 36
        %s6307 = smul.u32 %s6306, 7
        %s6308 = smul.addr %s6307, 4
        %s6309 = scalar_lea.vmem %s274, %s6308
        %v6310 = vld [vmem:[%s6309] sm:$0xf]
        %v6311 = vld [vmem:[%s6309 + $0x4] sm:$0xf]
        %v6312 = vld [vmem:[%s6309 + $0x1c] sm:$0xf]
        %v6313 = vld [vmem:[%s6309 + $0x20] sm:$0xf]
        %v6314 = vld [vmem:[%s6309 + $0x38] sm:$0xf]
        %v6315 = vld [vmem:[%s6309 + $0x3c] sm:$0xf]
        %v6316 = vld [vmem:[%s6309 + $0x54] sm:$0xf]
        %v6317 = vld [vmem:[%s6309 + $0x58] sm:$0xf]
        %v6318 = vld [vmem:[%s6309 + $0x70] sm:$0xf]
        %v6319 = vld [vmem:[%s6309 + $0x74] sm:$0xf]
        %v6320 = vld [vmem:[%s6309 + $0x8c] sm:$0xf]
        %v6321 = vld [vmem:[%s6309 + $0x90] sm:$0xf]
        %v6322 = vld [vmem:[%s6309 + $0xa8] sm:$0xf]
        %v6323 = vld [vmem:[%s6309 + $0xac] sm:$0xf]
        %v6324 = vld [vmem:[%s6309 + $0xc4] sm:$0xf]
        %v6325 = vld [vmem:[%s6309 + $0xc8] sm:$0xf]
        %v6342 = vunpack.c.l.b16 %v6310
        %v6343 = vunpack.c.l.b16 %v6311
        %v6344 = vunpack.c.l.b16 %v6312
        %v6345 = vunpack.c.l.b16 %v6313
        %v6346 = vunpack.c.l.b16 %v6314
        %v6347 = vunpack.c.l.b16 %v6315
        %v6348 = vunpack.c.l.b16 %v6316
        %v6349 = vunpack.c.l.b16 %v6317
        %v6350 = vunpack.c.l.b16 %v6318
        %v6351 = vunpack.c.l.b16 %v6319
        %v6352 = vunpack.c.l.b16 %v6320
        %v6353 = vunpack.c.l.b16 %v6321
        %v6354 = vunpack.c.l.b16 %v6322
        %v6355 = vunpack.c.l.b16 %v6323
        %v6356 = vunpack.c.l.b16 %v6324
        %v6357 = vunpack.c.l.b16 %v6325
        %v6358 = vpack.c.b16 %v6343, %v6342
        %v6359 = vpack.c.b16 %v6345, %v6344
        %v6360 = vpack.c.b16 %v6347, %v6346
        %v6361 = vpack.c.b16 %v6349, %v6348
        %v6362 = vpack.c.b16 %v6351, %v6350
        %v6363 = vpack.c.b16 %v6353, %v6352
        %v6364 = vpack.c.b16 %v6355, %v6354
        %v6365 = vpack.c.b16 %v6357, %v6356
        %v6368 = vunpack.c.l.b16 %v6304
        %v6369 = vunpack.c.l.b16 %v6305
        %v6370 = vpack.c.b16 %v6369, %v6368
        %v6373 = vsel %vm429, %v6358, 0
        %v6376 = vsel %vm429, %v6359, 0
        %v6379 = vsel %vm429, %v6360, 0
        %v6382 = vsel %vm429, %v6361, 0
        %v6385 = vsel %vm429, %v6362, 0
        %v6388 = vsel %vm429, %v6363, 0
        %v6391 = vsel %vm429, %v6364, 0
        %v6394 = vsel %vm429, %v6365, 0
        %6396 = vmatprep.subr.bf16.mxu0 0
        %6397 = vmatpush1.bf16.msra.mxu0 %v6370
        %6398 = vmatprep.subr.bf16.mxu0 0
        %6399 = vmatpush1.bf16.msra.mxu0 0
        %6400 = vmatprep.subr.bf16.mxu0 0
        %6401 = vmatpush1.bf16.msra.mxu0 0
        %6402 = vmatprep.subr.bf16.mxu0 0
        %6403 = vmatpush1.bf16.msra.mxu0 0
        %6404 = vmatprep.subr.bf16.mxu0 0
        %6405 = vmatpush1.bf16.msra.mxu0 0
        %6406 = vmatprep.subr.bf16.mxu0 0
        %6407 = vmatpush1.bf16.msra.mxu0 0
        %6408 = vmatprep.subr.bf16.mxu0 0
        %6409 = vmatpush1.bf16.msra.mxu0 0
        %6410 = vmatprep.subr.bf16.mxu0 0
        %6411 = vmatpush1.bf16.msra.mxu0 0
        %6412 = vmatprep.subr.bf16.mxu0 0
        %6413 = vmatpush1.bf16.msra.mxu0 0
        %6414 = vmatprep.subr.bf16.mxu0 0
        %6415 = vmatpush1.bf16.msra.mxu0 0
        %6416 = vmatprep.subr.bf16.mxu0 0
        %6417 = vmatpush1.bf16.msra.mxu0 0
        %6418 = vmatprep.subr.bf16.mxu0 0
        %6419 = vmatpush1.bf16.msra.mxu0 0
        %6420 = vmatprep.subr.bf16.mxu0 0
        %6421 = vmatpush1.bf16.msra.mxu0 0
        %6422 = vmatprep.subr.bf16.mxu0 0
        %6423 = vmatpush1.bf16.msra.mxu0 0
        %6424 = vmatprep.subr.bf16.mxu0 0
        %6425 = vmatpush1.bf16.msra.mxu0 0
        %6426 = vmatprep.subr.bf16.mxu0 0
        %6427 = vmatpush1.bf16.msra.mxu0 0
        %6428 = vmatprep.mubr.bf16.mxu0 0
        %6429 = vmatmul.mubr.bf16.gmra.mrb[0].mxu0 %v6373
        %v6430 = vpop.f32.mrb[0].mxu0
        %v6431 = vadd.f32 0.0, %v6430
        %v6432 = vpop.f32.mrb[0].mxu0
        %v6433 = vpop.f32.mrb[0].mxu0
        %v6434 = vadd.f32 0.0, %v6433
        %v6435 = vpop.f32.mrb[0].mxu0
        %6436 = vmatprep.mubr.bf16.mxu0 0
        %6437 = vmatmul.mubr.bf16.gmra.mrb[0].mxu0 %v6376
        %v6438 = vpop.f32.mrb[0].mxu0
        %v6439 = vadd.f32 0.0, %v6438
        %v6440 = vpop.f32.mrb[0].mxu0
        %v6441 = vpop.f32.mrb[0].mxu0
        %v6442 = vadd.f32 0.0, %v6441
        %v6443 = vpop.f32.mrb[0].mxu0
        %6444 = vmatprep.mubr.bf16.mxu0 0
        %6445 = vmatmul.mubr.bf16.gmra.mrb[0].mxu0 %v6379
        %v6446 = vpop.f32.mrb[0].mxu0
        %v6447 = vadd.f32 0.0, %v6446
        %v6448 = vpop.f32.mrb[0].mxu0
        %v6449 = vpop.f32.mrb[0].mxu0
        %v6450 = vadd.f32 0.0, %v6449
        %v6451 = vpop.f32.mrb[0].mxu0
        %6452 = vmatprep.mubr.bf16.mxu0 0
        %6453 = vmatmul.mubr.bf16.gmra.mrb[0].mxu0 %v6382
        %v6454 = vpop.f32.mrb[0].mxu0
        %v6455 = vadd.f32 0.0, %v6454
        %v6456 = vpop.f32.mrb[0].mxu0
        %v6457 = vpop.f32.mrb[0].mxu0
        %v6458 = vadd.f32 0.0, %v6457
        %v6459 = vpop.f32.mrb[0].mxu0
        %6460 = vmatprep.mubr.bf16.mxu0 0
        %6461 = vmatmul.mubr.bf16.gmra.mrb[0].mxu0 %v6385
        %v6462 = vpop.f32.mrb[0].mxu0
        %v6463 = vadd.f32 0.0, %v6462
        %v6464 = vpop.f32.mrb[0].mxu0
        %v6465 = vpop.f32.mrb[0].mxu0
        %v6466 = vadd.f32 0.0, %v6465
        %v6467 = vpop.f32.mrb[0].mxu0
        %6468 = vmatprep.mubr.bf16.mxu0 0
        %6469 = vmatmul.mubr.bf16.gmra.mrb[0].mxu0 %v6388
        %v6470 = vpop.f32.mrb[0].mxu0
        %v6471 = vadd.f32 0.0, %v6470
        %v6472 = vpop.f32.mrb[0].mxu0
        %v6473 = vpop.f32.mrb[0].mxu0
        %v6474 = vadd.f32 0.0, %v6473
        %v6475 = vpop.f32.mrb[0].mxu0
        %6476 = vmatprep.mubr.bf16.mxu0 0
        %6477 = vmatmul.mubr.bf16.gmra.mrb[0].mxu0 %v6391
        %v6478 = vpop.f32.mrb[0].mxu0
        %v6479 = vadd.f32 0.0, %v6478
        %v6480 = vpop.f32.mrb[0].mxu0
        %v6481 = vpop.f32.mrb[0].mxu0
        %v6482 = vadd.f32 0.0, %v6481
        %v6483 = vpop.f32.mrb[0].mxu0
        %6484 = vmatprep.mubr.bf16.mxu0 0
        %6485 = vmatmul.mubr.bf16.gmra.mrb[0].mxu0 %v6394
        %v6486 = vpop.f32.mrb[0].mxu0
        %v6487 = vadd.f32 0.0, %v6486
        %v6488 = vpop.f32.mrb[0].mxu0
        %v6489 = vpop.f32.mrb[0].mxu0
        %v6490 = vadd.f32 0.0, %v6489
        %v6491 = vpop.f32.mrb[0].mxu0
        %6492 = vdwg.mxu0
        %v6493 = vadd.f32 %v6287, %v6431
        %v6494 = vadd.f32 %v6288, %v6434
        %v6495 = vadd.f32 %v6289, %v6439
        %v6496 = vadd.f32 %v6290, %v6442
        %v6497 = vadd.f32 %v6291, %v6447
        %v6498 = vadd.f32 %v6292, %v6450
        %v6499 = vadd.f32 %v6293, %v6455
        %v6500 = vadd.f32 %v6294, %v6458
        %v6501 = vadd.f32 %v6295, %v6463
        %v6502 = vadd.f32 %v6296, %v6466
        %v6503 = vadd.f32 %v6297, %v6471
        %v6504 = vadd.f32 %v6298, %v6474
        %v6505 = vadd.f32 %v6299, %v6479
        %v6506 = vadd.f32 %v6300, %v6482
        %v6507 = vadd.f32 %v6301, %v6487
        %v6508 = vadd.f32 %v6302, %v6490
        %s6509 = scalar_lea.vmem %s2, 200
        %v6510 = vld [vmem:[%s6509] sm:$0xf]
        %v6511 = vld [vmem:[%s6509 + $0x4] sm:$0xf]
        %v6512 = vld [vmem:[%s6309 + $0x8] sm:$0xe]
        %v6513 = vld [vmem:[%s6309 + $0xc] sm:$0xf]
        %v6514 = vld [vmem:[%s6309 + $0x10] sm:$0x1]
        %v6515 = vld [vmem:[%s6309 + $0x24] sm:$0xe]
        %v6516 = vld [vmem:[%s6309 + $0x28] sm:$0xf]
        %v6517 = vld [vmem:[%s6309 + $0x2c] sm:$0x1]
        %v6518 = vld [vmem:[%s6309 + $0x40] sm:$0xe]
        %v6519 = vld [vmem:[%s6309 + $0x44] sm:$0xf]
        %v6520 = vld [vmem:[%s6309 + $0x48] sm:$0x1]
        %v6521 = vld [vmem:[%s6309 + $0x5c] sm:$0xe]
        %v6522 = vld [vmem:[%s6309 + $0x60] sm:$0xf]
        %v6523 = vld [vmem:[%s6309 + $0x64] sm:$0x1]
        %v6524 = vld [vmem:[%s6309 + $0x78] sm:$0xe]
        %v6525 = vld [vmem:[%s6309 + $0x7c] sm:$0xf]
        %v6526 = vld [vmem:[%s6309 + $0x80] sm:$0x1]
        %v6527 = vld [vmem:[%s6309 + $0x94] sm:$0xe]
        %v6528 = vld [vmem:[%s6309 + $0x98] sm:$0xf]
        %v6529 = vld [vmem:[%s6309 + $0x9c] sm:$0x1]
        %v6530 = vld [vmem:[%s6309 + $0xb0] sm:$0xe]
        %v6531 = vld [vmem:[%s6309 + $0xb4] sm:$0xf]
        %v6532 = vld [vmem:[%s6309 + $0xb8] sm:$0x1]
        %v6533 = vld [vmem:[%s6309 + $0xcc] sm:$0xe]
        %v6534 = vld [vmem:[%s6309 + $0xd0] sm:$0xf]
        %v6535 = vld [vmem:[%s6309 + $0xd4] sm:$0x1]
        %v6560 = vrot.slane %v6512, 5
        %v6561 = vrot.slane %v6560, 4
        %v6562 = vrot.slane %v6513, 5
        %v6563 = vsel %vm336, %v6561, %v6562
        %v6564 = vrot.slane %v6562, 4
        %v6565 = vrot.slane %v6514, 5
        %v6566 = vsel %vm336, %v6564, %v6565
        %v6567 = vrot.slane %v6515, 5
        %v6568 = vrot.slane %v6567, 4
        %v6569 = vrot.slane %v6516, 5
        %v6570 = vsel %vm336, %v6568, %v6569
        %v6571 = vrot.slane %v6569, 4
        %v6572 = vrot.slane %v6517, 5
        %v6573 = vsel %vm336, %v6571, %v6572
        %v6574 = vrot.slane %v6518, 5
        %v6575 = vrot.slane %v6574, 4
        %v6576 = vrot.slane %v6519, 5
        %v6577 = vsel %vm336, %v6575, %v6576
        %v6578 = vrot.slane %v6576, 4
        %v6579 = vrot.slane %v6520, 5
        %v6580 = vsel %vm336, %v6578, %v6579
        %v6581 = vrot.slane %v6521, 5
        %v6582 = vrot.slane %v6581, 4
        %v6583 = vrot.slane %v6522, 5
        %v6584 = vsel %vm336, %v6582, %v6583
        %v6585 = vrot.slane %v6583, 4
        %v6586 = vrot.slane %v6523, 5
        %v6587 = vsel %vm336, %v6585, %v6586
        %v6588 = vrot.slane %v6524, 5
        %v6589 = vrot.slane %v6588, 4
        %v6590 = vrot.slane %v6525, 5
        %v6591 = vsel %vm336, %v6589, %v6590
        %v6592 = vrot.slane %v6590, 4
        %v6593 = vrot.slane %v6526, 5
        %v6594 = vsel %vm336, %v6592, %v6593
        %v6595 = vrot.slane %v6527, 5
        %v6596 = vrot.slane %v6595, 4
        %v6597 = vrot.slane %v6528, 5
        %v6598 = vsel %vm336, %v6596, %v6597
        %v6599 = vrot.slane %v6597, 4
        %v6600 = vrot.slane %v6529, 5
        %v6601 = vsel %vm336, %v6599, %v6600
        %v6602 = vrot.slane %v6530, 5
        %v6603 = vrot.slane %v6602, 4
        %v6604 = vrot.slane %v6531, 5
        %v6605 = vsel %vm336, %v6603, %v6604
        %v6606 = vrot.slane %v6604, 4
        %v6607 = vrot.slane %v6532, 5
        %v6608 = vsel %vm336, %v6606, %v6607
        %v6609 = vrot.slane %v6533, 5
        %v6610 = vrot.slane %v6609, 4
        %v6611 = vrot.slane %v6534, 5
        %v6612 = vsel %vm336, %v6610, %v6611
        %v6613 = vrot.slane %v6611, 4
        %v6614 = vrot.slane %v6535, 5
        %v6615 = vsel %vm336, %v6613, %v6614
        %v6616 = vunpack.c.l.b16 %v6563
        %v6617 = vunpack.c.l.b16 %v6566
        %v6618 = vunpack.c.l.b16 %v6570
        %v6619 = vunpack.c.l.b16 %v6573
        %v6620 = vunpack.c.l.b16 %v6577
        %v6621 = vunpack.c.l.b16 %v6580
        %v6622 = vunpack.c.l.b16 %v6584
        %v6623 = vunpack.c.l.b16 %v6587
        %v6624 = vunpack.c.l.b16 %v6591
        %v6625 = vunpack.c.l.b16 %v6594
        %v6626 = vunpack.c.l.b16 %v6598
        %v6627 = vunpack.c.l.b16 %v6601
        %v6628 = vunpack.c.l.b16 %v6605
        %v6629 = vunpack.c.l.b16 %v6608
        %v6630 = vunpack.c.l.b16 %v6612
        %v6631 = vunpack.c.l.b16 %v6615
        %v6632 = vpack.c.b16 %v6617, %v6616
        %v6633 = vpack.c.b16 %v6619, %v6618
        %v6634 = vpack.c.b16 %v6621, %v6620
        %v6635 = vpack.c.b16 %v6623, %v6622
        %v6636 = vpack.c.b16 %v6625, %v6624
        %v6637 = vpack.c.b16 %v6627, %v6626
        %v6638 = vpack.c.b16 %v6629, %v6628
        %v6639 = vpack.c.b16 %v6631, %v6630
        %v6642 = vunpack.c.l.b16 %v6510
        %v6643 = vunpack.c.l.b16 %v6511
        %v6644 = vpack.c.b16 %v6643, %v6642
        %v6647 = vsel %vm429, %v6632, 0
        %v6650 = vsel %vm429, %v6633, 0
        %v6653 = vsel %vm429, %v6634, 0
        %v6656 = vsel %vm429, %v6635, 0
        %v6659 = vsel %vm429, %v6636, 0
        %v6662 = vsel %vm429, %v6637, 0
        %v6665 = vsel %vm429, %v6638, 0
        %v6668 = vsel %vm429, %v6639, 0
        %6670 = vmatprep.subr.bf16.mxu0 0
        %6671 = vmatpush1.bf16.msra.mxu0 %v6644
        %6672 = vmatprep.subr.bf16.mxu0 0
        %6673 = vmatpush1.bf16.msra.mxu0 0
        %6674 = vmatprep.subr.bf16.mxu0 0
        %6675 = vmatpush1.bf16.msra.mxu0 0
        %6676 = vmatprep.subr.bf16.mxu0 0
        %6677 = vmatpush1.bf16.msra.mxu0 0
        %6678 = vmatprep.subr.bf16.mxu0 0
        %6679 = vmatpush1.bf16.msra.mxu0 0
        %6680 = vmatprep.subr.bf16.mxu0 0
        %6681 = vmatpush1.bf16.msra.mxu0 0
        %6682 = vmatprep.subr.bf16.mxu0 0
        %6683 = vmatpush1.bf16.msra.mxu0 0
        %6684 = vmatprep.subr.bf16.mxu0 0
        %6685 = vmatpush1.bf16.msra.mxu0 0
        %6686 = vmatprep.subr.bf16.mxu0 0
        %6687 = vmatpush1.bf16.msra.mxu0 0
        %6688 = vmatprep.subr.bf16.mxu0 0
        %6689 = vmatpush1.bf16.msra.mxu0 0
        %6690 = vmatprep.subr.bf16.mxu0 0
        %6691 = vmatpush1.bf16.msra.mxu0 0
        %6692 = vmatprep.subr.bf16.mxu0 0
        %6693 = vmatpush1.bf16.msra.mxu0 0
        %6694 = vmatprep.subr.bf16.mxu0 0
        %6695 = vmatpush1.bf16.msra.mxu0 0
        %6696 = vmatprep.subr.bf16.mxu0 0
        %6697 = vmatpush1.bf16.msra.mxu0 0
        %6698 = vmatprep.subr.bf16.mxu0 0
        %6699 = vmatpush1.bf16.msra.mxu0 0
        %6700 = vmatprep.subr.bf16.mxu0 0
        %6701 = vmatpush1.bf16.msra.mxu0 0
        %6702 = vmatprep.mubr.bf16.mxu0 0
        %6703 = vmatmul.mubr.bf16.gmra.mrb[0].mxu0 %v6647
        %v6704 = vpop.f32.mrb[0].mxu0
        %v6705 = vadd.f32 0.0, %v6704
        %v6706 = vpop.f32.mrb[0].mxu0
        %v6707 = vpop.f32.mrb[0].mxu0
        %v6708 = vadd.f32 0.0, %v6707
        %v6709 = vpop.f32.mrb[0].mxu0
        %6710 = vmatprep.mubr.bf16.mxu0 0
        %6711 = vmatmul.mubr.bf16.gmra.mrb[0].mxu0 %v6650
        %v6712 = vpop.f32.mrb[0].mxu0
        %v6713 = vadd.f32 0.0, %v6712
        %v6714 = vpop.f32.mrb[0].mxu0
        %v6715 = vpop.f32.mrb[0].mxu0
        %v6716 = vadd.f32 0.0, %v6715
        %v6717 = vpop.f32.mrb[0].mxu0
        %6718 = vmatprep.mubr.bf16.mxu0 0
        %6719 = vmatmul.mubr.bf16.gmra.mrb[0].mxu0 %v6653
        %v6720 = vpop.f32.mrb[0].mxu0
        %v6721 = vadd.f32 0.0, %v6720
        %v6722 = vpop.f32.mrb[0].mxu0
        %v6723 = vpop.f32.mrb[0].mxu0
        %v6724 = vadd.f32 0.0, %v6723
        %v6725 = vpop.f32.mrb[0].mxu0
        %6726 = vmatprep.mubr.bf16.mxu0 0
        %6727 = vmatmul.mubr.bf16.gmra.mrb[0].mxu0 %v6656
        %v6728 = vpop.f32.mrb[0].mxu0
        %v6729 = vadd.f32 0.0, %v6728
        %v6730 = vpop.f32.mrb[0].mxu0
        %v6731 = vpop.f32.mrb[0].mxu0
        %v6732 = vadd.f32 0.0, %v6731
        %v6733 = vpop.f32.mrb[0].mxu0
        %6734 = vmatprep.mubr.bf16.mxu0 0
        %6735 = vmatmul.mubr.bf16.gmra.mrb[0].mxu0 %v6659
        %v6736 = vpop.f32.mrb[0].mxu0
        %v6737 = vadd.f32 0.0, %v6736
        %v6738 = vpop.f32.mrb[0].mxu0
        %v6739 = vpop.f32.mrb[0].mxu0
        %v6740 = vadd.f32 0.0, %v6739
        %v6741 = vpop.f32.mrb[0].mxu0
        %6742 = vmatprep.mubr.bf16.mxu0 0
        %6743 = vmatmul.mubr.bf16.gmra.mrb[0].mxu0 %v6662
        %v6744 = vpop.f32.mrb[0].mxu0
        %v6745 = vadd.f32 0.0, %v6744
        %v6746 = vpop.f32.mrb[0].mxu0
        %v6747 = vpop.f32.mrb[0].mxu0
        %v6748 = vadd.f32 0.0, %v6747
        %v6749 = vpop.f32.mrb[0].mxu0
        %6750 = vmatprep.mubr.bf16.mxu0 0
        %6751 = vmatmul.mubr.bf16.gmra.mrb[0].mxu0 %v6665
        %v6752 = vpop.f32.mrb[0].mxu0
        %v6753 = vadd.f32 0.0, %v6752
        %v6754 = vpop.f32.mrb[0].mxu0
        %v6755 = vpop.f32.mrb[0].mxu0
        %v6756 = vadd.f32 0.0, %v6755
        %v6757 = vpop.f32.mrb[0].mxu0
        %6758 = vmatprep.mubr.bf16.mxu0 0
        %6759 = vmatmul.mubr.bf16.gmra.mrb[0].mxu0 %v6668
        %v6760 = vpop.f32.mrb[0].mxu0
        %v6761 = vadd.f32 0.0, %v6760
        %v6762 = vpop.f32.mrb[0].mxu0
        %v6763 = vpop.f32.mrb[0].mxu0
        %v6764 = vadd.f32 0.0, %v6763
        %v6765 = vpop.f32.mrb[0].mxu0
        %6766 = vdwg.mxu0
        %v6767 = vadd.f32 %v6493, %v6705
        %v6768 = vadd.f32 %v6494, %v6708
        %v6769 = vadd.f32 %v6495, %v6713
        %v6770 = vadd.f32 %v6496, %v6716
        %v6771 = vadd.f32 %v6497, %v6721
        %v6772 = vadd.f32 %v6498, %v6724
        %v6773 = vadd.f32 %v6499, %v6729
        %v6774 = vadd.f32 %v6500, %v6732
        %v6775 = vadd.f32 %v6501, %v6737
        %v6776 = vadd.f32 %v6502, %v6740
        %v6777 = vadd.f32 %v6503, %v6745
        %v6778 = vadd.f32 %v6504, %v6748
        %v6779 = vadd.f32 %v6505, %v6753
        %v6780 = vadd.f32 %v6506, %v6756
        %v6781 = vadd.f32 %v6507, %v6761
        %v6782 = vadd.f32 %v6508, %v6764
        %s6783 = scalar_lea.vmem %s2, 208
        %v6784 = vld [vmem:[%s6783] sm:$0xf]
        %v6785 = vld [vmem:[%s6783 + $0x4] sm:$0xf]
        %v6786 = vld [vmem:[%s6309 + $0x10] sm:$0xc]
        %v6787 = vld [vmem:[%s6309 + $0x14] sm:$0xf]
        %v6788 = vld [vmem:[%s6309 + $0x18] sm:$0x3]
        %v6789 = vld [vmem:[%s6309 + $0x2c] sm:$0xc]
        %v6790 = vld [vmem:[%s6309 + $0x30] sm:$0xf]
        %v6791 = vld [vmem:[%s6309 + $0x34] sm:$0x3]
        %v6792 = vld [vmem:[%s6309 + $0x48] sm:$0xc]
        %v6793 = vld [vmem:[%s6309 + $0x4c] sm:$0xf]
        %v6794 = vld [vmem:[%s6309 + $0x50] sm:$0x3]
        %v6795 = vld [vmem:[%s6309 + $0x64] sm:$0xc]
        %v6796 = vld [vmem:[%s6309 + $0x68] sm:$0xf]
        %v6797 = vld [vmem:[%s6309 + $0x6c] sm:$0x3]
        %v6798 = vld [vmem:[%s6309 + $0x80] sm:$0xc]
        %v6799 = vld [vmem:[%s6309 + $0x84] sm:$0xf]
        %v6800 = vld [vmem:[%s6309 + $0x88] sm:$0x3]
        %v6801 = vld [vmem:[%s6309 + $0x9c] sm:$0xc]
        %v6802 = vld [vmem:[%s6309 + $0xa0] sm:$0xf]
        %v6803 = vld [vmem:[%s6309 + $0xa4] sm:$0x3]
        %v6804 = vld [vmem:[%s6309 + $0xb8] sm:$0xc]
        %v6805 = vld [vmem:[%s6309 + $0xbc] sm:$0xf]
        %v6806 = vld [vmem:[%s6309 + $0xc0] sm:$0x3]
        %v6807 = vld [vmem:[%s6309 + $0xd4] sm:$0xc]
        %v6808 = vld [vmem:[%s6309 + $0xd8] sm:$0xf]
        %v6809 = vld [vmem:[%s6309 + $0xdc] sm:$0x3]
        %v6834 = vrot.slane %v6786, 6
        %v6835 = vrot.slane %v6834, 4
        %v6836 = vrot.slane %v6787, 6
        %v6837 = vsel %vm631, %v6835, %v6836
        %v6838 = vrot.slane %v6836, 4
        %v6839 = vrot.slane %v6788, 6
        %v6840 = vsel %vm631, %v6838, %v6839
        %v6841 = vrot.slane %v6789, 6
        %v6842 = vrot.slane %v6841, 4
        %v6843 = vrot.slane %v6790, 6
        %v6844 = vsel %vm631, %v6842, %v6843
        %v6845 = vrot.slane %v6843, 4
        %v6846 = vrot.slane %v6791, 6
        %v6847 = vsel %vm631, %v6845, %v6846
        %v6848 = vrot.slane %v6792, 6
        %v6849 = vrot.slane %v6848, 4
        %v6850 = vrot.slane %v6793, 6
        %v6851 = vsel %vm631, %v6849, %v6850
        %v6852 = vrot.slane %v6850, 4
        %v6853 = vrot.slane %v6794, 6
        %v6854 = vsel %vm631, %v6852, %v6853
        %v6855 = vrot.slane %v6795, 6
        %v6856 = vrot.slane %v6855, 4
        %v6857 = vrot.slane %v6796, 6
        %v6858 = vsel %vm631, %v6856, %v6857
        %v6859 = vrot.slane %v6857, 4
        %v6860 = vrot.slane %v6797, 6
        %v6861 = vsel %vm631, %v6859, %v6860
        %v6862 = vrot.slane %v6798, 6
        %v6863 = vrot.slane %v6862, 4
        %v6864 = vrot.slane %v6799, 6
        %v6865 = vsel %vm631, %v6863, %v6864
        %v6866 = vrot.slane %v6864, 4
        %v6867 = vrot.slane %v6800, 6
        %v6868 = vsel %vm631, %v6866, %v6867
        %v6869 = vrot.slane %v6801, 6
        %v6870 = vrot.slane %v6869, 4
        %v6871 = vrot.slane %v6802, 6
        %v6872 = vsel %vm631, %v6870, %v6871
        %v6873 = vrot.slane %v6871, 4
        %v6874 = vrot.slane %v6803, 6
        %v6875 = vsel %vm631, %v6873, %v6874
        %v6876 = vrot.slane %v6804, 6
        %v6877 = vrot.slane %v6876, 4
        %v6878 = vrot.slane %v6805, 6
        %v6879 = vsel %vm631, %v6877, %v6878
        %v6880 = vrot.slane %v6878, 4
        %v6881 = vrot.slane %v6806, 6
        %v6882 = vsel %vm631, %v6880, %v6881
        %v6883 = vrot.slane %v6807, 6
        %v6884 = vrot.slane %v6883, 4
        %v6885 = vrot.slane %v6808, 6
        %v6886 = vsel %vm631, %v6884, %v6885
        %v6887 = vrot.slane %v6885, 4
        %v6888 = vrot.slane %v6809, 6
        %v6889 = vsel %vm631, %v6887, %v6888
        %v6890 = vunpack.c.l.b16 %v6837
        %v6891 = vunpack.c.l.b16 %v6840
        %v6892 = vunpack.c.l.b16 %v6844
        %v6893 = vunpack.c.l.b16 %v6847
        %v6894 = vunpack.c.l.b16 %v6851
        %v6895 = vunpack.c.l.b16 %v6854
        %v6896 = vunpack.c.l.b16 %v6858
        %v6897 = vunpack.c.l.b16 %v6861
        %v6898 = vunpack.c.l.b16 %v6865
        %v6899 = vunpack.c.l.b16 %v6868
        %v6900 = vunpack.c.l.b16 %v6872
        %v6901 = vunpack.c.l.b16 %v6875
        %v6902 = vunpack.c.l.b16 %v6879
        %v6903 = vunpack.c.l.b16 %v6882
        %v6904 = vunpack.c.l.b16 %v6886
        %v6905 = vunpack.c.l.b16 %v6889
        %v6906 = vpack.c.b16 %v6891, %v6890
        %v6907 = vpack.c.b16 %v6893, %v6892
        %v6908 = vpack.c.b16 %v6895, %v6894
        %v6909 = vpack.c.b16 %v6897, %v6896
        %v6910 = vpack.c.b16 %v6899, %v6898
        %v6911 = vpack.c.b16 %v6901, %v6900
        %v6912 = vpack.c.b16 %v6903, %v6902
        %v6913 = vpack.c.b16 %v6905, %v6904
        %v6916 = vunpack.c.l.b16 %v6784
        %v6917 = vunpack.c.l.b16 %v6785
        %v6918 = vpack.c.b16 %v6917, %v6916
        %v6921 = vsel %vm429, %v6906, 0
        %v6924 = vsel %vm429, %v6907, 0
        %v6927 = vsel %vm429, %v6908, 0
        %v6930 = vsel %vm429, %v6909, 0
        %v6933 = vsel %vm429, %v6910, 0
        %v6936 = vsel %vm429, %v6911, 0
        %v6939 = vsel %vm429, %v6912, 0
        %v6942 = vsel %vm429, %v6913, 0
        %6944 = vmatprep.subr.bf16.mxu0 0
        %6945 = vmatpush1.bf16.msra.mxu0 %v6918
        %6946 = vmatprep.subr.bf16.mxu0 0
        %6947 = vmatpush1.bf16.msra.mxu0 0
        %6948 = vmatprep.subr.bf16.mxu0 0
        %6949 = vmatpush1.bf16.msra.mxu0 0
        %6950 = vmatprep.subr.bf16.mxu0 0
        %6951 = vmatpush1.bf16.msra.mxu0 0
        %6952 = vmatprep.subr.bf16.mxu0 0
        %6953 = vmatpush1.bf16.msra.mxu0 0
        %6954 = vmatprep.subr.bf16.mxu0 0
        %6955 = vmatpush1.bf16.msra.mxu0 0
        %6956 = vmatprep.subr.bf16.mxu0 0
        %6957 = vmatpush1.bf16.msra.mxu0 0
        %6958 = vmatprep.subr.bf16.mxu0 0
        %6959 = vmatpush1.bf16.msra.mxu0 0
        %6960 = vmatprep.subr.bf16.mxu0 0
        %6961 = vmatpush1.bf16.msra.mxu0 0
        %6962 = vmatprep.subr.bf16.mxu0 0
        %6963 = vmatpush1.bf16.msra.mxu0 0
        %6964 = vmatprep.subr.bf16.mxu0 0
        %6965 = vmatpush1.bf16.msra.mxu0 0
        %6966 = vmatprep.subr.bf16.mxu0 0
        %6967 = vmatpush1.bf16.msra.mxu0 0
        %6968 = vmatprep.subr.bf16.mxu0 0
        %6969 = vmatpush1.bf16.msra.mxu0 0
        %6970 = vmatprep.subr.bf16.mxu0 0
        %6971 = vmatpush1.bf16.msra.mxu0 0
        %6972 = vmatprep.subr.bf16.mxu0 0
        %6973 = vmatpush1.bf16.msra.mxu0 0
        %6974 = vmatprep.subr.bf16.mxu0 0
        %6975 = vmatpush1.bf16.msra.mxu0 0
        %6976 = vmatprep.mubr.bf16.mxu0 0
        %6977 = vmatmul.mubr.bf16.gmra.mrb[0].mxu0 %v6921
        %v6978 = vpop.f32.mrb[0].mxu0
        %v6979 = vadd.f32 0.0, %v6978
        %v6980 = vpop.f32.mrb[0].mxu0
        %v6981 = vpop.f32.mrb[0].mxu0
        %v6982 = vadd.f32 0.0, %v6981
        %v6983 = vpop.f32.mrb[0].mxu0
        %6984 = vmatprep.mubr.bf16.mxu0 0
        %6985 = vmatmul.mubr.bf16.gmra.mrb[0].mxu0 %v6924
        %v6986 = vpop.f32.mrb[0].mxu0
        %v6987 = vadd.f32 0.0, %v6986
        %v6988 = vpop.f32.mrb[0].mxu0
        %v6989 = vpop.f32.mrb[0].mxu0
        %v6990 = vadd.f32 0.0, %v6989
        %v6991 = vpop.f32.mrb[0].mxu0
        %6992 = vmatprep.mubr.bf16.mxu0 0
        %6993 = vmatmul.mubr.bf16.gmra.mrb[0].mxu0 %v6927
        %v6994 = vpop.f32.mrb[0].mxu0
        %v6995 = vadd.f32 0.0, %v6994
        %v6996 = vpop.f32.mrb[0].mxu0
        %v6997 = vpop.f32.mrb[0].mxu0
        %v6998 = vadd.f32 0.0, %v6997
        %v6999 = vpop.f32.mrb[0].mxu0
        %7000 = vmatprep.mubr.bf16.mxu0 0
        %7001 = vmatmul.mubr.bf16.gmra.mrb[0].mxu0 %v6930
        %v7002 = vpop.f32.mrb[0].mxu0
        %v7003 = vadd.f32 0.0, %v7002
        %v7004 = vpop.f32.mrb[0].mxu0
        %v7005 = vpop.f32.mrb[0].mxu0
        %v7006 = vadd.f32 0.0, %v7005
        %v7007 = vpop.f32.mrb[0].mxu0
        %7008 = vmatprep.mubr.bf16.mxu0 0
        %7009 = vmatmul.mubr.bf16.gmra.mrb[0].mxu0 %v6933
        %v7010 = vpop.f32.mrb[0].mxu0
        %v7011 = vadd.f32 0.0, %v7010
        %v7012 = vpop.f32.mrb[0].mxu0
        %v7013 = vpop.f32.mrb[0].mxu0
        %v7014 = vadd.f32 0.0, %v7013
        %v7015 = vpop.f32.mrb[0].mxu0
        %7016 = vmatprep.mubr.bf16.mxu0 0
        %7017 = vmatmul.mubr.bf16.gmra.mrb[0].mxu0 %v6936
        %v7018 = vpop.f32.mrb[0].mxu0
        %v7019 = vadd.f32 0.0, %v7018
        %v7020 = vpop.f32.mrb[0].mxu0
        %v7021 = vpop.f32.mrb[0].mxu0
        %v7022 = vadd.f32 0.0, %v7021
        %v7023 = vpop.f32.mrb[0].mxu0
        %7024 = vmatprep.mubr.bf16.mxu0 0
        %7025 = vmatmul.mubr.bf16.gmra.mrb[0].mxu0 %v6939
        %v7026 = vpop.f32.mrb[0].mxu0
        %v7027 = vadd.f32 0.0, %v7026
        %v7028 = vpop.f32.mrb[0].mxu0
        %v7029 = vpop.f32.mrb[0].mxu0
        %v7030 = vadd.f32 0.0, %v7029
        %v7031 = vpop.f32.mrb[0].mxu0
        %7032 = vmatprep.mubr.bf16.mxu0 0
        %7033 = vmatmul.mubr.bf16.gmra.mrb[0].mxu0 %v6942
        %v7034 = vpop.f32.mrb[0].mxu0
        %v7035 = vadd.f32 0.0, %v7034
        %v7036 = vpop.f32.mrb[0].mxu0
        %v7037 = vpop.f32.mrb[0].mxu0
        %v7038 = vadd.f32 0.0, %v7037
        %v7039 = vpop.f32.mrb[0].mxu0
        %7040 = vdwg.mxu0
        %v7041 = vadd.f32 %v6767, %v6979
        %v7042 = vadd.f32 %v6768, %v6982
        %v7043 = vadd.f32 %v6769, %v6987
        %v7044 = vadd.f32 %v6770, %v6990
        %v7045 = vadd.f32 %v6771, %v6995
        %v7046 = vadd.f32 %v6772, %v6998
        %v7047 = vadd.f32 %v6773, %v7003
        %v7048 = vadd.f32 %v6774, %v7006
        %v7049 = vadd.f32 %v6775, %v7011
        %v7050 = vadd.f32 %v6776, %v7014
        %v7051 = vadd.f32 %v6777, %v7019
        %v7052 = vadd.f32 %v6778, %v7022
        %v7053 = vadd.f32 %v6779, %v7027
        %v7054 = vadd.f32 %v6780, %v7030
        %v7055 = vadd.f32 %v6781, %v7035
        %v7056 = vadd.f32 %v6782, %v7038
        %v7057 = vlaneseq
        %v7058 = vshrl.u32 %v7057, 7
        %v7059 = vsub.s32 3, %v7058
        %v7060 = vrot.slane %v281, %v7059
        %v7061 = vadd.f32 %v7041, %v7060
        %v7062 = vadd.f32 %v7042, %v7060
        %v7063 = vadd.f32 %v7043, %v7060
        %v7064 = vadd.f32 %v7044, %v7060
        %v7065 = vadd.f32 %v7045, %v7060
        %v7066 = vadd.f32 %v7046, %v7060
        %v7067 = vadd.f32 %v7047, %v7060
        %v7068 = vadd.f32 %v7048, %v7060
        %v7069 = vadd.f32 %v7049, %v7060
        %v7070 = vadd.f32 %v7050, %v7060
        %v7071 = vadd.f32 %v7051, %v7060
        %v7072 = vadd.f32 %v7052, %v7060
        %v7073 = vadd.f32 %v7053, %v7060
        %v7074 = vadd.f32 %v7054, %v7060
        %v7075 = vadd.f32 %v7055, %v7060
        %v7076 = vadd.f32 %v7056, %v7060
        %v7077 = vmax.f32 %v7061, 0.0
        %v7078 = vmax.f32 %v7062, 0.0
        %v7079 = vmax.f32 %v7063, 0.0
        %v7080 = vmax.f32 %v7064, 0.0
        %v7081 = vmax.f32 %v7065, 0.0
        %v7082 = vmax.f32 %v7066, 0.0
        %v7083 = vmax.f32 %v7067, 0.0
        %v7084 = vmax.f32 %v7068, 0.0
        %v7085 = vmax.f32 %v7069, 0.0
        %v7086 = vmax.f32 %v7070, 0.0
        %v7087 = vmax.f32 %v7071, 0.0
        %v7088 = vmax.f32 %v7072, 0.0
        %v7089 = vmax.f32 %v7073, 0.0
        %v7090 = vmax.f32 %v7074, 0.0
        %v7091 = vmax.f32 %v7075, 0.0
        %v7092 = vmax.f32 %v7076, 0.0
        %v7093 = vpack.c.bf16 %v7078, %v7077
        %v7094 = vpack.c.bf16 %v7080, %v7079
        %v7095 = vpack.c.bf16 %v7082, %v7081
        %v7096 = vpack.c.bf16 %v7084, %v7083
        %v7097 = vpack.c.bf16 %v7086, %v7085
        %v7098 = vpack.c.bf16 %v7088, %v7087
        %v7099 = vpack.c.bf16 %v7090, %v7089
        %v7100 = vpack.c.bf16 %v7092, %v7091
        %v7101 = vld [vmem:[%s3] sm:$0xf]
        %v7102 = vld [vmem:[%s3 + $0x4] sm:$0xf]
        %v7103 = vld [vmem:[%s3 + $0x8] sm:$0xf]
        %v7104 = vld [vmem:[%s3 + $0xc] sm:$0xf]
        %v7105 = vld [vmem:[%s3 + $0x10] sm:$0xf]
        %v7106 = vld [vmem:[%s3 + $0x14] sm:$0xf]
        %v7107 = vld [vmem:[%s3 + $0x18] sm:$0xf]
        %v7108 = vld [vmem:[%s3 + $0x1c] sm:$0xf]
        %v7109 = vld [vmem:[%s3 + $0x20] sm:$0xf]
        %v7110 = vld [vmem:[%s3 + $0x24] sm:$0xf]
        %v7111 = vld [vmem:[%s3 + $0x28] sm:$0xf]
        %v7112 = vld [vmem:[%s3 + $0x2c] sm:$0xf]
        %v7113 = vld [vmem:[%s3 + $0x30] sm:$0xf]
        %v7114 = vld [vmem:[%s3 + $0x34] sm:$0xf]
        %v7115 = vld [vmem:[%s3 + $0x38] sm:$0xf]
        %v7116 = vld [vmem:[%s3 + $0x3c] sm:$0xf]
        %v7117 = vld [vmem:[%s3 + $0x40] sm:$0xf]
        %v7118 = vld [vmem:[%s3 + $0x44] sm:$0xf]
        %v7119 = vld [vmem:[%s3 + $0x48] sm:$0xf]
        %v7120 = vld [vmem:[%s3 + $0x4c] sm:$0xf]
        %v7121 = vld [vmem:[%s3 + $0x50] sm:$0xf]
        %v7122 = vld [vmem:[%s3 + $0x54] sm:$0xf]
        %v7123 = vld [vmem:[%s3 + $0x58] sm:$0xf]
        %v7124 = vld [vmem:[%s3 + $0x5c] sm:$0xf]
        %v7125 = vld [vmem:[%s3 + $0x60] sm:$0xf]
        %v7126 = vld [vmem:[%s3 + $0x64] sm:$0xf]
        %v7127 = vld [vmem:[%s3 + $0x68] sm:$0xf]
        %v7128 = vld [vmem:[%s3 + $0x6c] sm:$0xf]
        %v7129 = vld [vmem:[%s3 + $0x70] sm:$0xf]
        %v7130 = vld [vmem:[%s3 + $0x74] sm:$0xf]
        %v7131 = vld [vmem:[%s3 + $0x78] sm:$0xf]
        %v7132 = vld [vmem:[%s3 + $0x7c] sm:$0xf]
        %v7133 = vld [vmem:[%s3 + $0x80] sm:$0xf]
        %v7134 = vld [vmem:[%s3 + $0x84] sm:$0xf]
        %v7135 = vld [vmem:[%s3 + $0x88] sm:$0xf]
        %v7136 = vld [vmem:[%s3 + $0x8c] sm:$0xf]
        %v7137 = vld [vmem:[%s3 + $0x90] sm:$0xf]
        %v7138 = vld [vmem:[%s3 + $0x94] sm:$0xf]
        %v7139 = vld [vmem:[%s3 + $0x98] sm:$0xf]
        %v7140 = vld [vmem:[%s3 + $0x9c] sm:$0xf]
        %v7141 = vld [vmem:[%s3 + $0xa0] sm:$0xf]
        %v7142 = vld [vmem:[%s3 + $0xa4] sm:$0xf]
        %v7143 = vld [vmem:[%s3 + $0xa8] sm:$0xf]
        %v7144 = vld [vmem:[%s3 + $0xac] sm:$0xf]
        %v7145 = vld [vmem:[%s3 + $0xb0] sm:$0xf]
        %v7146 = vld [vmem:[%s3 + $0xb4] sm:$0xf]
        %v7147 = vld [vmem:[%s3 + $0xb8] sm:$0xf]
        %v7148 = vld [vmem:[%s3 + $0xbc] sm:$0xf]
        %v7149 = vld [vmem:[%s3 + $0xc0] sm:$0xf]
        %v7150 = vld [vmem:[%s3 + $0xc4] sm:$0xf]
        %v7151 = vld [vmem:[%s3 + $0xc8] sm:$0xf]
        %v7152 = vld [vmem:[%s3 + $0xcc] sm:$0xf]
        %v7153 = vld [vmem:[%s3 + $0xd0] sm:$0xf]
        %v7154 = vld [vmem:[%s3 + $0xd4] sm:$0xf]
        %v7155 = vld [vmem:[%s3 + $0xd8] sm:$0xf]
        %v7156 = vld [vmem:[%s3 + $0xdc] sm:$0xf]
        %v7157 = vld [vmem:[%s3 + $0xe0] sm:$0xf]
        %v7158 = vld [vmem:[%s3 + $0xe4] sm:$0xf]
        %v7159 = vld [vmem:[%s3 + $0xe8] sm:$0xf]
        %v7160 = vld [vmem:[%s3 + $0xec] sm:$0xf]
        %v7161 = vld [vmem:[%s3 + $0xf0] sm:$0xf]
        %v7162 = vld [vmem:[%s3 + $0xf4] sm:$0xf]
        %v7163 = vld [vmem:[%s3 + $0xf8] sm:$0xf]
        %v7164 = vld [vmem:[%s3 + $0xfc] sm:$0xf]
        %v7165 = vld [vmem:[%s277] sm:$0x1]
        %v7167 = vlaneseq
        %v7168 = vshrl.u32 %v7167, 7
        %v7169 = vsub.s32 0, %v7168
        %v7170 = vrot.slane %v7165, %v7169
        %v7236 = vunpack.c.l.b16 %v7101
        %v7237 = vunpack.c.l.b16 %v7102
        %v7238 = vunpack.c.l.b16 %v7103
        %v7239 = vunpack.c.l.b16 %v7104
        %v7240 = vunpack.c.l.b16 %v7105
        %v7241 = vunpack.c.l.b16 %v7106
        %v7242 = vunpack.c.l.b16 %v7107
        %v7243 = vunpack.c.l.b16 %v7108
        %v7244 = vunpack.c.l.b16 %v7109
        %v7245 = vunpack.c.l.b16 %v7110
        %v7246 = vunpack.c.l.b16 %v7111
        %v7247 = vunpack.c.l.b16 %v7112
        %v7248 = vunpack.c.l.b16 %v7113
        %v7249 = vunpack.c.l.b16 %v7114
        %v7250 = vunpack.c.l.b16 %v7115
        %v7251 = vunpack.c.l.b16 %v7116
        %v7252 = vunpack.c.l.b16 %v7117
        %v7253 = vunpack.c.l.b16 %v7118
        %v7254 = vunpack.c.l.b16 %v7119
        %v7255 = vunpack.c.l.b16 %v7120
        %v7256 = vunpack.c.l.b16 %v7121
        %v7257 = vunpack.c.l.b16 %v7122
        %v7258 = vunpack.c.l.b16 %v7123
        %v7259 = vunpack.c.l.b16 %v7124
        %v7260 = vunpack.c.l.b16 %v7125
        %v7261 = vunpack.c.l.b16 %v7126
        %v7262 = vunpack.c.l.b16 %v7127
        %v7263 = vunpack.c.l.b16 %v7128
        %v7264 = vunpack.c.l.b16 %v7129
        %v7265 = vunpack.c.l.b16 %v7130
        %v7266 = vunpack.c.l.b16 %v7131
        %v7267 = vunpack.c.l.b16 %v7132
        %v7268 = vunpack.c.l.b16 %v7133
        %v7269 = vunpack.c.l.b16 %v7134
        %v7270 = vunpack.c.l.b16 %v7135
        %v7271 = vunpack.c.l.b16 %v7136
        %v7272 = vunpack.c.l.b16 %v7137
        %v7273 = vunpack.c.l.b16 %v7138
        %v7274 = vunpack.c.l.b16 %v7139
        %v7275 = vunpack.c.l.b16 %v7140
        %v7276 = vunpack.c.l.b16 %v7141
        %v7277 = vunpack.c.l.b16 %v7142
        %v7278 = vunpack.c.l.b16 %v7143
        %v7279 = vunpack.c.l.b16 %v7144
        %v7280 = vunpack.c.l.b16 %v7145
        %v7281 = vunpack.c.l.b16 %v7146
        %v7282 = vunpack.c.l.b16 %v7147
        %v7283 = vunpack.c.l.b16 %v7148
        %v7284 = vunpack.c.l.b16 %v7149
        %v7285 = vunpack.c.l.b16 %v7150
        %v7286 = vunpack.c.l.b16 %v7151
        %v7287 = vunpack.c.l.b16 %v7152
        %v7288 = vunpack.c.l.b16 %v7153
        %v7289 = vunpack.c.l.b16 %v7154
        %v7290 = vunpack.c.l.b16 %v7155
        %v7291 = vunpack.c.l.b16 %v7156
        %v7292 = vunpack.c.l.b16 %v7157
        %v7293 = vunpack.c.l.b16 %v7158
        %v7294 = vunpack.c.l.b16 %v7159
        %v7295 = vunpack.c.l.b16 %v7160
        %v7296 = vunpack.c.l.b16 %v7161
        %v7297 = vunpack.c.l.b16 %v7162
        %v7298 = vunpack.c.l.b16 %v7163
        %v7299 = vunpack.c.l.b16 %v7164
        %v7300 = vpack.c.b16 %v7237, %v7236
        %v7301 = vpack.c.b16 %v7239, %v7238
        %v7302 = vpack.c.b16 %v7241, %v7240
        %v7303 = vpack.c.b16 %v7243, %v7242
        %v7304 = vpack.c.b16 %v7245, %v7244
        %v7305 = vpack.c.b16 %v7247, %v7246
        %v7306 = vpack.c.b16 %v7249, %v7248
        %v7307 = vpack.c.b16 %v7251, %v7250
        %v7308 = vpack.c.b16 %v7253, %v7252
        %v7309 = vpack.c.b16 %v7255, %v7254
        %v7310 = vpack.c.b16 %v7257, %v7256
        %v7311 = vpack.c.b16 %v7259, %v7258
        %v7312 = vpack.c.b16 %v7261, %v7260
        %v7313 = vpack.c.b16 %v7263, %v7262
        %v7314 = vpack.c.b16 %v7265, %v7264
        %v7315 = vpack.c.b16 %v7267, %v7266
        %v7316 = vpack.c.b16 %v7269, %v7268
        %v7317 = vpack.c.b16 %v7271, %v7270
        %v7318 = vpack.c.b16 %v7273, %v7272
        %v7319 = vpack.c.b16 %v7275, %v7274
        %v7320 = vpack.c.b16 %v7277, %v7276
        %v7321 = vpack.c.b16 %v7279, %v7278
        %v7322 = vpack.c.b16 %v7281, %v7280
        %v7323 = vpack.c.b16 %v7283, %v7282
        %v7324 = vpack.c.b16 %v7285, %v7284
        %v7325 = vpack.c.b16 %v7287, %v7286
        %v7326 = vpack.c.b16 %v7289, %v7288
        %v7327 = vpack.c.b16 %v7291, %v7290
        %v7328 = vpack.c.b16 %v7293, %v7292
        %v7329 = vpack.c.b16 %v7295, %v7294
        %v7330 = vpack.c.b16 %v7297, %v7296
        %v7331 = vpack.c.b16 %v7299, %v7298
        %7364 = vmatprep.subr.bf16.mxu0 0
        %7365 = vmatpush1.bf16.msra.mxu0 %v7300
        %7366 = vmatprep.subr.bf16.mxu0 0
        %7367 = vmatpush1.bf16.msra.mxu0 %v7301
        %7368 = vmatprep.subr.bf16.mxu0 0
        %7369 = vmatpush1.bf16.msra.mxu0 %v7302
        %7370 = vmatprep.subr.bf16.mxu0 0
        %7371 = vmatpush1.bf16.msra.mxu0 %v7303
        %7372 = vmatprep.subr.bf16.mxu0 0
        %7373 = vmatpush1.bf16.msra.mxu0 %v7304
        %7374 = vmatprep.subr.bf16.mxu0 0
        %7375 = vmatpush1.bf16.msra.mxu0 %v7305
        %7376 = vmatprep.subr.bf16.mxu0 0
        %7377 = vmatpush1.bf16.msra.mxu0 %v7306
        %7378 = vmatprep.subr.bf16.mxu0 0
        %7379 = vmatpush1.bf16.msra.mxu0 %v7307
        %7380 = vmatprep.subr.bf16.mxu0 0
        %7381 = vmatpush1.bf16.msra.mxu0 %v7308
        %7382 = vmatprep.subr.bf16.mxu0 0
        %7383 = vmatpush1.bf16.msra.mxu0 %v7309
        %7384 = vmatprep.subr.bf16.mxu0 0
        %7385 = vmatpush1.bf16.msra.mxu0 %v7310
        %7386 = vmatprep.subr.bf16.mxu0 0
        %7387 = vmatpush1.bf16.msra.mxu0 %v7311
        %7388 = vmatprep.subr.bf16.mxu0 0
        %7389 = vmatpush1.bf16.msra.mxu0 %v7312
        %7390 = vmatprep.subr.bf16.mxu0 0
        %7391 = vmatpush1.bf16.msra.mxu0 %v7313
        %7392 = vmatprep.subr.bf16.mxu0 0
        %7393 = vmatpush1.bf16.msra.mxu0 %v7314
        %7394 = vmatprep.subr.bf16.mxu0 0
        %7395 = vmatpush1.bf16.msra.mxu0 %v7315
        %7396 = vmatprep.mubr.bf16.mxu0 %v2639
        %7397 = vmatmul.mubr.bf16.gmra.mrb[0].mxu0 %v567
        %v7398 = vpop.f32.mrb[0].mxu0
        %v7399 = vadd.f32 %v7170, %v7398
        %v7400 = vpop.f32.mrb[0].mxu0
        %v7401 = vpop.f32.mrb[0].mxu0
        %v7402 = vadd.f32 %v7170, %v7401
        %v7403 = vpop.f32.mrb[0].mxu0
        %7404 = vmatprep.mubr.bf16.mxu0 %v2640
        %7405 = vmatmul.mubr.bf16.gmra.mrb[0].mxu0 %v568
        %v7406 = vpop.f32.mrb[0].mxu0
        %v7407 = vadd.f32 %v7170, %v7406
        %v7408 = vpop.f32.mrb[0].mxu0
        %v7409 = vpop.f32.mrb[0].mxu0
        %v7410 = vadd.f32 %v7170, %v7409
        %v7411 = vpop.f32.mrb[0].mxu0
        %7412 = vmatprep.mubr.bf16.mxu0 %v2641
        %7413 = vmatmul.mubr.bf16.gmra.mrb[0].mxu0 %v569
        %v7414 = vpop.f32.mrb[0].mxu0
        %v7415 = vadd.f32 %v7170, %v7414
        %v7416 = vpop.f32.mrb[0].mxu0
        %v7417 = vpop.f32.mrb[0].mxu0
        %v7418 = vadd.f32 %v7170, %v7417
        %v7419 = vpop.f32.mrb[0].mxu0
        %7420 = vmatprep.mubr.bf16.mxu0 %v2642
        %7421 = vmatmul.mubr.bf16.gmra.mrb[0].mxu0 %v570
        %v7422 = vpop.f32.mrb[0].mxu0
        %v7423 = vadd.f32 %v7170, %v7422
        %v7424 = vpop.f32.mrb[0].mxu0
        %v7425 = vpop.f32.mrb[0].mxu0
        %v7426 = vadd.f32 %v7170, %v7425
        %v7427 = vpop.f32.mrb[0].mxu0
        %7428 = vmatprep.mubr.bf16.mxu0 %v2643
        %7429 = vmatmul.mubr.bf16.gmra.mrb[0].mxu0 %v571
        %v7430 = vpop.f32.mrb[0].mxu0
        %v7431 = vadd.f32 %v7170, %v7430
        %v7432 = vpop.f32.mrb[0].mxu0
        %v7433 = vpop.f32.mrb[0].mxu0
        %v7434 = vadd.f32 %v7170, %v7433
        %v7435 = vpop.f32.mrb[0].mxu0
        %7436 = vmatprep.mubr.bf16.mxu0 %v2644
        %7437 = vmatmul.mubr.bf16.gmra.mrb[0].mxu0 %v572
        %v7438 = vpop.f32.mrb[0].mxu0
        %v7439 = vadd.f32 %v7170, %v7438
        %v7440 = vpop.f32.mrb[0].mxu0
        %v7441 = vpop.f32.mrb[0].mxu0
        %v7442 = vadd.f32 %v7170, %v7441
        %v7443 = vpop.f32.mrb[0].mxu0
        %7444 = vmatprep.mubr.bf16.mxu0 %v2645
        %7445 = vmatmul.mubr.bf16.gmra.mrb[0].mxu0 %v573
        %v7446 = vpop.f32.mrb[0].mxu0
        %v7447 = vadd.f32 %v7170, %v7446
        %v7448 = vpop.f32.mrb[0].mxu0
        %v7449 = vpop.f32.mrb[0].mxu0
        %v7450 = vadd.f32 %v7170, %v7449
        %v7451 = vpop.f32.mrb[0].mxu0
        %7452 = vmatprep.mubr.bf16.mxu0 %v2646
        %7453 = vmatmul.mubr.bf16.gmra.mrb[0].mxu0 %v574
        %v7454 = vpop.f32.mrb[0].mxu0
        %v7455 = vadd.f32 %v7170, %v7454
        %v7456 = vpop.f32.mrb[0].mxu0
        %v7457 = vpop.f32.mrb[0].mxu0
        %v7458 = vadd.f32 %v7170, %v7457
        %v7459 = vpop.f32.mrb[0].mxu0
        %7460 = vdwg.mxu0
        %7461 = vmatprep.subr.bf16.mxu0 0
        %7462 = vmatpush1.bf16.msra.mxu0 %v7316
        %7463 = vmatprep.subr.bf16.mxu0 0
        %7464 = vmatpush1.bf16.msra.mxu0 %v7317
        %7465 = vmatprep.subr.bf16.mxu0 0
        %7466 = vmatpush1.bf16.msra.mxu0 %v7318
        %7467 = vmatprep.subr.bf16.mxu0 0
        %7468 = vmatpush1.bf16.msra.mxu0 %v7319
        %7469 = vmatprep.subr.bf16.mxu0 0
        %7470 = vmatpush1.bf16.msra.mxu0 %v7320
        %7471 = vmatprep.subr.bf16.mxu0 0
        %7472 = vmatpush1.bf16.msra.mxu0 %v7321
        %7473 = vmatprep.subr.bf16.mxu0 0
        %7474 = vmatpush1.bf16.msra.mxu0 %v7322
        %7475 = vmatprep.subr.bf16.mxu0 0
        %7476 = vmatpush1.bf16.msra.mxu0 %v7323
        %7477 = vmatprep.subr.bf16.mxu0 0
        %7478 = vmatpush1.bf16.msra.mxu0 %v7324
        %7479 = vmatprep.subr.bf16.mxu0 0
        %7480 = vmatpush1.bf16.msra.mxu0 %v7325
        %7481 = vmatprep.subr.bf16.mxu0 0
        %7482 = vmatpush1.bf16.msra.mxu0 %v7326
        %7483 = vmatprep.subr.bf16.mxu0 0
        %7484 = vmatpush1.bf16.msra.mxu0 %v7327
        %7485 = vmatprep.subr.bf16.mxu0 0
        %7486 = vmatpush1.bf16.msra.mxu0 %v7328
        %7487 = vmatprep.subr.bf16.mxu0 0
        %7488 = vmatpush1.bf16.msra.mxu0 %v7329
        %7489 = vmatprep.subr.bf16.mxu0 0
        %7490 = vmatpush1.bf16.msra.mxu0 %v7330
        %7491 = vmatprep.subr.bf16.mxu0 0
        %7492 = vmatpush1.bf16.msra.mxu0 %v7331
        %7493 = vmatprep.mubr.bf16.mxu0 %v7093
        %7494 = vmatmul.mubr.bf16.gmra.mrb[0].mxu0 %v4976
        %v7495 = vpop.f32.mrb[0].mxu0
        %v7496 = vadd.f32 %v7399, %v7495
        %v7497 = vpop.f32.mrb[0].mxu0
        %v7498 = vpop.f32.mrb[0].mxu0
        %v7499 = vadd.f32 %v7402, %v7498
        %v7500 = vpop.f32.mrb[0].mxu0
        %7501 = vmatprep.mubr.bf16.mxu0 %v7094
        %7502 = vmatmul.mubr.bf16.gmra.mrb[0].mxu0 %v4977
        %v7503 = vpop.f32.mrb[0].mxu0
        %v7504 = vadd.f32 %v7407, %v7503
        %v7505 = vpop.f32.mrb[0].mxu0
        %v7506 = vpop.f32.mrb[0].mxu0
        %v7507 = vadd.f32 %v7410, %v7506
        %v7508 = vpop.f32.mrb[0].mxu0
        %7509 = vmatprep.mubr.bf16.mxu0 %v7095
        %7510 = vmatmul.mubr.bf16.gmra.mrb[0].mxu0 %v4978
        %v7511 = vpop.f32.mrb[0].mxu0
        %v7512 = vadd.f32 %v7415, %v7511
        %v7513 = vpop.f32.mrb[0].mxu0
        %v7514 = vpop.f32.mrb[0].mxu0
        %v7515 = vadd.f32 %v7418, %v7514
        %v7516 = vpop.f32.mrb[0].mxu0
        %7517 = vmatprep.mubr.bf16.mxu0 %v7096
        %7518 = vmatmul.mubr.bf16.gmra.mrb[0].mxu0 %v4979
        %v7519 = vpop.f32.mrb[0].mxu0
        %v7520 = vadd.f32 %v7423, %v7519
        %v7521 = vpop.f32.mrb[0].mxu0
        %v7522 = vpop.f32.mrb[0].mxu0
        %v7523 = vadd.f32 %v7426, %v7522
        %v7524 = vpop.f32.mrb[0].mxu0
        %7525 = vmatprep.mubr.bf16.mxu0 %v7097
        %7526 = vmatmul.mubr.bf16.gmra.mrb[0].mxu0 %v4980
        %v7527 = vpop.f32.mrb[0].mxu0
        %v7528 = vadd.f32 %v7431, %v7527
        %v7529 = vpop.f32.mrb[0].mxu0
        %v7530 = vpop.f32.mrb[0].mxu0
        %v7531 = vadd.f32 %v7434, %v7530
        %v7532 = vpop.f32.mrb[0].mxu0
        %7533 = vmatprep.mubr.bf16.mxu0 %v7098
        %7534 = vmatmul.mubr.bf16.gmra.mrb[0].mxu0 %v4981
        %v7535 = vpop.f32.mrb[0].mxu0
        %v7536 = vadd.f32 %v7439, %v7535
        %v7537 = vpop.f32.mrb[0].mxu0
        %v7538 = vpop.f32.mrb[0].mxu0
        %v7539 = vadd.f32 %v7442, %v7538
        %v7540 = vpop.f32.mrb[0].mxu0
        %7541 = vmatprep.mubr.bf16.mxu0 %v7099
        %7542 = vmatmul.mubr.bf16.gmra.mrb[0].mxu0 %v4982
        %v7543 = vpop.f32.mrb[0].mxu0
        %v7544 = vadd.f32 %v7447, %v7543
        %v7545 = vpop.f32.mrb[0].mxu0
        %v7546 = vpop.f32.mrb[0].mxu0
        %v7547 = vadd.f32 %v7450, %v7546
        %v7548 = vpop.f32.mrb[0].mxu0
        %7549 = vmatprep.mubr.bf16.mxu0 %v7100
        %7550 = vmatmul.mubr.bf16.gmra.mrb[0].mxu0 %v4983
        %v7551 = vpop.f32.mrb[0].mxu0
        %v7552 = vadd.f32 %v7455, %v7551
        %v7553 = vpop.f32.mrb[0].mxu0
        %v7554 = vpop.f32.mrb[0].mxu0
        %v7555 = vadd.f32 %v7458, %v7554
        %v7556 = vpop.f32.mrb[0].mxu0
        %7557 = vdwg.mxu0
        %7558 = vst [vmem:[%s269] sm:$0xff] %v7496
        %7559 = vst [vmem:[%s269 + $0x8] sm:$0xff] %v7499
        %7560 = vst [vmem:[%s269 + $0x10] sm:$0xff] %v7504
        %7561 = vst [vmem:[%s269 + $0x18] sm:$0xff] %v7507
        %7562 = vst [vmem:[%s269 + $0x20] sm:$0xff] %v7512
        %7563 = vst [vmem:[%s269 + $0x28] sm:$0xff] %v7515
        %7564 = vst [vmem:[%s269 + $0x30] sm:$0xff] %v7520
        %7565 = vst [vmem:[%s269 + $0x38] sm:$0xff] %v7523
        %7566 = vst [vmem:[%s269 + $0x40] sm:$0xff] %v7528
        %7567 = vst [vmem:[%s269 + $0x48] sm:$0xff] %v7531
        %7568 = vst [vmem:[%s269 + $0x50] sm:$0xff] %v7536
        %7569 = vst [vmem:[%s269 + $0x58] sm:$0xff] %v7539
        %7570 = vst [vmem:[%s269 + $0x60] sm:$0xff] %v7544
        %7571 = vst [vmem:[%s269 + $0x68] sm:$0xff] %v7547
        %7572 = vst [vmem:[%s269 + $0x70] sm:$0xff] %v7552
        %7573 = vst [vmem:[%s269 + $0x78] sm:$0xff] %v7555
        %s7574 = sand.u32 %s178, 1
        %s7575 = scalar_lea.sflag [#allocation3], %s7574
        %s7576 = sand.u32 %s178, 1
        %s7577 = smul.addr %s7576, 128
        %s7578 = scalar_lea.vmem [#allocation2], %s7577
        // Predicated region
        $region45: #{tpu_custom_call.1} parent=43 // pred_check
          %p7579 = pneg %p188
        $region46: #{tpu_custom_call.1} parent=43 // pred_check_branch
          %7581 = sbr.rel (%p7579) target = $region48
        $region47: #{tpu_custom_call.1} parent=43 // pred_region
          %s7582 = smul.u32 16, %s25
          %s7584 = ssub.s32 2048, 2048
          %7585 = vsyncadd %s7575, %s7584
          %s7586 = smul.addr %s24, 32
          %s7587 = sadd.s32 %s7582, %s7586
          %s7588 = smul.addr %s7587, 128
          %s7589 = scalar_lea.hbm %s6, %s7588
          %s7590 = sshll.u32 %s7578, 4
          %s7591 = int_to_ptr.vmem [resolvable:$true] %s7590
          %7596 = dma.vmem_to_hbm [thread:$0]  %s7591, 2048, %s7589, %s7575, 128, 128, 8
        $region48: #{tpu_custom_call.1} parent=43 // pred_fallthru
          _
      $region44: #{tpu_custom_call.1} parent=5 // pred_fallthru
        _
      %p7597 = scmp.le.s32.totalorder 2, %s15
      // Predicated region
      $region49: #{tpu_custom_call.1} parent=5 // pred_check
        %p7598 = pneg %p7597
      $region50: #{tpu_custom_call.1} parent=5 // pred_check_branch
        %7600 = sbr.rel (%p7598) target = $region52
      $region51: #{tpu_custom_call.1} parent=5 // pred_region
        %s7601 = ssub.s32 %s15, 2
        // Predicated region
        $region53: #{tpu_custom_call.1} parent=51 // pred_check
          %p7602 = pneg %p194
        $region54: #{tpu_custom_call.1} parent=51 // pred_check_branch
          %7604 = sbr.rel (%p7602) target = $region56
        $region55: #{tpu_custom_call.1} parent=51 // pred_region
          %s7605 = sand.u32 %s179, 1
          %s7606 = scalar_lea.sflag [#allocation3], %s7605
          %s7607 = sand.u32 %s179, 1
          %s7608 = smul.addr %s7607, 128
          %s7609 = scalar_lea.vmem [#allocation2], %s7608
          %7610 = dma.done %s7606, 2048
        $region56: #{tpu_custom_call.1} parent=51 // pred_fallthru
          _
      $region52: #{tpu_custom_call.1} parent=5 // pred_fallthru
        _
    $region6: #{tpu_custom_call.1} parent=1 // loop_footer
      %s19 = sadd.s32 1, %s15
    $region7: #{tpu_custom_call.1} parent=1 // loop_footer_branch
      %14 = sbr.rel target = $region3
    $region8: #{tpu_custom_call.1} parent=1 // loop_exit
      _
    %7611 = vsyncpa [#allocation3], 1
    %s7612 = scalar_lea.sflag [#allocation3], 1
    %7613 = vsyncpa %s7612, 1

</llo_original>
